<compile_context>
chip_gen: v6e
topology: v6e:2x2x1
jax: 0.10.0
libtpu: 0.0.40
codegen_flags: <defaults>
</compile_context>

<pallas_src>
import jax
import jax.numpy as jnp
from jax import lax
from jax.experimental import pallas as pl
from jax.experimental.pallas import tpu as pltpu


# ----------------------------------------------------------------------------
# Pallas kernel: fused 3x3 conv (shifted-dot accumulation) + bias [+res] [ReLU]
# ----------------------------------------------------------------------------
def _make_conv3x3_kernel(relu: bool, has_residual: bool):
    def body(x_ref, w_ref, b_ref, *rest):
        # x_ref: (1, Ho+2, Wo+2, Cin)  halo-padded activation tile (f32)
        # w_ref: (9, Cin, Cout)        bf16, BN scale already folded in
        # b_ref: (1, Cout)             f32 folded BN bias
        # rest:  [res_ref (1, Ho*Wo, Cout) f32], o_ref (1, Ho*Wo, Cout)
        o_ref = rest[-1]
        _, Hp, Wp, Cin = x_ref.shape
        Ho, Wo = Hp - 2, Wp - 2
        Cout = o_ref.shape[-1]

        acc = jnp.zeros((Ho * Wo, Cout), jnp.float32)
        for kh in range(3):
            for kw in range(3):
                # shifted window, flattened to (Ho*Wo, Cin); bf16 MXU operands,
                # f32 accumulation.
                patch = x_ref[0, kh:kh + Ho, kw:kw + Wo, :].reshape(Ho * Wo, Cin)
                acc = acc + jnp.dot(patch.astype(jnp.bfloat16),
                                    w_ref[kh * 3 + kw],
                                    preferred_element_type=jnp.float32)
        y = acc + b_ref[...]
        if has_residual:
            y = y + rest[0][0]
        if relu:
            y = jnp.maximum(y, 0.0)
        o_ref[0] = y.astype(o_ref.dtype)

    return body


def conv3x3_bn_act(x, w_hwio, scale, bias, *, relu, residual=None):
    """Fused conv3x3(pad=1) + folded-BN affine [+ residual] [+ ReLU].

    x: (N, H, W, Cin) f32;  w_hwio: (3, 3, Cin, Cout);  scale/bias: (Cout,).
    """
    N, H, W, Cin = x.shape
    Cout = w_hwio.shape[3]

    xp = jnp.pad(x, ((0, 0), (1, 1), (1, 1), (0, 0)))
    # Fold BN scale into the weights once (trace-time), cast to bf16 for MXU.
    w9 = (w_hwio * scale[None, None, None, :]).reshape(9, Cin, Cout)
    w9 = w9.astype(jnp.bfloat16)
    b2 = bias.reshape(1, Cout).astype(jnp.float32)

    has_res = residual is not None
    args = [xp, w9, b2]
    in_specs = [
        pl.BlockSpec((1, H + 2, W + 2, Cin), lambda n: (n, 0, 0, 0)),
        pl.BlockSpec((9, Cin, Cout), lambda n: (0, 0, 0)),
        pl.BlockSpec((1, Cout), lambda n: (0, 0)),
    ]
    if has_res:
        args.append(residual.reshape(N, H * W, Cout))
        in_specs.append(pl.BlockSpec((1, H * W, Cout), lambda n: (n, 0, 0)))

    y = pl.pallas_call(
        _make_conv3x3_kernel(relu=relu, has_residual=has_res),
        out_shape=jax.ShapeDtypeStruct((N, H * W, Cout), jnp.float32),
        grid=(N,),
        in_specs=in_specs,
        out_specs=pl.BlockSpec((1, H * W, Cout), lambda n: (n, 0, 0)),
        compiler_params=pltpu.CompilerParams(
            dimension_semantics=("parallel",)),
    )(*args)
    return y.reshape(N, H, W, Cout)


# ----------------------------------------------------------------------------
# Pallas kernel: ConvTranspose2d(k=4, s=2, p=1) via sub-pixel phase decomposition
# ----------------------------------------------------------------------------
def _convT_phase_kernel(x_ref, w_ref, b_ref, o_ref):
    # x_ref: (1, H+2, W+2, Cin) f32 (pad=1 on each side)
    # w_ref: (4, 4, Cin, Cout) bf16 -- [phase=ph_h*2+ph_w, tap=th*2+tw, Cin, Cout]
    # b_ref: (1, Cout) f32
    # o_ref: (1, 4, H*W, Cout) f32 -- one plane per output phase
    _, Hp, Wp, Cin = x_ref.shape
    Hq, Wq = Hp - 2, Wp - 2
    Cout = o_ref.shape[-1]

    for ph_h in range(2):
        for ph_w in range(2):
            p = ph_h * 2 + ph_w
            acc = jnp.zeros((Hq * Wq, Cout), jnp.float32)
            for th in range(2):
                for tw in range(2):
                    t = th * 2 + tw
                    patch = x_ref[0,
                                  ph_h + th: ph_h + th + Hq,
                                  ph_w + tw: ph_w + tw + Wq, :]
                    patch = patch.reshape(Hq * Wq, Cin)
                    acc = acc + jnp.dot(patch.astype(jnp.bfloat16),
                                        w_ref[p, t],
                                        preferred_element_type=jnp.float32)
            o_ref[0, p] = (acc + b_ref[...]).astype(o_ref.dtype)


def conv_transpose2d(x, w_iohw, bias):
    """PyTorch ConvTranspose2d(k=4, s=2, p=1) semantics; x NHWC,
    w_iohw: (Cin, Cout, 4, 4)."""
    N, H, W, Cin = x.shape
    Cout = w_iohw.shape[1]

    xp = jnp.pad(x, ((0, 0), (1, 1), (1, 1), (0, 0)))
    w_hw = jnp.transpose(w_iohw, (2, 3, 0, 1))            # (4, 4, Cin, Cout)

    # Phase decomposition: out[2q+ph_h, 2r+ph_w] uses kernel rows taps[ph_h]
    # and cols taps[ph_w] at input offsets (q+ph_h+th, r+ph_w+tw) in xp.
    taps = ((3, 1), (2, 0))                                # taps[phase][tap]
    w_sub = jnp.stack([
        jnp.stack([w_hw[taps[ph_h][th], taps[ph_w][tw]]    # (Cin, Cout)
                   for th in range(2) for tw in range(2)], axis=0)
        for ph_h in range(2) for ph_w in range(2)], axis=0)  # (4, 4, Cin, Cout)
    w_sub = w_sub.astype(jnp.bfloat16)
    b2 = bias.reshape(1, Cout).astype(jnp.float32)

    yp = pl.pallas_call(
        _convT_phase_kernel,
        out_shape=jax.ShapeDtypeStruct((N, 4, H * W, Cout), jnp.float32),
        grid=(N,),
        in_specs=[
            pl.BlockSpec((1, H + 2, W + 2, Cin), lambda n: (n, 0, 0, 0)),
            pl.BlockSpec((4, 4, Cin, Cout), lambda n: (0, 0, 0, 0)),
            pl.BlockSpec((1, Cout), lambda n: (0, 0)),
        ],
        out_specs=pl.BlockSpec((1, 4, H * W, Cout), lambda n: (n, 0, 0, 0)),
        compiler_params=pltpu.CompilerParams(
            dimension_semantics=("parallel",)),
    )(xp, w_sub, b2)

    # Pixel-shuffle the 4 phase planes: (N,4,H*W,C) -> (N,2H,2W,C).
    y = yp.reshape(N, 2, 2, H, W, Cout).transpose(0, 3, 1, 4, 2, 5)
    return y.reshape(N, 2 * H, 2 * W, Cout)


# ----------------------------------------------------------------------------
# DecoderLayer forward (ResBlocks + upsampling)
# ----------------------------------------------------------------------------
_EPS = 1e-5


def _bn_fold(gamma, beta, mean, var, conv_bias):
    s = gamma / jnp.sqrt(var + _EPS)
    b = beta + s * (conv_bias - mean)
    return s, b


def resblock_forward(x, p):
    s1, b1 = _bn_fold(p["g1"], p["be1"], p["m1"], p["v1"], p["b1"])
    h = conv3x3_bn_act(x, p["w1"], s1, b1, relu=True)
    s2, b2 = _bn_fold(p["g2"], p["be2"], p["m2"], p["v2"], p["b2"])
    # relu(x + BN2(conv2(h)))
    return conv3x3_bn_act(h, p["w2"], s2, b2, relu=True, residual=x)


def decoder_forward(x, params):
    h = x
    for rp in params["resblocks"]:
        h = resblock_forward(h, rp)
    return conv_transpose2d(h, params["up_w"], params["up_b"])


# ----------------------------------------------------------------------------
# Pure-JAX reference (lax convolutions, f32), for verification
# ----------------------------------------------------------------------------
def _conv_ref(x, w_hwio, pad):
    return lax.conv_general_dilated(
        x, w_hwio, (1, 1), ((pad, pad), (pad, pad)),
        dimension_numbers=("NHWC", "HWIO", "NHWC"))


def resblock_ref(x, p):
    s1, b1 = _bn_fold(p["g1"], p["be1"], p["m1"], p["v1"], p["b1"])
    h = jnp.maximum(_conv_ref(x, p["w1"], 1) * s1 + b1, 0.0)
    s2, b2 = _bn_fold(p["g2"], p["be2"], p["m2"], p["v2"], p["b2"])
    y = _conv_ref(h, p["w2"], 1) * s2 + b2
    return jnp.maximum(x + y, 0.0)


def decoder_ref(x, params):
    h = x
    for rp in params["resblocks"]:
        h = resblock_ref(h, rp)
    wf = params["up_w"][:, :, ::-1, ::-1].transpose(2, 3, 0, 1)
    y = lax.conv_general_dilated(
        h, wf, (1, 1), ((2, 2), (2, 2)), lhs_dilation=(2, 2),
        dimension_numbers=("NHWC", "HWIO", "NHWC"))
    return y + params["up_b"]


# ----------------------------------------------------------------------------
# Deterministic parameter init
# ----------------------------------------------------------------------------
def init_resblock_params(key, C):
    ks = jax.random.split(key, 12)
    f = jax.random.normal
    return dict(
        w1=0.1 * f(ks[0], (3, 3, C, C), jnp.float32),
        b1=0.1 * f(ks[1], (C,), jnp.float32),
        g1=1.0 + 0.1 * f(ks[2], (C,), jnp.float32),
        be1=0.1 * f(ks[3], (C,), jnp.float32),
        m1=0.1 * f(ks[4], (C,), jnp.float32),
        v1=1.0 + 0.1 * jax.random.uniform(ks[5], (C,), jnp.float32),
        w2=0.1 * f(ks[6], (3, 3, C, C), jnp.float32),
        b2=0.1 * f(ks[7], (C,), jnp.float32),
        g2=1.0 + 0.1 * f(ks[8], (C,), jnp.float32),
        be2=0.1 * f(ks[9], (C,), jnp.float32),
        m2=0.1 * f(ks[10], (C,), jnp.float32),
        v2=1.0 + 0.1 * jax.random.uniform(ks[11], (C,), jnp.float32),
    )


def init_decoder_params(key, n_resblocks, in_channels, out_channels):
    keys = jax.random.split(key, n_resblocks + 2)
    return {
        "resblocks": [init_resblock_params(keys[i], in_channels)
                      for i in range(n_resblocks)],
        # PyTorch ConvTranspose2d weight layout: (Cin, Cout, KH, KW)
        "up_w": 0.1 * jax.random.normal(keys[-2], (in_channels, out_channels, 4, 4),
                                        jnp.float32),
        "up_b": 0.1 * jax.random.normal(keys[-1], (out_channels,), jnp.float32),
    }


# ----------------------------------------------------------------------------
if __name__ == "__main__":
    N, C_IN, C_OUT, H, W = 2, 4, 8, 16, 16
    N_RESBLOCKS = 2

    key = jax.random.PRNGKey(0)
    k_x, k_p = jax.random.split(key)
    # NCHW input (PyTorch convention) -> NHWC for the kernels
    x_nchw = jax.random.normal(k_x, (N, C_IN, H, W), jnp.float32)
    x = jnp.transpose(x_nchw, (0, 2, 3, 1))

    params = init_decoder_params(k_p, N_RESBLOCKS, C_IN, C_OUT)

    fwd = jax.jit(decoder_forward)
    out = jax.block_until_ready(fwd(x, params))

    assert out.shape == (N, 2 * H, 2 * W, C_OUT), out.shape

    ref = jax.block_until_ready(decoder_ref(x, params))
    max_err = float(jnp.max(jnp.abs(out - ref)))
    # bf16 MXU operands with f32 accumulation -> relaxed tolerance vs f32 ref.
    assert jnp.allclose(out, ref, atol=2e-2, rtol=2e-2), max_err

    print("KERNEL_OK")
</pallas_src>

<mosaic_0001>
module attributes {stable_mosaic.version = 11 : i64} {
  func.func @body(%arg0: i32, %arg1: memref<1x18x18x4xf32, #tpu.memory_space<vmem>>, %arg2: memref<9x4x4xbf16, #tpu.memory_space<vmem>>, %arg3: memref<1x4xf32, #tpu.memory_space<vmem>>, %arg4: memref<1x256x4xf32, #tpu.memory_space<vmem>>) attributes {dimension_semantics = [#tpu.dimension_semantics<parallel>], iteration_bounds = array<i64: 2>, scalar_prefetch = 0 : i64, scratch_operands = 0 : i64, tpu.core_type = #tpu.core_type<tc>, window_params = [{transform_indices = @transform_0, window_bounds = array<i64: 1, 18, 18, 4>}, {pipeline_mode = #tpu.pipeline_mode<synchronous>, transform_indices = @transform_1, window_bounds = array<i64: 9, 4, 4>}, {pipeline_mode = #tpu.pipeline_mode<synchronous>, transform_indices = @transform_2, window_bounds = array<i64: 1, 4>}, {transform_indices = @transform_3, window_bounds = array<i64: 1, 256, 4>}]} {
    %cst = arith.constant 0.000000e+00 : f32
    %0 = vector.broadcast %cst : f32 to vector<256x4xf32>
    %c0 = arith.constant 0 : index
    %c0_0 = arith.constant 0 : index
    %c0_1 = arith.constant 0 : index
    %c0_2 = arith.constant 0 : index
    %1 = vector.load %arg1[%c0, %c0_0, %c0_1, %c0_2] : memref<1x18x18x4xf32, #tpu.memory_space<vmem>>, vector<1x16x16x4xf32>
    %2 = vector.shape_cast %1 : vector<1x16x16x4xf32> to vector<16x16x4xf32>
    %3 = vector.shape_cast %2 : vector<16x16x4xf32> to vector<256x4xf32>
    %4 = arith.truncf %3 : vector<256x4xf32> to vector<256x4xbf16>
    %c0_3 = arith.constant 0 : index
    %c0_4 = arith.constant 0 : index
    %c0_5 = arith.constant 0 : index
    %5 = vector.load %arg2[%c0_3, %c0_4, %c0_5] : memref<9x4x4xbf16, #tpu.memory_space<vmem>>, vector<1x4x4xbf16>
    %6 = vector.shape_cast %5 : vector<1x4x4xbf16> to vector<4x4xbf16>
    %cst_6 = arith.constant dense<0.000000e+00> : vector<256x4xf32>
    %7 = tpu.matmul %4, %6, %cst_6 {dimension_numbers = #tpu.dot_dimension_numbers<[1], [0], [0], [1], [0, 0, 1, 1], [], []>} : vector<256x4xbf16>, vector<4x4xbf16>, vector<256x4xf32> -> vector<256x4xf32>
    %8 = arith.addf %0, %7 : vector<256x4xf32>
    %c0_7 = arith.constant 0 : index
    %c0_8 = arith.constant 0 : index
    %c1 = arith.constant 1 : index
    %c0_9 = arith.constant 0 : index
    %9 = vector.load %arg1[%c0_7, %c0_8, %c1, %c0_9] : memref<1x18x18x4xf32, #tpu.memory_space<vmem>>, vector<1x16x16x4xf32>
    %10 = vector.shape_cast %9 : vector<1x16x16x4xf32> to vector<16x16x4xf32>
    %11 = vector.shape_cast %10 : vector<16x16x4xf32> to vector<256x4xf32>
    %12 = arith.truncf %11 : vector<256x4xf32> to vector<256x4xbf16>
    %c1_10 = arith.constant 1 : index
    %c0_11 = arith.constant 0 : index
    %c0_12 = arith.constant 0 : index
    %13 = vector.load %arg2[%c1_10, %c0_11, %c0_12] : memref<9x4x4xbf16, #tpu.memory_space<vmem>>, vector<1x4x4xbf16>
    %14 = vector.shape_cast %13 : vector<1x4x4xbf16> to vector<4x4xbf16>
    %cst_13 = arith.constant dense<0.000000e+00> : vector<256x4xf32>
    %15 = tpu.matmul %12, %14, %cst_13 {dimension_numbers = #tpu.dot_dimension_numbers<[1], [0], [0], [1], [0, 0, 1, 1], [], []>} : vector<256x4xbf16>, vector<4x4xbf16>, vector<256x4xf32> -> vector<256x4xf32>
    %16 = arith.addf %8, %15 : vector<256x4xf32>
    %c0_14 = arith.constant 0 : index
    %c0_15 = arith.constant 0 : index
    %c2 = arith.constant 2 : index
    %c0_16 = arith.constant 0 : index
    %17 = vector.load %arg1[%c0_14, %c0_15, %c2, %c0_16] : memref<1x18x18x4xf32, #tpu.memory_space<vmem>>, vector<1x16x16x4xf32>
    %18 = vector.shape_cast %17 : vector<1x16x16x4xf32> to vector<16x16x4xf32>
    %19 = vector.shape_cast %18 : vector<16x16x4xf32> to vector<256x4xf32>
    %20 = arith.truncf %19 : vector<256x4xf32> to vector<256x4xbf16>
    %c2_17 = arith.constant 2 : index
    %c0_18 = arith.constant 0 : index
    %c0_19 = arith.constant 0 : index
    %21 = vector.load %arg2[%c2_17, %c0_18, %c0_19] : memref<9x4x4xbf16, #tpu.memory_space<vmem>>, vector<1x4x4xbf16>
    %22 = vector.shape_cast %21 : vector<1x4x4xbf16> to vector<4x4xbf16>
    %cst_20 = arith.constant dense<0.000000e+00> : vector<256x4xf32>
    %23 = tpu.matmul %20, %22, %cst_20 {dimension_numbers = #tpu.dot_dimension_numbers<[1], [0], [0], [1], [0, 0, 1, 1], [], []>} : vector<256x4xbf16>, vector<4x4xbf16>, vector<256x4xf32> -> vector<256x4xf32>
    %24 = arith.addf %16, %23 : vector<256x4xf32>
    %c0_21 = arith.constant 0 : index
    %c1_22 = arith.constant 1 : index
    %c0_23 = arith.constant 0 : index
    %c0_24 = arith.constant 0 : index
    %25 = vector.load %arg1[%c0_21, %c1_22, %c0_23, %c0_24] : memref<1x18x18x4xf32, #tpu.memory_space<vmem>>, vector<1x16x16x4xf32>
    %26 = vector.shape_cast %25 : vector<1x16x16x4xf32> to vector<16x16x4xf32>
    %27 = vector.shape_cast %26 : vector<16x16x4xf32> to vector<256x4xf32>
    %28 = arith.truncf %27 : vector<256x4xf32> to vector<256x4xbf16>
    %c3 = arith.constant 3 : index
    %c0_25 = arith.constant 0 : index
    %c0_26 = arith.constant 0 : index
    %29 = vector.load %arg2[%c3, %c0_25, %c0_26] : memref<9x4x4xbf16, #tpu.memory_space<vmem>>, vector<1x4x4xbf16>
    %30 = vector.shape_cast %29 : vector<1x4x4xbf16> to vector<4x4xbf16>
    %cst_27 = arith.constant dense<0.000000e+00> : vector<256x4xf32>
    %31 = tpu.matmul %28, %30, %cst_27 {dimension_numbers = #tpu.dot_dimension_numbers<[1], [0], [0], [1], [0, 0, 1, 1], [], []>} : vector<256x4xbf16>, vector<4x4xbf16>, vector<256x4xf32> -> vector<256x4xf32>
    %32 = arith.addf %24, %31 : vector<256x4xf32>
    %c0_28 = arith.constant 0 : index
    %c1_29 = arith.constant 1 : index
    %c1_30 = arith.constant 1 : index
    %c0_31 = arith.constant 0 : index
    %33 = vector.load %arg1[%c0_28, %c1_29, %c1_30, %c0_31] : memref<1x18x18x4xf32, #tpu.memory_space<vmem>>, vector<1x16x16x4xf32>
    %34 = vector.shape_cast %33 : vector<1x16x16x4xf32> to vector<16x16x4xf32>
    %35 = vector.shape_cast %34 : vector<16x16x4xf32> to vector<256x4xf32>
    %36 = arith.truncf %35 : vector<256x4xf32> to vector<256x4xbf16>
    %c4 = arith.constant 4 : index
    %c0_32 = arith.constant 0 : index
    %c0_33 = arith.constant 0 : index
    %37 = vector.load %arg2[%c4, %c0_32, %c0_33] : memref<9x4x4xbf16, #tpu.memory_space<vmem>>, vector<1x4x4xbf16>
    %38 = vector.shape_cast %37 : vector<1x4x4xbf16> to vector<4x4xbf16>
    %cst_34 = arith.constant dense<0.000000e+00> : vector<256x4xf32>
    %39 = tpu.matmul %36, %38, %cst_34 {dimension_numbers = #tpu.dot_dimension_numbers<[1], [0], [0], [1], [0, 0, 1, 1], [], []>} : vector<256x4xbf16>, vector<4x4xbf16>, vector<256x4xf32> -> vector<256x4xf32>
    %40 = arith.addf %32, %39 : vector<256x4xf32>
    %c0_35 = arith.constant 0 : index
    %c1_36 = arith.constant 1 : index
    %c2_37 = arith.constant 2 : index
    %c0_38 = arith.constant 0 : index
    %41 = vector.load %arg1[%c0_35, %c1_36, %c2_37, %c0_38] : memref<1x18x18x4xf32, #tpu.memory_space<vmem>>, vector<1x16x16x4xf32>
    %42 = vector.shape_cast %41 : vector<1x16x16x4xf32> to vector<16x16x4xf32>
    %43 = vector.shape_cast %42 : vector<16x16x4xf32> to vector<256x4xf32>
    %44 = arith.truncf %43 : vector<256x4xf32> to vector<256x4xbf16>
    %c5 = arith.constant 5 : index
    %c0_39 = arith.constant 0 : index
    %c0_40 = arith.constant 0 : index
    %45 = vector.load %arg2[%c5, %c0_39, %c0_40] : memref<9x4x4xbf16, #tpu.memory_space<vmem>>, vector<1x4x4xbf16>
    %46 = vector.shape_cast %45 : vector<1x4x4xbf16> to vector<4x4xbf16>
    %cst_41 = arith.constant dense<0.000000e+00> : vector<256x4xf32>
    %47 = tpu.matmul %44, %46, %cst_41 {dimension_numbers = #tpu.dot_dimension_numbers<[1], [0], [0], [1], [0, 0, 1, 1], [], []>} : vector<256x4xbf16>, vector<4x4xbf16>, vector<256x4xf32> -> vector<256x4xf32>
    %48 = arith.addf %40, %47 : vector<256x4xf32>
    %c0_42 = arith.constant 0 : index
    %c2_43 = arith.constant 2 : index
    %c0_44 = arith.constant 0 : index
    %c0_45 = arith.constant 0 : index
    %49 = vector.load %arg1[%c0_42, %c2_43, %c0_44, %c0_45] : memref<1x18x18x4xf32, #tpu.memory_space<vmem>>, vector<1x16x16x4xf32>
    %50 = vector.shape_cast %49 : vector<1x16x16x4xf32> to vector<16x16x4xf32>
    %51 = vector.shape_cast %50 : vector<16x16x4xf32> to vector<256x4xf32>
    %52 = arith.truncf %51 : vector<256x4xf32> to vector<256x4xbf16>
    %c6 = arith.constant 6 : index
    %c0_46 = arith.constant 0 : index
    %c0_47 = arith.constant 0 : index
    %53 = vector.load %arg2[%c6, %c0_46, %c0_47] : memref<9x4x4xbf16, #tpu.memory_space<vmem>>, vector<1x4x4xbf16>
    %54 = vector.shape_cast %53 : vector<1x4x4xbf16> to vector<4x4xbf16>
    %cst_48 = arith.constant dense<0.000000e+00> : vector<256x4xf32>
    %55 = tpu.matmul %52, %54, %cst_48 {dimension_numbers = #tpu.dot_dimension_numbers<[1], [0], [0], [1], [0, 0, 1, 1], [], []>} : vector<256x4xbf16>, vector<4x4xbf16>, vector<256x4xf32> -> vector<256x4xf32>
    %56 = arith.addf %48, %55 : vector<256x4xf32>
    %c0_49 = arith.constant 0 : index
    %c2_50 = arith.constant 2 : index
    %c1_51 = arith.constant 1 : index
    %c0_52 = arith.constant 0 : index
    %57 = vector.load %arg1[%c0_49, %c2_50, %c1_51, %c0_52] : memref<1x18x18x4xf32, #tpu.memory_space<vmem>>, vector<1x16x16x4xf32>
    %58 = vector.shape_cast %57 : vector<1x16x16x4xf32> to vector<16x16x4xf32>
    %59 = vector.shape_cast %58 : vector<16x16x4xf32> to vector<256x4xf32>
    %60 = arith.truncf %59 : vector<256x4xf32> to vector<256x4xbf16>
    %c7 = arith.constant 7 : index
    %c0_53 = arith.constant 0 : index
    %c0_54 = arith.constant 0 : index
    %61 = vector.load %arg2[%c7, %c0_53, %c0_54] : memref<9x4x4xbf16, #tpu.memory_space<vmem>>, vector<1x4x4xbf16>
    %62 = vector.shape_cast %61 : vector<1x4x4xbf16> to vector<4x4xbf16>
    %cst_55 = arith.constant dense<0.000000e+00> : vector<256x4xf32>
    %63 = tpu.matmul %60, %62, %cst_55 {dimension_numbers = #tpu.dot_dimension_numbers<[1], [0], [0], [1], [0, 0, 1, 1], [], []>} : vector<256x4xbf16>, vector<4x4xbf16>, vector<256x4xf32> -> vector<256x4xf32>
    %64 = arith.addf %56, %63 : vector<256x4xf32>
    %c0_56 = arith.constant 0 : index
    %c2_57 = arith.constant 2 : index
    %c2_58 = arith.constant 2 : index
    %c0_59 = arith.constant 0 : index
    %65 = vector.load %arg1[%c0_56, %c2_57, %c2_58, %c0_59] : memref<1x18x18x4xf32, #tpu.memory_space<vmem>>, vector<1x16x16x4xf32>
    %66 = vector.shape_cast %65 : vector<1x16x16x4xf32> to vector<16x16x4xf32>
    %67 = vector.shape_cast %66 : vector<16x16x4xf32> to vector<256x4xf32>
    %68 = arith.truncf %67 : vector<256x4xf32> to vector<256x4xbf16>
    %c8 = arith.constant 8 : index
    %c0_60 = arith.constant 0 : index
    %c0_61 = arith.constant 0 : index
    %69 = vector.load %arg2[%c8, %c0_60, %c0_61] : memref<9x4x4xbf16, #tpu.memory_space<vmem>>, vector<1x4x4xbf16>
    %70 = vector.shape_cast %69 : vector<1x4x4xbf16> to vector<4x4xbf16>
    %cst_62 = arith.constant dense<0.000000e+00> : vector<256x4xf32>
    %71 = tpu.matmul %68, %70, %cst_62 {dimension_numbers = #tpu.dot_dimension_numbers<[1], [0], [0], [1], [0, 0, 1, 1], [], []>} : vector<256x4xbf16>, vector<4x4xbf16>, vector<256x4xf32> -> vector<256x4xf32>
    %72 = arith.addf %64, %71 : vector<256x4xf32>
    %c0_63 = arith.constant 0 : index
    %c0_64 = arith.constant 0 : index
    %73 = vector.load %arg3[%c0_63, %c0_64] : memref<1x4xf32, #tpu.memory_space<vmem>>, vector<1x4xf32>
    %74 = vector.broadcast %73 : vector<1x4xf32> to vector<256x4xf32>
    %75 = arith.addf %72, %74 : vector<256x4xf32>
    %cst_65 = arith.constant 0.000000e+00 : f32
    %76 = vector.broadcast %cst_65 : f32 to vector<256x4xf32>
    %77 = arith.maximumf %75, %76 : vector<256x4xf32>
    %c0_66 = arith.constant 0 : index
    %c0_67 = arith.constant 0 : index
    %c0_68 = arith.constant 0 : index
    %78 = vector.load %arg4[%c0_66, %c0_67, %c0_68] : memref<1x256x4xf32, #tpu.memory_space<vmem>>, vector<1x256x4xf32>
    %79 = vector.shape_cast %78 : vector<1x256x4xf32> to vector<256x4xf32>
    %80 = vector.shape_cast %77 : vector<256x4xf32> to vector<1x256x4xf32>
    tpu.vector_store %arg4[%c0_66, %c0_67, %c0_68], %80 {strides = array<i32>} : memref<1x256x4xf32, #tpu.memory_space<vmem>>, vector<1x256x4xf32>,
    return
  }
  func.func @transform_0(%arg0: i32) -> (i32, i32, i32, i32) {
    %c0_i32 = arith.constant 0 : i32
    %c0_i32_0 = arith.constant 0 : i32
    %c0_i32_1 = arith.constant 0 : i32
    %c0_i32_2 = arith.constant 0 : i32
    return %arg0, %c0_i32, %c0_i32_0, %c0_i32_1 : i32, i32, i32, i32
  }
  func.func @transform_1(%arg0: i32) -> (i32, i32, i32) {
    %c0_i32 = arith.constant 0 : i32
    %c0_i32_0 = arith.constant 0 : i32
    %c0_i32_1 = arith.constant 0 : i32
    %c0_i32_2 = arith.constant 0 : i32
    return %c0_i32, %c0_i32_0, %c0_i32_1 : i32, i32, i32
  }
  func.func @transform_2(%arg0: i32) -> (i32, i32) {
    %c0_i32 = arith.constant 0 : i32
    %c0_i32_0 = arith.constant 0 : i32
    %c0_i32_1 = arith.constant 0 : i32
    return %c0_i32, %c0_i32_0 : i32, i32
  }
  func.func @transform_3(%arg0: i32) -> (i32, i32, i32) {
    %c0_i32 = arith.constant 0 : i32
    %c0_i32_0 = arith.constant 0 : i32
    %c0_i32_1 = arith.constant 0 : i32
    return %arg0, %c0_i32, %c0_i32_0 : i32, i32, i32
  }
}

module attributes {stable_mosaic.version = 11 : i64} {
  func.func @body(%arg0: i32, %arg1: memref<1x18x18x4xf32, #tpu.memory_space<vmem>>, %arg2: memref<9x4x4xbf16, #tpu.memory_space<vmem>>, %arg3: memref<1x4xf32, #tpu.memory_space<vmem>>, %arg4: memref<1x256x4xf32, #tpu.memory_space<vmem>>, %arg5: memref<1x256x4xf32, #tpu.memory_space<vmem>>) attributes {dimension_semantics = [#tpu.dimension_semantics<parallel>], iteration_bounds = array<i64: 2>, scalar_prefetch = 0 : i64, scratch_operands = 0 : i64, tpu.core_type = #tpu.core_type<tc>, window_params = [{transform_indices = @transform_0, window_bounds = array<i64: 1, 18, 18, 4>}, {pipeline_mode = #tpu.pipeline_mode<synchronous>, transform_indices = @transform_1, window_bounds = array<i64: 9, 4, 4>}, {pipeline_mode = #tpu.pipeline_mode<synchronous>, transform_indices = @transform_2, window_bounds = array<i64: 1, 4>}, {transform_indices = @transform_3, window_bounds = array<i64: 1, 256, 4>}, {transform_indices = @transform_4, window_bounds = array<i64: 1, 256, 4>}]} {
    %cst = arith.constant 0.000000e+00 : f32
    %0 = vector.broadcast %cst : f32 to vector<256x4xf32>
    %c0 = arith.constant 0 : index
    %c0_0 = arith.constant 0 : index
    %c0_1 = arith.constant 0 : index
    %c0_2 = arith.constant 0 : index
    %1 = vector.load %arg1[%c0, %c0_0, %c0_1, %c0_2] : memref<1x18x18x4xf32, #tpu.memory_space<vmem>>, vector<1x16x16x4xf32>
    %2 = vector.shape_cast %1 : vector<1x16x16x4xf32> to vector<16x16x4xf32>
    %3 = vector.shape_cast %2 : vector<16x16x4xf32> to vector<256x4xf32>
    %4 = arith.truncf %3 : vector<256x4xf32> to vector<256x4xbf16>
    %c0_3 = arith.constant 0 : index
    %c0_4 = arith.constant 0 : index
    %c0_5 = arith.constant 0 : index
    %5 = vector.load %arg2[%c0_3, %c0_4, %c0_5] : memref<9x4x4xbf16, #tpu.memory_space<vmem>>, vector<1x4x4xbf16>
    %6 = vector.shape_cast %5 : vector<1x4x4xbf16> to vector<4x4xbf16>
    %cst_6 = arith.constant dense<0.000000e+00> : vector<256x4xf32>
    %7 = tpu.matmul %4, %6, %cst_6 {dimension_numbers = #tpu.dot_dimension_numbers<[1], [0], [0], [1], [0, 0, 1, 1], [], []>} : vector<256x4xbf16>, vector<4x4xbf16>, vector<256x4xf32> -> vector<256x4xf32>
    %8 = arith.addf %0, %7 : vector<256x4xf32>
    %c0_7 = arith.constant 0 : index
    %c0_8 = arith.constant 0 : index
    %c1 = arith.constant 1 : index
    %c0_9 = arith.constant 0 : index
    %9 = vector.load %arg1[%c0_7, %c0_8, %c1, %c0_9] : memref<1x18x18x4xf32, #tpu.memory_space<vmem>>, vector<1x16x16x4xf32>
    %10 = vector.shape_cast %9 : vector<1x16x16x4xf32> to vector<16x16x4xf32>
    %11 = vector.shape_cast %10 : vector<16x16x4xf32> to vector<256x4xf32>
    %12 = arith.truncf %11 : vector<256x4xf32> to vector<256x4xbf16>
    %c1_10 = arith.constant 1 : index
    %c0_11 = arith.constant 0 : index
    %c0_12 = arith.constant 0 : index
    %13 = vector.load %arg2[%c1_10, %c0_11, %c0_12] : memref<9x4x4xbf16, #tpu.memory_space<vmem>>, vector<1x4x4xbf16>
    %14 = vector.shape_cast %13 : vector<1x4x4xbf16> to vector<4x4xbf16>
    %cst_13 = arith.constant dense<0.000000e+00> : vector<256x4xf32>
    %15 = tpu.matmul %12, %14, %cst_13 {dimension_numbers = #tpu.dot_dimension_numbers<[1], [0], [0], [1], [0, 0, 1, 1], [], []>} : vector<256x4xbf16>, vector<4x4xbf16>, vector<256x4xf32> -> vector<256x4xf32>
    %16 = arith.addf %8, %15 : vector<256x4xf32>
    %c0_14 = arith.constant 0 : index
    %c0_15 = arith.constant 0 : index
    %c2 = arith.constant 2 : index
    %c0_16 = arith.constant 0 : index
    %17 = vector.load %arg1[%c0_14, %c0_15, %c2, %c0_16] : memref<1x18x18x4xf32, #tpu.memory_space<vmem>>, vector<1x16x16x4xf32>
    %18 = vector.shape_cast %17 : vector<1x16x16x4xf32> to vector<16x16x4xf32>
    %19 = vector.shape_cast %18 : vector<16x16x4xf32> to vector<256x4xf32>
    %20 = arith.truncf %19 : vector<256x4xf32> to vector<256x4xbf16>
    %c2_17 = arith.constant 2 : index
    %c0_18 = arith.constant 0 : index
    %c0_19 = arith.constant 0 : index
    %21 = vector.load %arg2[%c2_17, %c0_18, %c0_19] : memref<9x4x4xbf16, #tpu.memory_space<vmem>>, vector<1x4x4xbf16>
    %22 = vector.shape_cast %21 : vector<1x4x4xbf16> to vector<4x4xbf16>
    %cst_20 = arith.constant dense<0.000000e+00> : vector<256x4xf32>
    %23 = tpu.matmul %20, %22, %cst_20 {dimension_numbers = #tpu.dot_dimension_numbers<[1], [0], [0], [1], [0, 0, 1, 1], [], []>} : vector<256x4xbf16>, vector<4x4xbf16>, vector<256x4xf32> -> vector<256x4xf32>
    %24 = arith.addf %16, %23 : vector<256x4xf32>
    %c0_21 = arith.constant 0 : index
    %c1_22 = arith.constant 1 : index
    %c0_23 = arith.constant 0 : index
    %c0_24 = arith.constant 0 : index
    %25 = vector.load %arg1[%c0_21, %c1_22, %c0_23, %c0_24] : memref<1x18x18x4xf32, #tpu.memory_space<vmem>>, vector<1x16x16x4xf32>
    %26 = vector.shape_cast %25 : vector<1x16x16x4xf32> to vector<16x16x4xf32>
    %27 = vector.shape_cast %26 : vector<16x16x4xf32> to vector<256x4xf32>
    %28 = arith.truncf %27 : vector<256x4xf32> to vector<256x4xbf16>
    %c3 = arith.constant 3 : index
    %c0_25 = arith.constant 0 : index
    %c0_26 = arith.constant 0 : index
    %29 = vector.load %arg2[%c3, %c0_25, %c0_26] : memref<9x4x4xbf16, #tpu.memory_space<vmem>>, vector<1x4x4xbf16>
    %30 = vector.shape_cast %29 : vector<1x4x4xbf16> to vector<4x4xbf16>
    %cst_27 = arith.constant dense<0.000000e+00> : vector<256x4xf32>
    %31 = tpu.matmul %28, %30, %cst_27 {dimension_numbers = #tpu.dot_dimension_numbers<[1], [0], [0], [1], [0, 0, 1, 1], [], []>} : vector<256x4xbf16>, vector<4x4xbf16>, vector<256x4xf32> -> vector<256x4xf32>
    %32 = arith.addf %24, %31 : vector<256x4xf32>
    %c0_28 = arith.constant 0 : index
    %c1_29 = arith.constant 1 : index
    %c1_30 = arith.constant 1 : index
    %c0_31 = arith.constant 0 : index
    %33 = vector.load %arg1[%c0_28, %c1_29, %c1_30, %c0_31] : memref<1x18x18x4xf32, #tpu.memory_space<vmem>>, vector<1x16x16x4xf32>
    %34 = vector.shape_cast %33 : vector<1x16x16x4xf32> to vector<16x16x4xf32>
    %35 = vector.shape_cast %34 : vector<16x16x4xf32> to vector<256x4xf32>
    %36 = arith.truncf %35 : vector<256x4xf32> to vector<256x4xbf16>
    %c4 = arith.constant 4 : index
    %c0_32 = arith.constant 0 : index
    %c0_33 = arith.constant 0 : index
    %37 = vector.load %arg2[%c4, %c0_32, %c0_33] : memref<9x4x4xbf16, #tpu.memory_space<vmem>>, vector<1x4x4xbf16>
    %38 = vector.shape_cast %37 : vector<1x4x4xbf16> to vector<4x4xbf16>
    %cst_34 = arith.constant dense<0.000000e+00> : vector<256x4xf32>
    %39 = tpu.matmul %36, %38, %cst_34 {dimension_numbers = #tpu.dot_dimension_numbers<[1], [0], [0], [1], [0, 0, 1, 1], [], []>} : vector<256x4xbf16>, vector<4x4xbf16>, vector<256x4xf32> -> vector<256x4xf32>
    %40 = arith.addf %32, %39 : vector<256x4xf32>
    %c0_35 = arith.constant 0 : index
    %c1_36 = arith.constant 1 : index
    %c2_37 = arith.constant 2 : index
    %c0_38 = arith.constant 0 : index
    %41 = vector.load %arg1[%c0_35, %c1_36, %c2_37, %c0_38] : memref<1x18x18x4xf32, #tpu.memory_space<vmem>>, vector<1x16x16x4xf32>
    %42 = vector.shape_cast %41 : vector<1x16x16x4xf32> to vector<16x16x4xf32>
    %43 = vector.shape_cast %42 : vector<16x16x4xf32> to vector<256x4xf32>
    %44 = arith.truncf %43 : vector<256x4xf32> to vector<256x4xbf16>
    %c5 = arith.constant 5 : index
    %c0_39 = arith.constant 0 : index
    %c0_40 = arith.constant 0 : index
    %45 = vector.load %arg2[%c5, %c0_39, %c0_40] : memref<9x4x4xbf16, #tpu.memory_space<vmem>>, vector<1x4x4xbf16>
    %46 = vector.shape_cast %45 : vector<1x4x4xbf16> to vector<4x4xbf16>
    %cst_41 = arith.constant dense<0.000000e+00> : vector<256x4xf32>
    %47 = tpu.matmul %44, %46, %cst_41 {dimension_numbers = #tpu.dot_dimension_numbers<[1], [0], [0], [1], [0, 0, 1, 1], [], []>} : vector<256x4xbf16>, vector<4x4xbf16>, vector<256x4xf32> -> vector<256x4xf32>
    %48 = arith.addf %40, %47 : vector<256x4xf32>
    %c0_42 = arith.constant 0 : index
    %c2_43 = arith.constant 2 : index
    %c0_44 = arith.constant 0 : index
    %c0_45 = arith.constant 0 : index
    %49 = vector.load %arg1[%c0_42, %c2_43, %c0_44, %c0_45] : memref<1x18x18x4xf32, #tpu.memory_space<vmem>>, vector<1x16x16x4xf32>
    %50 = vector.shape_cast %49 : vector<1x16x16x4xf32> to vector<16x16x4xf32>
    %51 = vector.shape_cast %50 : vector<16x16x4xf32> to vector<256x4xf32>
    %52 = arith.truncf %51 : vector<256x4xf32> to vector<256x4xbf16>
    %c6 = arith.constant 6 : index
    %c0_46 = arith.constant 0 : index
    %c0_47 = arith.constant 0 : index
    %53 = vector.load %arg2[%c6, %c0_46, %c0_47] : memref<9x4x4xbf16, #tpu.memory_space<vmem>>, vector<1x4x4xbf16>
    %54 = vector.shape_cast %53 : vector<1x4x4xbf16> to vector<4x4xbf16>
    %cst_48 = arith.constant dense<0.000000e+00> : vector<256x4xf32>
    %55 = tpu.matmul %52, %54, %cst_48 {dimension_numbers = #tpu.dot_dimension_numbers<[1], [0], [0], [1], [0, 0, 1, 1], [], []>} : vector<256x4xbf16>, vector<4x4xbf16>, vector<256x4xf32> -> vector<256x4xf32>
    %56 = arith.addf %48, %55 : vector<256x4xf32>
    %c0_49 = arith.constant 0 : index
    %c2_50 = arith.constant 2 : index
    %c1_51 = arith.constant 1 : index
    %c0_52 = arith.constant 0 : index
    %57 = vector.load %arg1[%c0_49, %c2_50, %c1_51, %c0_52] : memref<1x18x18x4xf32, #tpu.memory_space<vmem>>, vector<1x16x16x4xf32>
    %58 = vector.shape_cast %57 : vector<1x16x16x4xf32> to vector<16x16x4xf32>
    %59 = vector.shape_cast %58 : vector<16x16x4xf32> to vector<256x4xf32>
    %60 = arith.truncf %59 : vector<256x4xf32> to vector<256x4xbf16>
    %c7 = arith.constant 7 : index
    %c0_53 = arith.constant 0 : index
    %c0_54 = arith.constant 0 : index
    %61 = vector.load %arg2[%c7, %c0_53, %c0_54] : memref<9x4x4xbf16, #tpu.memory_space<vmem>>, vector<1x4x4xbf16>
    %62 = vector.shape_cast %61 : vector<1x4x4xbf16> to vector<4x4xbf16>
    %cst_55 = arith.constant dense<0.000000e+00> : vector<256x4xf32>
    %63 = tpu.matmul %60, %62, %cst_55 {dimension_numbers = #tpu.dot_dimension_numbers<[1], [0], [0], [1], [0, 0, 1, 1], [], []>} : vector<256x4xbf16>, vector<4x4xbf16>, vector<256x4xf32> -> vector<256x4xf32>
    %64 = arith.addf %56, %63 : vector<256x4xf32>
    %c0_56 = arith.constant 0 : index
    %c2_57 = arith.constant 2 : index
    %c2_58 = arith.constant 2 : index
    %c0_59 = arith.constant 0 : index
    %65 = vector.load %arg1[%c0_56, %c2_57, %c2_58, %c0_59] : memref<1x18x18x4xf32, #tpu.memory_space<vmem>>, vector<1x16x16x4xf32>
    %66 = vector.shape_cast %65 : vector<1x16x16x4xf32> to vector<16x16x4xf32>
    %67 = vector.shape_cast %66 : vector<16x16x4xf32> to vector<256x4xf32>
    %68 = arith.truncf %67 : vector<256x4xf32> to vector<256x4xbf16>
    %c8 = arith.constant 8 : index
    %c0_60 = arith.constant 0 : index
    %c0_61 = arith.constant 0 : index
    %69 = vector.load %arg2[%c8, %c0_60, %c0_61] : memref<9x4x4xbf16, #tpu.memory_space<vmem>>, vector<1x4x4xbf16>
    %70 = vector.shape_cast %69 : vector<1x4x4xbf16> to vector<4x4xbf16>
    %cst_62 = arith.constant dense<0.000000e+00> : vector<256x4xf32>
    %71 = tpu.matmul %68, %70, %cst_62 {dimension_numbers = #tpu.dot_dimension_numbers<[1], [0], [0], [1], [0, 0, 1, 1], [], []>} : vector<256x4xbf16>, vector<4x4xbf16>, vector<256x4xf32> -> vector<256x4xf32>
    %72 = arith.addf %64, %71 : vector<256x4xf32>
    %c0_63 = arith.constant 0 : index
    %c0_64 = arith.constant 0 : index
    %73 = vector.load %arg3[%c0_63, %c0_64] : memref<1x4xf32, #tpu.memory_space<vmem>>, vector<1x4xf32>
    %74 = vector.broadcast %73 : vector<1x4xf32> to vector<256x4xf32>
    %75 = arith.addf %72, %74 : vector<256x4xf32>
    %c0_65 = arith.constant 0 : index
    %c0_66 = arith.constant 0 : index
    %c0_67 = arith.constant 0 : index
    %76 = vector.load %arg4[%c0_65, %c0_66, %c0_67] : memref<1x256x4xf32, #tpu.memory_space<vmem>>, vector<1x256x4xf32>
    %77 = vector.shape_cast %76 : vector<1x256x4xf32> to vector<256x4xf32>
    %78 = arith.addf %75, %77 : vector<256x4xf32>
    %cst_68 = arith.constant 0.000000e+00 : f32
    %79 = vector.broadcast %cst_68 : f32 to vector<256x4xf32>
    %80 = arith.maximumf %78, %79 : vector<256x4xf32>
    %c0_69 = arith.constant 0 : index
    %c0_70 = arith.constant 0 : index
    %c0_71 = arith.constant 0 : index
    %81 = vector.load %arg5[%c0_69, %c0_70, %c0_71] : memref<1x256x4xf32, #tpu.memory_space<vmem>>, vector<1x256x4xf32>
    %82 = vector.shape_cast %81 : vector<1x256x4xf32> to vector<256x4xf32>
    %83 = vector.shape_cast %80 : vector<256x4xf32> to vector<1x256x4xf32>
    tpu.vector_store %arg5[%c0_69, %c0_70, %c0_71], %83 {strides = array<i32>} : memref<1x256x4xf32, #tpu.memory_space<vmem>>, vector<1x256x4xf32>,
    return
  }
  func.func @transform_0(%arg0: i32) -> (i32, i32, i32, i32) {
    %c0_i32 = arith.constant 0 : i32
    %c0_i32_0 = arith.constant 0 : i32
    %c0_i32_1 = arith.constant 0 : i32
    %c0_i32_2 = arith.constant 0 : i32
    return %arg0, %c0_i32, %c0_i32_0, %c0_i32_1 : i32, i32, i32, i32
  }
  func.func @transform_1(%arg0: i32) -> (i32, i32, i32) {
    %c0_i32 = arith.constant 0 : i32
    %c0_i32_0 = arith.constant 0 : i32
    %c0_i32_1 = arith.constant 0 : i32
    %c0_i32_2 = arith.constant 0 : i32
    return %c0_i32, %c0_i32_0, %c0_i32_1 : i32, i32, i32
  }
  func.func @transform_2(%arg0: i32) -> (i32, i32) {
    %c0_i32 = arith.constant 0 : i32
    %c0_i32_0 = arith.constant 0 : i32
    %c0_i32_1 = arith.constant 0 : i32
    return %c0_i32, %c0_i32_0 : i32, i32
  }
  func.func @transform_3(%arg0: i32) -> (i32, i32, i32) {
    %c0_i32 = arith.constant 0 : i32
    %c0_i32_0 = arith.constant 0 : i32
    %c0_i32_1 = arith.constant 0 : i32
    return %arg0, %c0_i32, %c0_i32_0 : i32, i32, i32
  }
  func.func @transform_4(%arg0: i32) -> (i32, i32, i32) {
    %c0_i32 = arith.constant 0 : i32
    %c0_i32_0 = arith.constant 0 : i32
    %c0_i32_1 = arith.constant 0 : i32
    return %arg0, %c0_i32, %c0_i32_0 : i32, i32, i32
  }
}

module attributes {stable_mosaic.version = 11 : i64} {
  func.func @_convT_phase_kernel(%arg0: i32, %arg1: memref<1x18x18x4xf32, #tpu.memory_space<vmem>>, %arg2: memref<4x4x4x8xbf16, #tpu.memory_space<vmem>>, %arg3: memref<1x8xf32, #tpu.memory_space<vmem>>, %arg4: memref<1x4x256x8xf32, #tpu.memory_space<vmem>>) attributes {dimension_semantics = [#tpu.dimension_semantics<parallel>], iteration_bounds = array<i64: 2>, scalar_prefetch = 0 : i64, scratch_operands = 0 : i64, tpu.core_type = #tpu.core_type<tc>, window_params = [{transform_indices = @transform_0, window_bounds = array<i64: 1, 18, 18, 4>}, {pipeline_mode = #tpu.pipeline_mode<synchronous>, transform_indices = @transform_1, window_bounds = array<i64: 4, 4, 4, 8>}, {pipeline_mode = #tpu.pipeline_mode<synchronous>, transform_indices = @transform_2, window_bounds = array<i64: 1, 8>}, {transform_indices = @transform_3, window_bounds = array<i64: 1, 4, 256, 8>}]} {
    %cst = arith.constant 0.000000e+00 : f32
    %0 = vector.broadcast %cst : f32 to vector<256x8xf32>
    %c0 = arith.constant 0 : index
    %c0_0 = arith.constant 0 : index
    %c0_1 = arith.constant 0 : index
    %c0_2 = arith.constant 0 : index
    %1 = vector.load %arg1[%c0, %c0_0, %c0_1, %c0_2] : memref<1x18x18x4xf32, #tpu.memory_space<vmem>>, vector<1x16x16x4xf32>
    %2 = vector.shape_cast %1 : vector<1x16x16x4xf32> to vector<16x16x4xf32>
    %3 = vector.shape_cast %2 : vector<16x16x4xf32> to vector<256x4xf32>
    %4 = arith.truncf %3 : vector<256x4xf32> to vector<256x4xbf16>
    %c0_3 = arith.constant 0 : index
    %c0_4 = arith.constant 0 : index
    %c0_5 = arith.constant 0 : index
    %c0_6 = arith.constant 0 : index
    %5 = vector.load %arg2[%c0_3, %c0_4, %c0_5, %c0_6] : memref<4x4x4x8xbf16, #tpu.memory_space<vmem>>, vector<1x1x4x8xbf16>
    %6 = vector.shape_cast %5 : vector<1x1x4x8xbf16> to vector<4x8xbf16>
    %cst_7 = arith.constant dense<0.000000e+00> : vector<256x8xf32>
    %7 = tpu.matmul %4, %6, %cst_7 {dimension_numbers = #tpu.dot_dimension_numbers<[1], [0], [0], [1], [0, 0, 1, 1], [], []>} : vector<256x4xbf16>, vector<4x8xbf16>, vector<256x8xf32> -> vector<256x8xf32>
    %8 = arith.addf %0, %7 : vector<256x8xf32>
    %c0_8 = arith.constant 0 : index
    %c0_9 = arith.constant 0 : index
    %c1 = arith.constant 1 : index
    %c0_10 = arith.constant 0 : index
    %9 = vector.load %arg1[%c0_8, %c0_9, %c1, %c0_10] : memref<1x18x18x4xf32, #tpu.memory_space<vmem>>, vector<1x16x16x4xf32>
    %10 = vector.shape_cast %9 : vector<1x16x16x4xf32> to vector<16x16x4xf32>
    %11 = vector.shape_cast %10 : vector<16x16x4xf32> to vector<256x4xf32>
    %12 = arith.truncf %11 : vector<256x4xf32> to vector<256x4xbf16>
    %c0_11 = arith.constant 0 : index
    %c1_12 = arith.constant 1 : index
    %c0_13 = arith.constant 0 : index
    %c0_14 = arith.constant 0 : index
    %13 = vector.load %arg2[%c0_11, %c1_12, %c0_13, %c0_14] : memref<4x4x4x8xbf16, #tpu.memory_space<vmem>>, vector<1x1x4x8xbf16>
    %14 = vector.shape_cast %13 : vector<1x1x4x8xbf16> to vector<4x8xbf16>
    %cst_15 = arith.constant dense<0.000000e+00> : vector<256x8xf32>
    %15 = tpu.matmul %12, %14, %cst_15 {dimension_numbers = #tpu.dot_dimension_numbers<[1], [0], [0], [1], [0, 0, 1, 1], [], []>} : vector<256x4xbf16>, vector<4x8xbf16>, vector<256x8xf32> -> vector<256x8xf32>
    %16 = arith.addf %8, %15 : vector<256x8xf32>
    %c0_16 = arith.constant 0 : index
    %c1_17 = arith.constant 1 : index
    %c0_18 = arith.constant 0 : index
    %c0_19 = arith.constant 0 : index
    %17 = vector.load %arg1[%c0_16, %c1_17, %c0_18, %c0_19] : memref<1x18x18x4xf32, #tpu.memory_space<vmem>>, vector<1x16x16x4xf32>
    %18 = vector.shape_cast %17 : vector<1x16x16x4xf32> to vector<16x16x4xf32>
    %19 = vector.shape_cast %18 : vector<16x16x4xf32> to vector<256x4xf32>
    %20 = arith.truncf %19 : vector<256x4xf32> to vector<256x4xbf16>
    %c0_20 = arith.constant 0 : index
    %c2 = arith.constant 2 : index
    %c0_21 = arith.constant 0 : index
    %c0_22 = arith.constant 0 : index
    %21 = vector.load %arg2[%c0_20, %c2, %c0_21, %c0_22] : memref<4x4x4x8xbf16, #tpu.memory_space<vmem>>, vector<1x1x4x8xbf16>
    %22 = vector.shape_cast %21 : vector<1x1x4x8xbf16> to vector<4x8xbf16>
    %cst_23 = arith.constant dense<0.000000e+00> : vector<256x8xf32>
    %23 = tpu.matmul %20, %22, %cst_23 {dimension_numbers = #tpu.dot_dimension_numbers<[1], [0], [0], [1], [0, 0, 1, 1], [], []>} : vector<256x4xbf16>, vector<4x8xbf16>, vector<256x8xf32> -> vector<256x8xf32>
    %24 = arith.addf %16, %23 : vector<256x8xf32>
    %c0_24 = arith.constant 0 : index
    %c1_25 = arith.constant 1 : index
    %c1_26 = arith.constant 1 : index
    %c0_27 = arith.constant 0 : index
    %25 = vector.load %arg1[%c0_24, %c1_25, %c1_26, %c0_27] : memref<1x18x18x4xf32, #tpu.memory_space<vmem>>, vector<1x16x16x4xf32>
    %26 = vector.shape_cast %25 : vector<1x16x16x4xf32> to vector<16x16x4xf32>
    %27 = vector.shape_cast %26 : vector<16x16x4xf32> to vector<256x4xf32>
    %28 = arith.truncf %27 : vector<256x4xf32> to vector<256x4xbf16>
    %c0_28 = arith.constant 0 : index
    %c3 = arith.constant 3 : index
    %c0_29 = arith.constant 0 : index
    %c0_30 = arith.constant 0 : index
    %29 = vector.load %arg2[%c0_28, %c3, %c0_29, %c0_30] : memref<4x4x4x8xbf16, #tpu.memory_space<vmem>>, vector<1x1x4x8xbf16>
    %30 = vector.shape_cast %29 : vector<1x1x4x8xbf16> to vector<4x8xbf16>
    %cst_31 = arith.constant dense<0.000000e+00> : vector<256x8xf32>
    %31 = tpu.matmul %28, %30, %cst_31 {dimension_numbers = #tpu.dot_dimension_numbers<[1], [0], [0], [1], [0, 0, 1, 1], [], []>} : vector<256x4xbf16>, vector<4x8xbf16>, vector<256x8xf32> -> vector<256x8xf32>
    %32 = arith.addf %24, %31 : vector<256x8xf32>
    %c0_32 = arith.constant 0 : index
    %c0_33 = arith.constant 0 : index
    %33 = vector.load %arg3[%c0_32, %c0_33] : memref<1x8xf32, #tpu.memory_space<vmem>>, vector<1x8xf32>
    %34 = vector.broadcast %33 : vector<1x8xf32> to vector<256x8xf32>
    %35 = arith.addf %32, %34 : vector<256x8xf32>
    %c0_34 = arith.constant 0 : index
    %c0_35 = arith.constant 0 : index
    %c0_36 = arith.constant 0 : index
    %c0_37 = arith.constant 0 : index
    %36 = vector.load %arg4[%c0_34, %c0_35, %c0_36, %c0_37] : memref<1x4x256x8xf32, #tpu.memory_space<vmem>>, vector<1x1x256x8xf32>
    %37 = vector.shape_cast %36 : vector<1x1x256x8xf32> to vector<256x8xf32>
    %38 = vector.shape_cast %35 : vector<256x8xf32> to vector<1x1x256x8xf32>
    tpu.vector_store %arg4[%c0_34, %c0_35, %c0_36, %c0_37], %38 {strides = array<i32>} : memref<1x4x256x8xf32, #tpu.memory_space<vmem>>, vector<1x1x256x8xf32>,
    %cst_38 = arith.constant 0.000000e+00 : f32
    %39 = vector.broadcast %cst_38 : f32 to vector<256x8xf32>
    %c0_39 = arith.constant 0 : index
    %c0_40 = arith.constant 0 : index
    %c1_41 = arith.constant 1 : index
    %c0_42 = arith.constant 0 : index
    %40 = vector.load %arg1[%c0_39, %c0_40, %c1_41, %c0_42] : memref<1x18x18x4xf32, #tpu.memory_space<vmem>>, vector<1x16x16x4xf32>
    %41 = vector.shape_cast %40 : vector<1x16x16x4xf32> to vector<16x16x4xf32>
    %42 = vector.shape_cast %41 : vector<16x16x4xf32> to vector<256x4xf32>
    %43 = arith.truncf %42 : vector<256x4xf32> to vector<256x4xbf16>
    %c1_43 = arith.constant 1 : index
    %c0_44 = arith.constant 0 : index
    %c0_45 = arith.constant 0 : index
    %c0_46 = arith.constant 0 : index
    %44 = vector.load %arg2[%c1_43, %c0_44, %c0_45, %c0_46] : memref<4x4x4x8xbf16, #tpu.memory_space<vmem>>, vector<1x1x4x8xbf16>
    %45 = vector.shape_cast %44 : vector<1x1x4x8xbf16> to vector<4x8xbf16>
    %cst_47 = arith.constant dense<0.000000e+00> : vector<256x8xf32>
    %46 = tpu.matmul %43, %45, %cst_47 {dimension_numbers = #tpu.dot_dimension_numbers<[1], [0], [0], [1], [0, 0, 1, 1], [], []>} : vector<256x4xbf16>, vector<4x8xbf16>, vector<256x8xf32> -> vector<256x8xf32>
    %47 = arith.addf %39, %46 : vector<256x8xf32>
    %c0_48 = arith.constant 0 : index
    %c0_49 = arith.constant 0 : index
    %c2_50 = arith.constant 2 : index
    %c0_51 = arith.constant 0 : index
    %48 = vector.load %arg1[%c0_48, %c0_49, %c2_50, %c0_51] : memref<1x18x18x4xf32, #tpu.memory_space<vmem>>, vector<1x16x16x4xf32>
    %49 = vector.shape_cast %48 : vector<1x16x16x4xf32> to vector<16x16x4xf32>
    %50 = vector.shape_cast %49 : vector<16x16x4xf32> to vector<256x4xf32>
    %51 = arith.truncf %50 : vector<256x4xf32> to vector<256x4xbf16>
    %c1_52 = arith.constant 1 : index
    %c1_53 = arith.constant 1 : index
    %c0_54 = arith.constant 0 : index
    %c0_55 = arith.constant 0 : index
    %52 = vector.load %arg2[%c1_52, %c1_53, %c0_54, %c0_55] : memref<4x4x4x8xbf16, #tpu.memory_space<vmem>>, vector<1x1x4x8xbf16>
    %53 = vector.shape_cast %52 : vector<1x1x4x8xbf16> to vector<4x8xbf16>
    %cst_56 = arith.constant dense<0.000000e+00> : vector<256x8xf32>
    %54 = tpu.matmul %51, %53, %cst_56 {dimension_numbers = #tpu.dot_dimension_numbers<[1], [0], [0], [1], [0, 0, 1, 1], [], []>} : vector<256x4xbf16>, vector<4x8xbf16>, vector<256x8xf32> -> vector<256x8xf32>
    %55 = arith.addf %47, %54 : vector<256x8xf32>
    %c0_57 = arith.constant 0 : index
    %c1_58 = arith.constant 1 : index
    %c1_59 = arith.constant 1 : index
    %c0_60 = arith.constant 0 : index
    %56 = vector.load %arg1[%c0_57, %c1_58, %c1_59, %c0_60] : memref<1x18x18x4xf32, #tpu.memory_space<vmem>>, vector<1x16x16x4xf32>
    %57 = vector.shape_cast %56 : vector<1x16x16x4xf32> to vector<16x16x4xf32>
    %58 = vector.shape_cast %57 : vector<16x16x4xf32> to vector<256x4xf32>
    %59 = arith.truncf %58 : vector<256x4xf32> to vector<256x4xbf16>
    %c1_61 = arith.constant 1 : index
    %c2_62 = arith.constant 2 : index
    %c0_63 = arith.constant 0 : index
    %c0_64 = arith.constant 0 : index
    %60 = vector.load %arg2[%c1_61, %c2_62, %c0_63, %c0_64] : memref<4x4x4x8xbf16, #tpu.memory_space<vmem>>, vector<1x1x4x8xbf16>
    %61 = vector.shape_cast %60 : vector<1x1x4x8xbf16> to vector<4x8xbf16>
    %cst_65 = arith.constant dense<0.000000e+00> : vector<256x8xf32>
    %62 = tpu.matmul %59, %61, %cst_65 {dimension_numbers = #tpu.dot_dimension_numbers<[1], [0], [0], [1], [0, 0, 1, 1], [], []>} : vector<256x4xbf16>, vector<4x8xbf16>, vector<256x8xf32> -> vector<256x8xf32>
    %63 = arith.addf %55, %62 : vector<256x8xf32>
    %c0_66 = arith.constant 0 : index
    %c1_67 = arith.constant 1 : index
    %c2_68 = arith.constant 2 : index
    %c0_69 = arith.constant 0 : index
    %64 = vector.load %arg1[%c0_66, %c1_67, %c2_68, %c0_69] : memref<1x18x18x4xf32, #tpu.memory_space<vmem>>, vector<1x16x16x4xf32>
    %65 = vector.shape_cast %64 : vector<1x16x16x4xf32> to vector<16x16x4xf32>
    %66 = vector.shape_cast %65 : vector<16x16x4xf32> to vector<256x4xf32>
    %67 = arith.truncf %66 : vector<256x4xf32> to vector<256x4xbf16>
    %c1_70 = arith.constant 1 : index
    %c3_71 = arith.constant 3 : index
    %c0_72 = arith.constant 0 : index
    %c0_73 = arith.constant 0 : index
    %68 = vector.load %arg2[%c1_70, %c3_71, %c0_72, %c0_73] : memref<4x4x4x8xbf16, #tpu.memory_space<vmem>>, vector<1x1x4x8xbf16>
    %69 = vector.shape_cast %68 : vector<1x1x4x8xbf16> to vector<4x8xbf16>
    %cst_74 = arith.constant dense<0.000000e+00> : vector<256x8xf32>
    %70 = tpu.matmul %67, %69, %cst_74 {dimension_numbers = #tpu.dot_dimension_numbers<[1], [0], [0], [1], [0, 0, 1, 1], [], []>} : vector<256x4xbf16>, vector<4x8xbf16>, vector<256x8xf32> -> vector<256x8xf32>
    %71 = arith.addf %63, %70 : vector<256x8xf32>
    %c0_75 = arith.constant 0 : index
    %c0_76 = arith.constant 0 : index
    %72 = vector.load %arg3[%c0_75, %c0_76] : memref<1x8xf32, #tpu.memory_space<vmem>>, vector<1x8xf32>
    %73 = vector.broadcast %72 : vector<1x8xf32> to vector<256x8xf32>
    %74 = arith.addf %71, %73 : vector<256x8xf32>
    %c0_77 = arith.constant 0 : index
    %c1_78 = arith.constant 1 : index
    %c0_79 = arith.constant 0 : index
    %c0_80 = arith.constant 0 : index
    %75 = vector.load %arg4[%c0_77, %c1_78, %c0_79, %c0_80] : memref<1x4x256x8xf32, #tpu.memory_space<vmem>>, vector<1x1x256x8xf32>
    %76 = vector.shape_cast %75 : vector<1x1x256x8xf32> to vector<256x8xf32>
    %77 = vector.shape_cast %74 : vector<256x8xf32> to vector<1x1x256x8xf32>
    tpu.vector_store %arg4[%c0_77, %c1_78, %c0_79, %c0_80], %77 {strides = array<i32>} : memref<1x4x256x8xf32, #tpu.memory_space<vmem>>, vector<1x1x256x8xf32>,
    %cst_81 = arith.constant 0.000000e+00 : f32
    %78 = vector.broadcast %cst_81 : f32 to vector<256x8xf32>
    %c0_82 = arith.constant 0 : index
    %c1_83 = arith.constant 1 : index
    %c0_84 = arith.constant 0 : index
    %c0_85 = arith.constant 0 : index
    %79 = vector.load %arg1[%c0_82, %c1_83, %c0_84, %c0_85] : memref<1x18x18x4xf32, #tpu.memory_space<vmem>>, vector<1x16x16x4xf32>
    %80 = vector.shape_cast %79 : vector<1x16x16x4xf32> to vector<16x16x4xf32>
    %81 = vector.shape_cast %80 : vector<16x16x4xf32> to vector<256x4xf32>
    %82 = arith.truncf %81 : vector<256x4xf32> to vector<256x4xbf16>
    %c2_86 = arith.constant 2 : index
    %c0_87 = arith.constant 0 : index
    %c0_88 = arith.constant 0 : index
    %c0_89 = arith.constant 0 : index
    %83 = vector.load %arg2[%c2_86, %c0_87, %c0_88, %c0_89] : memref<4x4x4x8xbf16, #tpu.memory_space<vmem>>, vector<1x1x4x8xbf16>
    %84 = vector.shape_cast %83 : vector<1x1x4x8xbf16> to vector<4x8xbf16>
    %cst_90 = arith.constant dense<0.000000e+00> : vector<256x8xf32>
    %85 = tpu.matmul %82, %84, %cst_90 {dimension_numbers = #tpu.dot_dimension_numbers<[1], [0], [0], [1], [0, 0, 1, 1], [], []>} : vector<256x4xbf16>, vector<4x8xbf16>, vector<256x8xf32> -> vector<256x8xf32>
    %86 = arith.addf %78, %85 : vector<256x8xf32>
    %c0_91 = arith.constant 0 : index
    %c1_92 = arith.constant 1 : index
    %c1_93 = arith.constant 1 : index
    %c0_94 = arith.constant 0 : index
    %87 = vector.load %arg1[%c0_91, %c1_92, %c1_93, %c0_94] : memref<1x18x18x4xf32, #tpu.memory_space<vmem>>, vector<1x16x16x4xf32>
    %88 = vector.shape_cast %87 : vector<1x16x16x4xf32> to vector<16x16x4xf32>
    %89 = vector.shape_cast %88 : vector<16x16x4xf32> to vector<256x4xf32>
    %90 = arith.truncf %89 : vector<256x4xf32> to vector<256x4xbf16>
    %c2_95 = arith.constant 2 : index
    %c1_96 = arith.constant 1 : index
    %c0_97 = arith.constant 0 : index
    %c0_98 = arith.constant 0 : index
    %91 = vector.load %arg2[%c2_95, %c1_96, %c0_97, %c0_98] : memref<4x4x4x8xbf16, #tpu.memory_space<vmem>>, vector<1x1x4x8xbf16>
    %92 = vector.shape_cast %91 : vector<1x1x4x8xbf16> to vector<4x8xbf16>
    %cst_99 = arith.constant dense<0.000000e+00> : vector<256x8xf32>
    %93 = tpu.matmul %90, %92, %cst_99 {dimension_numbers = #tpu.dot_dimension_numbers<[1], [0], [0], [1], [0, 0, 1, 1], [], []>} : vector<256x4xbf16>, vector<4x8xbf16>, vector<256x8xf32> -> vector<256x8xf32>
    %94 = arith.addf %86, %93 : vector<256x8xf32>
    %c0_100 = arith.constant 0 : index
    %c2_101 = arith.constant 2 : index
    %c0_102 = arith.constant 0 : index
    %c0_103 = arith.constant 0 : index
    %95 = vector.load %arg1[%c0_100, %c2_101, %c0_102, %c0_103] : memref<1x18x18x4xf32, #tpu.memory_space<vmem>>, vector<1x16x16x4xf32>
    %96 = vector.shape_cast %95 : vector<1x16x16x4xf32> to vector<16x16x4xf32>
    %97 = vector.shape_cast %96 : vector<16x16x4xf32> to vector<256x4xf32>
    %98 = arith.truncf %97 : vector<256x4xf32> to vector<256x4xbf16>
    %c2_104 = arith.constant 2 : index
    %c2_105 = arith.constant 2 : index
    %c0_106 = arith.constant 0 : index
    %c0_107 = arith.constant 0 : index
    %99 = vector.load %arg2[%c2_104, %c2_105, %c0_106, %c0_107] : memref<4x4x4x8xbf16, #tpu.memory_space<vmem>>, vector<1x1x4x8xbf16>
    %100 = vector.shape_cast %99 : vector<1x1x4x8xbf16> to vector<4x8xbf16>
    %cst_108 = arith.constant dense<0.000000e+00> : vector<256x8xf32>
    %101 = tpu.matmul %98, %100, %cst_108 {dimension_numbers = #tpu.dot_dimension_numbers<[1], [0], [0], [1], [0, 0, 1, 1], [], []>} : vector<256x4xbf16>, vector<4x8xbf16>, vector<256x8xf32> -> vector<256x8xf32>
    %102 = arith.addf %94, %101 : vector<256x8xf32>
    %c0_109 = arith.constant 0 : index
    %c2_110 = arith.constant 2 : index
    %c1_111 = arith.constant 1 : index
    %c0_112 = arith.constant 0 : index
    %103 = vector.load %arg1[%c0_109, %c2_110, %c1_111, %c0_112] : memref<1x18x18x4xf32, #tpu.memory_space<vmem>>, vector<1x16x16x4xf32>
    %104 = vector.shape_cast %103 : vector<1x16x16x4xf32> to vector<16x16x4xf32>
    %105 = vector.shape_cast %104 : vector<16x16x4xf32> to vector<256x4xf32>
    %106 = arith.truncf %105 : vector<256x4xf32> to vector<256x4xbf16>
    %c2_113 = arith.constant 2 : index
    %c3_114 = arith.constant 3 : index
    %c0_115 = arith.constant 0 : index
    %c0_116 = arith.constant 0 : index
    %107 = vector.load %arg2[%c2_113, %c3_114, %c0_115, %c0_116] : memref<4x4x4x8xbf16, #tpu.memory_space<vmem>>, vector<1x1x4x8xbf16>
    %108 = vector.shape_cast %107 : vector<1x1x4x8xbf16> to vector<4x8xbf16>
    %cst_117 = arith.constant dense<0.000000e+00> : vector<256x8xf32>
    %109 = tpu.matmul %106, %108, %cst_117 {dimension_numbers = #tpu.dot_dimension_numbers<[1], [0], [0], [1], [0, 0, 1, 1], [], []>} : vector<256x4xbf16>, vector<4x8xbf16>, vector<256x8xf32> -> vector<256x8xf32>
    %110 = arith.addf %102, %109 : vector<256x8xf32>
    %c0_118 = arith.constant 0 : index
    %c0_119 = arith.constant 0 : index
    %111 = vector.load %arg3[%c0_118, %c0_119] : memref<1x8xf32, #tpu.memory_space<vmem>>, vector<1x8xf32>
    %112 = vector.broadcast %111 : vector<1x8xf32> to vector<256x8xf32>
    %113 = arith.addf %110, %112 : vector<256x8xf32>
    %c0_120 = arith.constant 0 : index
    %c2_121 = arith.constant 2 : index
    %c0_122 = arith.constant 0 : index
    %c0_123 = arith.constant 0 : index
    %114 = vector.load %arg4[%c0_120, %c2_121, %c0_122, %c0_123] : memref<1x4x256x8xf32, #tpu.memory_space<vmem>>, vector<1x1x256x8xf32>
    %115 = vector.shape_cast %114 : vector<1x1x256x8xf32> to vector<256x8xf32>
    %116 = vector.shape_cast %113 : vector<256x8xf32> to vector<1x1x256x8xf32>
    tpu.vector_store %arg4[%c0_120, %c2_121, %c0_122, %c0_123], %116 {strides = array<i32>} : memref<1x4x256x8xf32, #tpu.memory_space<vmem>>, vector<1x1x256x8xf32>,
    %cst_124 = arith.constant 0.000000e+00 : f32
    %117 = vector.broadcast %cst_124 : f32 to vector<256x8xf32>
    %c0_125 = arith.constant 0 : index
    %c1_126 = arith.constant 1 : index
    %c1_127 = arith.constant 1 : index
    %c0_128 = arith.constant 0 : index
    %118 = vector.load %arg1[%c0_125, %c1_126, %c1_127, %c0_128] : memref<1x18x18x4xf32, #tpu.memory_space<vmem>>, vector<1x16x16x4xf32>
    %119 = vector.shape_cast %118 : vector<1x16x16x4xf32> to vector<16x16x4xf32>
    %120 = vector.shape_cast %119 : vector<16x16x4xf32> to vector<256x4xf32>
    %121 = arith.truncf %120 : vector<256x4xf32> to vector<256x4xbf16>
    %c3_129 = arith.constant 3 : index
    %c0_130 = arith.constant 0 : index
    %c0_131 = arith.constant 0 : index
    %c0_132 = arith.constant 0 : index
    %122 = vector.load %arg2[%c3_129, %c0_130, %c0_131, %c0_132] : memref<4x4x4x8xbf16, #tpu.memory_space<vmem>>, vector<1x1x4x8xbf16>
    %123 = vector.shape_cast %122 : vector<1x1x4x8xbf16> to vector<4x8xbf16>
    %cst_133 = arith.constant dense<0.000000e+00> : vector<256x8xf32>
    %124 = tpu.matmul %121, %123, %cst_133 {dimension_numbers = #tpu.dot_dimension_numbers<[1], [0], [0], [1], [0, 0, 1, 1], [], []>} : vector<256x4xbf16>, vector<4x8xbf16>, vector<256x8xf32> -> vector<256x8xf32>
    %125 = arith.addf %117, %124 : vector<256x8xf32>
    %c0_134 = arith.constant 0 : index
    %c1_135 = arith.constant 1 : index
    %c2_136 = arith.constant 2 : index
    %c0_137 = arith.constant 0 : index
    %126 = vector.load %arg1[%c0_134, %c1_135, %c2_136, %c0_137] : memref<1x18x18x4xf32, #tpu.memory_space<vmem>>, vector<1x16x16x4xf32>
    %127 = vector.shape_cast %126 : vector<1x16x16x4xf32> to vector<16x16x4xf32>
    %128 = vector.shape_cast %127 : vector<16x16x4xf32> to vector<256x4xf32>
    %129 = arith.truncf %128 : vector<256x4xf32> to vector<256x4xbf16>
    %c3_138 = arith.constant 3 : index
    %c1_139 = arith.constant 1 : index
    %c0_140 = arith.constant 0 : index
    %c0_141 = arith.constant 0 : index
    %130 = vector.load %arg2[%c3_138, %c1_139, %c0_140, %c0_141] : memref<4x4x4x8xbf16, #tpu.memory_space<vmem>>, vector<1x1x4x8xbf16>
    %131 = vector.shape_cast %130 : vector<1x1x4x8xbf16> to vector<4x8xbf16>
    %cst_142 = arith.constant dense<0.000000e+00> : vector<256x8xf32>
    %132 = tpu.matmul %129, %131, %cst_142 {dimension_numbers = #tpu.dot_dimension_numbers<[1], [0], [0], [1], [0, 0, 1, 1], [], []>} : vector<256x4xbf16>, vector<4x8xbf16>, vector<256x8xf32> -> vector<256x8xf32>
    %133 = arith.addf %125, %132 : vector<256x8xf32>
    %c0_143 = arith.constant 0 : index
    %c2_144 = arith.constant 2 : index
    %c1_145 = arith.constant 1 : index
    %c0_146 = arith.constant 0 : index
    %134 = vector.load %arg1[%c0_143, %c2_144, %c1_145, %c0_146] : memref<1x18x18x4xf32, #tpu.memory_space<vmem>>, vector<1x16x16x4xf32>
    %135 = vector.shape_cast %134 : vector<1x16x16x4xf32> to vector<16x16x4xf32>
    %136 = vector.shape_cast %135 : vector<16x16x4xf32> to vector<256x4xf32>
    %137 = arith.truncf %136 : vector<256x4xf32> to vector<256x4xbf16>
    %c3_147 = arith.constant 3 : index
    %c2_148 = arith.constant 2 : index
    %c0_149 = arith.constant 0 : index
    %c0_150 = arith.constant 0 : index
    %138 = vector.load %arg2[%c3_147, %c2_148, %c0_149, %c0_150] : memref<4x4x4x8xbf16, #tpu.memory_space<vmem>>, vector<1x1x4x8xbf16>
    %139 = vector.shape_cast %138 : vector<1x1x4x8xbf16> to vector<4x8xbf16>
    %cst_151 = arith.constant dense<0.000000e+00> : vector<256x8xf32>
    %140 = tpu.matmul %137, %139, %cst_151 {dimension_numbers = #tpu.dot_dimension_numbers<[1], [0], [0], [1], [0, 0, 1, 1], [], []>} : vector<256x4xbf16>, vector<4x8xbf16>, vector<256x8xf32> -> vector<256x8xf32>
    %141 = arith.addf %133, %140 : vector<256x8xf32>
    %c0_152 = arith.constant 0 : index
    %c2_153 = arith.constant 2 : index
    %c2_154 = arith.constant 2 : index
    %c0_155 = arith.constant 0 : index
    %142 = vector.load %arg1[%c0_152, %c2_153, %c2_154, %c0_155] : memref<1x18x18x4xf32, #tpu.memory_space<vmem>>, vector<1x16x16x4xf32>
    %143 = vector.shape_cast %142 : vector<1x16x16x4xf32> to vector<16x16x4xf32>
    %144 = vector.shape_cast %143 : vector<16x16x4xf32> to vector<256x4xf32>
    %145 = arith.truncf %144 : vector<256x4xf32> to vector<256x4xbf16>
    %c3_156 = arith.constant 3 : index
    %c3_157 = arith.constant 3 : index
    %c0_158 = arith.constant 0 : index
    %c0_159 = arith.constant 0 : index
    %146 = vector.load %arg2[%c3_156, %c3_157, %c0_158, %c0_159] : memref<4x4x4x8xbf16, #tpu.memory_space<vmem>>, vector<1x1x4x8xbf16>
    %147 = vector.shape_cast %146 : vector<1x1x4x8xbf16> to vector<4x8xbf16>
    %cst_160 = arith.constant dense<0.000000e+00> : vector<256x8xf32>
    %148 = tpu.matmul %145, %147, %cst_160 {dimension_numbers = #tpu.dot_dimension_numbers<[1], [0], [0], [1], [0, 0, 1, 1], [], []>} : vector<256x4xbf16>, vector<4x8xbf16>, vector<256x8xf32> -> vector<256x8xf32>
    %149 = arith.addf %141, %148 : vector<256x8xf32>
    %c0_161 = arith.constant 0 : index
    %c0_162 = arith.constant 0 : index
    %150 = vector.load %arg3[%c0_161, %c0_162] : memref<1x8xf32, #tpu.memory_space<vmem>>, vector<1x8xf32>
    %151 = vector.broadcast %150 : vector<1x8xf32> to vector<256x8xf32>
    %152 = arith.addf %149, %151 : vector<256x8xf32>
    %c0_163 = arith.constant 0 : index
    %c3_164 = arith.constant 3 : index
    %c0_165 = arith.constant 0 : index
    %c0_166 = arith.constant 0 : index
    %153 = vector.load %arg4[%c0_163, %c3_164, %c0_165, %c0_166] : memref<1x4x256x8xf32, #tpu.memory_space<vmem>>, vector<1x1x256x8xf32>
    %154 = vector.shape_cast %153 : vector<1x1x256x8xf32> to vector<256x8xf32>
    %155 = vector.shape_cast %152 : vector<256x8xf32> to vector<1x1x256x8xf32>
    tpu.vector_store %arg4[%c0_163, %c3_164, %c0_165, %c0_166], %155 {strides = array<i32>} : memref<1x4x256x8xf32, #tpu.memory_space<vmem>>, vector<1x1x256x8xf32>,
    return
  }
  func.func @transform_0(%arg0: i32) -> (i32, i32, i32, i32) {
    %c0_i32 = arith.constant 0 : i32
    %c0_i32_0 = arith.constant 0 : i32
    %c0_i32_1 = arith.constant 0 : i32
    %c0_i32_2 = arith.constant 0 : i32
    return %arg0, %c0_i32, %c0_i32_0, %c0_i32_1 : i32, i32, i32, i32
  }
  func.func @transform_1(%arg0: i32) -> (i32, i32, i32, i32) {
    %c0_i32 = arith.constant 0 : i32
    %c0_i32_0 = arith.constant 0 : i32
    %c0_i32_1 = arith.constant 0 : i32
    %c0_i32_2 = arith.constant 0 : i32
    %c0_i32_3 = arith.constant 0 : i32
    return %c0_i32, %c0_i32_0, %c0_i32_1, %c0_i32_2 : i32, i32, i32, i32
  }
  func.func @transform_2(%arg0: i32) -> (i32, i32) {
    %c0_i32 = arith.constant 0 : i32
    %c0_i32_0 = arith.constant 0 : i32
    %c0_i32_1 = arith.constant 0 : i32
    return %c0_i32, %c0_i32_0 : i32, i32
  }
  func.func @transform_3(%arg0: i32) -> (i32, i32, i32, i32) {
    %c0_i32 = arith.constant 0 : i32
    %c0_i32_0 = arith.constant 0 : i32
    %c0_i32_1 = arith.constant 0 : i32
    %c0_i32_2 = arith.constant 0 : i32
    return %arg0, %c0_i32, %c0_i32_0, %c0_i32_1 : i32, i32, i32, i32
  }
}

</mosaic_0001>

<llo_original>
// kernel: decoder_forward.6
$region0: #{decoder_forward.6}
  #allocation0 [shape = 'u32[]', space=smem, size = 0x4, offset = 0x4, fixed_abs, tag = 'smem constant byte address 0x4 - core index']
  #allocation1 [shape = 'u32[144,128]{1,0:T(1,128)}', space=vmem, size = 0x12000, scoped, tag = 'internal scratch']
  %s0 = inlined_call_operand.vmem [shape: f32[2,18,18,4], index: 0, kind: input, shape index: {}]
  %s1 = inlined_call_operand.vmem [shape: bf16[9,4,4], index: 1, kind: input, shape index: {}]
  %s2 = inlined_call_operand.vmem [shape: f32[1,4], index: 2, kind: input, shape index: {}]
  %s3 = inlined_call_operand.vmem [shape: f32[2,256,4], index: 3, kind: input, shape index: {}]
  %s4 = inlined_call_operand.vmem [shape: f32[2,256,4], index: 4, kind: output, shape index: {}]
  %s5 = sld [smem:[#allocation0]]
  $region49: #{decoder_forward.6} parent=0
    _
  %s7 = ssub.s32 1, %s5
  %s8 = scalar_select 0, %s7, %s5
  loop: start=0, step=1, limit=4
  $region2: #{decoder_forward.6} parent=0 // loop_pre_header
    _
  $region3: #{decoder_forward.6} parent=0 // loop_header
    %s10 = sphi 0, %s14
    %p11 = scmp.ge.s32.totalorder %s10, 4
    %s20 = sphi 0, %s22
    %s23 = sphi 0, %s20
    %s24 = sphi 0, %s23
    %s40 = sphi 0, %s24
    %s44 = sphi 0, %s44
    %s46 = sphi 0, %s44
    %s47 = sphi 0, %s46
    %s61 = sphi 0, %s47
    %s65 = sphi 0, %s65
    %s67 = sphi 0, %s65
    %s68 = sphi 0, %s67
    %s82 = sphi 0, %s68
    %s88 = sphi 0, %s90
    %s91 = sphi 0, %s88
    %s92 = sphi 0, %s91
    %s108 = sphi 0, %s92
    %s114 = sphi 0, %s116
    %s117 = sphi 0, %s114
    %s118 = sphi 0, %s117
    %s134 = sphi 0, %s118
  $region4: #{decoder_forward.6} parent=0 // loop_header_branch
    %13 = sbr.rel (%p11) target = $region8
  $region5: #{decoder_forward.6} parent=0 // loop_body
    %s15 = ssub.s32 %s10, 1
    %s16 = ssub.s32 %s10, 2
    %s17 = sadd.s32 %s10, 1
    %s18 = ssub.s32 %s10, %s17
    %p19 = scmp.eq.s32.totalorder %s18, 0
    %s21 = sadd.s32 %s20, 1
    %s22 = scalar_select %p19, %s20, %s21
    %p25 = pneg %p19
    %p26 = scmp.eq.s32.totalorder %s10, 1
    %p27 = por %p25, %p26
    %p28 = scmp.ne.s32.totalorder %s20, %s23
    %p29 = scmp.eq.s32.totalorder %s10, 0
    %p30 = por %p28, %p29
    %p31 = scmp.ne.s32.totalorder %s20, %s23
    %p32 = scmp.eq.s32.totalorder %s15, 1
    %p33 = por %p31, %p32
    %p34 = scmp.ne.s32.totalorder %s23, %s24
    %p35 = scmp.eq.s32.totalorder %s15, 0
    %p36 = por %p34, %p35
    %p37 = scmp.ne.s32.totalorder %s23, %s24
    %p38 = scmp.eq.s32.totalorder %s16, 1
    %p39 = por %p37, %p38
    %p41 = scmp.ne.s32.totalorder %s24, %s40
    %p42 = scmp.eq.s32.totalorder %s16, 0
    %p43 = por %p41, %p42
    %s45 = sadd.s32 %s44, 1
    %p48 = scmp.eq.s32.totalorder %s10, 1
    %p49 = scmp.ne.s32.totalorder %s44, %s46
    %p50 = scmp.eq.s32.totalorder %s10, 0
    %p51 = por %p49, %p50
    %p52 = scmp.ne.s32.totalorder %s44, %s46
    %p53 = scmp.eq.s32.totalorder %s15, 1
    %p54 = por %p52, %p53
    %p55 = scmp.ne.s32.totalorder %s46, %s47
    %p56 = scmp.eq.s32.totalorder %s15, 0
    %p57 = por %p55, %p56
    %p58 = scmp.ne.s32.totalorder %s46, %s47
    %p59 = scmp.eq.s32.totalorder %s16, 1
    %p60 = por %p58, %p59
    %p62 = scmp.ne.s32.totalorder %s47, %s61
    %p63 = scmp.eq.s32.totalorder %s16, 0
    %p64 = por %p62, %p63
    %s66 = sadd.s32 %s65, 1
    %p69 = scmp.eq.s32.totalorder %s10, 1
    %p70 = scmp.ne.s32.totalorder %s65, %s67
    %p71 = scmp.eq.s32.totalorder %s10, 0
    %p72 = por %p70, %p71
    %p73 = scmp.ne.s32.totalorder %s65, %s67
    %p74 = scmp.eq.s32.totalorder %s15, 1
    %p75 = por %p73, %p74
    %p76 = scmp.ne.s32.totalorder %s67, %s68
    %p77 = scmp.eq.s32.totalorder %s15, 0
    %p78 = por %p76, %p77
    %p79 = scmp.ne.s32.totalorder %s67, %s68
    %p80 = scmp.eq.s32.totalorder %s16, 1
    %p81 = por %p79, %p80
    %p83 = scmp.ne.s32.totalorder %s68, %s82
    %p84 = scmp.eq.s32.totalorder %s16, 0
    %p85 = por %p83, %p84
    %s86 = ssub.s32 %s10, %s17
    %p87 = scmp.eq.s32.totalorder %s86, 0
    %s89 = sadd.s32 %s88, 1
    %s90 = scalar_select %p87, %s88, %s89
    %p93 = pneg %p87
    %p94 = scmp.eq.s32.totalorder %s10, 1
    %p95 = por %p93, %p94
    %p96 = scmp.ne.s32.totalorder %s88, %s91
    %p97 = scmp.eq.s32.totalorder %s10, 0
    %p98 = por %p96, %p97
    %p99 = scmp.ne.s32.totalorder %s88, %s91
    %p100 = scmp.eq.s32.totalorder %s15, 1
    %p101 = por %p99, %p100
    %p102 = scmp.ne.s32.totalorder %s91, %s92
    %p103 = scmp.eq.s32.totalorder %s15, 0
    %p104 = por %p102, %p103
    %p105 = scmp.ne.s32.totalorder %s91, %s92
    %p106 = scmp.eq.s32.totalorder %s16, 1
    %p107 = por %p105, %p106
    %p109 = scmp.ne.s32.totalorder %s92, %s108
    %p110 = scmp.eq.s32.totalorder %s16, 0
    %p111 = por %p109, %p110
    %s112 = ssub.s32 %s10, %s17
    %p113 = scmp.eq.s32.totalorder %s112, 0
    %s115 = sadd.s32 %s114, 1
    %s116 = scalar_select %p113, %s114, %s115
    %p119 = pneg %p113
    %p120 = scmp.eq.s32.totalorder %s10, 1
    %p121 = por %p119, %p120
    %p122 = scmp.ne.s32.totalorder %s114, %s117
    %p123 = scmp.eq.s32.totalorder %s10, 0
    %p124 = por %p122, %p123
    %p125 = scmp.ne.s32.totalorder %s114, %s117
    %p126 = scmp.eq.s32.totalorder %s15, 1
    %p127 = por %p125, %p126
    %p128 = scmp.ne.s32.totalorder %s117, %s118
    %p129 = scmp.eq.s32.totalorder %s15, 0
    %p130 = por %p128, %p129
    %p131 = scmp.ne.s32.totalorder %s117, %s118
    %p132 = scmp.eq.s32.totalorder %s16, 1
    %p133 = por %p131, %p132
    %p135 = scmp.ne.s32.totalorder %s118, %s134
    %p136 = scmp.eq.s32.totalorder %s16, 0
    %p137 = por %p135, %p136
    %p138 = scmp.le.s32.totalorder 1, %s10
    %p139 = scmp.lt.s32.totalorder %s10, 3
    %p140 = pnand %p138, %p139
    %p141 = pneg %p140
    // Predicated region
    $region9: #{decoder_forward.6} parent=5 // pred_check
      _
    $region10: #{decoder_forward.6} parent=5 // pred_check_branch
      %143 = sbr.rel (%p140) target = $region12
    $region11: #{decoder_forward.6} parent=5 // pred_region
      %s144 = ssub.s32 %s10, 1
      // Predicated region
      $region13: #{decoder_forward.6} parent=11 // pred_check
        %p145 = pneg %p57
      $region14: #{decoder_forward.6} parent=11 // pred_check_branch
        %147 = sbr.rel (%p145) target = $region16
      $region15: #{decoder_forward.6} parent=11 // pred_region
        _
      $region16: #{decoder_forward.6} parent=11 // pred_fallthru
        _
      // Predicated region
      $region17: #{decoder_forward.6} parent=11 // pred_check
        %p148 = pneg %p78
      $region18: #{decoder_forward.6} parent=11 // pred_check_branch
        %150 = sbr.rel (%p148) target = $region20
      $region19: #{decoder_forward.6} parent=11 // pred_region
        _
      $region20: #{decoder_forward.6} parent=11 // pred_fallthru
        _
    $region12: #{decoder_forward.6} parent=5 // pred_fallthru
      _
    %p151 = scmp.lt.s32.totalorder %s10, 2
    // Predicated region
    $region21: #{decoder_forward.6} parent=5 // pred_check
      %p152 = pneg %p151
    $region22: #{decoder_forward.6} parent=5 // pred_check_branch
      %154 = sbr.rel (%p152) target = $region24
    $region23: #{decoder_forward.6} parent=5 // pred_region
      // Predicated region
      $region25: #{decoder_forward.6} parent=23 // pred_check
        %p155 = pneg %p30
      $region26: #{decoder_forward.6} parent=23 // pred_check_branch
        %157 = sbr.rel (%p155) target = $region28
      $region27: #{decoder_forward.6} parent=23 // pred_region
        %p158 = scmp.lt.s32.totalorder %s10, 1
        %s159 = scalar_select %p158, %s10, 1
        %s160 = smul.addr %s159, 54
        %s161 = smul.addr %s160, 8
        %s162 = scalar_lea.vmem %s0, %s161
      $region28: #{decoder_forward.6} parent=23 // pred_fallthru
        _
      // Predicated region
      $region29: #{decoder_forward.6} parent=23 // pred_check
        %p163 = pneg %p98
      $region30: #{decoder_forward.6} parent=23 // pred_check_branch
        %165 = sbr.rel (%p163) target = $region32
      $region31: #{decoder_forward.6} parent=23 // pred_region
        %p166 = scmp.lt.s32.totalorder %s10, 1
        %s167 = scalar_select %p166, %s10, 1
        %s168 = smul.addr %s167, 32
        %s169 = smul.addr %s168, 8
        %s170 = scalar_lea.vmem %s3, %s169
      $region32: #{decoder_forward.6} parent=23 // pred_fallthru
        _
    $region24: #{decoder_forward.6} parent=5 // pred_fallthru
      _
    %p171 = scmp.le.s32.totalorder 1, %s10
    %p172 = scmp.lt.s32.totalorder %s10, 3
    %p173 = pnand %p171, %p172
    %p174 = pneg %p173
    // Predicated region
    $region33: #{decoder_forward.6} parent=5 // pred_check
      _
    $region34: #{decoder_forward.6} parent=5 // pred_check_branch
      %176 = sbr.rel (%p173) target = $region36
    $region35: #{decoder_forward.6} parent=5 // pred_region
      %s177 = ssub.s32 %s10, 1
      %p178 = scmp.lt.s32.totalorder %s15, 1
      %s179 = scalar_select %p178, %s15, 1
      %s180 = smul.addr %s179, 54
      %s181 = smul.addr %s180, 8
      %s182 = scalar_lea.vmem %s0, %s181
      %p183 = pneg %p36
      %p184 = pneg %p33
      %p185 = pneg %p57
      %p186 = pneg %p54
      %p187 = pneg %p78
      %p188 = pneg %p75
      %p189 = scmp.lt.s32.totalorder %s15, 1
      %s190 = scalar_select %p189, %s15, 1
      %s191 = smul.addr %s190, 32
      %s192 = smul.addr %s191, 8
      %s193 = scalar_lea.vmem %s3, %s192
      %p194 = pneg %p104
      %p195 = pneg %p101
      %p196 = pneg %p130
      %p197 = pneg %p127
      %p198 = scmp.lt.s32.totalorder %s15, 1
      %s199 = scalar_select %p198, %s15, 1
      %s200 = smul.addr %s199, 32
      %s201 = smul.addr %s200, 8
      %s202 = scalar_lea.vmem %s4, %s201
      %p203 = scmp.lt.s32.totalorder %s15, 1
      %s204 = scalar_select %p203, %s15, 1
      %s205 = smul.addr %s204, 54
      %s206 = smul.addr %s205, 8
      %s207 = scalar_lea.vmem %s0, %s206
      %p208 = scmp.lt.s32.totalorder %s15, 1
      %s209 = scalar_select %p208, %s15, 1
      %s210 = smul.addr %s209, 32
      %s211 = smul.addr %s210, 8
      %s212 = scalar_lea.vmem %s3, %s211
      %p213 = scmp.lt.s32.totalorder %s15, 1
      %s214 = scalar_select %p213, %s15, 1
      %s215 = smul.addr %s214, 32
      %s216 = smul.addr %s215, 8
      %s217 = scalar_lea.vmem %s4, %s216
      %v219 = vld [vmem:[%s207] sm:$0xff]
      %v220 = vld [vmem:[%s207 + $0x8] sm:$0xff]
      %v221 = vld [vmem:[%s207 + $0x18] sm:$0xff]
      %v222 = vld [vmem:[%s207 + $0x20] sm:$0xff]
      %v223 = vld [vmem:[%s207 + $0x30] sm:$0xff]
      %v224 = vld [vmem:[%s207 + $0x38] sm:$0xff]
      %v225 = vld [vmem:[%s207 + $0x48] sm:$0xff]
      %v226 = vld [vmem:[%s207 + $0x50] sm:$0xff]
      %v227 = vld [vmem:[%s207 + $0x60] sm:$0xff]
      %v228 = vld [vmem:[%s207 + $0x68] sm:$0xff]
      %v229 = vld [vmem:[%s207 + $0x78] sm:$0xff]
      %v230 = vld [vmem:[%s207 + $0x80] sm:$0xff]
      %v231 = vld [vmem:[%s207 + $0x90] sm:$0xff]
      %v232 = vld [vmem:[%s207 + $0x98] sm:$0xff]
      %v233 = vld [vmem:[%s207 + $0xa8] sm:$0xff]
      %v234 = vld [vmem:[%s207 + $0xb0] sm:$0xff]
      %v235 = vld [vmem:[%s207 + $0xc0] sm:$0xff]
      %v236 = vld [vmem:[%s207 + $0xc8] sm:$0xff]
      %v237 = vld [vmem:[%s207 + $0xd8] sm:$0xff]
      %v238 = vld [vmem:[%s207 + $0xe0] sm:$0xff]
      %v239 = vld [vmem:[%s207 + $0xf0] sm:$0xff]
      %v240 = vld [vmem:[%s207 + $0xf8] sm:$0xff]
      %v241 = vld [vmem:[%s207 + $0x108] sm:$0xff]
      %v242 = vld [vmem:[%s207 + $0x110] sm:$0xff]
      %v243 = vld [vmem:[%s207 + $0x120] sm:$0xff]
      %v244 = vld [vmem:[%s207 + $0x128] sm:$0xff]
      %v245 = vld [vmem:[%s207 + $0x138] sm:$0xff]
      %v246 = vld [vmem:[%s207 + $0x140] sm:$0xff]
      %v247 = vld [vmem:[%s207 + $0x150] sm:$0xff]
      %v248 = vld [vmem:[%s207 + $0x158] sm:$0xff]
      %v249 = vld [vmem:[%s207 + $0x168] sm:$0xff]
      %v250 = vld [vmem:[%s207 + $0x170] sm:$0xff]
      %v251 = vpack.c.bf16 %v220, %v219
      %v252 = vpack.c.bf16 %v222, %v221
      %v253 = vpack.c.bf16 %v224, %v223
      %v254 = vpack.c.bf16 %v226, %v225
      %v255 = vpack.c.bf16 %v228, %v227
      %v256 = vpack.c.bf16 %v230, %v229
      %v257 = vpack.c.bf16 %v232, %v231
      %v258 = vpack.c.bf16 %v234, %v233
      %v259 = vpack.c.bf16 %v236, %v235
      %v260 = vpack.c.bf16 %v238, %v237
      %v261 = vpack.c.bf16 %v240, %v239
      %v262 = vpack.c.bf16 %v242, %v241
      %v263 = vpack.c.bf16 %v244, %v243
      %v264 = vpack.c.bf16 %v246, %v245
      %v265 = vpack.c.bf16 %v248, %v247
      %v266 = vpack.c.bf16 %v250, %v249
      %v267 = vld [vmem:[%s1] sm:$0x3]
      %v268 = vld [vmem:[%s207 + $0x1] sm:$0xff]
      %v269 = vld [vmem:[%s207 + $0x9] sm:$0xff]
      %v270 = vld [vmem:[%s207 + $0x19] sm:$0xff]
      %v271 = vld [vmem:[%s207 + $0x21] sm:$0xff]
      %v272 = vld [vmem:[%s207 + $0x31] sm:$0xff]
      %v273 = vld [vmem:[%s207 + $0x39] sm:$0xff]
      %v274 = vld [vmem:[%s207 + $0x49] sm:$0xff]
      %v275 = vld [vmem:[%s207 + $0x51] sm:$0xff]
      %v276 = vld [vmem:[%s207 + $0x61] sm:$0xff]
      %v277 = vld [vmem:[%s207 + $0x69] sm:$0xff]
      %v278 = vld [vmem:[%s207 + $0x79] sm:$0xff]
      %v279 = vld [vmem:[%s207 + $0x81] sm:$0xff]
      %v280 = vld [vmem:[%s207 + $0x91] sm:$0xff]
      %v281 = vld [vmem:[%s207 + $0x99] sm:$0xff]
      %v282 = vld [vmem:[%s207 + $0xa9] sm:$0xff]
      %v283 = vld [vmem:[%s207 + $0xb1] sm:$0xff]
      %v284 = vld [vmem:[%s207 + $0xc1] sm:$0xff]
      %v285 = vld [vmem:[%s207 + $0xc9] sm:$0xff]
      %v286 = vld [vmem:[%s207 + $0xd9] sm:$0xff]
      %v287 = vld [vmem:[%s207 + $0xe1] sm:$0xff]
      %v288 = vld [vmem:[%s207 + $0xf1] sm:$0xff]
      %v289 = vld [vmem:[%s207 + $0xf9] sm:$0xff]
      %v290 = vld [vmem:[%s207 + $0x109] sm:$0xff]
      %v291 = vld [vmem:[%s207 + $0x111] sm:$0xff]
      %v292 = vld [vmem:[%s207 + $0x121] sm:$0xff]
      %v293 = vld [vmem:[%s207 + $0x129] sm:$0xff]
      %v294 = vld [vmem:[%s207 + $0x139] sm:$0xff]
      %v295 = vld [vmem:[%s207 + $0x141] sm:$0xff]
      %v296 = vld [vmem:[%s207 + $0x151] sm:$0xff]
      %v297 = vld [vmem:[%s207 + $0x159] sm:$0xff]
      %v298 = vld [vmem:[%s207 + $0x169] sm:$0xff]
      %v299 = vld [vmem:[%s207 + $0x171] sm:$0xff]
      %v300 = vpack.c.bf16 %v269, %v268
      %v301 = vpack.c.bf16 %v271, %v270
      %v302 = vpack.c.bf16 %v273, %v272
      %v303 = vpack.c.bf16 %v275, %v274
      %v304 = vpack.c.bf16 %v277, %v276
      %v305 = vpack.c.bf16 %v279, %v278
      %v306 = vpack.c.bf16 %v281, %v280
      %v307 = vpack.c.bf16 %v283, %v282
      %v308 = vpack.c.bf16 %v285, %v284
      %v309 = vpack.c.bf16 %v287, %v286
      %v310 = vpack.c.bf16 %v289, %v288
      %v311 = vpack.c.bf16 %v291, %v290
      %v312 = vpack.c.bf16 %v293, %v292
      %v313 = vpack.c.bf16 %v295, %v294
      %v314 = vpack.c.bf16 %v297, %v296
      %v315 = vpack.c.bf16 %v299, %v298
      %s316 = scalar_lea.vmem %s1, 2
      %v317 = vld [vmem:[%s316] sm:$0x3]
      %vm318 = vcmask 31744
      %v320 = vsel %vm318, %v300, 0
      %v323 = vsel %vm318, %v301, 0
      %v326 = vsel %vm318, %v302, 0
      %v329 = vsel %vm318, %v303, 0
      %v332 = vsel %vm318, %v304, 0
      %v335 = vsel %vm318, %v305, 0
      %v338 = vsel %vm318, %v306, 0
      %v341 = vsel %vm318, %v307, 0
      %v344 = vsel %vm318, %v308, 0
      %v347 = vsel %vm318, %v309, 0
      %v350 = vsel %vm318, %v310, 0
      %v353 = vsel %vm318, %v311, 0
      %v356 = vsel %vm318, %v312, 0
      %v359 = vsel %vm318, %v313, 0
      %v362 = vsel %vm318, %v314, 0
      %v365 = vsel %vm318, %v315, 0
      %vm367 = vcmask 1041408
      %v369 = vsel %vm367, %v317, 0
      %371 = vmatprep.subr.bf16.mxu0 0
      %372 = vmatpush1.bf16.msra.mxu0 0
      %373 = vmatprep.subr.bf16.mxu0 0
      %374 = vmatpush1.bf16.msra.mxu0 0
      %375 = vmatprep.subr.bf16.mxu0 0
      %376 = vmatpush1.bf16.msra.mxu0 0
      %377 = vmatprep.subr.bf16.mxu0 0
      %378 = vmatpush1.bf16.msra.mxu0 0
      %379 = vmatprep.subr.bf16.mxu0 0
      %380 = vmatpush1.bf16.msra.mxu0 0
      %381 = vmatprep.subr.bf16.mxu0 0
      %382 = vmatpush1.bf16.msra.mxu0 0
      %383 = vmatprep.subr.bf16.mxu0 0
      %384 = vmatpush1.bf16.msra.mxu0 0
      %385 = vmatprep.subr.bf16.mxu0 0
      %386 = vmatpush1.bf16.msra.mxu0 %v369
      %387 = vmatprep.subr.bf16.mxu0 0
      %388 = vmatpush2.bf16.msra.mxu0 0
      %389 = vmatprep.subr.bf16.mxu0 0
      %390 = vmatpush2.bf16.msra.mxu0 0
      %391 = vmatprep.subr.bf16.mxu0 0
      %392 = vmatpush2.bf16.msra.mxu0 0
      %393 = vmatprep.subr.bf16.mxu0 0
      %394 = vmatpush2.bf16.msra.mxu0 0
      %395 = vmatprep.subr.bf16.mxu0 0
      %396 = vmatpush2.bf16.msra.mxu0 0
      %397 = vmatprep.subr.bf16.mxu0 0
      %398 = vmatpush2.bf16.msra.mxu0 0
      %399 = vmatprep.subr.bf16.mxu0 0
      %400 = vmatpush2.bf16.msra.mxu0 0
      %401 = vmatprep.subr.bf16.mxu0 0
      %402 = vmatpush2.bf16.msra.mxu0 0
      %403 = vmatprep.mubr.bf16.mxu0 0
      %404 = vmatmul.mubr.bf16.gmra.mxu0 %v320
      %v405 = vpop.f32.mrf.mxu0
      %v406 = vadd.f32 0.0, %v405
      %v407 = vpop.f32.mrf.mxu0
      %v408 = vpop.f32.mrf.mxu0
      %v409 = vadd.f32 0.0, %v408
      %v410 = vpop.f32.mrf.mxu0
      %411 = vmatprep.mubr.bf16.mxu0 0
      %412 = vmatmul.mubr.bf16.gmra.mxu0 %v323
      %v413 = vpop.f32.mrf.mxu0
      %v414 = vadd.f32 0.0, %v413
      %v415 = vpop.f32.mrf.mxu0
      %v416 = vpop.f32.mrf.mxu0
      %v417 = vadd.f32 0.0, %v416
      %v418 = vpop.f32.mrf.mxu0
      %419 = vmatprep.mubr.bf16.mxu0 0
      %420 = vmatmul.mubr.bf16.gmra.mxu0 %v326
      %v421 = vpop.f32.mrf.mxu0
      %v422 = vadd.f32 0.0, %v421
      %v423 = vpop.f32.mrf.mxu0
      %v424 = vpop.f32.mrf.mxu0
      %v425 = vadd.f32 0.0, %v424
      %v426 = vpop.f32.mrf.mxu0
      %427 = vmatprep.mubr.bf16.mxu0 0
      %428 = vmatmul.mubr.bf16.gmra.mxu0 %v329
      %v429 = vpop.f32.mrf.mxu0
      %v430 = vadd.f32 0.0, %v429
      %v431 = vpop.f32.mrf.mxu0
      %v432 = vpop.f32.mrf.mxu0
      %v433 = vadd.f32 0.0, %v432
      %v434 = vpop.f32.mrf.mxu0
      %435 = vmatprep.mubr.bf16.mxu0 0
      %436 = vmatmul.mubr.bf16.gmra.mxu0 %v332
      %v437 = vpop.f32.mrf.mxu0
      %v438 = vadd.f32 0.0, %v437
      %v439 = vpop.f32.mrf.mxu0
      %v440 = vpop.f32.mrf.mxu0
      %v441 = vadd.f32 0.0, %v440
      %v442 = vpop.f32.mrf.mxu0
      %443 = vmatprep.mubr.bf16.mxu0 0
      %444 = vmatmul.mubr.bf16.gmra.mxu0 %v335
      %v445 = vpop.f32.mrf.mxu0
      %v446 = vadd.f32 0.0, %v445
      %v447 = vpop.f32.mrf.mxu0
      %v448 = vpop.f32.mrf.mxu0
      %v449 = vadd.f32 0.0, %v448
      %v450 = vpop.f32.mrf.mxu0
      %451 = vmatprep.mubr.bf16.mxu0 0
      %452 = vmatmul.mubr.bf16.gmra.mxu0 %v338
      %v453 = vpop.f32.mrf.mxu0
      %v454 = vadd.f32 0.0, %v453
      %v455 = vpop.f32.mrf.mxu0
      %v456 = vpop.f32.mrf.mxu0
      %v457 = vadd.f32 0.0, %v456
      %v458 = vpop.f32.mrf.mxu0
      %459 = vmatprep.mubr.bf16.mxu0 0
      %460 = vmatmul.mubr.bf16.gmra.mxu0 %v341
      %v461 = vpop.f32.mrf.mxu0
      %v462 = vadd.f32 0.0, %v461
      %v463 = vpop.f32.mrf.mxu0
      %v464 = vpop.f32.mrf.mxu0
      %v465 = vadd.f32 0.0, %v464
      %v466 = vpop.f32.mrf.mxu0
      %467 = vmatprep.mubr.bf16.mxu0 0
      %468 = vmatmul.mubr.bf16.gmra.mxu0 %v344
      %v469 = vpop.f32.mrf.mxu0
      %v470 = vadd.f32 0.0, %v469
      %v471 = vpop.f32.mrf.mxu0
      %v472 = vpop.f32.mrf.mxu0
      %v473 = vadd.f32 0.0, %v472
      %v474 = vpop.f32.mrf.mxu0
      %475 = vmatprep.mubr.bf16.mxu0 0
      %476 = vmatmul.mubr.bf16.gmra.mxu0 %v347
      %v477 = vpop.f32.mrf.mxu0
      %v478 = vadd.f32 0.0, %v477
      %v479 = vpop.f32.mrf.mxu0
      %v480 = vpop.f32.mrf.mxu0
      %v481 = vadd.f32 0.0, %v480
      %v482 = vpop.f32.mrf.mxu0
      %483 = vmatprep.mubr.bf16.mxu0 0
      %484 = vmatmul.mubr.bf16.gmra.mxu0 %v350
      %v485 = vpop.f32.mrf.mxu0
      %v486 = vadd.f32 0.0, %v485
      %v487 = vpop.f32.mrf.mxu0
      %v488 = vpop.f32.mrf.mxu0
      %v489 = vadd.f32 0.0, %v488
      %v490 = vpop.f32.mrf.mxu0
      %491 = vmatprep.mubr.bf16.mxu0 0
      %492 = vmatmul.mubr.bf16.gmra.mxu0 %v353
      %v493 = vpop.f32.mrf.mxu0
      %v494 = vadd.f32 0.0, %v493
      %v495 = vpop.f32.mrf.mxu0
      %v496 = vpop.f32.mrf.mxu0
      %v497 = vadd.f32 0.0, %v496
      %v498 = vpop.f32.mrf.mxu0
      %499 = vmatprep.mubr.bf16.mxu0 0
      %500 = vmatmul.mubr.bf16.gmra.mxu0 %v356
      %v501 = vpop.f32.mrf.mxu0
      %v502 = vadd.f32 0.0, %v501
      %v503 = vpop.f32.mrf.mxu0
      %v504 = vpop.f32.mrf.mxu0
      %v505 = vadd.f32 0.0, %v504
      %v506 = vpop.f32.mrf.mxu0
      %507 = vmatprep.mubr.bf16.mxu0 0
      %508 = vmatmul.mubr.bf16.gmra.mxu0 %v359
      %v509 = vpop.f32.mrf.mxu0
      %v510 = vadd.f32 0.0, %v509
      %v511 = vpop.f32.mrf.mxu0
      %v512 = vpop.f32.mrf.mxu0
      %v513 = vadd.f32 0.0, %v512
      %v514 = vpop.f32.mrf.mxu0
      %515 = vmatprep.mubr.bf16.mxu0 0
      %516 = vmatmul.mubr.bf16.gmra.mxu0 %v362
      %v517 = vpop.f32.mrf.mxu0
      %v518 = vadd.f32 0.0, %v517
      %v519 = vpop.f32.mrf.mxu0
      %v520 = vpop.f32.mrf.mxu0
      %v521 = vadd.f32 0.0, %v520
      %v522 = vpop.f32.mrf.mxu0
      %523 = vmatprep.mubr.bf16.mxu0 0
      %524 = vmatmul.mubr.bf16.gmra.mxu0 %v365
      %v525 = vpop.f32.mrf.mxu0
      %v526 = vadd.f32 0.0, %v525
      %v527 = vpop.f32.mrf.mxu0
      %v528 = vpop.f32.mrf.mxu0
      %v529 = vadd.f32 0.0, %v528
      %v530 = vpop.f32.mrf.mxu0
      %531 = vdwg.mxu0
      %v533 = vsel %vm318, %v251, 0
      %v536 = vsel %vm318, %v252, 0
      %v539 = vsel %vm318, %v253, 0
      %v542 = vsel %vm318, %v254, 0
      %v545 = vsel %vm318, %v255, 0
      %v548 = vsel %vm318, %v256, 0
      %v551 = vsel %vm318, %v257, 0
      %v554 = vsel %vm318, %v258, 0
      %v557 = vsel %vm318, %v259, 0
      %v560 = vsel %vm318, %v260, 0
      %v563 = vsel %vm318, %v261, 0
      %v566 = vsel %vm318, %v262, 0
      %v569 = vsel %vm318, %v263, 0
      %v572 = vsel %vm318, %v264, 0
      %v575 = vsel %vm318, %v265, 0
      %v578 = vsel %vm318, %v266, 0
      %v581 = vsel %vm367, %v267, 0
      %583 = vmatprep.subr.bf16.mxu0 0
      %584 = vmatpush1.bf16.msra.mxu0 0
      %585 = vmatprep.subr.bf16.mxu0 0
      %586 = vmatpush1.bf16.msra.mxu0 0
      %587 = vmatprep.subr.bf16.mxu0 0
      %588 = vmatpush1.bf16.msra.mxu0 0
      %589 = vmatprep.subr.bf16.mxu0 0
      %590 = vmatpush1.bf16.msra.mxu0 0
      %591 = vmatprep.subr.bf16.mxu0 0
      %592 = vmatpush1.bf16.msra.mxu0 0
      %593 = vmatprep.subr.bf16.mxu0 0
      %594 = vmatpush1.bf16.msra.mxu0 0
      %595 = vmatprep.subr.bf16.mxu0 0
      %596 = vmatpush1.bf16.msra.mxu0 0
      %597 = vmatprep.subr.bf16.mxu0 0
      %598 = vmatpush1.bf16.msra.mxu0 %v581
      %599 = vmatprep.subr.bf16.mxu0 0
      %600 = vmatpush2.bf16.msra.mxu0 0
      %601 = vmatprep.subr.bf16.mxu0 0
      %602 = vmatpush2.bf16.msra.mxu0 0
      %603 = vmatprep.subr.bf16.mxu0 0
      %604 = vmatpush2.bf16.msra.mxu0 0
      %605 = vmatprep.subr.bf16.mxu0 0
      %606 = vmatpush2.bf16.msra.mxu0 0
      %607 = vmatprep.subr.bf16.mxu0 0
      %608 = vmatpush2.bf16.msra.mxu0 0
      %609 = vmatprep.subr.bf16.mxu0 0
      %610 = vmatpush2.bf16.msra.mxu0 0
      %611 = vmatprep.subr.bf16.mxu0 0
      %612 = vmatpush2.bf16.msra.mxu0 0
      %613 = vmatprep.subr.bf16.mxu0 0
      %614 = vmatpush2.bf16.msra.mxu0 0
      %615 = vmatprep.mubr.bf16.mxu0 0
      %616 = vmatmul.mubr.bf16.gmra.mxu0 %v533
      %v617 = vpop.f32.mrf.mxu0
      %v618 = vadd.f32 %v406, %v617
      %v619 = vpop.f32.mrf.mxu0
      %v620 = vpop.f32.mrf.mxu0
      %v621 = vadd.f32 %v409, %v620
      %v622 = vpop.f32.mrf.mxu0
      %623 = vmatprep.mubr.bf16.mxu0 0
      %624 = vmatmul.mubr.bf16.gmra.mxu0 %v536
      %v625 = vpop.f32.mrf.mxu0
      %v626 = vadd.f32 %v414, %v625
      %v627 = vpop.f32.mrf.mxu0
      %v628 = vpop.f32.mrf.mxu0
      %v629 = vadd.f32 %v417, %v628
      %v630 = vpop.f32.mrf.mxu0
      %631 = vmatprep.mubr.bf16.mxu0 0
      %632 = vmatmul.mubr.bf16.gmra.mxu0 %v539
      %v633 = vpop.f32.mrf.mxu0
      %v634 = vadd.f32 %v422, %v633
      %v635 = vpop.f32.mrf.mxu0
      %v636 = vpop.f32.mrf.mxu0
      %v637 = vadd.f32 %v425, %v636
      %v638 = vpop.f32.mrf.mxu0
      %639 = vmatprep.mubr.bf16.mxu0 0
      %640 = vmatmul.mubr.bf16.gmra.mxu0 %v542
      %v641 = vpop.f32.mrf.mxu0
      %v642 = vadd.f32 %v430, %v641
      %v643 = vpop.f32.mrf.mxu0
      %v644 = vpop.f32.mrf.mxu0
      %v645 = vadd.f32 %v433, %v644
      %v646 = vpop.f32.mrf.mxu0
      %647 = vmatprep.mubr.bf16.mxu0 0
      %648 = vmatmul.mubr.bf16.gmra.mxu0 %v545
      %v649 = vpop.f32.mrf.mxu0
      %v650 = vadd.f32 %v438, %v649
      %v651 = vpop.f32.mrf.mxu0
      %v652 = vpop.f32.mrf.mxu0
      %v653 = vadd.f32 %v441, %v652
      %v654 = vpop.f32.mrf.mxu0
      %655 = vmatprep.mubr.bf16.mxu0 0
      %656 = vmatmul.mubr.bf16.gmra.mxu0 %v548
      %v657 = vpop.f32.mrf.mxu0
      %v658 = vadd.f32 %v446, %v657
      %v659 = vpop.f32.mrf.mxu0
      %v660 = vpop.f32.mrf.mxu0
      %v661 = vadd.f32 %v449, %v660
      %v662 = vpop.f32.mrf.mxu0
      %663 = vmatprep.mubr.bf16.mxu0 0
      %664 = vmatmul.mubr.bf16.gmra.mxu0 %v551
      %v665 = vpop.f32.mrf.mxu0
      %v666 = vadd.f32 %v454, %v665
      %v667 = vpop.f32.mrf.mxu0
      %v668 = vpop.f32.mrf.mxu0
      %v669 = vadd.f32 %v457, %v668
      %v670 = vpop.f32.mrf.mxu0
      %671 = vmatprep.mubr.bf16.mxu0 0
      %672 = vmatmul.mubr.bf16.gmra.mxu0 %v554
      %v673 = vpop.f32.mrf.mxu0
      %v674 = vadd.f32 %v462, %v673
      %v675 = vpop.f32.mrf.mxu0
      %v676 = vpop.f32.mrf.mxu0
      %v677 = vadd.f32 %v465, %v676
      %v678 = vpop.f32.mrf.mxu0
      %679 = vmatprep.mubr.bf16.mxu0 0
      %680 = vmatmul.mubr.bf16.gmra.mxu0 %v557
      %v681 = vpop.f32.mrf.mxu0
      %v682 = vadd.f32 %v470, %v681
      %v683 = vpop.f32.mrf.mxu0
      %v684 = vpop.f32.mrf.mxu0
      %v685 = vadd.f32 %v473, %v684
      %v686 = vpop.f32.mrf.mxu0
      %687 = vmatprep.mubr.bf16.mxu0 0
      %688 = vmatmul.mubr.bf16.gmra.mxu0 %v560
      %v689 = vpop.f32.mrf.mxu0
      %v690 = vadd.f32 %v478, %v689
      %v691 = vpop.f32.mrf.mxu0
      %v692 = vpop.f32.mrf.mxu0
      %v693 = vadd.f32 %v481, %v692
      %v694 = vpop.f32.mrf.mxu0
      %695 = vmatprep.mubr.bf16.mxu0 0
      %696 = vmatmul.mubr.bf16.gmra.mxu0 %v563
      %v697 = vpop.f32.mrf.mxu0
      %v698 = vadd.f32 %v486, %v697
      %v699 = vpop.f32.mrf.mxu0
      %v700 = vpop.f32.mrf.mxu0
      %v701 = vadd.f32 %v489, %v700
      %v702 = vpop.f32.mrf.mxu0
      %703 = vmatprep.mubr.bf16.mxu0 0
      %704 = vmatmul.mubr.bf16.gmra.mxu0 %v566
      %v705 = vpop.f32.mrf.mxu0
      %v706 = vadd.f32 %v494, %v705
      %v707 = vpop.f32.mrf.mxu0
      %v708 = vpop.f32.mrf.mxu0
      %v709 = vadd.f32 %v497, %v708
      %v710 = vpop.f32.mrf.mxu0
      %711 = vmatprep.mubr.bf16.mxu0 0
      %712 = vmatmul.mubr.bf16.gmra.mxu0 %v569
      %v713 = vpop.f32.mrf.mxu0
      %v714 = vadd.f32 %v502, %v713
      %v715 = vpop.f32.mrf.mxu0
      %v716 = vpop.f32.mrf.mxu0
      %v717 = vadd.f32 %v505, %v716
      %v718 = vpop.f32.mrf.mxu0
      %719 = vmatprep.mubr.bf16.mxu0 0
      %720 = vmatmul.mubr.bf16.gmra.mxu0 %v572
      %v721 = vpop.f32.mrf.mxu0
      %v722 = vadd.f32 %v510, %v721
      %v723 = vpop.f32.mrf.mxu0
      %v724 = vpop.f32.mrf.mxu0
      %v725 = vadd.f32 %v513, %v724
      %v726 = vpop.f32.mrf.mxu0
      %727 = vmatprep.mubr.bf16.mxu0 0
      %728 = vmatmul.mubr.bf16.gmra.mxu0 %v575
      %v729 = vpop.f32.mrf.mxu0
      %v730 = vadd.f32 %v518, %v729
      %v731 = vpop.f32.mrf.mxu0
      %v732 = vpop.f32.mrf.mxu0
      %v733 = vadd.f32 %v521, %v732
      %v734 = vpop.f32.mrf.mxu0
      %735 = vmatprep.mubr.bf16.mxu0 0
      %736 = vmatmul.mubr.bf16.gmra.mxu0 %v578
      %v737 = vpop.f32.mrf.mxu0
      %v738 = vadd.f32 %v526, %v737
      %v739 = vpop.f32.mrf.mxu0
      %v740 = vpop.f32.mrf.mxu0
      %v741 = vadd.f32 %v529, %v740
      %v742 = vpop.f32.mrf.mxu0
      %743 = vdwg.mxu0
      %v744 = vld [vmem:[%s207 + $0x2] sm:$0xff]
      %v745 = vld [vmem:[%s207 + $0xa] sm:$0xff]
      %v746 = vld [vmem:[%s207 + $0x1a] sm:$0xff]
      %v747 = vld [vmem:[%s207 + $0x22] sm:$0xff]
      %v748 = vld [vmem:[%s207 + $0x32] sm:$0xff]
      %v749 = vld [vmem:[%s207 + $0x3a] sm:$0xff]
      %v750 = vld [vmem:[%s207 + $0x4a] sm:$0xff]
      %v751 = vld [vmem:[%s207 + $0x52] sm:$0xff]
      %v752 = vld [vmem:[%s207 + $0x62] sm:$0xff]
      %v753 = vld [vmem:[%s207 + $0x6a] sm:$0xff]
      %v754 = vld [vmem:[%s207 + $0x7a] sm:$0xff]
      %v755 = vld [vmem:[%s207 + $0x82] sm:$0xff]
      %v756 = vld [vmem:[%s207 + $0x92] sm:$0xff]
      %v757 = vld [vmem:[%s207 + $0x9a] sm:$0xff]
      %v758 = vld [vmem:[%s207 + $0xaa] sm:$0xff]
      %v759 = vld [vmem:[%s207 + $0xb2] sm:$0xff]
      %v760 = vld [vmem:[%s207 + $0xc2] sm:$0xff]
      %v761 = vld [vmem:[%s207 + $0xca] sm:$0xff]
      %v762 = vld [vmem:[%s207 + $0xda] sm:$0xff]
      %v763 = vld [vmem:[%s207 + $0xe2] sm:$0xff]
      %v764 = vld [vmem:[%s207 + $0xf2] sm:$0xff]
      %v765 = vld [vmem:[%s207 + $0xfa] sm:$0xff]
      %v766 = vld [vmem:[%s207 + $0x10a] sm:$0xff]
      %v767 = vld [vmem:[%s207 + $0x112] sm:$0xff]
      %v768 = vld [vmem:[%s207 + $0x122] sm:$0xff]
      %v769 = vld [vmem:[%s207 + $0x12a] sm:$0xff]
      %v770 = vld [vmem:[%s207 + $0x13a] sm:$0xff]
      %v771 = vld [vmem:[%s207 + $0x142] sm:$0xff]
      %v772 = vld [vmem:[%s207 + $0x152] sm:$0xff]
      %v773 = vld [vmem:[%s207 + $0x15a] sm:$0xff]
      %v774 = vld [vmem:[%s207 + $0x16a] sm:$0xff]
      %v775 = vld [vmem:[%s207 + $0x172] sm:$0xff]
      %v776 = vpack.c.bf16 %v745, %v744
      %v777 = vpack.c.bf16 %v747, %v746
      %v778 = vpack.c.bf16 %v749, %v748
      %v779 = vpack.c.bf16 %v751, %v750
      %v780 = vpack.c.bf16 %v753, %v752
      %v781 = vpack.c.bf16 %v755, %v754
      %v782 = vpack.c.bf16 %v757, %v756
      %v783 = vpack.c.bf16 %v759, %v758
      %v784 = vpack.c.bf16 %v761, %v760
      %v785 = vpack.c.bf16 %v763, %v762
      %v786 = vpack.c.bf16 %v765, %v764
      %v787 = vpack.c.bf16 %v767, %v766
      %v788 = vpack.c.bf16 %v769, %v768
      %v789 = vpack.c.bf16 %v771, %v770
      %v790 = vpack.c.bf16 %v773, %v772
      %v791 = vpack.c.bf16 %v775, %v774
      %s792 = scalar_lea.vmem %s1, 4
      %v793 = vld [vmem:[%s792] sm:$0x3]
      %v795 = vsel %vm318, %v776, 0
      %v798 = vsel %vm318, %v777, 0
      %v801 = vsel %vm318, %v778, 0
      %v804 = vsel %vm318, %v779, 0
      %v807 = vsel %vm318, %v780, 0
      %v810 = vsel %vm318, %v781, 0
      %v813 = vsel %vm318, %v782, 0
      %v816 = vsel %vm318, %v783, 0
      %v819 = vsel %vm318, %v784, 0
      %v822 = vsel %vm318, %v785, 0
      %v825 = vsel %vm318, %v786, 0
      %v828 = vsel %vm318, %v787, 0
      %v831 = vsel %vm318, %v788, 0
      %v834 = vsel %vm318, %v789, 0
      %v837 = vsel %vm318, %v790, 0
      %v840 = vsel %vm318, %v791, 0
      %v843 = vsel %vm367, %v793, 0
      %845 = vmatprep.subr.bf16.mxu0 0
      %846 = vmatpush1.bf16.msra.mxu0 0
      %847 = vmatprep.subr.bf16.mxu0 0
      %848 = vmatpush1.bf16.msra.mxu0 0
      %849 = vmatprep.subr.bf16.mxu0 0
      %850 = vmatpush1.bf16.msra.mxu0 0
      %851 = vmatprep.subr.bf16.mxu0 0
      %852 = vmatpush1.bf16.msra.mxu0 0
      %853 = vmatprep.subr.bf16.mxu0 0
      %854 = vmatpush1.bf16.msra.mxu0 0
      %855 = vmatprep.subr.bf16.mxu0 0
      %856 = vmatpush1.bf16.msra.mxu0 0
      %857 = vmatprep.subr.bf16.mxu0 0
      %858 = vmatpush1.bf16.msra.mxu0 0
      %859 = vmatprep.subr.bf16.mxu0 0
      %860 = vmatpush1.bf16.msra.mxu0 %v843
      %861 = vmatprep.subr.bf16.mxu0 0
      %862 = vmatpush2.bf16.msra.mxu0 0
      %863 = vmatprep.subr.bf16.mxu0 0
      %864 = vmatpush2.bf16.msra.mxu0 0
      %865 = vmatprep.subr.bf16.mxu0 0
      %866 = vmatpush2.bf16.msra.mxu0 0
      %867 = vmatprep.subr.bf16.mxu0 0
      %868 = vmatpush2.bf16.msra.mxu0 0
      %869 = vmatprep.subr.bf16.mxu0 0
      %870 = vmatpush2.bf16.msra.mxu0 0
      %871 = vmatprep.subr.bf16.mxu0 0
      %872 = vmatpush2.bf16.msra.mxu0 0
      %873 = vmatprep.subr.bf16.mxu0 0
      %874 = vmatpush2.bf16.msra.mxu0 0
      %875 = vmatprep.subr.bf16.mxu0 0
      %876 = vmatpush2.bf16.msra.mxu0 0
      %877 = vmatprep.mubr.bf16.mxu0 0
      %878 = vmatmul.mubr.bf16.gmra.mxu0 %v795
      %v879 = vpop.f32.mrf.mxu0
      %v880 = vadd.f32 0.0, %v879
      %v881 = vpop.f32.mrf.mxu0
      %v882 = vpop.f32.mrf.mxu0
      %v883 = vadd.f32 0.0, %v882
      %v884 = vpop.f32.mrf.mxu0
      %885 = vmatprep.mubr.bf16.mxu0 0
      %886 = vmatmul.mubr.bf16.gmra.mxu0 %v798
      %v887 = vpop.f32.mrf.mxu0
      %v888 = vadd.f32 0.0, %v887
      %v889 = vpop.f32.mrf.mxu0
      %v890 = vpop.f32.mrf.mxu0
      %v891 = vadd.f32 0.0, %v890
      %v892 = vpop.f32.mrf.mxu0
      %893 = vmatprep.mubr.bf16.mxu0 0
      %894 = vmatmul.mubr.bf16.gmra.mxu0 %v801
      %v895 = vpop.f32.mrf.mxu0
      %v896 = vadd.f32 0.0, %v895
      %v897 = vpop.f32.mrf.mxu0
      %v898 = vpop.f32.mrf.mxu0
      %v899 = vadd.f32 0.0, %v898
      %v900 = vpop.f32.mrf.mxu0
      %901 = vmatprep.mubr.bf16.mxu0 0
      %902 = vmatmul.mubr.bf16.gmra.mxu0 %v804
      %v903 = vpop.f32.mrf.mxu0
      %v904 = vadd.f32 0.0, %v903
      %v905 = vpop.f32.mrf.mxu0
      %v906 = vpop.f32.mrf.mxu0
      %v907 = vadd.f32 0.0, %v906
      %v908 = vpop.f32.mrf.mxu0
      %909 = vmatprep.mubr.bf16.mxu0 0
      %910 = vmatmul.mubr.bf16.gmra.mxu0 %v807
      %v911 = vpop.f32.mrf.mxu0
      %v912 = vadd.f32 0.0, %v911
      %v913 = vpop.f32.mrf.mxu0
      %v914 = vpop.f32.mrf.mxu0
      %v915 = vadd.f32 0.0, %v914
      %v916 = vpop.f32.mrf.mxu0
      %917 = vmatprep.mubr.bf16.mxu0 0
      %918 = vmatmul.mubr.bf16.gmra.mxu0 %v810
      %v919 = vpop.f32.mrf.mxu0
      %v920 = vadd.f32 0.0, %v919
      %v921 = vpop.f32.mrf.mxu0
      %v922 = vpop.f32.mrf.mxu0
      %v923 = vadd.f32 0.0, %v922
      %v924 = vpop.f32.mrf.mxu0
      %925 = vmatprep.mubr.bf16.mxu0 0
      %926 = vmatmul.mubr.bf16.gmra.mxu0 %v813
      %v927 = vpop.f32.mrf.mxu0
      %v928 = vadd.f32 0.0, %v927
      %v929 = vpop.f32.mrf.mxu0
      %v930 = vpop.f32.mrf.mxu0
      %v931 = vadd.f32 0.0, %v930
      %v932 = vpop.f32.mrf.mxu0
      %933 = vmatprep.mubr.bf16.mxu0 0
      %934 = vmatmul.mubr.bf16.gmra.mxu0 %v816
      %v935 = vpop.f32.mrf.mxu0
      %v936 = vadd.f32 0.0, %v935
      %v937 = vpop.f32.mrf.mxu0
      %v938 = vpop.f32.mrf.mxu0
      %v939 = vadd.f32 0.0, %v938
      %v940 = vpop.f32.mrf.mxu0
      %941 = vmatprep.mubr.bf16.mxu0 0
      %942 = vmatmul.mubr.bf16.gmra.mxu0 %v819
      %v943 = vpop.f32.mrf.mxu0
      %v944 = vadd.f32 0.0, %v943
      %v945 = vpop.f32.mrf.mxu0
      %v946 = vpop.f32.mrf.mxu0
      %v947 = vadd.f32 0.0, %v946
      %v948 = vpop.f32.mrf.mxu0
      %949 = vmatprep.mubr.bf16.mxu0 0
      %950 = vmatmul.mubr.bf16.gmra.mxu0 %v822
      %v951 = vpop.f32.mrf.mxu0
      %v952 = vadd.f32 0.0, %v951
      %v953 = vpop.f32.mrf.mxu0
      %v954 = vpop.f32.mrf.mxu0
      %v955 = vadd.f32 0.0, %v954
      %v956 = vpop.f32.mrf.mxu0
      %957 = vmatprep.mubr.bf16.mxu0 0
      %958 = vmatmul.mubr.bf16.gmra.mxu0 %v825
      %v959 = vpop.f32.mrf.mxu0
      %v960 = vadd.f32 0.0, %v959
      %v961 = vpop.f32.mrf.mxu0
      %v962 = vpop.f32.mrf.mxu0
      %v963 = vadd.f32 0.0, %v962
      %v964 = vpop.f32.mrf.mxu0
      %965 = vmatprep.mubr.bf16.mxu0 0
      %966 = vmatmul.mubr.bf16.gmra.mxu0 %v828
      %v967 = vpop.f32.mrf.mxu0
      %v968 = vadd.f32 0.0, %v967
      %v969 = vpop.f32.mrf.mxu0
      %v970 = vpop.f32.mrf.mxu0
      %v971 = vadd.f32 0.0, %v970
      %v972 = vpop.f32.mrf.mxu0
      %973 = vmatprep.mubr.bf16.mxu0 0
      %974 = vmatmul.mubr.bf16.gmra.mxu0 %v831
      %v975 = vpop.f32.mrf.mxu0
      %v976 = vadd.f32 0.0, %v975
      %v977 = vpop.f32.mrf.mxu0
      %v978 = vpop.f32.mrf.mxu0
      %v979 = vadd.f32 0.0, %v978
      %v980 = vpop.f32.mrf.mxu0
      %981 = vmatprep.mubr.bf16.mxu0 0
      %982 = vmatmul.mubr.bf16.gmra.mxu0 %v834
      %v983 = vpop.f32.mrf.mxu0
      %v984 = vadd.f32 0.0, %v983
      %v985 = vpop.f32.mrf.mxu0
      %v986 = vpop.f32.mrf.mxu0
      %v987 = vadd.f32 0.0, %v986
      %v988 = vpop.f32.mrf.mxu0
      %989 = vmatprep.mubr.bf16.mxu0 0
      %990 = vmatmul.mubr.bf16.gmra.mxu0 %v837
      %v991 = vpop.f32.mrf.mxu0
      %v992 = vadd.f32 0.0, %v991
      %v993 = vpop.f32.mrf.mxu0
      %v994 = vpop.f32.mrf.mxu0
      %v995 = vadd.f32 0.0, %v994
      %v996 = vpop.f32.mrf.mxu0
      %997 = vmatprep.mubr.bf16.mxu0 0
      %998 = vmatmul.mubr.bf16.gmra.mxu0 %v840
      %v999 = vpop.f32.mrf.mxu0
      %v1000 = vadd.f32 0.0, %v999
      %v1001 = vpop.f32.mrf.mxu0
      %v1002 = vpop.f32.mrf.mxu0
      %v1003 = vadd.f32 0.0, %v1002
      %v1004 = vpop.f32.mrf.mxu0
      %1005 = vdwg.mxu0
      %v1006 = vadd.f32 %v618, %v880
      %v1007 = vadd.f32 %v621, %v883
      %v1008 = vadd.f32 %v626, %v888
      %v1009 = vadd.f32 %v629, %v891
      %v1010 = vadd.f32 %v634, %v896
      %v1011 = vadd.f32 %v637, %v899
      %v1012 = vadd.f32 %v642, %v904
      %v1013 = vadd.f32 %v645, %v907
      %v1014 = vadd.f32 %v650, %v912
      %v1015 = vadd.f32 %v653, %v915
      %v1016 = vadd.f32 %v658, %v920
      %v1017 = vadd.f32 %v661, %v923
      %v1018 = vadd.f32 %v666, %v928
      %v1019 = vadd.f32 %v669, %v931
      %v1020 = vadd.f32 %v674, %v936
      %v1021 = vadd.f32 %v677, %v939
      %v1022 = vadd.f32 %v682, %v944
      %v1023 = vadd.f32 %v685, %v947
      %v1024 = vadd.f32 %v690, %v952
      %v1025 = vadd.f32 %v693, %v955
      %v1026 = vadd.f32 %v698, %v960
      %v1027 = vadd.f32 %v701, %v963
      %v1028 = vadd.f32 %v706, %v968
      %v1029 = vadd.f32 %v709, %v971
      %v1030 = vadd.f32 %v714, %v976
      %v1031 = vadd.f32 %v717, %v979
      %v1032 = vadd.f32 %v722, %v984
      %v1033 = vadd.f32 %v725, %v987
      %v1034 = vadd.f32 %v730, %v992
      %v1035 = vadd.f32 %v733, %v995
      %v1036 = vadd.f32 %v738, %v1000
      %v1037 = vadd.f32 %v741, %v1003
      %s1038 = scalar_lea.vmem %s207, 24
      %v1039 = vld [vmem:[%s1038] sm:$0xff]
      %v1040 = vld [vmem:[%s1038 + $0x8] sm:$0xff]
      %v1041 = vld [vmem:[%s1038 + $0x18] sm:$0xff]
      %v1042 = vld [vmem:[%s1038 + $0x20] sm:$0xff]
      %v1043 = vld [vmem:[%s1038 + $0x30] sm:$0xff]
      %v1044 = vld [vmem:[%s1038 + $0x38] sm:$0xff]
      %v1045 = vld [vmem:[%s1038 + $0x48] sm:$0xff]
      %v1046 = vld [vmem:[%s1038 + $0x50] sm:$0xff]
      %v1047 = vld [vmem:[%s1038 + $0x60] sm:$0xff]
      %v1048 = vld [vmem:[%s1038 + $0x68] sm:$0xff]
      %v1049 = vld [vmem:[%s1038 + $0x78] sm:$0xff]
      %v1050 = vld [vmem:[%s1038 + $0x80] sm:$0xff]
      %v1051 = vld [vmem:[%s1038 + $0x90] sm:$0xff]
      %v1052 = vld [vmem:[%s1038 + $0x98] sm:$0xff]
      %v1053 = vld [vmem:[%s1038 + $0xa8] sm:$0xff]
      %v1054 = vld [vmem:[%s1038 + $0xb0] sm:$0xff]
      %v1055 = vld [vmem:[%s1038 + $0xc0] sm:$0xff]
      %v1056 = vld [vmem:[%s1038 + $0xc8] sm:$0xff]
      %v1057 = vld [vmem:[%s1038 + $0xd8] sm:$0xff]
      %v1058 = vld [vmem:[%s1038 + $0xe0] sm:$0xff]
      %v1059 = vld [vmem:[%s1038 + $0xf0] sm:$0xff]
      %v1060 = vld [vmem:[%s1038 + $0xf8] sm:$0xff]
      %v1061 = vld [vmem:[%s1038 + $0x108] sm:$0xff]
      %v1062 = vld [vmem:[%s1038 + $0x110] sm:$0xff]
      %v1063 = vld [vmem:[%s1038 + $0x120] sm:$0xff]
      %v1064 = vld [vmem:[%s1038 + $0x128] sm:$0xff]
      %v1065 = vld [vmem:[%s1038 + $0x138] sm:$0xff]
      %v1066 = vld [vmem:[%s1038 + $0x140] sm:$0xff]
      %v1067 = vld [vmem:[%s1038 + $0x150] sm:$0xff]
      %v1068 = vld [vmem:[%s1038 + $0x158] sm:$0xff]
      %v1069 = vld [vmem:[%s1038 + $0x168] sm:$0xff]
      %v1070 = vld [vmem:[%s1038 + $0x170] sm:$0xff]
      %v1071 = vpack.c.bf16 %v1040, %v1039
      %v1072 = vpack.c.bf16 %v1042, %v1041
      %v1073 = vpack.c.bf16 %v1044, %v1043
      %v1074 = vpack.c.bf16 %v1046, %v1045
      %v1075 = vpack.c.bf16 %v1048, %v1047
      %v1076 = vpack.c.bf16 %v1050, %v1049
      %v1077 = vpack.c.bf16 %v1052, %v1051
      %v1078 = vpack.c.bf16 %v1054, %v1053
      %v1079 = vpack.c.bf16 %v1056, %v1055
      %v1080 = vpack.c.bf16 %v1058, %v1057
      %v1081 = vpack.c.bf16 %v1060, %v1059
      %v1082 = vpack.c.bf16 %v1062, %v1061
      %v1083 = vpack.c.bf16 %v1064, %v1063
      %v1084 = vpack.c.bf16 %v1066, %v1065
      %v1085 = vpack.c.bf16 %v1068, %v1067
      %v1086 = vpack.c.bf16 %v1070, %v1069
      %s1087 = scalar_lea.vmem %s1, 6
      %v1088 = vld [vmem:[%s1087] sm:$0x3]
      %v1090 = vsel %vm318, %v1071, 0
      %v1093 = vsel %vm318, %v1072, 0
      %v1096 = vsel %vm318, %v1073, 0
      %v1099 = vsel %vm318, %v1074, 0
      %v1102 = vsel %vm318, %v1075, 0
      %v1105 = vsel %vm318, %v1076, 0
      %v1108 = vsel %vm318, %v1077, 0
      %v1111 = vsel %vm318, %v1078, 0
      %v1114 = vsel %vm318, %v1079, 0
      %v1117 = vsel %vm318, %v1080, 0
      %v1120 = vsel %vm318, %v1081, 0
      %v1123 = vsel %vm318, %v1082, 0
      %v1126 = vsel %vm318, %v1083, 0
      %v1129 = vsel %vm318, %v1084, 0
      %v1132 = vsel %vm318, %v1085, 0
      %v1135 = vsel %vm318, %v1086, 0
      %v1138 = vsel %vm367, %v1088, 0
      %1140 = vmatprep.subr.bf16.mxu0 0
      %1141 = vmatpush1.bf16.msra.mxu0 0
      %1142 = vmatprep.subr.bf16.mxu0 0
      %1143 = vmatpush1.bf16.msra.mxu0 0
      %1144 = vmatprep.subr.bf16.mxu0 0
      %1145 = vmatpush1.bf16.msra.mxu0 0
      %1146 = vmatprep.subr.bf16.mxu0 0
      %1147 = vmatpush1.bf16.msra.mxu0 0
      %1148 = vmatprep.subr.bf16.mxu0 0
      %1149 = vmatpush1.bf16.msra.mxu0 0
      %1150 = vmatprep.subr.bf16.mxu0 0
      %1151 = vmatpush1.bf16.msra.mxu0 0
      %1152 = vmatprep.subr.bf16.mxu0 0
      %1153 = vmatpush1.bf16.msra.mxu0 0
      %1154 = vmatprep.subr.bf16.mxu0 0
      %1155 = vmatpush1.bf16.msra.mxu0 %v1138
      %1156 = vmatprep.subr.bf16.mxu0 0
      %1157 = vmatpush2.bf16.msra.mxu0 0
      %1158 = vmatprep.subr.bf16.mxu0 0
      %1159 = vmatpush2.bf16.msra.mxu0 0
      %1160 = vmatprep.subr.bf16.mxu0 0
      %1161 = vmatpush2.bf16.msra.mxu0 0
      %1162 = vmatprep.subr.bf16.mxu0 0
      %1163 = vmatpush2.bf16.msra.mxu0 0
      %1164 = vmatprep.subr.bf16.mxu0 0
      %1165 = vmatpush2.bf16.msra.mxu0 0
      %1166 = vmatprep.subr.bf16.mxu0 0
      %1167 = vmatpush2.bf16.msra.mxu0 0
      %1168 = vmatprep.subr.bf16.mxu0 0
      %1169 = vmatpush2.bf16.msra.mxu0 0
      %1170 = vmatprep.subr.bf16.mxu0 0
      %1171 = vmatpush2.bf16.msra.mxu0 0
      %1172 = vmatprep.mubr.bf16.mxu0 0
      %1173 = vmatmul.mubr.bf16.gmra.mxu0 %v1090
      %v1174 = vpop.f32.mrf.mxu0
      %v1175 = vadd.f32 0.0, %v1174
      %v1176 = vpop.f32.mrf.mxu0
      %v1177 = vpop.f32.mrf.mxu0
      %v1178 = vadd.f32 0.0, %v1177
      %v1179 = vpop.f32.mrf.mxu0
      %1180 = vmatprep.mubr.bf16.mxu0 0
      %1181 = vmatmul.mubr.bf16.gmra.mxu0 %v1093
      %v1182 = vpop.f32.mrf.mxu0
      %v1183 = vadd.f32 0.0, %v1182
      %v1184 = vpop.f32.mrf.mxu0
      %v1185 = vpop.f32.mrf.mxu0
      %v1186 = vadd.f32 0.0, %v1185
      %v1187 = vpop.f32.mrf.mxu0
      %1188 = vmatprep.mubr.bf16.mxu0 0
      %1189 = vmatmul.mubr.bf16.gmra.mxu0 %v1096
      %v1190 = vpop.f32.mrf.mxu0
      %v1191 = vadd.f32 0.0, %v1190
      %v1192 = vpop.f32.mrf.mxu0
      %v1193 = vpop.f32.mrf.mxu0
      %v1194 = vadd.f32 0.0, %v1193
      %v1195 = vpop.f32.mrf.mxu0
      %1196 = vmatprep.mubr.bf16.mxu0 0
      %1197 = vmatmul.mubr.bf16.gmra.mxu0 %v1099
      %v1198 = vpop.f32.mrf.mxu0
      %v1199 = vadd.f32 0.0, %v1198
      %v1200 = vpop.f32.mrf.mxu0
      %v1201 = vpop.f32.mrf.mxu0
      %v1202 = vadd.f32 0.0, %v1201
      %v1203 = vpop.f32.mrf.mxu0
      %1204 = vmatprep.mubr.bf16.mxu0 0
      %1205 = vmatmul.mubr.bf16.gmra.mxu0 %v1102
      %v1206 = vpop.f32.mrf.mxu0
      %v1207 = vadd.f32 0.0, %v1206
      %v1208 = vpop.f32.mrf.mxu0
      %v1209 = vpop.f32.mrf.mxu0
      %v1210 = vadd.f32 0.0, %v1209
      %v1211 = vpop.f32.mrf.mxu0
      %1212 = vmatprep.mubr.bf16.mxu0 0
      %1213 = vmatmul.mubr.bf16.gmra.mxu0 %v1105
      %v1214 = vpop.f32.mrf.mxu0
      %v1215 = vadd.f32 0.0, %v1214
      %v1216 = vpop.f32.mrf.mxu0
      %v1217 = vpop.f32.mrf.mxu0
      %v1218 = vadd.f32 0.0, %v1217
      %v1219 = vpop.f32.mrf.mxu0
      %1220 = vmatprep.mubr.bf16.mxu0 0
      %1221 = vmatmul.mubr.bf16.gmra.mxu0 %v1108
      %v1222 = vpop.f32.mrf.mxu0
      %v1223 = vadd.f32 0.0, %v1222
      %v1224 = vpop.f32.mrf.mxu0
      %v1225 = vpop.f32.mrf.mxu0
      %v1226 = vadd.f32 0.0, %v1225
      %v1227 = vpop.f32.mrf.mxu0
      %1228 = vmatprep.mubr.bf16.mxu0 0
      %1229 = vmatmul.mubr.bf16.gmra.mxu0 %v1111
      %v1230 = vpop.f32.mrf.mxu0
      %v1231 = vadd.f32 0.0, %v1230
      %v1232 = vpop.f32.mrf.mxu0
      %v1233 = vpop.f32.mrf.mxu0
      %v1234 = vadd.f32 0.0, %v1233
      %v1235 = vpop.f32.mrf.mxu0
      %1236 = vmatprep.mubr.bf16.mxu0 0
      %1237 = vmatmul.mubr.bf16.gmra.mxu0 %v1114
      %v1238 = vpop.f32.mrf.mxu0
      %v1239 = vadd.f32 0.0, %v1238
      %v1240 = vpop.f32.mrf.mxu0
      %v1241 = vpop.f32.mrf.mxu0
      %v1242 = vadd.f32 0.0, %v1241
      %v1243 = vpop.f32.mrf.mxu0
      %1244 = vmatprep.mubr.bf16.mxu0 0
      %1245 = vmatmul.mubr.bf16.gmra.mxu0 %v1117
      %v1246 = vpop.f32.mrf.mxu0
      %v1247 = vadd.f32 0.0, %v1246
      %v1248 = vpop.f32.mrf.mxu0
      %v1249 = vpop.f32.mrf.mxu0
      %v1250 = vadd.f32 0.0, %v1249
      %v1251 = vpop.f32.mrf.mxu0
      %1252 = vmatprep.mubr.bf16.mxu0 0
      %1253 = vmatmul.mubr.bf16.gmra.mxu0 %v1120
      %v1254 = vpop.f32.mrf.mxu0
      %v1255 = vadd.f32 0.0, %v1254
      %v1256 = vpop.f32.mrf.mxu0
      %v1257 = vpop.f32.mrf.mxu0
      %v1258 = vadd.f32 0.0, %v1257
      %v1259 = vpop.f32.mrf.mxu0
      %1260 = vmatprep.mubr.bf16.mxu0 0
      %1261 = vmatmul.mubr.bf16.gmra.mxu0 %v1123
      %v1262 = vpop.f32.mrf.mxu0
      %v1263 = vadd.f32 0.0, %v1262
      %v1264 = vpop.f32.mrf.mxu0
      %v1265 = vpop.f32.mrf.mxu0
      %v1266 = vadd.f32 0.0, %v1265
      %v1267 = vpop.f32.mrf.mxu0
      %1268 = vmatprep.mubr.bf16.mxu0 0
      %1269 = vmatmul.mubr.bf16.gmra.mxu0 %v1126
      %v1270 = vpop.f32.mrf.mxu0
      %v1271 = vadd.f32 0.0, %v1270
      %v1272 = vpop.f32.mrf.mxu0
      %v1273 = vpop.f32.mrf.mxu0
      %v1274 = vadd.f32 0.0, %v1273
      %v1275 = vpop.f32.mrf.mxu0
      %1276 = vmatprep.mubr.bf16.mxu0 0
      %1277 = vmatmul.mubr.bf16.gmra.mxu0 %v1129
      %v1278 = vpop.f32.mrf.mxu0
      %v1279 = vadd.f32 0.0, %v1278
      %v1280 = vpop.f32.mrf.mxu0
      %v1281 = vpop.f32.mrf.mxu0
      %v1282 = vadd.f32 0.0, %v1281
      %v1283 = vpop.f32.mrf.mxu0
      %1284 = vmatprep.mubr.bf16.mxu0 0
      %1285 = vmatmul.mubr.bf16.gmra.mxu0 %v1132
      %v1286 = vpop.f32.mrf.mxu0
      %v1287 = vadd.f32 0.0, %v1286
      %v1288 = vpop.f32.mrf.mxu0
      %v1289 = vpop.f32.mrf.mxu0
      %v1290 = vadd.f32 0.0, %v1289
      %v1291 = vpop.f32.mrf.mxu0
      %1292 = vmatprep.mubr.bf16.mxu0 0
      %1293 = vmatmul.mubr.bf16.gmra.mxu0 %v1135
      %v1294 = vpop.f32.mrf.mxu0
      %v1295 = vadd.f32 0.0, %v1294
      %v1296 = vpop.f32.mrf.mxu0
      %v1297 = vpop.f32.mrf.mxu0
      %v1298 = vadd.f32 0.0, %v1297
      %v1299 = vpop.f32.mrf.mxu0
      %1300 = vdwg.mxu0
      %v1301 = vadd.f32 %v1006, %v1175
      %v1302 = vadd.f32 %v1007, %v1178
      %v1303 = vadd.f32 %v1008, %v1183
      %v1304 = vadd.f32 %v1009, %v1186
      %v1305 = vadd.f32 %v1010, %v1191
      %v1306 = vadd.f32 %v1011, %v1194
      %v1307 = vadd.f32 %v1012, %v1199
      %v1308 = vadd.f32 %v1013, %v1202
      %v1309 = vadd.f32 %v1014, %v1207
      %v1310 = vadd.f32 %v1015, %v1210
      %v1311 = vadd.f32 %v1016, %v1215
      %v1312 = vadd.f32 %v1017, %v1218
      %v1313 = vadd.f32 %v1018, %v1223
      %v1314 = vadd.f32 %v1019, %v1226
      %v1315 = vadd.f32 %v1020, %v1231
      %v1316 = vadd.f32 %v1021, %v1234
      %v1317 = vadd.f32 %v1022, %v1239
      %v1318 = vadd.f32 %v1023, %v1242
      %v1319 = vadd.f32 %v1024, %v1247
      %v1320 = vadd.f32 %v1025, %v1250
      %v1321 = vadd.f32 %v1026, %v1255
      %v1322 = vadd.f32 %v1027, %v1258
      %v1323 = vadd.f32 %v1028, %v1263
      %v1324 = vadd.f32 %v1029, %v1266
      %v1325 = vadd.f32 %v1030, %v1271
      %v1326 = vadd.f32 %v1031, %v1274
      %v1327 = vadd.f32 %v1032, %v1279
      %v1328 = vadd.f32 %v1033, %v1282
      %v1329 = vadd.f32 %v1034, %v1287
      %v1330 = vadd.f32 %v1035, %v1290
      %v1331 = vadd.f32 %v1036, %v1295
      %v1332 = vadd.f32 %v1037, %v1298
      %v1333 = vld [vmem:[%s1038 + $0x1] sm:$0xff]
      %v1334 = vld [vmem:[%s1038 + $0x9] sm:$0xff]
      %v1335 = vld [vmem:[%s1038 + $0x19] sm:$0xff]
      %v1336 = vld [vmem:[%s1038 + $0x21] sm:$0xff]
      %v1337 = vld [vmem:[%s1038 + $0x31] sm:$0xff]
      %v1338 = vld [vmem:[%s1038 + $0x39] sm:$0xff]
      %v1339 = vld [vmem:[%s1038 + $0x49] sm:$0xff]
      %v1340 = vld [vmem:[%s1038 + $0x51] sm:$0xff]
      %v1341 = vld [vmem:[%s1038 + $0x61] sm:$0xff]
      %v1342 = vld [vmem:[%s1038 + $0x69] sm:$0xff]
      %v1343 = vld [vmem:[%s1038 + $0x79] sm:$0xff]
      %v1344 = vld [vmem:[%s1038 + $0x81] sm:$0xff]
      %v1345 = vld [vmem:[%s1038 + $0x91] sm:$0xff]
      %v1346 = vld [vmem:[%s1038 + $0x99] sm:$0xff]
      %v1347 = vld [vmem:[%s1038 + $0xa9] sm:$0xff]
      %v1348 = vld [vmem:[%s1038 + $0xb1] sm:$0xff]
      %v1349 = vld [vmem:[%s1038 + $0xc1] sm:$0xff]
      %v1350 = vld [vmem:[%s1038 + $0xc9] sm:$0xff]
      %v1351 = vld [vmem:[%s1038 + $0xd9] sm:$0xff]
      %v1352 = vld [vmem:[%s1038 + $0xe1] sm:$0xff]
      %v1353 = vld [vmem:[%s1038 + $0xf1] sm:$0xff]
      %v1354 = vld [vmem:[%s1038 + $0xf9] sm:$0xff]
      %v1355 = vld [vmem:[%s1038 + $0x109] sm:$0xff]
      %v1356 = vld [vmem:[%s1038 + $0x111] sm:$0xff]
      %v1357 = vld [vmem:[%s1038 + $0x121] sm:$0xff]
      %v1358 = vld [vmem:[%s1038 + $0x129] sm:$0xff]
      %v1359 = vld [vmem:[%s1038 + $0x139] sm:$0xff]
      %v1360 = vld [vmem:[%s1038 + $0x141] sm:$0xff]
      %v1361 = vld [vmem:[%s1038 + $0x151] sm:$0xff]
      %v1362 = vld [vmem:[%s1038 + $0x159] sm:$0xff]
      %v1363 = vld [vmem:[%s1038 + $0x169] sm:$0xff]
      %v1364 = vld [vmem:[%s1038 + $0x171] sm:$0xff]
      %v1365 = vpack.c.bf16 %v1334, %v1333
      %v1366 = vpack.c.bf16 %v1336, %v1335
      %v1367 = vpack.c.bf16 %v1338, %v1337
      %v1368 = vpack.c.bf16 %v1340, %v1339
      %v1369 = vpack.c.bf16 %v1342, %v1341
      %v1370 = vpack.c.bf16 %v1344, %v1343
      %v1371 = vpack.c.bf16 %v1346, %v1345
      %v1372 = vpack.c.bf16 %v1348, %v1347
      %v1373 = vpack.c.bf16 %v1350, %v1349
      %v1374 = vpack.c.bf16 %v1352, %v1351
      %v1375 = vpack.c.bf16 %v1354, %v1353
      %v1376 = vpack.c.bf16 %v1356, %v1355
      %v1377 = vpack.c.bf16 %v1358, %v1357
      %v1378 = vpack.c.bf16 %v1360, %v1359
      %v1379 = vpack.c.bf16 %v1362, %v1361
      %v1380 = vpack.c.bf16 %v1364, %v1363
      %s1381 = scalar_lea.vmem %s1, 8
      %v1382 = vld [vmem:[%s1381] sm:$0x3]
      %v1384 = vsel %vm318, %v1365, 0
      %v1387 = vsel %vm318, %v1366, 0
      %v1390 = vsel %vm318, %v1367, 0
      %v1393 = vsel %vm318, %v1368, 0
      %v1396 = vsel %vm318, %v1369, 0
      %v1399 = vsel %vm318, %v1370, 0
      %v1402 = vsel %vm318, %v1371, 0
      %v1405 = vsel %vm318, %v1372, 0
      %v1408 = vsel %vm318, %v1373, 0
      %v1411 = vsel %vm318, %v1374, 0
      %v1414 = vsel %vm318, %v1375, 0
      %v1417 = vsel %vm318, %v1376, 0
      %v1420 = vsel %vm318, %v1377, 0
      %v1423 = vsel %vm318, %v1378, 0
      %v1426 = vsel %vm318, %v1379, 0
      %v1429 = vsel %vm318, %v1380, 0
      %v1432 = vsel %vm367, %v1382, 0
      %1434 = vmatprep.subr.bf16.mxu0 0
      %1435 = vmatpush1.bf16.msra.mxu0 0
      %1436 = vmatprep.subr.bf16.mxu0 0
      %1437 = vmatpush1.bf16.msra.mxu0 0
      %1438 = vmatprep.subr.bf16.mxu0 0
      %1439 = vmatpush1.bf16.msra.mxu0 0
      %1440 = vmatprep.subr.bf16.mxu0 0
      %1441 = vmatpush1.bf16.msra.mxu0 0
      %1442 = vmatprep.subr.bf16.mxu0 0
      %1443 = vmatpush1.bf16.msra.mxu0 0
      %1444 = vmatprep.subr.bf16.mxu0 0
      %1445 = vmatpush1.bf16.msra.mxu0 0
      %1446 = vmatprep.subr.bf16.mxu0 0
      %1447 = vmatpush1.bf16.msra.mxu0 0
      %1448 = vmatprep.subr.bf16.mxu0 0
      %1449 = vmatpush1.bf16.msra.mxu0 %v1432
      %1450 = vmatprep.subr.bf16.mxu0 0
      %1451 = vmatpush2.bf16.msra.mxu0 0
      %1452 = vmatprep.subr.bf16.mxu0 0
      %1453 = vmatpush2.bf16.msra.mxu0 0
      %1454 = vmatprep.subr.bf16.mxu0 0
      %1455 = vmatpush2.bf16.msra.mxu0 0
      %1456 = vmatprep.subr.bf16.mxu0 0
      %1457 = vmatpush2.bf16.msra.mxu0 0
      %1458 = vmatprep.subr.bf16.mxu0 0
      %1459 = vmatpush2.bf16.msra.mxu0 0
      %1460 = vmatprep.subr.bf16.mxu0 0
      %1461 = vmatpush2.bf16.msra.mxu0 0
      %1462 = vmatprep.subr.bf16.mxu0 0
      %1463 = vmatpush2.bf16.msra.mxu0 0
      %1464 = vmatprep.subr.bf16.mxu0 0
      %1465 = vmatpush2.bf16.msra.mxu0 0
      %1466 = vmatprep.mubr.bf16.mxu0 0
      %1467 = vmatmul.mubr.bf16.gmra.mxu0 %v1384
      %v1468 = vpop.f32.mrf.mxu0
      %v1469 = vadd.f32 0.0, %v1468
      %v1470 = vpop.f32.mrf.mxu0
      %v1471 = vpop.f32.mrf.mxu0
      %v1472 = vadd.f32 0.0, %v1471
      %v1473 = vpop.f32.mrf.mxu0
      %1474 = vmatprep.mubr.bf16.mxu0 0
      %1475 = vmatmul.mubr.bf16.gmra.mxu0 %v1387
      %v1476 = vpop.f32.mrf.mxu0
      %v1477 = vadd.f32 0.0, %v1476
      %v1478 = vpop.f32.mrf.mxu0
      %v1479 = vpop.f32.mrf.mxu0
      %v1480 = vadd.f32 0.0, %v1479
      %v1481 = vpop.f32.mrf.mxu0
      %1482 = vmatprep.mubr.bf16.mxu0 0
      %1483 = vmatmul.mubr.bf16.gmra.mxu0 %v1390
      %v1484 = vpop.f32.mrf.mxu0
      %v1485 = vadd.f32 0.0, %v1484
      %v1486 = vpop.f32.mrf.mxu0
      %v1487 = vpop.f32.mrf.mxu0
      %v1488 = vadd.f32 0.0, %v1487
      %v1489 = vpop.f32.mrf.mxu0
      %1490 = vmatprep.mubr.bf16.mxu0 0
      %1491 = vmatmul.mubr.bf16.gmra.mxu0 %v1393
      %v1492 = vpop.f32.mrf.mxu0
      %v1493 = vadd.f32 0.0, %v1492
      %v1494 = vpop.f32.mrf.mxu0
      %v1495 = vpop.f32.mrf.mxu0
      %v1496 = vadd.f32 0.0, %v1495
      %v1497 = vpop.f32.mrf.mxu0
      %1498 = vmatprep.mubr.bf16.mxu0 0
      %1499 = vmatmul.mubr.bf16.gmra.mxu0 %v1396
      %v1500 = vpop.f32.mrf.mxu0
      %v1501 = vadd.f32 0.0, %v1500
      %v1502 = vpop.f32.mrf.mxu0
      %v1503 = vpop.f32.mrf.mxu0
      %v1504 = vadd.f32 0.0, %v1503
      %v1505 = vpop.f32.mrf.mxu0
      %1506 = vmatprep.mubr.bf16.mxu0 0
      %1507 = vmatmul.mubr.bf16.gmra.mxu0 %v1399
      %v1508 = vpop.f32.mrf.mxu0
      %v1509 = vadd.f32 0.0, %v1508
      %v1510 = vpop.f32.mrf.mxu0
      %v1511 = vpop.f32.mrf.mxu0
      %v1512 = vadd.f32 0.0, %v1511
      %v1513 = vpop.f32.mrf.mxu0
      %1514 = vmatprep.mubr.bf16.mxu0 0
      %1515 = vmatmul.mubr.bf16.gmra.mxu0 %v1402
      %v1516 = vpop.f32.mrf.mxu0
      %v1517 = vadd.f32 0.0, %v1516
      %v1518 = vpop.f32.mrf.mxu0
      %v1519 = vpop.f32.mrf.mxu0
      %v1520 = vadd.f32 0.0, %v1519
      %v1521 = vpop.f32.mrf.mxu0
      %1522 = vmatprep.mubr.bf16.mxu0 0
      %1523 = vmatmul.mubr.bf16.gmra.mxu0 %v1405
      %v1524 = vpop.f32.mrf.mxu0
      %v1525 = vadd.f32 0.0, %v1524
      %v1526 = vpop.f32.mrf.mxu0
      %v1527 = vpop.f32.mrf.mxu0
      %v1528 = vadd.f32 0.0, %v1527
      %v1529 = vpop.f32.mrf.mxu0
      %1530 = vmatprep.mubr.bf16.mxu0 0
      %1531 = vmatmul.mubr.bf16.gmra.mxu0 %v1408
      %v1532 = vpop.f32.mrf.mxu0
      %v1533 = vadd.f32 0.0, %v1532
      %v1534 = vpop.f32.mrf.mxu0
      %v1535 = vpop.f32.mrf.mxu0
      %v1536 = vadd.f32 0.0, %v1535
      %v1537 = vpop.f32.mrf.mxu0
      %1538 = vmatprep.mubr.bf16.mxu0 0
      %1539 = vmatmul.mubr.bf16.gmra.mxu0 %v1411
      %v1540 = vpop.f32.mrf.mxu0
      %v1541 = vadd.f32 0.0, %v1540
      %v1542 = vpop.f32.mrf.mxu0
      %v1543 = vpop.f32.mrf.mxu0
      %v1544 = vadd.f32 0.0, %v1543
      %v1545 = vpop.f32.mrf.mxu0
      %1546 = vmatprep.mubr.bf16.mxu0 0
      %1547 = vmatmul.mubr.bf16.gmra.mxu0 %v1414
      %v1548 = vpop.f32.mrf.mxu0
      %v1549 = vadd.f32 0.0, %v1548
      %v1550 = vpop.f32.mrf.mxu0
      %v1551 = vpop.f32.mrf.mxu0
      %v1552 = vadd.f32 0.0, %v1551
      %v1553 = vpop.f32.mrf.mxu0
      %1554 = vmatprep.mubr.bf16.mxu0 0
      %1555 = vmatmul.mubr.bf16.gmra.mxu0 %v1417
      %v1556 = vpop.f32.mrf.mxu0
      %v1557 = vadd.f32 0.0, %v1556
      %v1558 = vpop.f32.mrf.mxu0
      %v1559 = vpop.f32.mrf.mxu0
      %v1560 = vadd.f32 0.0, %v1559
      %v1561 = vpop.f32.mrf.mxu0
      %1562 = vmatprep.mubr.bf16.mxu0 0
      %1563 = vmatmul.mubr.bf16.gmra.mxu0 %v1420
      %v1564 = vpop.f32.mrf.mxu0
      %v1565 = vadd.f32 0.0, %v1564
      %v1566 = vpop.f32.mrf.mxu0
      %v1567 = vpop.f32.mrf.mxu0
      %v1568 = vadd.f32 0.0, %v1567
      %v1569 = vpop.f32.mrf.mxu0
      %1570 = vmatprep.mubr.bf16.mxu0 0
      %1571 = vmatmul.mubr.bf16.gmra.mxu0 %v1423
      %v1572 = vpop.f32.mrf.mxu0
      %v1573 = vadd.f32 0.0, %v1572
      %v1574 = vpop.f32.mrf.mxu0
      %v1575 = vpop.f32.mrf.mxu0
      %v1576 = vadd.f32 0.0, %v1575
      %v1577 = vpop.f32.mrf.mxu0
      %1578 = vmatprep.mubr.bf16.mxu0 0
      %1579 = vmatmul.mubr.bf16.gmra.mxu0 %v1426
      %v1580 = vpop.f32.mrf.mxu0
      %v1581 = vadd.f32 0.0, %v1580
      %v1582 = vpop.f32.mrf.mxu0
      %v1583 = vpop.f32.mrf.mxu0
      %v1584 = vadd.f32 0.0, %v1583
      %v1585 = vpop.f32.mrf.mxu0
      %1586 = vmatprep.mubr.bf16.mxu0 0
      %1587 = vmatmul.mubr.bf16.gmra.mxu0 %v1429
      %v1588 = vpop.f32.mrf.mxu0
      %v1589 = vadd.f32 0.0, %v1588
      %v1590 = vpop.f32.mrf.mxu0
      %v1591 = vpop.f32.mrf.mxu0
      %v1592 = vadd.f32 0.0, %v1591
      %v1593 = vpop.f32.mrf.mxu0
      %1594 = vdwg.mxu0
      %v1595 = vadd.f32 %v1301, %v1469
      %v1596 = vadd.f32 %v1302, %v1472
      %v1597 = vadd.f32 %v1303, %v1477
      %v1598 = vadd.f32 %v1304, %v1480
      %v1599 = vadd.f32 %v1305, %v1485
      %v1600 = vadd.f32 %v1306, %v1488
      %v1601 = vadd.f32 %v1307, %v1493
      %v1602 = vadd.f32 %v1308, %v1496
      %v1603 = vadd.f32 %v1309, %v1501
      %v1604 = vadd.f32 %v1310, %v1504
      %v1605 = vadd.f32 %v1311, %v1509
      %v1606 = vadd.f32 %v1312, %v1512
      %v1607 = vadd.f32 %v1313, %v1517
      %v1608 = vadd.f32 %v1314, %v1520
      %v1609 = vadd.f32 %v1315, %v1525
      %v1610 = vadd.f32 %v1316, %v1528
      %v1611 = vadd.f32 %v1317, %v1533
      %v1612 = vadd.f32 %v1318, %v1536
      %v1613 = vadd.f32 %v1319, %v1541
      %v1614 = vadd.f32 %v1320, %v1544
      %v1615 = vadd.f32 %v1321, %v1549
      %v1616 = vadd.f32 %v1322, %v1552
      %v1617 = vadd.f32 %v1323, %v1557
      %v1618 = vadd.f32 %v1324, %v1560
      %v1619 = vadd.f32 %v1325, %v1565
      %v1620 = vadd.f32 %v1326, %v1568
      %v1621 = vadd.f32 %v1327, %v1573
      %v1622 = vadd.f32 %v1328, %v1576
      %v1623 = vadd.f32 %v1329, %v1581
      %v1624 = vadd.f32 %v1330, %v1584
      %v1625 = vadd.f32 %v1331, %v1589
      %v1626 = vadd.f32 %v1332, %v1592
      %v1627 = vld [vmem:[%s1038 + $0x2] sm:$0xff]
      %v1628 = vld [vmem:[%s1038 + $0xa] sm:$0xff]
      %v1629 = vld [vmem:[%s1038 + $0x1a] sm:$0xff]
      %v1630 = vld [vmem:[%s1038 + $0x22] sm:$0xff]
      %v1631 = vld [vmem:[%s1038 + $0x32] sm:$0xff]
      %v1632 = vld [vmem:[%s1038 + $0x3a] sm:$0xff]
      %v1633 = vld [vmem:[%s1038 + $0x4a] sm:$0xff]
      %v1634 = vld [vmem:[%s1038 + $0x52] sm:$0xff]
      %v1635 = vld [vmem:[%s1038 + $0x62] sm:$0xff]
      %v1636 = vld [vmem:[%s1038 + $0x6a] sm:$0xff]
      %v1637 = vld [vmem:[%s1038 + $0x7a] sm:$0xff]
      %v1638 = vld [vmem:[%s1038 + $0x82] sm:$0xff]
      %v1639 = vld [vmem:[%s1038 + $0x92] sm:$0xff]
      %v1640 = vld [vmem:[%s1038 + $0x9a] sm:$0xff]
      %v1641 = vld [vmem:[%s1038 + $0xaa] sm:$0xff]
      %v1642 = vld [vmem:[%s1038 + $0xb2] sm:$0xff]
      %v1643 = vld [vmem:[%s1038 + $0xc2] sm:$0xff]
      %v1644 = vld [vmem:[%s1038 + $0xca] sm:$0xff]
      %v1645 = vld [vmem:[%s1038 + $0xda] sm:$0xff]
      %v1646 = vld [vmem:[%s1038 + $0xe2] sm:$0xff]
      %v1647 = vld [vmem:[%s1038 + $0xf2] sm:$0xff]
      %v1648 = vld [vmem:[%s1038 + $0xfa] sm:$0xff]
      %v1649 = vld [vmem:[%s1038 + $0x10a] sm:$0xff]
      %v1650 = vld [vmem:[%s1038 + $0x112] sm:$0xff]
      %v1651 = vld [vmem:[%s1038 + $0x122] sm:$0xff]
      %v1652 = vld [vmem:[%s1038 + $0x12a] sm:$0xff]
      %v1653 = vld [vmem:[%s1038 + $0x13a] sm:$0xff]
      %v1654 = vld [vmem:[%s1038 + $0x142] sm:$0xff]
      %v1655 = vld [vmem:[%s1038 + $0x152] sm:$0xff]
      %v1656 = vld [vmem:[%s1038 + $0x15a] sm:$0xff]
      %v1657 = vld [vmem:[%s1038 + $0x16a] sm:$0xff]
      %v1658 = vld [vmem:[%s1038 + $0x172] sm:$0xff]
      %v1659 = vpack.c.bf16 %v1628, %v1627
      %v1660 = vpack.c.bf16 %v1630, %v1629
      %v1661 = vpack.c.bf16 %v1632, %v1631
      %v1662 = vpack.c.bf16 %v1634, %v1633
      %v1663 = vpack.c.bf16 %v1636, %v1635
      %v1664 = vpack.c.bf16 %v1638, %v1637
      %v1665 = vpack.c.bf16 %v1640, %v1639
      %v1666 = vpack.c.bf16 %v1642, %v1641
      %v1667 = vpack.c.bf16 %v1644, %v1643
      %v1668 = vpack.c.bf16 %v1646, %v1645
      %v1669 = vpack.c.bf16 %v1648, %v1647
      %v1670 = vpack.c.bf16 %v1650, %v1649
      %v1671 = vpack.c.bf16 %v1652, %v1651
      %v1672 = vpack.c.bf16 %v1654, %v1653
      %v1673 = vpack.c.bf16 %v1656, %v1655
      %v1674 = vpack.c.bf16 %v1658, %v1657
      %s1675 = scalar_lea.vmem %s1, 10
      %v1676 = vld [vmem:[%s1675] sm:$0x3]
      %v1678 = vsel %vm318, %v1659, 0
      %v1681 = vsel %vm318, %v1660, 0
      %v1684 = vsel %vm318, %v1661, 0
      %v1687 = vsel %vm318, %v1662, 0
      %v1690 = vsel %vm318, %v1663, 0
      %v1693 = vsel %vm318, %v1664, 0
      %v1696 = vsel %vm318, %v1665, 0
      %v1699 = vsel %vm318, %v1666, 0
      %v1702 = vsel %vm318, %v1667, 0
      %v1705 = vsel %vm318, %v1668, 0
      %v1708 = vsel %vm318, %v1669, 0
      %v1711 = vsel %vm318, %v1670, 0
      %v1714 = vsel %vm318, %v1671, 0
      %v1717 = vsel %vm318, %v1672, 0
      %v1720 = vsel %vm318, %v1673, 0
      %v1723 = vsel %vm318, %v1674, 0
      %v1726 = vsel %vm367, %v1676, 0
      %1728 = vmatprep.subr.bf16.mxu0 0
      %1729 = vmatpush1.bf16.msra.mxu0 0
      %1730 = vmatprep.subr.bf16.mxu0 0
      %1731 = vmatpush1.bf16.msra.mxu0 0
      %1732 = vmatprep.subr.bf16.mxu0 0
      %1733 = vmatpush1.bf16.msra.mxu0 0
      %1734 = vmatprep.subr.bf16.mxu0 0
      %1735 = vmatpush1.bf16.msra.mxu0 0
      %1736 = vmatprep.subr.bf16.mxu0 0
      %1737 = vmatpush1.bf16.msra.mxu0 0
      %1738 = vmatprep.subr.bf16.mxu0 0
      %1739 = vmatpush1.bf16.msra.mxu0 0
      %1740 = vmatprep.subr.bf16.mxu0 0
      %1741 = vmatpush1.bf16.msra.mxu0 0
      %1742 = vmatprep.subr.bf16.mxu0 0
      %1743 = vmatpush1.bf16.msra.mxu0 %v1726
      %1744 = vmatprep.subr.bf16.mxu0 0
      %1745 = vmatpush2.bf16.msra.mxu0 0
      %1746 = vmatprep.subr.bf16.mxu0 0
      %1747 = vmatpush2.bf16.msra.mxu0 0
      %1748 = vmatprep.subr.bf16.mxu0 0
      %1749 = vmatpush2.bf16.msra.mxu0 0
      %1750 = vmatprep.subr.bf16.mxu0 0
      %1751 = vmatpush2.bf16.msra.mxu0 0
      %1752 = vmatprep.subr.bf16.mxu0 0
      %1753 = vmatpush2.bf16.msra.mxu0 0
      %1754 = vmatprep.subr.bf16.mxu0 0
      %1755 = vmatpush2.bf16.msra.mxu0 0
      %1756 = vmatprep.subr.bf16.mxu0 0
      %1757 = vmatpush2.bf16.msra.mxu0 0
      %1758 = vmatprep.subr.bf16.mxu0 0
      %1759 = vmatpush2.bf16.msra.mxu0 0
      %1760 = vmatprep.mubr.bf16.mxu0 0
      %1761 = vmatmul.mubr.bf16.gmra.mxu0 %v1678
      %v1762 = vpop.f32.mrf.mxu0
      %v1763 = vadd.f32 0.0, %v1762
      %v1764 = vpop.f32.mrf.mxu0
      %v1765 = vpop.f32.mrf.mxu0
      %v1766 = vadd.f32 0.0, %v1765
      %v1767 = vpop.f32.mrf.mxu0
      %1768 = vmatprep.mubr.bf16.mxu0 0
      %1769 = vmatmul.mubr.bf16.gmra.mxu0 %v1681
      %v1770 = vpop.f32.mrf.mxu0
      %v1771 = vadd.f32 0.0, %v1770
      %v1772 = vpop.f32.mrf.mxu0
      %v1773 = vpop.f32.mrf.mxu0
      %v1774 = vadd.f32 0.0, %v1773
      %v1775 = vpop.f32.mrf.mxu0
      %1776 = vmatprep.mubr.bf16.mxu0 0
      %1777 = vmatmul.mubr.bf16.gmra.mxu0 %v1684
      %v1778 = vpop.f32.mrf.mxu0
      %v1779 = vadd.f32 0.0, %v1778
      %v1780 = vpop.f32.mrf.mxu0
      %v1781 = vpop.f32.mrf.mxu0
      %v1782 = vadd.f32 0.0, %v1781
      %v1783 = vpop.f32.mrf.mxu0
      %1784 = vmatprep.mubr.bf16.mxu0 0
      %1785 = vmatmul.mubr.bf16.gmra.mxu0 %v1687
      %v1786 = vpop.f32.mrf.mxu0
      %v1787 = vadd.f32 0.0, %v1786
      %v1788 = vpop.f32.mrf.mxu0
      %v1789 = vpop.f32.mrf.mxu0
      %v1790 = vadd.f32 0.0, %v1789
      %v1791 = vpop.f32.mrf.mxu0
      %1792 = vmatprep.mubr.bf16.mxu0 0
      %1793 = vmatmul.mubr.bf16.gmra.mxu0 %v1690
      %v1794 = vpop.f32.mrf.mxu0
      %v1795 = vadd.f32 0.0, %v1794
      %v1796 = vpop.f32.mrf.mxu0
      %v1797 = vpop.f32.mrf.mxu0
      %v1798 = vadd.f32 0.0, %v1797
      %v1799 = vpop.f32.mrf.mxu0
      %1800 = vmatprep.mubr.bf16.mxu0 0
      %1801 = vmatmul.mubr.bf16.gmra.mxu0 %v1693
      %v1802 = vpop.f32.mrf.mxu0
      %v1803 = vadd.f32 0.0, %v1802
      %v1804 = vpop.f32.mrf.mxu0
      %v1805 = vpop.f32.mrf.mxu0
      %v1806 = vadd.f32 0.0, %v1805
      %v1807 = vpop.f32.mrf.mxu0
      %1808 = vmatprep.mubr.bf16.mxu0 0
      %1809 = vmatmul.mubr.bf16.gmra.mxu0 %v1696
      %v1810 = vpop.f32.mrf.mxu0
      %v1811 = vadd.f32 0.0, %v1810
      %v1812 = vpop.f32.mrf.mxu0
      %v1813 = vpop.f32.mrf.mxu0
      %v1814 = vadd.f32 0.0, %v1813
      %v1815 = vpop.f32.mrf.mxu0
      %1816 = vmatprep.mubr.bf16.mxu0 0
      %1817 = vmatmul.mubr.bf16.gmra.mxu0 %v1699
      %v1818 = vpop.f32.mrf.mxu0
      %v1819 = vadd.f32 0.0, %v1818
      %v1820 = vpop.f32.mrf.mxu0
      %v1821 = vpop.f32.mrf.mxu0
      %v1822 = vadd.f32 0.0, %v1821
      %v1823 = vpop.f32.mrf.mxu0
      %1824 = vmatprep.mubr.bf16.mxu0 0
      %1825 = vmatmul.mubr.bf16.gmra.mxu0 %v1702
      %v1826 = vpop.f32.mrf.mxu0
      %v1827 = vadd.f32 0.0, %v1826
      %v1828 = vpop.f32.mrf.mxu0
      %v1829 = vpop.f32.mrf.mxu0
      %v1830 = vadd.f32 0.0, %v1829
      %v1831 = vpop.f32.mrf.mxu0
      %1832 = vmatprep.mubr.bf16.mxu0 0
      %1833 = vmatmul.mubr.bf16.gmra.mxu0 %v1705
      %v1834 = vpop.f32.mrf.mxu0
      %v1835 = vadd.f32 0.0, %v1834
      %v1836 = vpop.f32.mrf.mxu0
      %v1837 = vpop.f32.mrf.mxu0
      %v1838 = vadd.f32 0.0, %v1837
      %v1839 = vpop.f32.mrf.mxu0
      %1840 = vmatprep.mubr.bf16.mxu0 0
      %1841 = vmatmul.mubr.bf16.gmra.mxu0 %v1708
      %v1842 = vpop.f32.mrf.mxu0
      %v1843 = vadd.f32 0.0, %v1842
      %v1844 = vpop.f32.mrf.mxu0
      %v1845 = vpop.f32.mrf.mxu0
      %v1846 = vadd.f32 0.0, %v1845
      %v1847 = vpop.f32.mrf.mxu0
      %1848 = vmatprep.mubr.bf16.mxu0 0
      %1849 = vmatmul.mubr.bf16.gmra.mxu0 %v1711
      %v1850 = vpop.f32.mrf.mxu0
      %v1851 = vadd.f32 0.0, %v1850
      %v1852 = vpop.f32.mrf.mxu0
      %v1853 = vpop.f32.mrf.mxu0
      %v1854 = vadd.f32 0.0, %v1853
      %v1855 = vpop.f32.mrf.mxu0
      %1856 = vmatprep.mubr.bf16.mxu0 0
      %1857 = vmatmul.mubr.bf16.gmra.mxu0 %v1714
      %v1858 = vpop.f32.mrf.mxu0
      %v1859 = vadd.f32 0.0, %v1858
      %v1860 = vpop.f32.mrf.mxu0
      %v1861 = vpop.f32.mrf.mxu0
      %v1862 = vadd.f32 0.0, %v1861
      %v1863 = vpop.f32.mrf.mxu0
      %1864 = vmatprep.mubr.bf16.mxu0 0
      %1865 = vmatmul.mubr.bf16.gmra.mxu0 %v1717
      %v1866 = vpop.f32.mrf.mxu0
      %v1867 = vadd.f32 0.0, %v1866
      %v1868 = vpop.f32.mrf.mxu0
      %v1869 = vpop.f32.mrf.mxu0
      %v1870 = vadd.f32 0.0, %v1869
      %v1871 = vpop.f32.mrf.mxu0
      %1872 = vmatprep.mubr.bf16.mxu0 0
      %1873 = vmatmul.mubr.bf16.gmra.mxu0 %v1720
      %v1874 = vpop.f32.mrf.mxu0
      %v1875 = vadd.f32 0.0, %v1874
      %v1876 = vpop.f32.mrf.mxu0
      %v1877 = vpop.f32.mrf.mxu0
      %v1878 = vadd.f32 0.0, %v1877
      %v1879 = vpop.f32.mrf.mxu0
      %1880 = vmatprep.mubr.bf16.mxu0 0
      %1881 = vmatmul.mubr.bf16.gmra.mxu0 %v1723
      %v1882 = vpop.f32.mrf.mxu0
      %v1883 = vadd.f32 0.0, %v1882
      %v1884 = vpop.f32.mrf.mxu0
      %v1885 = vpop.f32.mrf.mxu0
      %v1886 = vadd.f32 0.0, %v1885
      %v1887 = vpop.f32.mrf.mxu0
      %1888 = vdwg.mxu0
      %v1889 = vadd.f32 %v1595, %v1763
      %v1890 = vadd.f32 %v1596, %v1766
      %v1891 = vadd.f32 %v1597, %v1771
      %v1892 = vadd.f32 %v1598, %v1774
      %v1893 = vadd.f32 %v1599, %v1779
      %v1894 = vadd.f32 %v1600, %v1782
      %v1895 = vadd.f32 %v1601, %v1787
      %v1896 = vadd.f32 %v1602, %v1790
      %v1897 = vadd.f32 %v1603, %v1795
      %v1898 = vadd.f32 %v1604, %v1798
      %v1899 = vadd.f32 %v1605, %v1803
      %v1900 = vadd.f32 %v1606, %v1806
      %v1901 = vadd.f32 %v1607, %v1811
      %v1902 = vadd.f32 %v1608, %v1814
      %v1903 = vadd.f32 %v1609, %v1819
      %v1904 = vadd.f32 %v1610, %v1822
      %v1905 = vadd.f32 %v1611, %v1827
      %v1906 = vadd.f32 %v1612, %v1830
      %v1907 = vadd.f32 %v1613, %v1835
      %v1908 = vadd.f32 %v1614, %v1838
      %v1909 = vadd.f32 %v1615, %v1843
      %v1910 = vadd.f32 %v1616, %v1846
      %v1911 = vadd.f32 %v1617, %v1851
      %v1912 = vadd.f32 %v1618, %v1854
      %v1913 = vadd.f32 %v1619, %v1859
      %v1914 = vadd.f32 %v1620, %v1862
      %v1915 = vadd.f32 %v1621, %v1867
      %v1916 = vadd.f32 %v1622, %v1870
      %v1917 = vadd.f32 %v1623, %v1875
      %v1918 = vadd.f32 %v1624, %v1878
      %v1919 = vadd.f32 %v1625, %v1883
      %v1920 = vadd.f32 %v1626, %v1886
      %s1921 = scalar_lea.vmem %s207, 48
      %v1922 = vld [vmem:[%s1921] sm:$0xff]
      %v1923 = vld [vmem:[%s1921 + $0x8] sm:$0xff]
      %v1924 = vld [vmem:[%s1921 + $0x18] sm:$0xff]
      %v1925 = vld [vmem:[%s1921 + $0x20] sm:$0xff]
      %v1926 = vld [vmem:[%s1921 + $0x30] sm:$0xff]
      %v1927 = vld [vmem:[%s1921 + $0x38] sm:$0xff]
      %v1928 = vld [vmem:[%s1921 + $0x48] sm:$0xff]
      %v1929 = vld [vmem:[%s1921 + $0x50] sm:$0xff]
      %v1930 = vld [vmem:[%s1921 + $0x60] sm:$0xff]
      %v1931 = vld [vmem:[%s1921 + $0x68] sm:$0xff]
      %v1932 = vld [vmem:[%s1921 + $0x78] sm:$0xff]
      %v1933 = vld [vmem:[%s1921 + $0x80] sm:$0xff]
      %v1934 = vld [vmem:[%s1921 + $0x90] sm:$0xff]
      %v1935 = vld [vmem:[%s1921 + $0x98] sm:$0xff]
      %v1936 = vld [vmem:[%s1921 + $0xa8] sm:$0xff]
      %v1937 = vld [vmem:[%s1921 + $0xb0] sm:$0xff]
      %v1938 = vld [vmem:[%s1921 + $0xc0] sm:$0xff]
      %v1939 = vld [vmem:[%s1921 + $0xc8] sm:$0xff]
      %v1940 = vld [vmem:[%s1921 + $0xd8] sm:$0xff]
      %v1941 = vld [vmem:[%s1921 + $0xe0] sm:$0xff]
      %v1942 = vld [vmem:[%s1921 + $0xf0] sm:$0xff]
      %v1943 = vld [vmem:[%s1921 + $0xf8] sm:$0xff]
      %v1944 = vld [vmem:[%s1921 + $0x108] sm:$0xff]
      %v1945 = vld [vmem:[%s1921 + $0x110] sm:$0xff]
      %v1946 = vld [vmem:[%s1921 + $0x120] sm:$0xff]
      %v1947 = vld [vmem:[%s1921 + $0x128] sm:$0xff]
      %v1948 = vld [vmem:[%s1921 + $0x138] sm:$0xff]
      %v1949 = vld [vmem:[%s1921 + $0x140] sm:$0xff]
      %v1950 = vld [vmem:[%s1921 + $0x150] sm:$0xff]
      %v1951 = vld [vmem:[%s1921 + $0x158] sm:$0xff]
      %v1952 = vld [vmem:[%s1921 + $0x168] sm:$0xff]
      %v1953 = vld [vmem:[%s1921 + $0x170] sm:$0xff]
      %v1954 = vpack.c.bf16 %v1923, %v1922
      %v1955 = vpack.c.bf16 %v1925, %v1924
      %v1956 = vpack.c.bf16 %v1927, %v1926
      %v1957 = vpack.c.bf16 %v1929, %v1928
      %v1958 = vpack.c.bf16 %v1931, %v1930
      %v1959 = vpack.c.bf16 %v1933, %v1932
      %v1960 = vpack.c.bf16 %v1935, %v1934
      %v1961 = vpack.c.bf16 %v1937, %v1936
      %v1962 = vpack.c.bf16 %v1939, %v1938
      %v1963 = vpack.c.bf16 %v1941, %v1940
      %v1964 = vpack.c.bf16 %v1943, %v1942
      %v1965 = vpack.c.bf16 %v1945, %v1944
      %v1966 = vpack.c.bf16 %v1947, %v1946
      %v1967 = vpack.c.bf16 %v1949, %v1948
      %v1968 = vpack.c.bf16 %v1951, %v1950
      %v1969 = vpack.c.bf16 %v1953, %v1952
      %s1970 = scalar_lea.vmem %s1, 12
      %v1971 = vld [vmem:[%s1970] sm:$0x3]
      %v1973 = vsel %vm318, %v1954, 0
      %v1976 = vsel %vm318, %v1955, 0
      %v1979 = vsel %vm318, %v1956, 0
      %v1982 = vsel %vm318, %v1957, 0
      %v1985 = vsel %vm318, %v1958, 0
      %v1988 = vsel %vm318, %v1959, 0
      %v1991 = vsel %vm318, %v1960, 0
      %v1994 = vsel %vm318, %v1961, 0
      %v1997 = vsel %vm318, %v1962, 0
      %v2000 = vsel %vm318, %v1963, 0
      %v2003 = vsel %vm318, %v1964, 0
      %v2006 = vsel %vm318, %v1965, 0
      %v2009 = vsel %vm318, %v1966, 0
      %v2012 = vsel %vm318, %v1967, 0
      %v2015 = vsel %vm318, %v1968, 0
      %v2018 = vsel %vm318, %v1969, 0
      %v2021 = vsel %vm367, %v1971, 0
      %2023 = vmatprep.subr.bf16.mxu0 0
      %2024 = vmatpush1.bf16.msra.mxu0 0
      %2025 = vmatprep.subr.bf16.mxu0 0
      %2026 = vmatpush1.bf16.msra.mxu0 0
      %2027 = vmatprep.subr.bf16.mxu0 0
      %2028 = vmatpush1.bf16.msra.mxu0 0
      %2029 = vmatprep.subr.bf16.mxu0 0
      %2030 = vmatpush1.bf16.msra.mxu0 0
      %2031 = vmatprep.subr.bf16.mxu0 0
      %2032 = vmatpush1.bf16.msra.mxu0 0
      %2033 = vmatprep.subr.bf16.mxu0 0
      %2034 = vmatpush1.bf16.msra.mxu0 0
      %2035 = vmatprep.subr.bf16.mxu0 0
      %2036 = vmatpush1.bf16.msra.mxu0 0
      %2037 = vmatprep.subr.bf16.mxu0 0
      %2038 = vmatpush1.bf16.msra.mxu0 %v2021
      %2039 = vmatprep.subr.bf16.mxu0 0
      %2040 = vmatpush2.bf16.msra.mxu0 0
      %2041 = vmatprep.subr.bf16.mxu0 0
      %2042 = vmatpush2.bf16.msra.mxu0 0
      %2043 = vmatprep.subr.bf16.mxu0 0
      %2044 = vmatpush2.bf16.msra.mxu0 0
      %2045 = vmatprep.subr.bf16.mxu0 0
      %2046 = vmatpush2.bf16.msra.mxu0 0
      %2047 = vmatprep.subr.bf16.mxu0 0
      %2048 = vmatpush2.bf16.msra.mxu0 0
      %2049 = vmatprep.subr.bf16.mxu0 0
      %2050 = vmatpush2.bf16.msra.mxu0 0
      %2051 = vmatprep.subr.bf16.mxu0 0
      %2052 = vmatpush2.bf16.msra.mxu0 0
      %2053 = vmatprep.subr.bf16.mxu0 0
      %2054 = vmatpush2.bf16.msra.mxu0 0
      %2055 = vmatprep.mubr.bf16.mxu0 0
      %2056 = vmatmul.mubr.bf16.gmra.mxu0 %v1973
      %v2057 = vpop.f32.mrf.mxu0
      %v2058 = vadd.f32 0.0, %v2057
      %v2059 = vpop.f32.mrf.mxu0
      %v2060 = vpop.f32.mrf.mxu0
      %v2061 = vadd.f32 0.0, %v2060
      %v2062 = vpop.f32.mrf.mxu0
      %2063 = vmatprep.mubr.bf16.mxu0 0
      %2064 = vmatmul.mubr.bf16.gmra.mxu0 %v1976
      %v2065 = vpop.f32.mrf.mxu0
      %v2066 = vadd.f32 0.0, %v2065
      %v2067 = vpop.f32.mrf.mxu0
      %v2068 = vpop.f32.mrf.mxu0
      %v2069 = vadd.f32 0.0, %v2068
      %v2070 = vpop.f32.mrf.mxu0
      %2071 = vmatprep.mubr.bf16.mxu0 0
      %2072 = vmatmul.mubr.bf16.gmra.mxu0 %v1979
      %v2073 = vpop.f32.mrf.mxu0
      %v2074 = vadd.f32 0.0, %v2073
      %v2075 = vpop.f32.mrf.mxu0
      %v2076 = vpop.f32.mrf.mxu0
      %v2077 = vadd.f32 0.0, %v2076
      %v2078 = vpop.f32.mrf.mxu0
      %2079 = vmatprep.mubr.bf16.mxu0 0
      %2080 = vmatmul.mubr.bf16.gmra.mxu0 %v1982
      %v2081 = vpop.f32.mrf.mxu0
      %v2082 = vadd.f32 0.0, %v2081
      %v2083 = vpop.f32.mrf.mxu0
      %v2084 = vpop.f32.mrf.mxu0
      %v2085 = vadd.f32 0.0, %v2084
      %v2086 = vpop.f32.mrf.mxu0
      %2087 = vmatprep.mubr.bf16.mxu0 0
      %2088 = vmatmul.mubr.bf16.gmra.mxu0 %v1985
      %v2089 = vpop.f32.mrf.mxu0
      %v2090 = vadd.f32 0.0, %v2089
      %v2091 = vpop.f32.mrf.mxu0
      %v2092 = vpop.f32.mrf.mxu0
      %v2093 = vadd.f32 0.0, %v2092
      %v2094 = vpop.f32.mrf.mxu0
      %2095 = vmatprep.mubr.bf16.mxu0 0
      %2096 = vmatmul.mubr.bf16.gmra.mxu0 %v1988
      %v2097 = vpop.f32.mrf.mxu0
      %v2098 = vadd.f32 0.0, %v2097
      %v2099 = vpop.f32.mrf.mxu0
      %v2100 = vpop.f32.mrf.mxu0
      %v2101 = vadd.f32 0.0, %v2100
      %v2102 = vpop.f32.mrf.mxu0
      %2103 = vmatprep.mubr.bf16.mxu0 0
      %2104 = vmatmul.mubr.bf16.gmra.mxu0 %v1991
      %v2105 = vpop.f32.mrf.mxu0
      %v2106 = vadd.f32 0.0, %v2105
      %v2107 = vpop.f32.mrf.mxu0
      %v2108 = vpop.f32.mrf.mxu0
      %v2109 = vadd.f32 0.0, %v2108
      %v2110 = vpop.f32.mrf.mxu0
      %2111 = vmatprep.mubr.bf16.mxu0 0
      %2112 = vmatmul.mubr.bf16.gmra.mxu0 %v1994
      %v2113 = vpop.f32.mrf.mxu0
      %v2114 = vadd.f32 0.0, %v2113
      %v2115 = vpop.f32.mrf.mxu0
      %v2116 = vpop.f32.mrf.mxu0
      %v2117 = vadd.f32 0.0, %v2116
      %v2118 = vpop.f32.mrf.mxu0
      %2119 = vmatprep.mubr.bf16.mxu0 0
      %2120 = vmatmul.mubr.bf16.gmra.mxu0 %v1997
      %v2121 = vpop.f32.mrf.mxu0
      %v2122 = vadd.f32 0.0, %v2121
      %v2123 = vpop.f32.mrf.mxu0
      %v2124 = vpop.f32.mrf.mxu0
      %v2125 = vadd.f32 0.0, %v2124
      %v2126 = vpop.f32.mrf.mxu0
      %2127 = vmatprep.mubr.bf16.mxu0 0
      %2128 = vmatmul.mubr.bf16.gmra.mxu0 %v2000
      %v2129 = vpop.f32.mrf.mxu0
      %v2130 = vadd.f32 0.0, %v2129
      %v2131 = vpop.f32.mrf.mxu0
      %v2132 = vpop.f32.mrf.mxu0
      %v2133 = vadd.f32 0.0, %v2132
      %v2134 = vpop.f32.mrf.mxu0
      %2135 = vmatprep.mubr.bf16.mxu0 0
      %2136 = vmatmul.mubr.bf16.gmra.mxu0 %v2003
      %v2137 = vpop.f32.mrf.mxu0
      %v2138 = vadd.f32 0.0, %v2137
      %v2139 = vpop.f32.mrf.mxu0
      %v2140 = vpop.f32.mrf.mxu0
      %v2141 = vadd.f32 0.0, %v2140
      %v2142 = vpop.f32.mrf.mxu0
      %2143 = vmatprep.mubr.bf16.mxu0 0
      %2144 = vmatmul.mubr.bf16.gmra.mxu0 %v2006
      %v2145 = vpop.f32.mrf.mxu0
      %v2146 = vadd.f32 0.0, %v2145
      %v2147 = vpop.f32.mrf.mxu0
      %v2148 = vpop.f32.mrf.mxu0
      %v2149 = vadd.f32 0.0, %v2148
      %v2150 = vpop.f32.mrf.mxu0
      %2151 = vmatprep.mubr.bf16.mxu0 0
      %2152 = vmatmul.mubr.bf16.gmra.mxu0 %v2009
      %v2153 = vpop.f32.mrf.mxu0
      %v2154 = vadd.f32 0.0, %v2153
      %v2155 = vpop.f32.mrf.mxu0
      %v2156 = vpop.f32.mrf.mxu0
      %v2157 = vadd.f32 0.0, %v2156
      %v2158 = vpop.f32.mrf.mxu0
      %2159 = vmatprep.mubr.bf16.mxu0 0
      %2160 = vmatmul.mubr.bf16.gmra.mxu0 %v2012
      %v2161 = vpop.f32.mrf.mxu0
      %v2162 = vadd.f32 0.0, %v2161
      %v2163 = vpop.f32.mrf.mxu0
      %v2164 = vpop.f32.mrf.mxu0
      %v2165 = vadd.f32 0.0, %v2164
      %v2166 = vpop.f32.mrf.mxu0
      %2167 = vmatprep.mubr.bf16.mxu0 0
      %2168 = vmatmul.mubr.bf16.gmra.mxu0 %v2015
      %v2169 = vpop.f32.mrf.mxu0
      %v2170 = vadd.f32 0.0, %v2169
      %v2171 = vpop.f32.mrf.mxu0
      %v2172 = vpop.f32.mrf.mxu0
      %v2173 = vadd.f32 0.0, %v2172
      %v2174 = vpop.f32.mrf.mxu0
      %2175 = vmatprep.mubr.bf16.mxu0 0
      %2176 = vmatmul.mubr.bf16.gmra.mxu0 %v2018
      %v2177 = vpop.f32.mrf.mxu0
      %v2178 = vadd.f32 0.0, %v2177
      %v2179 = vpop.f32.mrf.mxu0
      %v2180 = vpop.f32.mrf.mxu0
      %v2181 = vadd.f32 0.0, %v2180
      %v2182 = vpop.f32.mrf.mxu0
      %2183 = vdwg.mxu0
      %v2184 = vadd.f32 %v1889, %v2058
      %v2185 = vadd.f32 %v1890, %v2061
      %v2186 = vadd.f32 %v1891, %v2066
      %v2187 = vadd.f32 %v1892, %v2069
      %v2188 = vadd.f32 %v1893, %v2074
      %v2189 = vadd.f32 %v1894, %v2077
      %v2190 = vadd.f32 %v1895, %v2082
      %v2191 = vadd.f32 %v1896, %v2085
      %v2192 = vadd.f32 %v1897, %v2090
      %v2193 = vadd.f32 %v1898, %v2093
      %v2194 = vadd.f32 %v1899, %v2098
      %v2195 = vadd.f32 %v1900, %v2101
      %v2196 = vadd.f32 %v1901, %v2106
      %v2197 = vadd.f32 %v1902, %v2109
      %v2198 = vadd.f32 %v1903, %v2114
      %v2199 = vadd.f32 %v1904, %v2117
      %v2200 = vadd.f32 %v1905, %v2122
      %v2201 = vadd.f32 %v1906, %v2125
      %v2202 = vadd.f32 %v1907, %v2130
      %v2203 = vadd.f32 %v1908, %v2133
      %v2204 = vadd.f32 %v1909, %v2138
      %v2205 = vadd.f32 %v1910, %v2141
      %v2206 = vadd.f32 %v1911, %v2146
      %v2207 = vadd.f32 %v1912, %v2149
      %v2208 = vadd.f32 %v1913, %v2154
      %v2209 = vadd.f32 %v1914, %v2157
      %v2210 = vadd.f32 %v1915, %v2162
      %v2211 = vadd.f32 %v1916, %v2165
      %v2212 = vadd.f32 %v1917, %v2170
      %v2213 = vadd.f32 %v1918, %v2173
      %v2214 = vadd.f32 %v1919, %v2178
      %v2215 = vadd.f32 %v1920, %v2181
      %v2216 = vld [vmem:[%s1921 + $0x1] sm:$0xff]
      %v2217 = vld [vmem:[%s1921 + $0x9] sm:$0xff]
      %v2218 = vld [vmem:[%s1921 + $0x19] sm:$0xff]
      %v2219 = vld [vmem:[%s1921 + $0x21] sm:$0xff]
      %v2220 = vld [vmem:[%s1921 + $0x31] sm:$0xff]
      %v2221 = vld [vmem:[%s1921 + $0x39] sm:$0xff]
      %v2222 = vld [vmem:[%s1921 + $0x49] sm:$0xff]
      %v2223 = vld [vmem:[%s1921 + $0x51] sm:$0xff]
      %v2224 = vld [vmem:[%s1921 + $0x61] sm:$0xff]
      %v2225 = vld [vmem:[%s1921 + $0x69] sm:$0xff]
      %v2226 = vld [vmem:[%s1921 + $0x79] sm:$0xff]
      %v2227 = vld [vmem:[%s1921 + $0x81] sm:$0xff]
      %v2228 = vld [vmem:[%s1921 + $0x91] sm:$0xff]
      %v2229 = vld [vmem:[%s1921 + $0x99] sm:$0xff]
      %v2230 = vld [vmem:[%s1921 + $0xa9] sm:$0xff]
      %v2231 = vld [vmem:[%s1921 + $0xb1] sm:$0xff]
      %v2232 = vld [vmem:[%s1921 + $0xc1] sm:$0xff]
      %v2233 = vld [vmem:[%s1921 + $0xc9] sm:$0xff]
      %v2234 = vld [vmem:[%s1921 + $0xd9] sm:$0xff]
      %v2235 = vld [vmem:[%s1921 + $0xe1] sm:$0xff]
      %v2236 = vld [vmem:[%s1921 + $0xf1] sm:$0xff]
      %v2237 = vld [vmem:[%s1921 + $0xf9] sm:$0xff]
      %v2238 = vld [vmem:[%s1921 + $0x109] sm:$0xff]
      %v2239 = vld [vmem:[%s1921 + $0x111] sm:$0xff]
      %v2240 = vld [vmem:[%s1921 + $0x121] sm:$0xff]
      %v2241 = vld [vmem:[%s1921 + $0x129] sm:$0xff]
      %v2242 = vld [vmem:[%s1921 + $0x139] sm:$0xff]
      %v2243 = vld [vmem:[%s1921 + $0x141] sm:$0xff]
      %v2244 = vld [vmem:[%s1921 + $0x151] sm:$0xff]
      %v2245 = vld [vmem:[%s1921 + $0x159] sm:$0xff]
      %v2246 = vld [vmem:[%s1921 + $0x169] sm:$0xff]
      %v2247 = vld [vmem:[%s1921 + $0x171] sm:$0xff]
      %v2248 = vpack.c.bf16 %v2217, %v2216
      %v2249 = vpack.c.bf16 %v2219, %v2218
      %v2250 = vpack.c.bf16 %v2221, %v2220
      %v2251 = vpack.c.bf16 %v2223, %v2222
      %v2252 = vpack.c.bf16 %v2225, %v2224
      %v2253 = vpack.c.bf16 %v2227, %v2226
      %v2254 = vpack.c.bf16 %v2229, %v2228
      %v2255 = vpack.c.bf16 %v2231, %v2230
      %v2256 = vpack.c.bf16 %v2233, %v2232
      %v2257 = vpack.c.bf16 %v2235, %v2234
      %v2258 = vpack.c.bf16 %v2237, %v2236
      %v2259 = vpack.c.bf16 %v2239, %v2238
      %v2260 = vpack.c.bf16 %v2241, %v2240
      %v2261 = vpack.c.bf16 %v2243, %v2242
      %v2262 = vpack.c.bf16 %v2245, %v2244
      %v2263 = vpack.c.bf16 %v2247, %v2246
      %s2264 = scalar_lea.vmem %s1, 14
      %v2265 = vld [vmem:[%s2264] sm:$0x3]
      %v2267 = vsel %vm318, %v2248, 0
      %v2270 = vsel %vm318, %v2249, 0
      %v2273 = vsel %vm318, %v2250, 0
      %v2276 = vsel %vm318, %v2251, 0
      %v2279 = vsel %vm318, %v2252, 0
      %v2282 = vsel %vm318, %v2253, 0
      %v2285 = vsel %vm318, %v2254, 0
      %v2288 = vsel %vm318, %v2255, 0
      %v2291 = vsel %vm318, %v2256, 0
      %v2294 = vsel %vm318, %v2257, 0
      %v2297 = vsel %vm318, %v2258, 0
      %v2300 = vsel %vm318, %v2259, 0
      %v2303 = vsel %vm318, %v2260, 0
      %v2306 = vsel %vm318, %v2261, 0
      %v2309 = vsel %vm318, %v2262, 0
      %v2312 = vsel %vm318, %v2263, 0
      %v2315 = vsel %vm367, %v2265, 0
      %2317 = vmatprep.subr.bf16.mxu0 0
      %2318 = vmatpush1.bf16.msra.mxu0 0
      %2319 = vmatprep.subr.bf16.mxu0 0
      %2320 = vmatpush1.bf16.msra.mxu0 0
      %2321 = vmatprep.subr.bf16.mxu0 0
      %2322 = vmatpush1.bf16.msra.mxu0 0
      %2323 = vmatprep.subr.bf16.mxu0 0
      %2324 = vmatpush1.bf16.msra.mxu0 0
      %2325 = vmatprep.subr.bf16.mxu0 0
      %2326 = vmatpush1.bf16.msra.mxu0 0
      %2327 = vmatprep.subr.bf16.mxu0 0
      %2328 = vmatpush1.bf16.msra.mxu0 0
      %2329 = vmatprep.subr.bf16.mxu0 0
      %2330 = vmatpush1.bf16.msra.mxu0 0
      %2331 = vmatprep.subr.bf16.mxu0 0
      %2332 = vmatpush1.bf16.msra.mxu0 %v2315
      %2333 = vmatprep.subr.bf16.mxu0 0
      %2334 = vmatpush2.bf16.msra.mxu0 0
      %2335 = vmatprep.subr.bf16.mxu0 0
      %2336 = vmatpush2.bf16.msra.mxu0 0
      %2337 = vmatprep.subr.bf16.mxu0 0
      %2338 = vmatpush2.bf16.msra.mxu0 0
      %2339 = vmatprep.subr.bf16.mxu0 0
      %2340 = vmatpush2.bf16.msra.mxu0 0
      %2341 = vmatprep.subr.bf16.mxu0 0
      %2342 = vmatpush2.bf16.msra.mxu0 0
      %2343 = vmatprep.subr.bf16.mxu0 0
      %2344 = vmatpush2.bf16.msra.mxu0 0
      %2345 = vmatprep.subr.bf16.mxu0 0
      %2346 = vmatpush2.bf16.msra.mxu0 0
      %2347 = vmatprep.subr.bf16.mxu0 0
      %2348 = vmatpush2.bf16.msra.mxu0 0
      %2349 = vmatprep.mubr.bf16.mxu0 0
      %2350 = vmatmul.mubr.bf16.gmra.mxu0 %v2267
      %v2351 = vpop.f32.mrf.mxu0
      %v2352 = vadd.f32 0.0, %v2351
      %v2353 = vpop.f32.mrf.mxu0
      %v2354 = vpop.f32.mrf.mxu0
      %v2355 = vadd.f32 0.0, %v2354
      %v2356 = vpop.f32.mrf.mxu0
      %2357 = vmatprep.mubr.bf16.mxu0 0
      %2358 = vmatmul.mubr.bf16.gmra.mxu0 %v2270
      %v2359 = vpop.f32.mrf.mxu0
      %v2360 = vadd.f32 0.0, %v2359
      %v2361 = vpop.f32.mrf.mxu0
      %v2362 = vpop.f32.mrf.mxu0
      %v2363 = vadd.f32 0.0, %v2362
      %v2364 = vpop.f32.mrf.mxu0
      %2365 = vmatprep.mubr.bf16.mxu0 0
      %2366 = vmatmul.mubr.bf16.gmra.mxu0 %v2273
      %v2367 = vpop.f32.mrf.mxu0
      %v2368 = vadd.f32 0.0, %v2367
      %v2369 = vpop.f32.mrf.mxu0
      %v2370 = vpop.f32.mrf.mxu0
      %v2371 = vadd.f32 0.0, %v2370
      %v2372 = vpop.f32.mrf.mxu0
      %2373 = vmatprep.mubr.bf16.mxu0 0
      %2374 = vmatmul.mubr.bf16.gmra.mxu0 %v2276
      %v2375 = vpop.f32.mrf.mxu0
      %v2376 = vadd.f32 0.0, %v2375
      %v2377 = vpop.f32.mrf.mxu0
      %v2378 = vpop.f32.mrf.mxu0
      %v2379 = vadd.f32 0.0, %v2378
      %v2380 = vpop.f32.mrf.mxu0
      %2381 = vmatprep.mubr.bf16.mxu0 0
      %2382 = vmatmul.mubr.bf16.gmra.mxu0 %v2279
      %v2383 = vpop.f32.mrf.mxu0
      %v2384 = vadd.f32 0.0, %v2383
      %v2385 = vpop.f32.mrf.mxu0
      %v2386 = vpop.f32.mrf.mxu0
      %v2387 = vadd.f32 0.0, %v2386
      %v2388 = vpop.f32.mrf.mxu0
      %2389 = vmatprep.mubr.bf16.mxu0 0
      %2390 = vmatmul.mubr.bf16.gmra.mxu0 %v2282
      %v2391 = vpop.f32.mrf.mxu0
      %v2392 = vadd.f32 0.0, %v2391
      %v2393 = vpop.f32.mrf.mxu0
      %v2394 = vpop.f32.mrf.mxu0
      %v2395 = vadd.f32 0.0, %v2394
      %v2396 = vpop.f32.mrf.mxu0
      %2397 = vmatprep.mubr.bf16.mxu0 0
      %2398 = vmatmul.mubr.bf16.gmra.mxu0 %v2285
      %v2399 = vpop.f32.mrf.mxu0
      %v2400 = vadd.f32 0.0, %v2399
      %v2401 = vpop.f32.mrf.mxu0
      %v2402 = vpop.f32.mrf.mxu0
      %v2403 = vadd.f32 0.0, %v2402
      %v2404 = vpop.f32.mrf.mxu0
      %2405 = vmatprep.mubr.bf16.mxu0 0
      %2406 = vmatmul.mubr.bf16.gmra.mxu0 %v2288
      %v2407 = vpop.f32.mrf.mxu0
      %v2408 = vadd.f32 0.0, %v2407
      %v2409 = vpop.f32.mrf.mxu0
      %v2410 = vpop.f32.mrf.mxu0
      %v2411 = vadd.f32 0.0, %v2410
      %v2412 = vpop.f32.mrf.mxu0
      %2413 = vmatprep.mubr.bf16.mxu0 0
      %2414 = vmatmul.mubr.bf16.gmra.mxu0 %v2291
      %v2415 = vpop.f32.mrf.mxu0
      %v2416 = vadd.f32 0.0, %v2415
      %v2417 = vpop.f32.mrf.mxu0
      %v2418 = vpop.f32.mrf.mxu0
      %v2419 = vadd.f32 0.0, %v2418
      %v2420 = vpop.f32.mrf.mxu0
      %2421 = vmatprep.mubr.bf16.mxu0 0
      %2422 = vmatmul.mubr.bf16.gmra.mxu0 %v2294
      %v2423 = vpop.f32.mrf.mxu0
      %v2424 = vadd.f32 0.0, %v2423
      %v2425 = vpop.f32.mrf.mxu0
      %v2426 = vpop.f32.mrf.mxu0
      %v2427 = vadd.f32 0.0, %v2426
      %v2428 = vpop.f32.mrf.mxu0
      %2429 = vmatprep.mubr.bf16.mxu0 0
      %2430 = vmatmul.mubr.bf16.gmra.mxu0 %v2297
      %v2431 = vpop.f32.mrf.mxu0
      %v2432 = vadd.f32 0.0, %v2431
      %v2433 = vpop.f32.mrf.mxu0
      %v2434 = vpop.f32.mrf.mxu0
      %v2435 = vadd.f32 0.0, %v2434
      %v2436 = vpop.f32.mrf.mxu0
      %2437 = vmatprep.mubr.bf16.mxu0 0
      %2438 = vmatmul.mubr.bf16.gmra.mxu0 %v2300
      %v2439 = vpop.f32.mrf.mxu0
      %v2440 = vadd.f32 0.0, %v2439
      %v2441 = vpop.f32.mrf.mxu0
      %v2442 = vpop.f32.mrf.mxu0
      %v2443 = vadd.f32 0.0, %v2442
      %v2444 = vpop.f32.mrf.mxu0
      %2445 = vmatprep.mubr.bf16.mxu0 0
      %2446 = vmatmul.mubr.bf16.gmra.mxu0 %v2303
      %v2447 = vpop.f32.mrf.mxu0
      %v2448 = vadd.f32 0.0, %v2447
      %v2449 = vpop.f32.mrf.mxu0
      %v2450 = vpop.f32.mrf.mxu0
      %v2451 = vadd.f32 0.0, %v2450
      %v2452 = vpop.f32.mrf.mxu0
      %2453 = vmatprep.mubr.bf16.mxu0 0
      %2454 = vmatmul.mubr.bf16.gmra.mxu0 %v2306
      %v2455 = vpop.f32.mrf.mxu0
      %v2456 = vadd.f32 0.0, %v2455
      %v2457 = vpop.f32.mrf.mxu0
      %v2458 = vpop.f32.mrf.mxu0
      %v2459 = vadd.f32 0.0, %v2458
      %v2460 = vpop.f32.mrf.mxu0
      %2461 = vmatprep.mubr.bf16.mxu0 0
      %2462 = vmatmul.mubr.bf16.gmra.mxu0 %v2309
      %v2463 = vpop.f32.mrf.mxu0
      %v2464 = vadd.f32 0.0, %v2463
      %v2465 = vpop.f32.mrf.mxu0
      %v2466 = vpop.f32.mrf.mxu0
      %v2467 = vadd.f32 0.0, %v2466
      %v2468 = vpop.f32.mrf.mxu0
      %2469 = vmatprep.mubr.bf16.mxu0 0
      %2470 = vmatmul.mubr.bf16.gmra.mxu0 %v2312
      %v2471 = vpop.f32.mrf.mxu0
      %v2472 = vadd.f32 0.0, %v2471
      %v2473 = vpop.f32.mrf.mxu0
      %v2474 = vpop.f32.mrf.mxu0
      %v2475 = vadd.f32 0.0, %v2474
      %v2476 = vpop.f32.mrf.mxu0
      %2477 = vdwg.mxu0
      %v2478 = vadd.f32 %v2184, %v2352
      %v2479 = vadd.f32 %v2185, %v2355
      %v2480 = vadd.f32 %v2186, %v2360
      %v2481 = vadd.f32 %v2187, %v2363
      %v2482 = vadd.f32 %v2188, %v2368
      %v2483 = vadd.f32 %v2189, %v2371
      %v2484 = vadd.f32 %v2190, %v2376
      %v2485 = vadd.f32 %v2191, %v2379
      %v2486 = vadd.f32 %v2192, %v2384
      %v2487 = vadd.f32 %v2193, %v2387
      %v2488 = vadd.f32 %v2194, %v2392
      %v2489 = vadd.f32 %v2195, %v2395
      %v2490 = vadd.f32 %v2196, %v2400
      %v2491 = vadd.f32 %v2197, %v2403
      %v2492 = vadd.f32 %v2198, %v2408
      %v2493 = vadd.f32 %v2199, %v2411
      %v2494 = vadd.f32 %v2200, %v2416
      %v2495 = vadd.f32 %v2201, %v2419
      %v2496 = vadd.f32 %v2202, %v2424
      %v2497 = vadd.f32 %v2203, %v2427
      %v2498 = vadd.f32 %v2204, %v2432
      %v2499 = vadd.f32 %v2205, %v2435
      %v2500 = vadd.f32 %v2206, %v2440
      %v2501 = vadd.f32 %v2207, %v2443
      %v2502 = vadd.f32 %v2208, %v2448
      %v2503 = vadd.f32 %v2209, %v2451
      %v2504 = vadd.f32 %v2210, %v2456
      %v2505 = vadd.f32 %v2211, %v2459
      %v2506 = vadd.f32 %v2212, %v2464
      %v2507 = vadd.f32 %v2213, %v2467
      %v2508 = vadd.f32 %v2214, %v2472
      %v2509 = vadd.f32 %v2215, %v2475
      %v2510 = vld [vmem:[%s1921 + $0x2] sm:$0xff]
      %v2511 = vld [vmem:[%s1921 + $0xa] sm:$0xff]
      %v2512 = vld [vmem:[%s1921 + $0x1a] sm:$0xff]
      %v2513 = vld [vmem:[%s1921 + $0x22] sm:$0xff]
      %v2514 = vld [vmem:[%s1921 + $0x32] sm:$0xff]
      %v2515 = vld [vmem:[%s1921 + $0x3a] sm:$0xff]
      %v2516 = vld [vmem:[%s1921 + $0x4a] sm:$0xff]
      %v2517 = vld [vmem:[%s1921 + $0x52] sm:$0xff]
      %v2518 = vld [vmem:[%s1921 + $0x62] sm:$0xff]
      %v2519 = vld [vmem:[%s1921 + $0x6a] sm:$0xff]
      %v2520 = vld [vmem:[%s1921 + $0x7a] sm:$0xff]
      %v2521 = vld [vmem:[%s1921 + $0x82] sm:$0xff]
      %v2522 = vld [vmem:[%s1921 + $0x92] sm:$0xff]
      %v2523 = vld [vmem:[%s1921 + $0x9a] sm:$0xff]
      %v2524 = vld [vmem:[%s1921 + $0xaa] sm:$0xff]
      %v2525 = vld [vmem:[%s1921 + $0xb2] sm:$0xff]
      %v2526 = vld [vmem:[%s1921 + $0xc2] sm:$0xff]
      %v2527 = vld [vmem:[%s1921 + $0xca] sm:$0xff]
      %v2528 = vld [vmem:[%s1921 + $0xda] sm:$0xff]
      %v2529 = vld [vmem:[%s1921 + $0xe2] sm:$0xff]
      %v2530 = vld [vmem:[%s1921 + $0xf2] sm:$0xff]
      %v2531 = vld [vmem:[%s1921 + $0xfa] sm:$0xff]
      %v2532 = vld [vmem:[%s1921 + $0x10a] sm:$0xff]
      %v2533 = vld [vmem:[%s1921 + $0x112] sm:$0xff]
      %v2534 = vld [vmem:[%s1921 + $0x122] sm:$0xff]
      %v2535 = vld [vmem:[%s1921 + $0x12a] sm:$0xff]
      %v2536 = vld [vmem:[%s1921 + $0x13a] sm:$0xff]
      %v2537 = vld [vmem:[%s1921 + $0x142] sm:$0xff]
      %v2538 = vld [vmem:[%s1921 + $0x152] sm:$0xff]
      %v2539 = vld [vmem:[%s1921 + $0x15a] sm:$0xff]
      %v2540 = vld [vmem:[%s1921 + $0x16a] sm:$0xff]
      %v2541 = vld [vmem:[%s1921 + $0x172] sm:$0xff]
      %v2542 = vpack.c.bf16 %v2511, %v2510
      %v2543 = vpack.c.bf16 %v2513, %v2512
      %v2544 = vpack.c.bf16 %v2515, %v2514
      %v2545 = vpack.c.bf16 %v2517, %v2516
      %v2546 = vpack.c.bf16 %v2519, %v2518
      %v2547 = vpack.c.bf16 %v2521, %v2520
      %v2548 = vpack.c.bf16 %v2523, %v2522
      %v2549 = vpack.c.bf16 %v2525, %v2524
      %v2550 = vpack.c.bf16 %v2527, %v2526
      %v2551 = vpack.c.bf16 %v2529, %v2528
      %v2552 = vpack.c.bf16 %v2531, %v2530
      %v2553 = vpack.c.bf16 %v2533, %v2532
      %v2554 = vpack.c.bf16 %v2535, %v2534
      %v2555 = vpack.c.bf16 %v2537, %v2536
      %v2556 = vpack.c.bf16 %v2539, %v2538
      %v2557 = vpack.c.bf16 %v2541, %v2540
      %s2558 = scalar_lea.vmem %s1, 16
      %v2559 = vld [vmem:[%s2558] sm:$0x3]
      %v2561 = vsel %vm318, %v2542, 0
      %v2564 = vsel %vm318, %v2543, 0
      %v2567 = vsel %vm318, %v2544, 0
      %v2570 = vsel %vm318, %v2545, 0
      %v2573 = vsel %vm318, %v2546, 0
      %v2576 = vsel %vm318, %v2547, 0
      %v2579 = vsel %vm318, %v2548, 0
      %v2582 = vsel %vm318, %v2549, 0
      %v2585 = vsel %vm318, %v2550, 0
      %v2588 = vsel %vm318, %v2551, 0
      %v2591 = vsel %vm318, %v2552, 0
      %v2594 = vsel %vm318, %v2553, 0
      %v2597 = vsel %vm318, %v2554, 0
      %v2600 = vsel %vm318, %v2555, 0
      %v2603 = vsel %vm318, %v2556, 0
      %v2606 = vsel %vm318, %v2557, 0
      %v2609 = vsel %vm367, %v2559, 0
      %2611 = vmatprep.subr.bf16.mxu0 0
      %2612 = vmatpush1.bf16.msra.mxu0 0
      %2613 = vmatprep.subr.bf16.mxu0 0
      %2614 = vmatpush1.bf16.msra.mxu0 0
      %2615 = vmatprep.subr.bf16.mxu0 0
      %2616 = vmatpush1.bf16.msra.mxu0 0
      %2617 = vmatprep.subr.bf16.mxu0 0
      %2618 = vmatpush1.bf16.msra.mxu0 0
      %2619 = vmatprep.subr.bf16.mxu0 0
      %2620 = vmatpush1.bf16.msra.mxu0 0
      %2621 = vmatprep.subr.bf16.mxu0 0
      %2622 = vmatpush1.bf16.msra.mxu0 0
      %2623 = vmatprep.subr.bf16.mxu0 0
      %2624 = vmatpush1.bf16.msra.mxu0 0
      %2625 = vmatprep.subr.bf16.mxu0 0
      %2626 = vmatpush1.bf16.msra.mxu0 %v2609
      %2627 = vmatprep.subr.bf16.mxu0 0
      %2628 = vmatpush2.bf16.msra.mxu0 0
      %2629 = vmatprep.subr.bf16.mxu0 0
      %2630 = vmatpush2.bf16.msra.mxu0 0
      %2631 = vmatprep.subr.bf16.mxu0 0
      %2632 = vmatpush2.bf16.msra.mxu0 0
      %2633 = vmatprep.subr.bf16.mxu0 0
      %2634 = vmatpush2.bf16.msra.mxu0 0
      %2635 = vmatprep.subr.bf16.mxu0 0
      %2636 = vmatpush2.bf16.msra.mxu0 0
      %2637 = vmatprep.subr.bf16.mxu0 0
      %2638 = vmatpush2.bf16.msra.mxu0 0
      %2639 = vmatprep.subr.bf16.mxu0 0
      %2640 = vmatpush2.bf16.msra.mxu0 0
      %2641 = vmatprep.subr.bf16.mxu0 0
      %2642 = vmatpush2.bf16.msra.mxu0 0
      %2643 = vmatprep.mubr.bf16.mxu0 0
      %2644 = vmatmul.mubr.bf16.gmra.mxu0 %v2561
      %v2645 = vpop.f32.mrf.mxu0
      %v2646 = vadd.f32 0.0, %v2645
      %v2647 = vpop.f32.mrf.mxu0
      %v2648 = vpop.f32.mrf.mxu0
      %v2649 = vadd.f32 0.0, %v2648
      %v2650 = vpop.f32.mrf.mxu0
      %2651 = vmatprep.mubr.bf16.mxu0 0
      %2652 = vmatmul.mubr.bf16.gmra.mxu0 %v2564
      %v2653 = vpop.f32.mrf.mxu0
      %v2654 = vadd.f32 0.0, %v2653
      %v2655 = vpop.f32.mrf.mxu0
      %v2656 = vpop.f32.mrf.mxu0
      %v2657 = vadd.f32 0.0, %v2656
      %v2658 = vpop.f32.mrf.mxu0
      %2659 = vmatprep.mubr.bf16.mxu0 0
      %2660 = vmatmul.mubr.bf16.gmra.mxu0 %v2567
      %v2661 = vpop.f32.mrf.mxu0
      %v2662 = vadd.f32 0.0, %v2661
      %v2663 = vpop.f32.mrf.mxu0
      %v2664 = vpop.f32.mrf.mxu0
      %v2665 = vadd.f32 0.0, %v2664
      %v2666 = vpop.f32.mrf.mxu0
      %2667 = vmatprep.mubr.bf16.mxu0 0
      %2668 = vmatmul.mubr.bf16.gmra.mxu0 %v2570
      %v2669 = vpop.f32.mrf.mxu0
      %v2670 = vadd.f32 0.0, %v2669
      %v2671 = vpop.f32.mrf.mxu0
      %v2672 = vpop.f32.mrf.mxu0
      %v2673 = vadd.f32 0.0, %v2672
      %v2674 = vpop.f32.mrf.mxu0
      %2675 = vmatprep.mubr.bf16.mxu0 0
      %2676 = vmatmul.mubr.bf16.gmra.mxu0 %v2573
      %v2677 = vpop.f32.mrf.mxu0
      %v2678 = vadd.f32 0.0, %v2677
      %v2679 = vpop.f32.mrf.mxu0
      %v2680 = vpop.f32.mrf.mxu0
      %v2681 = vadd.f32 0.0, %v2680
      %v2682 = vpop.f32.mrf.mxu0
      %2683 = vmatprep.mubr.bf16.mxu0 0
      %2684 = vmatmul.mubr.bf16.gmra.mxu0 %v2576
      %v2685 = vpop.f32.mrf.mxu0
      %v2686 = vadd.f32 0.0, %v2685
      %v2687 = vpop.f32.mrf.mxu0
      %v2688 = vpop.f32.mrf.mxu0
      %v2689 = vadd.f32 0.0, %v2688
      %v2690 = vpop.f32.mrf.mxu0
      %2691 = vmatprep.mubr.bf16.mxu0 0
      %2692 = vmatmul.mubr.bf16.gmra.mxu0 %v2579
      %v2693 = vpop.f32.mrf.mxu0
      %v2694 = vadd.f32 0.0, %v2693
      %v2695 = vpop.f32.mrf.mxu0
      %v2696 = vpop.f32.mrf.mxu0
      %v2697 = vadd.f32 0.0, %v2696
      %v2698 = vpop.f32.mrf.mxu0
      %2699 = vmatprep.mubr.bf16.mxu0 0
      %2700 = vmatmul.mubr.bf16.gmra.mxu0 %v2582
      %v2701 = vpop.f32.mrf.mxu0
      %v2702 = vadd.f32 0.0, %v2701
      %v2703 = vpop.f32.mrf.mxu0
      %v2704 = vpop.f32.mrf.mxu0
      %v2705 = vadd.f32 0.0, %v2704
      %v2706 = vpop.f32.mrf.mxu0
      %2707 = vmatprep.mubr.bf16.mxu0 0
      %2708 = vmatmul.mubr.bf16.gmra.mxu0 %v2585
      %v2709 = vpop.f32.mrf.mxu0
      %v2710 = vadd.f32 0.0, %v2709
      %v2711 = vpop.f32.mrf.mxu0
      %v2712 = vpop.f32.mrf.mxu0
      %v2713 = vadd.f32 0.0, %v2712
      %v2714 = vpop.f32.mrf.mxu0
      %2715 = vmatprep.mubr.bf16.mxu0 0
      %2716 = vmatmul.mubr.bf16.gmra.mxu0 %v2588
      %v2717 = vpop.f32.mrf.mxu0
      %v2718 = vadd.f32 0.0, %v2717
      %v2719 = vpop.f32.mrf.mxu0
      %v2720 = vpop.f32.mrf.mxu0
      %v2721 = vadd.f32 0.0, %v2720
      %v2722 = vpop.f32.mrf.mxu0
      %2723 = vmatprep.mubr.bf16.mxu0 0
      %2724 = vmatmul.mubr.bf16.gmra.mxu0 %v2591
      %v2725 = vpop.f32.mrf.mxu0
      %v2726 = vadd.f32 0.0, %v2725
      %v2727 = vpop.f32.mrf.mxu0
      %v2728 = vpop.f32.mrf.mxu0
      %v2729 = vadd.f32 0.0, %v2728
      %v2730 = vpop.f32.mrf.mxu0
      %2731 = vmatprep.mubr.bf16.mxu0 0
      %2732 = vmatmul.mubr.bf16.gmra.mxu0 %v2594
      %v2733 = vpop.f32.mrf.mxu0
      %v2734 = vadd.f32 0.0, %v2733
      %v2735 = vpop.f32.mrf.mxu0
      %v2736 = vpop.f32.mrf.mxu0
      %v2737 = vadd.f32 0.0, %v2736
      %v2738 = vpop.f32.mrf.mxu0
      %2739 = vmatprep.mubr.bf16.mxu0 0
      %2740 = vmatmul.mubr.bf16.gmra.mxu0 %v2597
      %v2741 = vpop.f32.mrf.mxu0
      %v2742 = vadd.f32 0.0, %v2741
      %v2743 = vpop.f32.mrf.mxu0
      %v2744 = vpop.f32.mrf.mxu0
      %v2745 = vadd.f32 0.0, %v2744
      %v2746 = vpop.f32.mrf.mxu0
      %2747 = vmatprep.mubr.bf16.mxu0 0
      %2748 = vmatmul.mubr.bf16.gmra.mxu0 %v2600
      %v2749 = vpop.f32.mrf.mxu0
      %v2750 = vadd.f32 0.0, %v2749
      %v2751 = vpop.f32.mrf.mxu0
      %v2752 = vpop.f32.mrf.mxu0
      %v2753 = vadd.f32 0.0, %v2752
      %v2754 = vpop.f32.mrf.mxu0
      %2755 = vmatprep.mubr.bf16.mxu0 0
      %2756 = vmatmul.mubr.bf16.gmra.mxu0 %v2603
      %v2757 = vpop.f32.mrf.mxu0
      %v2758 = vadd.f32 0.0, %v2757
      %v2759 = vpop.f32.mrf.mxu0
      %v2760 = vpop.f32.mrf.mxu0
      %v2761 = vadd.f32 0.0, %v2760
      %v2762 = vpop.f32.mrf.mxu0
      %2763 = vmatprep.mubr.bf16.mxu0 0
      %2764 = vmatmul.mubr.bf16.gmra.mxu0 %v2606
      %v2765 = vpop.f32.mrf.mxu0
      %v2766 = vadd.f32 0.0, %v2765
      %v2767 = vpop.f32.mrf.mxu0
      %v2768 = vpop.f32.mrf.mxu0
      %v2769 = vadd.f32 0.0, %v2768
      %v2770 = vpop.f32.mrf.mxu0
      %2771 = vdwg.mxu0
      %v2772 = vadd.f32 %v2478, %v2646
      %v2773 = vadd.f32 %v2479, %v2649
      %v2774 = vadd.f32 %v2480, %v2654
      %v2775 = vadd.f32 %v2481, %v2657
      %v2776 = vadd.f32 %v2482, %v2662
      %v2777 = vadd.f32 %v2483, %v2665
      %v2778 = vadd.f32 %v2484, %v2670
      %v2779 = vadd.f32 %v2485, %v2673
      %v2780 = vadd.f32 %v2486, %v2678
      %v2781 = vadd.f32 %v2487, %v2681
      %v2782 = vadd.f32 %v2488, %v2686
      %v2783 = vadd.f32 %v2489, %v2689
      %v2784 = vadd.f32 %v2490, %v2694
      %v2785 = vadd.f32 %v2491, %v2697
      %v2786 = vadd.f32 %v2492, %v2702
      %v2787 = vadd.f32 %v2493, %v2705
      %v2788 = vadd.f32 %v2494, %v2710
      %v2789 = vadd.f32 %v2495, %v2713
      %v2790 = vadd.f32 %v2496, %v2718
      %v2791 = vadd.f32 %v2497, %v2721
      %v2792 = vadd.f32 %v2498, %v2726
      %v2793 = vadd.f32 %v2499, %v2729
      %v2794 = vadd.f32 %v2500, %v2734
      %v2795 = vadd.f32 %v2501, %v2737
      %v2796 = vadd.f32 %v2502, %v2742
      %v2797 = vadd.f32 %v2503, %v2745
      %v2798 = vadd.f32 %v2504, %v2750
      %v2799 = vadd.f32 %v2505, %v2753
      %v2800 = vadd.f32 %v2506, %v2758
      %v2801 = vadd.f32 %v2507, %v2761
      %v2802 = vadd.f32 %v2508, %v2766
      %v2803 = vadd.f32 %v2509, %v2769
      %v2804 = vld [vmem:[%s2] sm:$0x1]
      %v2806 = vlaneseq
      %v2807 = vshrl.u32 %v2806, 7
      %v2808 = vsub.s32 0, %v2807
      %v2809 = vrot.slane %v2804, %v2808
      %v2811 = vadd.f32 %v2772, %v2809
      %v2812 = vadd.f32 %v2773, %v2809
      %v2813 = vadd.f32 %v2774, %v2809
      %v2814 = vadd.f32 %v2775, %v2809
      %v2815 = vadd.f32 %v2776, %v2809
      %v2816 = vadd.f32 %v2777, %v2809
      %v2817 = vadd.f32 %v2778, %v2809
      %v2818 = vadd.f32 %v2779, %v2809
      %v2819 = vadd.f32 %v2780, %v2809
      %v2820 = vadd.f32 %v2781, %v2809
      %v2821 = vadd.f32 %v2782, %v2809
      %v2822 = vadd.f32 %v2783, %v2809
      %v2823 = vadd.f32 %v2784, %v2809
      %v2824 = vadd.f32 %v2785, %v2809
      %v2825 = vadd.f32 %v2786, %v2809
      %v2826 = vadd.f32 %v2787, %v2809
      %v2827 = vadd.f32 %v2788, %v2809
      %v2828 = vadd.f32 %v2789, %v2809
      %v2829 = vadd.f32 %v2790, %v2809
      %v2830 = vadd.f32 %v2791, %v2809
      %v2831 = vadd.f32 %v2792, %v2809
      %v2832 = vadd.f32 %v2793, %v2809
      %v2833 = vadd.f32 %v2794, %v2809
      %v2834 = vadd.f32 %v2795, %v2809
      %v2835 = vadd.f32 %v2796, %v2809
      %v2836 = vadd.f32 %v2797, %v2809
      %v2837 = vadd.f32 %v2798, %v2809
      %v2838 = vadd.f32 %v2799, %v2809
      %v2839 = vadd.f32 %v2800, %v2809
      %v2840 = vadd.f32 %v2801, %v2809
      %v2841 = vadd.f32 %v2802, %v2809
      %v2842 = vadd.f32 %v2803, %v2809
      %v2843 = vld [vmem:[%s212] sm:$0xff]
      %v2844 = vld [vmem:[%s212 + $0x8] sm:$0xff]
      %v2845 = vld [vmem:[%s212 + $0x10] sm:$0xff]
      %v2846 = vld [vmem:[%s212 + $0x18] sm:$0xff]
      %v2847 = vld [vmem:[%s212 + $0x20] sm:$0xff]
      %v2848 = vld [vmem:[%s212 + $0x28] sm:$0xff]
      %v2849 = vld [vmem:[%s212 + $0x30] sm:$0xff]
      %v2850 = vld [vmem:[%s212 + $0x38] sm:$0xff]
      %v2851 = vld [vmem:[%s212 + $0x40] sm:$0xff]
      %v2852 = vld [vmem:[%s212 + $0x48] sm:$0xff]
      %v2853 = vld [vmem:[%s212 + $0x50] sm:$0xff]
      %v2854 = vld [vmem:[%s212 + $0x58] sm:$0xff]
      %v2855 = vld [vmem:[%s212 + $0x60] sm:$0xff]
      %v2856 = vld [vmem:[%s212 + $0x68] sm:$0xff]
      %v2857 = vld [vmem:[%s212 + $0x70] sm:$0xff]
      %v2858 = vld [vmem:[%s212 + $0x78] sm:$0xff]
      %v2859 = vld [vmem:[%s212 + $0x80] sm:$0xff]
      %v2860 = vld [vmem:[%s212 + $0x88] sm:$0xff]
      %v2861 = vld [vmem:[%s212 + $0x90] sm:$0xff]
      %v2862 = vld [vmem:[%s212 + $0x98] sm:$0xff]
      %v2863 = vld [vmem:[%s212 + $0xa0] sm:$0xff]
      %v2864 = vld [vmem:[%s212 + $0xa8] sm:$0xff]
      %v2865 = vld [vmem:[%s212 + $0xb0] sm:$0xff]
      %v2866 = vld [vmem:[%s212 + $0xb8] sm:$0xff]
      %v2867 = vld [vmem:[%s212 + $0xc0] sm:$0xff]
      %v2868 = vld [vmem:[%s212 + $0xc8] sm:$0xff]
      %v2869 = vld [vmem:[%s212 + $0xd0] sm:$0xff]
      %v2870 = vld [vmem:[%s212 + $0xd8] sm:$0xff]
      %v2871 = vld [vmem:[%s212 + $0xe0] sm:$0xff]
      %v2872 = vld [vmem:[%s212 + $0xe8] sm:$0xff]
      %v2873 = vld [vmem:[%s212 + $0xf0] sm:$0xff]
      %v2874 = vld [vmem:[%s212 + $0xf8] sm:$0xff]
      %v2875 = vadd.f32 %v2811, %v2843
      %v2876 = vadd.f32 %v2812, %v2844
      %v2877 = vadd.f32 %v2813, %v2845
      %v2878 = vadd.f32 %v2814, %v2846
      %v2879 = vadd.f32 %v2815, %v2847
      %v2880 = vadd.f32 %v2816, %v2848
      %v2881 = vadd.f32 %v2817, %v2849
      %v2882 = vadd.f32 %v2818, %v2850
      %v2883 = vadd.f32 %v2819, %v2851
      %v2884 = vadd.f32 %v2820, %v2852
      %v2885 = vadd.f32 %v2821, %v2853
      %v2886 = vadd.f32 %v2822, %v2854
      %v2887 = vadd.f32 %v2823, %v2855
      %v2888 = vadd.f32 %v2824, %v2856
      %v2889 = vadd.f32 %v2825, %v2857
      %v2890 = vadd.f32 %v2826, %v2858
      %v2891 = vadd.f32 %v2827, %v2859
      %v2892 = vadd.f32 %v2828, %v2860
      %v2893 = vadd.f32 %v2829, %v2861
      %v2894 = vadd.f32 %v2830, %v2862
      %v2895 = vadd.f32 %v2831, %v2863
      %v2896 = vadd.f32 %v2832, %v2864
      %v2897 = vadd.f32 %v2833, %v2865
      %v2898 = vadd.f32 %v2834, %v2866
      %v2899 = vadd.f32 %v2835, %v2867
      %v2900 = vadd.f32 %v2836, %v2868
      %v2901 = vadd.f32 %v2837, %v2869
      %v2902 = vadd.f32 %v2838, %v2870
      %v2903 = vadd.f32 %v2839, %v2871
      %v2904 = vadd.f32 %v2840, %v2872
      %v2905 = vadd.f32 %v2841, %v2873
      %v2906 = vadd.f32 %v2842, %v2874
      %v2907 = vmax.f32 %v2875, 0.0
      %v2908 = vmax.f32 %v2876, 0.0
      %v2909 = vmax.f32 %v2877, 0.0
      %v2910 = vmax.f32 %v2878, 0.0
      %v2911 = vmax.f32 %v2879, 0.0
      %v2912 = vmax.f32 %v2880, 0.0
      %v2913 = vmax.f32 %v2881, 0.0
      %v2914 = vmax.f32 %v2882, 0.0
      %v2915 = vmax.f32 %v2883, 0.0
      %v2916 = vmax.f32 %v2884, 0.0
      %v2917 = vmax.f32 %v2885, 0.0
      %v2918 = vmax.f32 %v2886, 0.0
      %v2919 = vmax.f32 %v2887, 0.0
      %v2920 = vmax.f32 %v2888, 0.0
      %v2921 = vmax.f32 %v2889, 0.0
      %v2922 = vmax.f32 %v2890, 0.0
      %v2923 = vmax.f32 %v2891, 0.0
      %v2924 = vmax.f32 %v2892, 0.0
      %v2925 = vmax.f32 %v2893, 0.0
      %v2926 = vmax.f32 %v2894, 0.0
      %v2927 = vmax.f32 %v2895, 0.0
      %v2928 = vmax.f32 %v2896, 0.0
      %v2929 = vmax.f32 %v2897, 0.0
      %v2930 = vmax.f32 %v2898, 0.0
      %v2931 = vmax.f32 %v2899, 0.0
      %v2932 = vmax.f32 %v2900, 0.0
      %v2933 = vmax.f32 %v2901, 0.0
      %v2934 = vmax.f32 %v2902, 0.0
      %v2935 = vmax.f32 %v2903, 0.0
      %v2936 = vmax.f32 %v2904, 0.0
      %v2937 = vmax.f32 %v2905, 0.0
      %v2938 = vmax.f32 %v2906, 0.0
      %2939 = vst.msk [vmem:[%s217] sm:$0xff] %vm318, %v2907
      %2940 = vst.msk [vmem:[%s217 + $0x8] sm:$0xff] %vm318, %v2908
      %2941 = vst.msk [vmem:[%s217 + $0x10] sm:$0xff] %vm318, %v2909
      %2942 = vst.msk [vmem:[%s217 + $0x18] sm:$0xff] %vm318, %v2910
      %2943 = vst.msk [vmem:[%s217 + $0x20] sm:$0xff] %vm318, %v2911
      %2944 = vst.msk [vmem:[%s217 + $0x28] sm:$0xff] %vm318, %v2912
      %2945 = vst.msk [vmem:[%s217 + $0x30] sm:$0xff] %vm318, %v2913
      %2946 = vst.msk [vmem:[%s217 + $0x38] sm:$0xff] %vm318, %v2914
      %2947 = vst.msk [vmem:[%s217 + $0x40] sm:$0xff] %vm318, %v2915
      %2948 = vst.msk [vmem:[%s217 + $0x48] sm:$0xff] %vm318, %v2916
      %2949 = vst.msk [vmem:[%s217 + $0x50] sm:$0xff] %vm318, %v2917
      %2950 = vst.msk [vmem:[%s217 + $0x58] sm:$0xff] %vm318, %v2918
      %2951 = vst.msk [vmem:[%s217 + $0x60] sm:$0xff] %vm318, %v2919
      %2952 = vst.msk [vmem:[%s217 + $0x68] sm:$0xff] %vm318, %v2920
      %2953 = vst.msk [vmem:[%s217 + $0x70] sm:$0xff] %vm318, %v2921
      %2954 = vst.msk [vmem:[%s217 + $0x78] sm:$0xff] %vm318, %v2922
      %2955 = vst.msk [vmem:[%s217 + $0x80] sm:$0xff] %vm318, %v2923
      %2956 = vst.msk [vmem:[%s217 + $0x88] sm:$0xff] %vm318, %v2924
      %2957 = vst.msk [vmem:[%s217 + $0x90] sm:$0xff] %vm318, %v2925
      %2958 = vst.msk [vmem:[%s217 + $0x98] sm:$0xff] %vm318, %v2926
      %2959 = vst.msk [vmem:[%s217 + $0xa0] sm:$0xff] %vm318, %v2927
      %2960 = vst.msk [vmem:[%s217 + $0xa8] sm:$0xff] %vm318, %v2928
      %2961 = vst.msk [vmem:[%s217 + $0xb0] sm:$0xff] %vm318, %v2929
      %2962 = vst.msk [vmem:[%s217 + $0xb8] sm:$0xff] %vm318, %v2930
      %2963 = vst.msk [vmem:[%s217 + $0xc0] sm:$0xff] %vm318, %v2931
      %2964 = vst.msk [vmem:[%s217 + $0xc8] sm:$0xff] %vm318, %v2932
      %2965 = vst.msk [vmem:[%s217 + $0xd0] sm:$0xff] %vm318, %v2933
      %2966 = vst.msk [vmem:[%s217 + $0xd8] sm:$0xff] %vm318, %v2934
      %2967 = vst.msk [vmem:[%s217 + $0xe0] sm:$0xff] %vm318, %v2935
      %2968 = vst.msk [vmem:[%s217 + $0xe8] sm:$0xff] %vm318, %v2936
      %2969 = vst.msk [vmem:[%s217 + $0xf0] sm:$0xff] %vm318, %v2937
      %2970 = vst.msk [vmem:[%s217 + $0xf8] sm:$0xff] %vm318, %v2938
      %p2971 = scmp.lt.s32.totalorder %s15, 1
      %s2972 = scalar_select %p2971, %s15, 1
      %s2973 = smul.addr %s2972, 32
      %s2974 = smul.addr %s2973, 8
      %s2975 = scalar_lea.vmem %s4, %s2974
      // Predicated region
      $region37: #{decoder_forward.6} parent=35 // pred_check
        %p2976 = pneg %p127
      $region38: #{decoder_forward.6} parent=35 // pred_check_branch
        %2978 = sbr.rel (%p2976) target = $region40
      $region39: #{decoder_forward.6} parent=35 // pred_region
        _
      $region40: #{decoder_forward.6} parent=35 // pred_fallthru
        _
    $region36: #{decoder_forward.6} parent=5 // pred_fallthru
      _
    %p2979 = scmp.le.s32.totalorder 2, %s10
    // Predicated region
    $region41: #{decoder_forward.6} parent=5 // pred_check
      %p2980 = pneg %p2979
    $region42: #{decoder_forward.6} parent=5 // pred_check_branch
      %2982 = sbr.rel (%p2980) target = $region44
    $region43: #{decoder_forward.6} parent=5 // pred_region
      %s2983 = ssub.s32 %s10, 2
      // Predicated region
      $region45: #{decoder_forward.6} parent=43 // pred_check
        %p2984 = pneg %p133
      $region46: #{decoder_forward.6} parent=43 // pred_check_branch
        %2986 = sbr.rel (%p2984) target = $region48
      $region47: #{decoder_forward.6} parent=43 // pred_region
        %p2987 = scmp.lt.s32.totalorder %s16, 1
        %s2988 = scalar_select %p2987, %s16, 1
        %s2989 = smul.addr %s2988, 32
        %s2990 = smul.addr %s2989, 8
        %s2991 = scalar_lea.vmem %s4, %s2990
      $region48: #{decoder_forward.6} parent=43 // pred_fallthru
        _
    $region44: #{decoder_forward.6} parent=5 // pred_fallthru
      _
  $region6: #{decoder_forward.6} parent=0 // loop_footer
    %s14 = sadd.s32 1, %s10
  $region7: #{decoder_forward.6} parent=0 // loop_footer_branch
    %9 = sbr.rel target = $region3
  $region8: #{decoder_forward.6} parent=0 // loop_exit
    _

// kernel: decoder_forward.5
$region0: #{decoder_forward.5}
  #allocation0 [shape = 'u32[]', space=smem, size = 0x4, offset = 0x4, fixed_abs, tag = 'smem constant byte address 0x4 - core index']
  #allocation1 [shape = 'u32[144,128]{1,0:T(1,128)}', space=vmem, size = 0x12000, scoped, tag = 'internal scratch']
  %s0 = inlined_call_operand.vmem [shape: f32[2,18,18,4], index: 0, kind: input, shape index: {}]
  %s1 = inlined_call_operand.vmem [shape: bf16[9,4,4], index: 1, kind: input, shape index: {}]
  %s2 = inlined_call_operand.vmem [shape: f32[1,4], index: 2, kind: input, shape index: {}]
  %s3 = inlined_call_operand.vmem [shape: f32[2,256,4], index: 3, kind: output, shape index: {}]
  %s4 = sld [smem:[#allocation0]]
  $region45: #{decoder_forward.5} parent=0
    _
  %s6 = ssub.s32 1, %s4
  %s7 = scalar_select 0, %s6, %s4
  loop: start=0, step=1, limit=4
  $region2: #{decoder_forward.5} parent=0 // loop_pre_header
    _
  $region3: #{decoder_forward.5} parent=0 // loop_header
    %s9 = sphi 0, %s13
    %p10 = scmp.ge.s32.totalorder %s9, 4
    %s19 = sphi 0, %s21
    %s22 = sphi 0, %s19
    %s23 = sphi 0, %s22
    %s39 = sphi 0, %s23
    %s43 = sphi 0, %s43
    %s45 = sphi 0, %s43
    %s46 = sphi 0, %s45
    %s60 = sphi 0, %s46
    %s64 = sphi 0, %s64
    %s66 = sphi 0, %s64
    %s67 = sphi 0, %s66
    %s81 = sphi 0, %s67
    %s87 = sphi 0, %s89
    %s90 = sphi 0, %s87
    %s91 = sphi 0, %s90
    %s107 = sphi 0, %s91
  $region4: #{decoder_forward.5} parent=0 // loop_header_branch
    %12 = sbr.rel (%p10) target = $region8
  $region5: #{decoder_forward.5} parent=0 // loop_body
    %s14 = ssub.s32 %s9, 1
    %s15 = ssub.s32 %s9, 2
    %s16 = sadd.s32 %s9, 1
    %s17 = ssub.s32 %s9, %s16
    %p18 = scmp.eq.s32.totalorder %s17, 0
    %s20 = sadd.s32 %s19, 1
    %s21 = scalar_select %p18, %s19, %s20
    %p24 = pneg %p18
    %p25 = scmp.eq.s32.totalorder %s9, 1
    %p26 = por %p24, %p25
    %p27 = scmp.ne.s32.totalorder %s19, %s22
    %p28 = scmp.eq.s32.totalorder %s9, 0
    %p29 = por %p27, %p28
    %p30 = scmp.ne.s32.totalorder %s19, %s22
    %p31 = scmp.eq.s32.totalorder %s14, 1
    %p32 = por %p30, %p31
    %p33 = scmp.ne.s32.totalorder %s22, %s23
    %p34 = scmp.eq.s32.totalorder %s14, 0
    %p35 = por %p33, %p34
    %p36 = scmp.ne.s32.totalorder %s22, %s23
    %p37 = scmp.eq.s32.totalorder %s15, 1
    %p38 = por %p36, %p37
    %p40 = scmp.ne.s32.totalorder %s23, %s39
    %p41 = scmp.eq.s32.totalorder %s15, 0
    %p42 = por %p40, %p41
    %s44 = sadd.s32 %s43, 1
    %p47 = scmp.eq.s32.totalorder %s9, 1
    %p48 = scmp.ne.s32.totalorder %s43, %s45
    %p49 = scmp.eq.s32.totalorder %s9, 0
    %p50 = por %p48, %p49
    %p51 = scmp.ne.s32.totalorder %s43, %s45
    %p52 = scmp.eq.s32.totalorder %s14, 1
    %p53 = por %p51, %p52
    %p54 = scmp.ne.s32.totalorder %s45, %s46
    %p55 = scmp.eq.s32.totalorder %s14, 0
    %p56 = por %p54, %p55
    %p57 = scmp.ne.s32.totalorder %s45, %s46
    %p58 = scmp.eq.s32.totalorder %s15, 1
    %p59 = por %p57, %p58
    %p61 = scmp.ne.s32.totalorder %s46, %s60
    %p62 = scmp.eq.s32.totalorder %s15, 0
    %p63 = por %p61, %p62
    %s65 = sadd.s32 %s64, 1
    %p68 = scmp.eq.s32.totalorder %s9, 1
    %p69 = scmp.ne.s32.totalorder %s64, %s66
    %p70 = scmp.eq.s32.totalorder %s9, 0
    %p71 = por %p69, %p70
    %p72 = scmp.ne.s32.totalorder %s64, %s66
    %p73 = scmp.eq.s32.totalorder %s14, 1
    %p74 = por %p72, %p73
    %p75 = scmp.ne.s32.totalorder %s66, %s67
    %p76 = scmp.eq.s32.totalorder %s14, 0
    %p77 = por %p75, %p76
    %p78 = scmp.ne.s32.totalorder %s66, %s67
    %p79 = scmp.eq.s32.totalorder %s15, 1
    %p80 = por %p78, %p79
    %p82 = scmp.ne.s32.totalorder %s67, %s81
    %p83 = scmp.eq.s32.totalorder %s15, 0
    %p84 = por %p82, %p83
    %s85 = ssub.s32 %s9, %s16
    %p86 = scmp.eq.s32.totalorder %s85, 0
    %s88 = sadd.s32 %s87, 1
    %s89 = scalar_select %p86, %s87, %s88
    %p92 = pneg %p86
    %p93 = scmp.eq.s32.totalorder %s9, 1
    %p94 = por %p92, %p93
    %p95 = scmp.ne.s32.totalorder %s87, %s90
    %p96 = scmp.eq.s32.totalorder %s9, 0
    %p97 = por %p95, %p96
    %p98 = scmp.ne.s32.totalorder %s87, %s90
    %p99 = scmp.eq.s32.totalorder %s14, 1
    %p100 = por %p98, %p99
    %p101 = scmp.ne.s32.totalorder %s90, %s91
    %p102 = scmp.eq.s32.totalorder %s14, 0
    %p103 = por %p101, %p102
    %p104 = scmp.ne.s32.totalorder %s90, %s91
    %p105 = scmp.eq.s32.totalorder %s15, 1
    %p106 = por %p104, %p105
    %p108 = scmp.ne.s32.totalorder %s91, %s107
    %p109 = scmp.eq.s32.totalorder %s15, 0
    %p110 = por %p108, %p109
    %p111 = scmp.le.s32.totalorder 1, %s9
    %p112 = scmp.lt.s32.totalorder %s9, 3
    %p113 = pnand %p111, %p112
    %p114 = pneg %p113
    // Predicated region
    $region9: #{decoder_forward.5} parent=5 // pred_check
      _
    $region10: #{decoder_forward.5} parent=5 // pred_check_branch
      %116 = sbr.rel (%p113) target = $region12
    $region11: #{decoder_forward.5} parent=5 // pred_region
      %s117 = ssub.s32 %s9, 1
      // Predicated region
      $region13: #{decoder_forward.5} parent=11 // pred_check
        %p118 = pneg %p56
      $region14: #{decoder_forward.5} parent=11 // pred_check_branch
        %120 = sbr.rel (%p118) target = $region16
      $region15: #{decoder_forward.5} parent=11 // pred_region
        _
      $region16: #{decoder_forward.5} parent=11 // pred_fallthru
        _
      // Predicated region
      $region17: #{decoder_forward.5} parent=11 // pred_check
        %p121 = pneg %p77
      $region18: #{decoder_forward.5} parent=11 // pred_check_branch
        %123 = sbr.rel (%p121) target = $region20
      $region19: #{decoder_forward.5} parent=11 // pred_region
        _
      $region20: #{decoder_forward.5} parent=11 // pred_fallthru
        _
    $region12: #{decoder_forward.5} parent=5 // pred_fallthru
      _
    %p124 = scmp.lt.s32.totalorder %s9, 2
    // Predicated region
    $region21: #{decoder_forward.5} parent=5 // pred_check
      %p125 = pneg %p124
    $region22: #{decoder_forward.5} parent=5 // pred_check_branch
      %127 = sbr.rel (%p125) target = $region24
    $region23: #{decoder_forward.5} parent=5 // pred_region
      // Predicated region
      $region25: #{decoder_forward.5} parent=23 // pred_check
        %p128 = pneg %p29
      $region26: #{decoder_forward.5} parent=23 // pred_check_branch
        %130 = sbr.rel (%p128) target = $region28
      $region27: #{decoder_forward.5} parent=23 // pred_region
        %p131 = scmp.lt.s32.totalorder %s9, 1
        %s132 = scalar_select %p131, %s9, 1
        %s133 = smul.addr %s132, 54
        %s134 = smul.addr %s133, 8
        %s135 = scalar_lea.vmem %s0, %s134
      $region28: #{decoder_forward.5} parent=23 // pred_fallthru
        _
    $region24: #{decoder_forward.5} parent=5 // pred_fallthru
      _
    %p136 = scmp.le.s32.totalorder 1, %s9
    %p137 = scmp.lt.s32.totalorder %s9, 3
    %p138 = pnand %p136, %p137
    %p139 = pneg %p138
    // Predicated region
    $region29: #{decoder_forward.5} parent=5 // pred_check
      _
    $region30: #{decoder_forward.5} parent=5 // pred_check_branch
      %141 = sbr.rel (%p138) target = $region32
    $region31: #{decoder_forward.5} parent=5 // pred_region
      %s142 = ssub.s32 %s9, 1
      %p143 = scmp.lt.s32.totalorder %s14, 1
      %s144 = scalar_select %p143, %s14, 1
      %s145 = smul.addr %s144, 54
      %s146 = smul.addr %s145, 8
      %s147 = scalar_lea.vmem %s0, %s146
      %p148 = pneg %p35
      %p149 = pneg %p32
      %p150 = pneg %p56
      %p151 = pneg %p53
      %p152 = pneg %p77
      %p153 = pneg %p74
      %p154 = pneg %p103
      %p155 = pneg %p100
      %p156 = scmp.lt.s32.totalorder %s14, 1
      %s157 = scalar_select %p156, %s14, 1
      %s158 = smul.addr %s157, 32
      %s159 = smul.addr %s158, 8
      %s160 = scalar_lea.vmem %s3, %s159
      %p161 = scmp.lt.s32.totalorder %s14, 1
      %s162 = scalar_select %p161, %s14, 1
      %s163 = smul.addr %s162, 54
      %s164 = smul.addr %s163, 8
      %s165 = scalar_lea.vmem %s0, %s164
      %p166 = scmp.lt.s32.totalorder %s14, 1
      %s167 = scalar_select %p166, %s14, 1
      %s168 = smul.addr %s167, 32
      %s169 = smul.addr %s168, 8
      %s170 = scalar_lea.vmem %s3, %s169
      %v172 = vld [vmem:[%s165] sm:$0xff]
      %v173 = vld [vmem:[%s165 + $0x8] sm:$0xff]
      %v174 = vld [vmem:[%s165 + $0x18] sm:$0xff]
      %v175 = vld [vmem:[%s165 + $0x20] sm:$0xff]
      %v176 = vld [vmem:[%s165 + $0x30] sm:$0xff]
      %v177 = vld [vmem:[%s165 + $0x38] sm:$0xff]
      %v178 = vld [vmem:[%s165 + $0x48] sm:$0xff]
      %v179 = vld [vmem:[%s165 + $0x50] sm:$0xff]
      %v180 = vld [vmem:[%s165 + $0x60] sm:$0xff]
      %v181 = vld [vmem:[%s165 + $0x68] sm:$0xff]
      %v182 = vld [vmem:[%s165 + $0x78] sm:$0xff]
      %v183 = vld [vmem:[%s165 + $0x80] sm:$0xff]
      %v184 = vld [vmem:[%s165 + $0x90] sm:$0xff]
      %v185 = vld [vmem:[%s165 + $0x98] sm:$0xff]
      %v186 = vld [vmem:[%s165 + $0xa8] sm:$0xff]
      %v187 = vld [vmem:[%s165 + $0xb0] sm:$0xff]
      %v188 = vld [vmem:[%s165 + $0xc0] sm:$0xff]
      %v189 = vld [vmem:[%s165 + $0xc8] sm:$0xff]
      %v190 = vld [vmem:[%s165 + $0xd8] sm:$0xff]
      %v191 = vld [vmem:[%s165 + $0xe0] sm:$0xff]
      %v192 = vld [vmem:[%s165 + $0xf0] sm:$0xff]
      %v193 = vld [vmem:[%s165 + $0xf8] sm:$0xff]
      %v194 = vld [vmem:[%s165 + $0x108] sm:$0xff]
      %v195 = vld [vmem:[%s165 + $0x110] sm:$0xff]
      %v196 = vld [vmem:[%s165 + $0x120] sm:$0xff]
      %v197 = vld [vmem:[%s165 + $0x128] sm:$0xff]
      %v198 = vld [vmem:[%s165 + $0x138] sm:$0xff]
      %v199 = vld [vmem:[%s165 + $0x140] sm:$0xff]
      %v200 = vld [vmem:[%s165 + $0x150] sm:$0xff]
      %v201 = vld [vmem:[%s165 + $0x158] sm:$0xff]
      %v202 = vld [vmem:[%s165 + $0x168] sm:$0xff]
      %v203 = vld [vmem:[%s165 + $0x170] sm:$0xff]
      %v204 = vpack.c.bf16 %v173, %v172
      %v205 = vpack.c.bf16 %v175, %v174
      %v206 = vpack.c.bf16 %v177, %v176
      %v207 = vpack.c.bf16 %v179, %v178
      %v208 = vpack.c.bf16 %v181, %v180
      %v209 = vpack.c.bf16 %v183, %v182
      %v210 = vpack.c.bf16 %v185, %v184
      %v211 = vpack.c.bf16 %v187, %v186
      %v212 = vpack.c.bf16 %v189, %v188
      %v213 = vpack.c.bf16 %v191, %v190
      %v214 = vpack.c.bf16 %v193, %v192
      %v215 = vpack.c.bf16 %v195, %v194
      %v216 = vpack.c.bf16 %v197, %v196
      %v217 = vpack.c.bf16 %v199, %v198
      %v218 = vpack.c.bf16 %v201, %v200
      %v219 = vpack.c.bf16 %v203, %v202
      %v220 = vld [vmem:[%s1] sm:$0x3]
      %v221 = vld [vmem:[%s165 + $0x1] sm:$0xff]
      %v222 = vld [vmem:[%s165 + $0x9] sm:$0xff]
      %v223 = vld [vmem:[%s165 + $0x19] sm:$0xff]
      %v224 = vld [vmem:[%s165 + $0x21] sm:$0xff]
      %v225 = vld [vmem:[%s165 + $0x31] sm:$0xff]
      %v226 = vld [vmem:[%s165 + $0x39] sm:$0xff]
      %v227 = vld [vmem:[%s165 + $0x49] sm:$0xff]
      %v228 = vld [vmem:[%s165 + $0x51] sm:$0xff]
      %v229 = vld [vmem:[%s165 + $0x61] sm:$0xff]
      %v230 = vld [vmem:[%s165 + $0x69] sm:$0xff]
      %v231 = vld [vmem:[%s165 + $0x79] sm:$0xff]
      %v232 = vld [vmem:[%s165 + $0x81] sm:$0xff]
      %v233 = vld [vmem:[%s165 + $0x91] sm:$0xff]
      %v234 = vld [vmem:[%s165 + $0x99] sm:$0xff]
      %v235 = vld [vmem:[%s165 + $0xa9] sm:$0xff]
      %v236 = vld [vmem:[%s165 + $0xb1] sm:$0xff]
      %v237 = vld [vmem:[%s165 + $0xc1] sm:$0xff]
      %v238 = vld [vmem:[%s165 + $0xc9] sm:$0xff]
      %v239 = vld [vmem:[%s165 + $0xd9] sm:$0xff]
      %v240 = vld [vmem:[%s165 + $0xe1] sm:$0xff]
      %v241 = vld [vmem:[%s165 + $0xf1] sm:$0xff]
      %v242 = vld [vmem:[%s165 + $0xf9] sm:$0xff]
      %v243 = vld [vmem:[%s165 + $0x109] sm:$0xff]
      %v244 = vld [vmem:[%s165 + $0x111] sm:$0xff]
      %v245 = vld [vmem:[%s165 + $0x121] sm:$0xff]
      %v246 = vld [vmem:[%s165 + $0x129] sm:$0xff]
      %v247 = vld [vmem:[%s165 + $0x139] sm:$0xff]
      %v248 = vld [vmem:[%s165 + $0x141] sm:$0xff]
      %v249 = vld [vmem:[%s165 + $0x151] sm:$0xff]
      %v250 = vld [vmem:[%s165 + $0x159] sm:$0xff]
      %v251 = vld [vmem:[%s165 + $0x169] sm:$0xff]
      %v252 = vld [vmem:[%s165 + $0x171] sm:$0xff]
      %v253 = vpack.c.bf16 %v222, %v221
      %v254 = vpack.c.bf16 %v224, %v223
      %v255 = vpack.c.bf16 %v226, %v225
      %v256 = vpack.c.bf16 %v228, %v227
      %v257 = vpack.c.bf16 %v230, %v229
      %v258 = vpack.c.bf16 %v232, %v231
      %v259 = vpack.c.bf16 %v234, %v233
      %v260 = vpack.c.bf16 %v236, %v235
      %v261 = vpack.c.bf16 %v238, %v237
      %v262 = vpack.c.bf16 %v240, %v239
      %v263 = vpack.c.bf16 %v242, %v241
      %v264 = vpack.c.bf16 %v244, %v243
      %v265 = vpack.c.bf16 %v246, %v245
      %v266 = vpack.c.bf16 %v248, %v247
      %v267 = vpack.c.bf16 %v250, %v249
      %v268 = vpack.c.bf16 %v252, %v251
      %s269 = scalar_lea.vmem %s1, 2
      %v270 = vld [vmem:[%s269] sm:$0x3]
      %vm271 = vcmask 31744
      %v273 = vsel %vm271, %v253, 0
      %v276 = vsel %vm271, %v254, 0
      %v279 = vsel %vm271, %v255, 0
      %v282 = vsel %vm271, %v256, 0
      %v285 = vsel %vm271, %v257, 0
      %v288 = vsel %vm271, %v258, 0
      %v291 = vsel %vm271, %v259, 0
      %v294 = vsel %vm271, %v260, 0
      %v297 = vsel %vm271, %v261, 0
      %v300 = vsel %vm271, %v262, 0
      %v303 = vsel %vm271, %v263, 0
      %v306 = vsel %vm271, %v264, 0
      %v309 = vsel %vm271, %v265, 0
      %v312 = vsel %vm271, %v266, 0
      %v315 = vsel %vm271, %v267, 0
      %v318 = vsel %vm271, %v268, 0
      %vm320 = vcmask 1041408
      %v322 = vsel %vm320, %v270, 0
      %324 = vmatprep.subr.bf16.mxu0 0
      %325 = vmatpush1.bf16.msra.mxu0 0
      %326 = vmatprep.subr.bf16.mxu0 0
      %327 = vmatpush1.bf16.msra.mxu0 0
      %328 = vmatprep.subr.bf16.mxu0 0
      %329 = vmatpush1.bf16.msra.mxu0 0
      %330 = vmatprep.subr.bf16.mxu0 0
      %331 = vmatpush1.bf16.msra.mxu0 0
      %332 = vmatprep.subr.bf16.mxu0 0
      %333 = vmatpush1.bf16.msra.mxu0 0
      %334 = vmatprep.subr.bf16.mxu0 0
      %335 = vmatpush1.bf16.msra.mxu0 0
      %336 = vmatprep.subr.bf16.mxu0 0
      %337 = vmatpush1.bf16.msra.mxu0 0
      %338 = vmatprep.subr.bf16.mxu0 0
      %339 = vmatpush1.bf16.msra.mxu0 %v322
      %340 = vmatprep.subr.bf16.mxu0 0
      %341 = vmatpush2.bf16.msra.mxu0 0
      %342 = vmatprep.subr.bf16.mxu0 0
      %343 = vmatpush2.bf16.msra.mxu0 0
      %344 = vmatprep.subr.bf16.mxu0 0
      %345 = vmatpush2.bf16.msra.mxu0 0
      %346 = vmatprep.subr.bf16.mxu0 0
      %347 = vmatpush2.bf16.msra.mxu0 0
      %348 = vmatprep.subr.bf16.mxu0 0
      %349 = vmatpush2.bf16.msra.mxu0 0
      %350 = vmatprep.subr.bf16.mxu0 0
      %351 = vmatpush2.bf16.msra.mxu0 0
      %352 = vmatprep.subr.bf16.mxu0 0
      %353 = vmatpush2.bf16.msra.mxu0 0
      %354 = vmatprep.subr.bf16.mxu0 0
      %355 = vmatpush2.bf16.msra.mxu0 0
      %356 = vmatprep.mubr.bf16.mxu0 0
      %357 = vmatmul.mubr.bf16.gmra.mxu0 %v273
      %v358 = vpop.f32.mrf.mxu0
      %v359 = vadd.f32 0.0, %v358
      %v360 = vpop.f32.mrf.mxu0
      %v361 = vpop.f32.mrf.mxu0
      %v362 = vadd.f32 0.0, %v361
      %v363 = vpop.f32.mrf.mxu0
      %364 = vmatprep.mubr.bf16.mxu0 0
      %365 = vmatmul.mubr.bf16.gmra.mxu0 %v276
      %v366 = vpop.f32.mrf.mxu0
      %v367 = vadd.f32 0.0, %v366
      %v368 = vpop.f32.mrf.mxu0
      %v369 = vpop.f32.mrf.mxu0
      %v370 = vadd.f32 0.0, %v369
      %v371 = vpop.f32.mrf.mxu0
      %372 = vmatprep.mubr.bf16.mxu0 0
      %373 = vmatmul.mubr.bf16.gmra.mxu0 %v279
      %v374 = vpop.f32.mrf.mxu0
      %v375 = vadd.f32 0.0, %v374
      %v376 = vpop.f32.mrf.mxu0
      %v377 = vpop.f32.mrf.mxu0
      %v378 = vadd.f32 0.0, %v377
      %v379 = vpop.f32.mrf.mxu0
      %380 = vmatprep.mubr.bf16.mxu0 0
      %381 = vmatmul.mubr.bf16.gmra.mxu0 %v282
      %v382 = vpop.f32.mrf.mxu0
      %v383 = vadd.f32 0.0, %v382
      %v384 = vpop.f32.mrf.mxu0
      %v385 = vpop.f32.mrf.mxu0
      %v386 = vadd.f32 0.0, %v385
      %v387 = vpop.f32.mrf.mxu0
      %388 = vmatprep.mubr.bf16.mxu0 0
      %389 = vmatmul.mubr.bf16.gmra.mxu0 %v285
      %v390 = vpop.f32.mrf.mxu0
      %v391 = vadd.f32 0.0, %v390
      %v392 = vpop.f32.mrf.mxu0
      %v393 = vpop.f32.mrf.mxu0
      %v394 = vadd.f32 0.0, %v393
      %v395 = vpop.f32.mrf.mxu0
      %396 = vmatprep.mubr.bf16.mxu0 0
      %397 = vmatmul.mubr.bf16.gmra.mxu0 %v288
      %v398 = vpop.f32.mrf.mxu0
      %v399 = vadd.f32 0.0, %v398
      %v400 = vpop.f32.mrf.mxu0
      %v401 = vpop.f32.mrf.mxu0
      %v402 = vadd.f32 0.0, %v401
      %v403 = vpop.f32.mrf.mxu0
      %404 = vmatprep.mubr.bf16.mxu0 0
      %405 = vmatmul.mubr.bf16.gmra.mxu0 %v291
      %v406 = vpop.f32.mrf.mxu0
      %v407 = vadd.f32 0.0, %v406
      %v408 = vpop.f32.mrf.mxu0
      %v409 = vpop.f32.mrf.mxu0
      %v410 = vadd.f32 0.0, %v409
      %v411 = vpop.f32.mrf.mxu0
      %412 = vmatprep.mubr.bf16.mxu0 0
      %413 = vmatmul.mubr.bf16.gmra.mxu0 %v294
      %v414 = vpop.f32.mrf.mxu0
      %v415 = vadd.f32 0.0, %v414
      %v416 = vpop.f32.mrf.mxu0
      %v417 = vpop.f32.mrf.mxu0
      %v418 = vadd.f32 0.0, %v417
      %v419 = vpop.f32.mrf.mxu0
      %420 = vmatprep.mubr.bf16.mxu0 0
      %421 = vmatmul.mubr.bf16.gmra.mxu0 %v297
      %v422 = vpop.f32.mrf.mxu0
      %v423 = vadd.f32 0.0, %v422
      %v424 = vpop.f32.mrf.mxu0
      %v425 = vpop.f32.mrf.mxu0
      %v426 = vadd.f32 0.0, %v425
      %v427 = vpop.f32.mrf.mxu0
      %428 = vmatprep.mubr.bf16.mxu0 0
      %429 = vmatmul.mubr.bf16.gmra.mxu0 %v300
      %v430 = vpop.f32.mrf.mxu0
      %v431 = vadd.f32 0.0, %v430
      %v432 = vpop.f32.mrf.mxu0
      %v433 = vpop.f32.mrf.mxu0
      %v434 = vadd.f32 0.0, %v433
      %v435 = vpop.f32.mrf.mxu0
      %436 = vmatprep.mubr.bf16.mxu0 0
      %437 = vmatmul.mubr.bf16.gmra.mxu0 %v303
      %v438 = vpop.f32.mrf.mxu0
      %v439 = vadd.f32 0.0, %v438
      %v440 = vpop.f32.mrf.mxu0
      %v441 = vpop.f32.mrf.mxu0
      %v442 = vadd.f32 0.0, %v441
      %v443 = vpop.f32.mrf.mxu0
      %444 = vmatprep.mubr.bf16.mxu0 0
      %445 = vmatmul.mubr.bf16.gmra.mxu0 %v306
      %v446 = vpop.f32.mrf.mxu0
      %v447 = vadd.f32 0.0, %v446
      %v448 = vpop.f32.mrf.mxu0
      %v449 = vpop.f32.mrf.mxu0
      %v450 = vadd.f32 0.0, %v449
      %v451 = vpop.f32.mrf.mxu0
      %452 = vmatprep.mubr.bf16.mxu0 0
      %453 = vmatmul.mubr.bf16.gmra.mxu0 %v309
      %v454 = vpop.f32.mrf.mxu0
      %v455 = vadd.f32 0.0, %v454
      %v456 = vpop.f32.mrf.mxu0
      %v457 = vpop.f32.mrf.mxu0
      %v458 = vadd.f32 0.0, %v457
      %v459 = vpop.f32.mrf.mxu0
      %460 = vmatprep.mubr.bf16.mxu0 0
      %461 = vmatmul.mubr.bf16.gmra.mxu0 %v312
      %v462 = vpop.f32.mrf.mxu0
      %v463 = vadd.f32 0.0, %v462
      %v464 = vpop.f32.mrf.mxu0
      %v465 = vpop.f32.mrf.mxu0
      %v466 = vadd.f32 0.0, %v465
      %v467 = vpop.f32.mrf.mxu0
      %468 = vmatprep.mubr.bf16.mxu0 0
      %469 = vmatmul.mubr.bf16.gmra.mxu0 %v315
      %v470 = vpop.f32.mrf.mxu0
      %v471 = vadd.f32 0.0, %v470
      %v472 = vpop.f32.mrf.mxu0
      %v473 = vpop.f32.mrf.mxu0
      %v474 = vadd.f32 0.0, %v473
      %v475 = vpop.f32.mrf.mxu0
      %476 = vmatprep.mubr.bf16.mxu0 0
      %477 = vmatmul.mubr.bf16.gmra.mxu0 %v318
      %v478 = vpop.f32.mrf.mxu0
      %v479 = vadd.f32 0.0, %v478
      %v480 = vpop.f32.mrf.mxu0
      %v481 = vpop.f32.mrf.mxu0
      %v482 = vadd.f32 0.0, %v481
      %v483 = vpop.f32.mrf.mxu0
      %484 = vdwg.mxu0
      %v486 = vsel %vm271, %v204, 0
      %v489 = vsel %vm271, %v205, 0
      %v492 = vsel %vm271, %v206, 0
      %v495 = vsel %vm271, %v207, 0
      %v498 = vsel %vm271, %v208, 0
      %v501 = vsel %vm271, %v209, 0
      %v504 = vsel %vm271, %v210, 0
      %v507 = vsel %vm271, %v211, 0
      %v510 = vsel %vm271, %v212, 0
      %v513 = vsel %vm271, %v213, 0
      %v516 = vsel %vm271, %v214, 0
      %v519 = vsel %vm271, %v215, 0
      %v522 = vsel %vm271, %v216, 0
      %v525 = vsel %vm271, %v217, 0
      %v528 = vsel %vm271, %v218, 0
      %v531 = vsel %vm271, %v219, 0
      %v534 = vsel %vm320, %v220, 0
      %536 = vmatprep.subr.bf16.mxu0 0
      %537 = vmatpush1.bf16.msra.mxu0 0
      %538 = vmatprep.subr.bf16.mxu0 0
      %539 = vmatpush1.bf16.msra.mxu0 0
      %540 = vmatprep.subr.bf16.mxu0 0
      %541 = vmatpush1.bf16.msra.mxu0 0
      %542 = vmatprep.subr.bf16.mxu0 0
      %543 = vmatpush1.bf16.msra.mxu0 0
      %544 = vmatprep.subr.bf16.mxu0 0
      %545 = vmatpush1.bf16.msra.mxu0 0
      %546 = vmatprep.subr.bf16.mxu0 0
      %547 = vmatpush1.bf16.msra.mxu0 0
      %548 = vmatprep.subr.bf16.mxu0 0
      %549 = vmatpush1.bf16.msra.mxu0 0
      %550 = vmatprep.subr.bf16.mxu0 0
      %551 = vmatpush1.bf16.msra.mxu0 %v534
      %552 = vmatprep.subr.bf16.mxu0 0
      %553 = vmatpush2.bf16.msra.mxu0 0
      %554 = vmatprep.subr.bf16.mxu0 0
      %555 = vmatpush2.bf16.msra.mxu0 0
      %556 = vmatprep.subr.bf16.mxu0 0
      %557 = vmatpush2.bf16.msra.mxu0 0
      %558 = vmatprep.subr.bf16.mxu0 0
      %559 = vmatpush2.bf16.msra.mxu0 0
      %560 = vmatprep.subr.bf16.mxu0 0
      %561 = vmatpush2.bf16.msra.mxu0 0
      %562 = vmatprep.subr.bf16.mxu0 0
      %563 = vmatpush2.bf16.msra.mxu0 0
      %564 = vmatprep.subr.bf16.mxu0 0
      %565 = vmatpush2.bf16.msra.mxu0 0
      %566 = vmatprep.subr.bf16.mxu0 0
      %567 = vmatpush2.bf16.msra.mxu0 0
      %568 = vmatprep.mubr.bf16.mxu0 0
      %569 = vmatmul.mubr.bf16.gmra.mxu0 %v486
      %v570 = vpop.f32.mrf.mxu0
      %v571 = vadd.f32 %v359, %v570
      %v572 = vpop.f32.mrf.mxu0
      %v573 = vpop.f32.mrf.mxu0
      %v574 = vadd.f32 %v362, %v573
      %v575 = vpop.f32.mrf.mxu0
      %576 = vmatprep.mubr.bf16.mxu0 0
      %577 = vmatmul.mubr.bf16.gmra.mxu0 %v489
      %v578 = vpop.f32.mrf.mxu0
      %v579 = vadd.f32 %v367, %v578
      %v580 = vpop.f32.mrf.mxu0
      %v581 = vpop.f32.mrf.mxu0
      %v582 = vadd.f32 %v370, %v581
      %v583 = vpop.f32.mrf.mxu0
      %584 = vmatprep.mubr.bf16.mxu0 0
      %585 = vmatmul.mubr.bf16.gmra.mxu0 %v492
      %v586 = vpop.f32.mrf.mxu0
      %v587 = vadd.f32 %v375, %v586
      %v588 = vpop.f32.mrf.mxu0
      %v589 = vpop.f32.mrf.mxu0
      %v590 = vadd.f32 %v378, %v589
      %v591 = vpop.f32.mrf.mxu0
      %592 = vmatprep.mubr.bf16.mxu0 0
      %593 = vmatmul.mubr.bf16.gmra.mxu0 %v495
      %v594 = vpop.f32.mrf.mxu0
      %v595 = vadd.f32 %v383, %v594
      %v596 = vpop.f32.mrf.mxu0
      %v597 = vpop.f32.mrf.mxu0
      %v598 = vadd.f32 %v386, %v597
      %v599 = vpop.f32.mrf.mxu0
      %600 = vmatprep.mubr.bf16.mxu0 0
      %601 = vmatmul.mubr.bf16.gmra.mxu0 %v498
      %v602 = vpop.f32.mrf.mxu0
      %v603 = vadd.f32 %v391, %v602
      %v604 = vpop.f32.mrf.mxu0
      %v605 = vpop.f32.mrf.mxu0
      %v606 = vadd.f32 %v394, %v605
      %v607 = vpop.f32.mrf.mxu0
      %608 = vmatprep.mubr.bf16.mxu0 0
      %609 = vmatmul.mubr.bf16.gmra.mxu0 %v501
      %v610 = vpop.f32.mrf.mxu0
      %v611 = vadd.f32 %v399, %v610
      %v612 = vpop.f32.mrf.mxu0
      %v613 = vpop.f32.mrf.mxu0
      %v614 = vadd.f32 %v402, %v613
      %v615 = vpop.f32.mrf.mxu0
      %616 = vmatprep.mubr.bf16.mxu0 0
      %617 = vmatmul.mubr.bf16.gmra.mxu0 %v504
      %v618 = vpop.f32.mrf.mxu0
      %v619 = vadd.f32 %v407, %v618
      %v620 = vpop.f32.mrf.mxu0
      %v621 = vpop.f32.mrf.mxu0
      %v622 = vadd.f32 %v410, %v621
      %v623 = vpop.f32.mrf.mxu0
      %624 = vmatprep.mubr.bf16.mxu0 0
      %625 = vmatmul.mubr.bf16.gmra.mxu0 %v507
      %v626 = vpop.f32.mrf.mxu0
      %v627 = vadd.f32 %v415, %v626
      %v628 = vpop.f32.mrf.mxu0
      %v629 = vpop.f32.mrf.mxu0
      %v630 = vadd.f32 %v418, %v629
      %v631 = vpop.f32.mrf.mxu0
      %632 = vmatprep.mubr.bf16.mxu0 0
      %633 = vmatmul.mubr.bf16.gmra.mxu0 %v510
      %v634 = vpop.f32.mrf.mxu0
      %v635 = vadd.f32 %v423, %v634
      %v636 = vpop.f32.mrf.mxu0
      %v637 = vpop.f32.mrf.mxu0
      %v638 = vadd.f32 %v426, %v637
      %v639 = vpop.f32.mrf.mxu0
      %640 = vmatprep.mubr.bf16.mxu0 0
      %641 = vmatmul.mubr.bf16.gmra.mxu0 %v513
      %v642 = vpop.f32.mrf.mxu0
      %v643 = vadd.f32 %v431, %v642
      %v644 = vpop.f32.mrf.mxu0
      %v645 = vpop.f32.mrf.mxu0
      %v646 = vadd.f32 %v434, %v645
      %v647 = vpop.f32.mrf.mxu0
      %648 = vmatprep.mubr.bf16.mxu0 0
      %649 = vmatmul.mubr.bf16.gmra.mxu0 %v516
      %v650 = vpop.f32.mrf.mxu0
      %v651 = vadd.f32 %v439, %v650
      %v652 = vpop.f32.mrf.mxu0
      %v653 = vpop.f32.mrf.mxu0
      %v654 = vadd.f32 %v442, %v653
      %v655 = vpop.f32.mrf.mxu0
      %656 = vmatprep.mubr.bf16.mxu0 0
      %657 = vmatmul.mubr.bf16.gmra.mxu0 %v519
      %v658 = vpop.f32.mrf.mxu0
      %v659 = vadd.f32 %v447, %v658
      %v660 = vpop.f32.mrf.mxu0
      %v661 = vpop.f32.mrf.mxu0
      %v662 = vadd.f32 %v450, %v661
      %v663 = vpop.f32.mrf.mxu0
      %664 = vmatprep.mubr.bf16.mxu0 0
      %665 = vmatmul.mubr.bf16.gmra.mxu0 %v522
      %v666 = vpop.f32.mrf.mxu0
      %v667 = vadd.f32 %v455, %v666
      %v668 = vpop.f32.mrf.mxu0
      %v669 = vpop.f32.mrf.mxu0
      %v670 = vadd.f32 %v458, %v669
      %v671 = vpop.f32.mrf.mxu0
      %672 = vmatprep.mubr.bf16.mxu0 0
      %673 = vmatmul.mubr.bf16.gmra.mxu0 %v525
      %v674 = vpop.f32.mrf.mxu0
      %v675 = vadd.f32 %v463, %v674
      %v676 = vpop.f32.mrf.mxu0
      %v677 = vpop.f32.mrf.mxu0
      %v678 = vadd.f32 %v466, %v677
      %v679 = vpop.f32.mrf.mxu0
      %680 = vmatprep.mubr.bf16.mxu0 0
      %681 = vmatmul.mubr.bf16.gmra.mxu0 %v528
      %v682 = vpop.f32.mrf.mxu0
      %v683 = vadd.f32 %v471, %v682
      %v684 = vpop.f32.mrf.mxu0
      %v685 = vpop.f32.mrf.mxu0
      %v686 = vadd.f32 %v474, %v685
      %v687 = vpop.f32.mrf.mxu0
      %688 = vmatprep.mubr.bf16.mxu0 0
      %689 = vmatmul.mubr.bf16.gmra.mxu0 %v531
      %v690 = vpop.f32.mrf.mxu0
      %v691 = vadd.f32 %v479, %v690
      %v692 = vpop.f32.mrf.mxu0
      %v693 = vpop.f32.mrf.mxu0
      %v694 = vadd.f32 %v482, %v693
      %v695 = vpop.f32.mrf.mxu0
      %696 = vdwg.mxu0
      %v697 = vld [vmem:[%s165 + $0x2] sm:$0xff]
      %v698 = vld [vmem:[%s165 + $0xa] sm:$0xff]
      %v699 = vld [vmem:[%s165 + $0x1a] sm:$0xff]
      %v700 = vld [vmem:[%s165 + $0x22] sm:$0xff]
      %v701 = vld [vmem:[%s165 + $0x32] sm:$0xff]
      %v702 = vld [vmem:[%s165 + $0x3a] sm:$0xff]
      %v703 = vld [vmem:[%s165 + $0x4a] sm:$0xff]
      %v704 = vld [vmem:[%s165 + $0x52] sm:$0xff]
      %v705 = vld [vmem:[%s165 + $0x62] sm:$0xff]
      %v706 = vld [vmem:[%s165 + $0x6a] sm:$0xff]
      %v707 = vld [vmem:[%s165 + $0x7a] sm:$0xff]
      %v708 = vld [vmem:[%s165 + $0x82] sm:$0xff]
      %v709 = vld [vmem:[%s165 + $0x92] sm:$0xff]
      %v710 = vld [vmem:[%s165 + $0x9a] sm:$0xff]
      %v711 = vld [vmem:[%s165 + $0xaa] sm:$0xff]
      %v712 = vld [vmem:[%s165 + $0xb2] sm:$0xff]
      %v713 = vld [vmem:[%s165 + $0xc2] sm:$0xff]
      %v714 = vld [vmem:[%s165 + $0xca] sm:$0xff]
      %v715 = vld [vmem:[%s165 + $0xda] sm:$0xff]
      %v716 = vld [vmem:[%s165 + $0xe2] sm:$0xff]
      %v717 = vld [vmem:[%s165 + $0xf2] sm:$0xff]
      %v718 = vld [vmem:[%s165 + $0xfa] sm:$0xff]
      %v719 = vld [vmem:[%s165 + $0x10a] sm:$0xff]
      %v720 = vld [vmem:[%s165 + $0x112] sm:$0xff]
      %v721 = vld [vmem:[%s165 + $0x122] sm:$0xff]
      %v722 = vld [vmem:[%s165 + $0x12a] sm:$0xff]
      %v723 = vld [vmem:[%s165 + $0x13a] sm:$0xff]
      %v724 = vld [vmem:[%s165 + $0x142] sm:$0xff]
      %v725 = vld [vmem:[%s165 + $0x152] sm:$0xff]
      %v726 = vld [vmem:[%s165 + $0x15a] sm:$0xff]
      %v727 = vld [vmem:[%s165 + $0x16a] sm:$0xff]
      %v728 = vld [vmem:[%s165 + $0x172] sm:$0xff]
      %v729 = vpack.c.bf16 %v698, %v697
      %v730 = vpack.c.bf16 %v700, %v699
      %v731 = vpack.c.bf16 %v702, %v701
      %v732 = vpack.c.bf16 %v704, %v703
      %v733 = vpack.c.bf16 %v706, %v705
      %v734 = vpack.c.bf16 %v708, %v707
      %v735 = vpack.c.bf16 %v710, %v709
      %v736 = vpack.c.bf16 %v712, %v711
      %v737 = vpack.c.bf16 %v714, %v713
      %v738 = vpack.c.bf16 %v716, %v715
      %v739 = vpack.c.bf16 %v718, %v717
      %v740 = vpack.c.bf16 %v720, %v719
      %v741 = vpack.c.bf16 %v722, %v721
      %v742 = vpack.c.bf16 %v724, %v723
      %v743 = vpack.c.bf16 %v726, %v725
      %v744 = vpack.c.bf16 %v728, %v727
      %s745 = scalar_lea.vmem %s1, 4
      %v746 = vld [vmem:[%s745] sm:$0x3]
      %v748 = vsel %vm271, %v729, 0
      %v751 = vsel %vm271, %v730, 0
      %v754 = vsel %vm271, %v731, 0
      %v757 = vsel %vm271, %v732, 0
      %v760 = vsel %vm271, %v733, 0
      %v763 = vsel %vm271, %v734, 0
      %v766 = vsel %vm271, %v735, 0
      %v769 = vsel %vm271, %v736, 0
      %v772 = vsel %vm271, %v737, 0
      %v775 = vsel %vm271, %v738, 0
      %v778 = vsel %vm271, %v739, 0
      %v781 = vsel %vm271, %v740, 0
      %v784 = vsel %vm271, %v741, 0
      %v787 = vsel %vm271, %v742, 0
      %v790 = vsel %vm271, %v743, 0
      %v793 = vsel %vm271, %v744, 0
      %v796 = vsel %vm320, %v746, 0
      %798 = vmatprep.subr.bf16.mxu0 0
      %799 = vmatpush1.bf16.msra.mxu0 0
      %800 = vmatprep.subr.bf16.mxu0 0
      %801 = vmatpush1.bf16.msra.mxu0 0
      %802 = vmatprep.subr.bf16.mxu0 0
      %803 = vmatpush1.bf16.msra.mxu0 0
      %804 = vmatprep.subr.bf16.mxu0 0
      %805 = vmatpush1.bf16.msra.mxu0 0
      %806 = vmatprep.subr.bf16.mxu0 0
      %807 = vmatpush1.bf16.msra.mxu0 0
      %808 = vmatprep.subr.bf16.mxu0 0
      %809 = vmatpush1.bf16.msra.mxu0 0
      %810 = vmatprep.subr.bf16.mxu0 0
      %811 = vmatpush1.bf16.msra.mxu0 0
      %812 = vmatprep.subr.bf16.mxu0 0
      %813 = vmatpush1.bf16.msra.mxu0 %v796
      %814 = vmatprep.subr.bf16.mxu0 0
      %815 = vmatpush2.bf16.msra.mxu0 0
      %816 = vmatprep.subr.bf16.mxu0 0
      %817 = vmatpush2.bf16.msra.mxu0 0
      %818 = vmatprep.subr.bf16.mxu0 0
      %819 = vmatpush2.bf16.msra.mxu0 0
      %820 = vmatprep.subr.bf16.mxu0 0
      %821 = vmatpush2.bf16.msra.mxu0 0
      %822 = vmatprep.subr.bf16.mxu0 0
      %823 = vmatpush2.bf16.msra.mxu0 0
      %824 = vmatprep.subr.bf16.mxu0 0
      %825 = vmatpush2.bf16.msra.mxu0 0
      %826 = vmatprep.subr.bf16.mxu0 0
      %827 = vmatpush2.bf16.msra.mxu0 0
      %828 = vmatprep.subr.bf16.mxu0 0
      %829 = vmatpush2.bf16.msra.mxu0 0
      %830 = vmatprep.mubr.bf16.mxu0 0
      %831 = vmatmul.mubr.bf16.gmra.mxu0 %v748
      %v832 = vpop.f32.mrf.mxu0
      %v833 = vadd.f32 0.0, %v832
      %v834 = vpop.f32.mrf.mxu0
      %v835 = vpop.f32.mrf.mxu0
      %v836 = vadd.f32 0.0, %v835
      %v837 = vpop.f32.mrf.mxu0
      %838 = vmatprep.mubr.bf16.mxu0 0
      %839 = vmatmul.mubr.bf16.gmra.mxu0 %v751
      %v840 = vpop.f32.mrf.mxu0
      %v841 = vadd.f32 0.0, %v840
      %v842 = vpop.f32.mrf.mxu0
      %v843 = vpop.f32.mrf.mxu0
      %v844 = vadd.f32 0.0, %v843
      %v845 = vpop.f32.mrf.mxu0
      %846 = vmatprep.mubr.bf16.mxu0 0
      %847 = vmatmul.mubr.bf16.gmra.mxu0 %v754
      %v848 = vpop.f32.mrf.mxu0
      %v849 = vadd.f32 0.0, %v848
      %v850 = vpop.f32.mrf.mxu0
      %v851 = vpop.f32.mrf.mxu0
      %v852 = vadd.f32 0.0, %v851
      %v853 = vpop.f32.mrf.mxu0
      %854 = vmatprep.mubr.bf16.mxu0 0
      %855 = vmatmul.mubr.bf16.gmra.mxu0 %v757
      %v856 = vpop.f32.mrf.mxu0
      %v857 = vadd.f32 0.0, %v856
      %v858 = vpop.f32.mrf.mxu0
      %v859 = vpop.f32.mrf.mxu0
      %v860 = vadd.f32 0.0, %v859
      %v861 = vpop.f32.mrf.mxu0
      %862 = vmatprep.mubr.bf16.mxu0 0
      %863 = vmatmul.mubr.bf16.gmra.mxu0 %v760
      %v864 = vpop.f32.mrf.mxu0
      %v865 = vadd.f32 0.0, %v864
      %v866 = vpop.f32.mrf.mxu0
      %v867 = vpop.f32.mrf.mxu0
      %v868 = vadd.f32 0.0, %v867
      %v869 = vpop.f32.mrf.mxu0
      %870 = vmatprep.mubr.bf16.mxu0 0
      %871 = vmatmul.mubr.bf16.gmra.mxu0 %v763
      %v872 = vpop.f32.mrf.mxu0
      %v873 = vadd.f32 0.0, %v872
      %v874 = vpop.f32.mrf.mxu0
      %v875 = vpop.f32.mrf.mxu0
      %v876 = vadd.f32 0.0, %v875
      %v877 = vpop.f32.mrf.mxu0
      %878 = vmatprep.mubr.bf16.mxu0 0
      %879 = vmatmul.mubr.bf16.gmra.mxu0 %v766
      %v880 = vpop.f32.mrf.mxu0
      %v881 = vadd.f32 0.0, %v880
      %v882 = vpop.f32.mrf.mxu0
      %v883 = vpop.f32.mrf.mxu0
      %v884 = vadd.f32 0.0, %v883
      %v885 = vpop.f32.mrf.mxu0
      %886 = vmatprep.mubr.bf16.mxu0 0
      %887 = vmatmul.mubr.bf16.gmra.mxu0 %v769
      %v888 = vpop.f32.mrf.mxu0
      %v889 = vadd.f32 0.0, %v888
      %v890 = vpop.f32.mrf.mxu0
      %v891 = vpop.f32.mrf.mxu0
      %v892 = vadd.f32 0.0, %v891
      %v893 = vpop.f32.mrf.mxu0
      %894 = vmatprep.mubr.bf16.mxu0 0
      %895 = vmatmul.mubr.bf16.gmra.mxu0 %v772
      %v896 = vpop.f32.mrf.mxu0
      %v897 = vadd.f32 0.0, %v896
      %v898 = vpop.f32.mrf.mxu0
      %v899 = vpop.f32.mrf.mxu0
      %v900 = vadd.f32 0.0, %v899
      %v901 = vpop.f32.mrf.mxu0
      %902 = vmatprep.mubr.bf16.mxu0 0
      %903 = vmatmul.mubr.bf16.gmra.mxu0 %v775
      %v904 = vpop.f32.mrf.mxu0
      %v905 = vadd.f32 0.0, %v904
      %v906 = vpop.f32.mrf.mxu0
      %v907 = vpop.f32.mrf.mxu0
      %v908 = vadd.f32 0.0, %v907
      %v909 = vpop.f32.mrf.mxu0
      %910 = vmatprep.mubr.bf16.mxu0 0
      %911 = vmatmul.mubr.bf16.gmra.mxu0 %v778
      %v912 = vpop.f32.mrf.mxu0
      %v913 = vadd.f32 0.0, %v912
      %v914 = vpop.f32.mrf.mxu0
      %v915 = vpop.f32.mrf.mxu0
      %v916 = vadd.f32 0.0, %v915
      %v917 = vpop.f32.mrf.mxu0
      %918 = vmatprep.mubr.bf16.mxu0 0
      %919 = vmatmul.mubr.bf16.gmra.mxu0 %v781
      %v920 = vpop.f32.mrf.mxu0
      %v921 = vadd.f32 0.0, %v920
      %v922 = vpop.f32.mrf.mxu0
      %v923 = vpop.f32.mrf.mxu0
      %v924 = vadd.f32 0.0, %v923
      %v925 = vpop.f32.mrf.mxu0
      %926 = vmatprep.mubr.bf16.mxu0 0
      %927 = vmatmul.mubr.bf16.gmra.mxu0 %v784
      %v928 = vpop.f32.mrf.mxu0
      %v929 = vadd.f32 0.0, %v928
      %v930 = vpop.f32.mrf.mxu0
      %v931 = vpop.f32.mrf.mxu0
      %v932 = vadd.f32 0.0, %v931
      %v933 = vpop.f32.mrf.mxu0
      %934 = vmatprep.mubr.bf16.mxu0 0
      %935 = vmatmul.mubr.bf16.gmra.mxu0 %v787
      %v936 = vpop.f32.mrf.mxu0
      %v937 = vadd.f32 0.0, %v936
      %v938 = vpop.f32.mrf.mxu0
      %v939 = vpop.f32.mrf.mxu0
      %v940 = vadd.f32 0.0, %v939
      %v941 = vpop.f32.mrf.mxu0
      %942 = vmatprep.mubr.bf16.mxu0 0
      %943 = vmatmul.mubr.bf16.gmra.mxu0 %v790
      %v944 = vpop.f32.mrf.mxu0
      %v945 = vadd.f32 0.0, %v944
      %v946 = vpop.f32.mrf.mxu0
      %v947 = vpop.f32.mrf.mxu0
      %v948 = vadd.f32 0.0, %v947
      %v949 = vpop.f32.mrf.mxu0
      %950 = vmatprep.mubr.bf16.mxu0 0
      %951 = vmatmul.mubr.bf16.gmra.mxu0 %v793
      %v952 = vpop.f32.mrf.mxu0
      %v953 = vadd.f32 0.0, %v952
      %v954 = vpop.f32.mrf.mxu0
      %v955 = vpop.f32.mrf.mxu0
      %v956 = vadd.f32 0.0, %v955
      %v957 = vpop.f32.mrf.mxu0
      %958 = vdwg.mxu0
      %v959 = vadd.f32 %v571, %v833
      %v960 = vadd.f32 %v574, %v836
      %v961 = vadd.f32 %v579, %v841
      %v962 = vadd.f32 %v582, %v844
      %v963 = vadd.f32 %v587, %v849
      %v964 = vadd.f32 %v590, %v852
      %v965 = vadd.f32 %v595, %v857
      %v966 = vadd.f32 %v598, %v860
      %v967 = vadd.f32 %v603, %v865
      %v968 = vadd.f32 %v606, %v868
      %v969 = vadd.f32 %v611, %v873
      %v970 = vadd.f32 %v614, %v876
      %v971 = vadd.f32 %v619, %v881
      %v972 = vadd.f32 %v622, %v884
      %v973 = vadd.f32 %v627, %v889
      %v974 = vadd.f32 %v630, %v892
      %v975 = vadd.f32 %v635, %v897
      %v976 = vadd.f32 %v638, %v900
      %v977 = vadd.f32 %v643, %v905
      %v978 = vadd.f32 %v646, %v908
      %v979 = vadd.f32 %v651, %v913
      %v980 = vadd.f32 %v654, %v916
      %v981 = vadd.f32 %v659, %v921
      %v982 = vadd.f32 %v662, %v924
      %v983 = vadd.f32 %v667, %v929
      %v984 = vadd.f32 %v670, %v932
      %v985 = vadd.f32 %v675, %v937
      %v986 = vadd.f32 %v678, %v940
      %v987 = vadd.f32 %v683, %v945
      %v988 = vadd.f32 %v686, %v948
      %v989 = vadd.f32 %v691, %v953
      %v990 = vadd.f32 %v694, %v956
      %s991 = scalar_lea.vmem %s165, 24
      %v992 = vld [vmem:[%s991] sm:$0xff]
      %v993 = vld [vmem:[%s991 + $0x8] sm:$0xff]
      %v994 = vld [vmem:[%s991 + $0x18] sm:$0xff]
      %v995 = vld [vmem:[%s991 + $0x20] sm:$0xff]
      %v996 = vld [vmem:[%s991 + $0x30] sm:$0xff]
      %v997 = vld [vmem:[%s991 + $0x38] sm:$0xff]
      %v998 = vld [vmem:[%s991 + $0x48] sm:$0xff]
      %v999 = vld [vmem:[%s991 + $0x50] sm:$0xff]
      %v1000 = vld [vmem:[%s991 + $0x60] sm:$0xff]
      %v1001 = vld [vmem:[%s991 + $0x68] sm:$0xff]
      %v1002 = vld [vmem:[%s991 + $0x78] sm:$0xff]
      %v1003 = vld [vmem:[%s991 + $0x80] sm:$0xff]
      %v1004 = vld [vmem:[%s991 + $0x90] sm:$0xff]
      %v1005 = vld [vmem:[%s991 + $0x98] sm:$0xff]
      %v1006 = vld [vmem:[%s991 + $0xa8] sm:$0xff]
      %v1007 = vld [vmem:[%s991 + $0xb0] sm:$0xff]
      %v1008 = vld [vmem:[%s991 + $0xc0] sm:$0xff]
      %v1009 = vld [vmem:[%s991 + $0xc8] sm:$0xff]
      %v1010 = vld [vmem:[%s991 + $0xd8] sm:$0xff]
      %v1011 = vld [vmem:[%s991 + $0xe0] sm:$0xff]
      %v1012 = vld [vmem:[%s991 + $0xf0] sm:$0xff]
      %v1013 = vld [vmem:[%s991 + $0xf8] sm:$0xff]
      %v1014 = vld [vmem:[%s991 + $0x108] sm:$0xff]
      %v1015 = vld [vmem:[%s991 + $0x110] sm:$0xff]
      %v1016 = vld [vmem:[%s991 + $0x120] sm:$0xff]
      %v1017 = vld [vmem:[%s991 + $0x128] sm:$0xff]
      %v1018 = vld [vmem:[%s991 + $0x138] sm:$0xff]
      %v1019 = vld [vmem:[%s991 + $0x140] sm:$0xff]
      %v1020 = vld [vmem:[%s991 + $0x150] sm:$0xff]
      %v1021 = vld [vmem:[%s991 + $0x158] sm:$0xff]
      %v1022 = vld [vmem:[%s991 + $0x168] sm:$0xff]
      %v1023 = vld [vmem:[%s991 + $0x170] sm:$0xff]
      %v1024 = vpack.c.bf16 %v993, %v992
      %v1025 = vpack.c.bf16 %v995, %v994
      %v1026 = vpack.c.bf16 %v997, %v996
      %v1027 = vpack.c.bf16 %v999, %v998
      %v1028 = vpack.c.bf16 %v1001, %v1000
      %v1029 = vpack.c.bf16 %v1003, %v1002
      %v1030 = vpack.c.bf16 %v1005, %v1004
      %v1031 = vpack.c.bf16 %v1007, %v1006
      %v1032 = vpack.c.bf16 %v1009, %v1008
      %v1033 = vpack.c.bf16 %v1011, %v1010
      %v1034 = vpack.c.bf16 %v1013, %v1012
      %v1035 = vpack.c.bf16 %v1015, %v1014
      %v1036 = vpack.c.bf16 %v1017, %v1016
      %v1037 = vpack.c.bf16 %v1019, %v1018
      %v1038 = vpack.c.bf16 %v1021, %v1020
      %v1039 = vpack.c.bf16 %v1023, %v1022
      %s1040 = scalar_lea.vmem %s1, 6
      %v1041 = vld [vmem:[%s1040] sm:$0x3]
      %v1043 = vsel %vm271, %v1024, 0
      %v1046 = vsel %vm271, %v1025, 0
      %v1049 = vsel %vm271, %v1026, 0
      %v1052 = vsel %vm271, %v1027, 0
      %v1055 = vsel %vm271, %v1028, 0
      %v1058 = vsel %vm271, %v1029, 0
      %v1061 = vsel %vm271, %v1030, 0
      %v1064 = vsel %vm271, %v1031, 0
      %v1067 = vsel %vm271, %v1032, 0
      %v1070 = vsel %vm271, %v1033, 0
      %v1073 = vsel %vm271, %v1034, 0
      %v1076 = vsel %vm271, %v1035, 0
      %v1079 = vsel %vm271, %v1036, 0
      %v1082 = vsel %vm271, %v1037, 0
      %v1085 = vsel %vm271, %v1038, 0
      %v1088 = vsel %vm271, %v1039, 0
      %v1091 = vsel %vm320, %v1041, 0
      %1093 = vmatprep.subr.bf16.mxu0 0
      %1094 = vmatpush1.bf16.msra.mxu0 0
      %1095 = vmatprep.subr.bf16.mxu0 0
      %1096 = vmatpush1.bf16.msra.mxu0 0
      %1097 = vmatprep.subr.bf16.mxu0 0
      %1098 = vmatpush1.bf16.msra.mxu0 0
      %1099 = vmatprep.subr.bf16.mxu0 0
      %1100 = vmatpush1.bf16.msra.mxu0 0
      %1101 = vmatprep.subr.bf16.mxu0 0
      %1102 = vmatpush1.bf16.msra.mxu0 0
      %1103 = vmatprep.subr.bf16.mxu0 0
      %1104 = vmatpush1.bf16.msra.mxu0 0
      %1105 = vmatprep.subr.bf16.mxu0 0
      %1106 = vmatpush1.bf16.msra.mxu0 0
      %1107 = vmatprep.subr.bf16.mxu0 0
      %1108 = vmatpush1.bf16.msra.mxu0 %v1091
      %1109 = vmatprep.subr.bf16.mxu0 0
      %1110 = vmatpush2.bf16.msra.mxu0 0
      %1111 = vmatprep.subr.bf16.mxu0 0
      %1112 = vmatpush2.bf16.msra.mxu0 0
      %1113 = vmatprep.subr.bf16.mxu0 0
      %1114 = vmatpush2.bf16.msra.mxu0 0
      %1115 = vmatprep.subr.bf16.mxu0 0
      %1116 = vmatpush2.bf16.msra.mxu0 0
      %1117 = vmatprep.subr.bf16.mxu0 0
      %1118 = vmatpush2.bf16.msra.mxu0 0
      %1119 = vmatprep.subr.bf16.mxu0 0
      %1120 = vmatpush2.bf16.msra.mxu0 0
      %1121 = vmatprep.subr.bf16.mxu0 0
      %1122 = vmatpush2.bf16.msra.mxu0 0
      %1123 = vmatprep.subr.bf16.mxu0 0
      %1124 = vmatpush2.bf16.msra.mxu0 0
      %1125 = vmatprep.mubr.bf16.mxu0 0
      %1126 = vmatmul.mubr.bf16.gmra.mxu0 %v1043
      %v1127 = vpop.f32.mrf.mxu0
      %v1128 = vadd.f32 0.0, %v1127
      %v1129 = vpop.f32.mrf.mxu0
      %v1130 = vpop.f32.mrf.mxu0
      %v1131 = vadd.f32 0.0, %v1130
      %v1132 = vpop.f32.mrf.mxu0
      %1133 = vmatprep.mubr.bf16.mxu0 0
      %1134 = vmatmul.mubr.bf16.gmra.mxu0 %v1046
      %v1135 = vpop.f32.mrf.mxu0
      %v1136 = vadd.f32 0.0, %v1135
      %v1137 = vpop.f32.mrf.mxu0
      %v1138 = vpop.f32.mrf.mxu0
      %v1139 = vadd.f32 0.0, %v1138
      %v1140 = vpop.f32.mrf.mxu0
      %1141 = vmatprep.mubr.bf16.mxu0 0
      %1142 = vmatmul.mubr.bf16.gmra.mxu0 %v1049
      %v1143 = vpop.f32.mrf.mxu0
      %v1144 = vadd.f32 0.0, %v1143
      %v1145 = vpop.f32.mrf.mxu0
      %v1146 = vpop.f32.mrf.mxu0
      %v1147 = vadd.f32 0.0, %v1146
      %v1148 = vpop.f32.mrf.mxu0
      %1149 = vmatprep.mubr.bf16.mxu0 0
      %1150 = vmatmul.mubr.bf16.gmra.mxu0 %v1052
      %v1151 = vpop.f32.mrf.mxu0
      %v1152 = vadd.f32 0.0, %v1151
      %v1153 = vpop.f32.mrf.mxu0
      %v1154 = vpop.f32.mrf.mxu0
      %v1155 = vadd.f32 0.0, %v1154
      %v1156 = vpop.f32.mrf.mxu0
      %1157 = vmatprep.mubr.bf16.mxu0 0
      %1158 = vmatmul.mubr.bf16.gmra.mxu0 %v1055
      %v1159 = vpop.f32.mrf.mxu0
      %v1160 = vadd.f32 0.0, %v1159
      %v1161 = vpop.f32.mrf.mxu0
      %v1162 = vpop.f32.mrf.mxu0
      %v1163 = vadd.f32 0.0, %v1162
      %v1164 = vpop.f32.mrf.mxu0
      %1165 = vmatprep.mubr.bf16.mxu0 0
      %1166 = vmatmul.mubr.bf16.gmra.mxu0 %v1058
      %v1167 = vpop.f32.mrf.mxu0
      %v1168 = vadd.f32 0.0, %v1167
      %v1169 = vpop.f32.mrf.mxu0
      %v1170 = vpop.f32.mrf.mxu0
      %v1171 = vadd.f32 0.0, %v1170
      %v1172 = vpop.f32.mrf.mxu0
      %1173 = vmatprep.mubr.bf16.mxu0 0
      %1174 = vmatmul.mubr.bf16.gmra.mxu0 %v1061
      %v1175 = vpop.f32.mrf.mxu0
      %v1176 = vadd.f32 0.0, %v1175
      %v1177 = vpop.f32.mrf.mxu0
      %v1178 = vpop.f32.mrf.mxu0
      %v1179 = vadd.f32 0.0, %v1178
      %v1180 = vpop.f32.mrf.mxu0
      %1181 = vmatprep.mubr.bf16.mxu0 0
      %1182 = vmatmul.mubr.bf16.gmra.mxu0 %v1064
      %v1183 = vpop.f32.mrf.mxu0
      %v1184 = vadd.f32 0.0, %v1183
      %v1185 = vpop.f32.mrf.mxu0
      %v1186 = vpop.f32.mrf.mxu0
      %v1187 = vadd.f32 0.0, %v1186
      %v1188 = vpop.f32.mrf.mxu0
      %1189 = vmatprep.mubr.bf16.mxu0 0
      %1190 = vmatmul.mubr.bf16.gmra.mxu0 %v1067
      %v1191 = vpop.f32.mrf.mxu0
      %v1192 = vadd.f32 0.0, %v1191
      %v1193 = vpop.f32.mrf.mxu0
      %v1194 = vpop.f32.mrf.mxu0
      %v1195 = vadd.f32 0.0, %v1194
      %v1196 = vpop.f32.mrf.mxu0
      %1197 = vmatprep.mubr.bf16.mxu0 0
      %1198 = vmatmul.mubr.bf16.gmra.mxu0 %v1070
      %v1199 = vpop.f32.mrf.mxu0
      %v1200 = vadd.f32 0.0, %v1199
      %v1201 = vpop.f32.mrf.mxu0
      %v1202 = vpop.f32.mrf.mxu0
      %v1203 = vadd.f32 0.0, %v1202
      %v1204 = vpop.f32.mrf.mxu0
      %1205 = vmatprep.mubr.bf16.mxu0 0
      %1206 = vmatmul.mubr.bf16.gmra.mxu0 %v1073
      %v1207 = vpop.f32.mrf.mxu0
      %v1208 = vadd.f32 0.0, %v1207
      %v1209 = vpop.f32.mrf.mxu0
      %v1210 = vpop.f32.mrf.mxu0
      %v1211 = vadd.f32 0.0, %v1210
      %v1212 = vpop.f32.mrf.mxu0
      %1213 = vmatprep.mubr.bf16.mxu0 0
      %1214 = vmatmul.mubr.bf16.gmra.mxu0 %v1076
      %v1215 = vpop.f32.mrf.mxu0
      %v1216 = vadd.f32 0.0, %v1215
      %v1217 = vpop.f32.mrf.mxu0
      %v1218 = vpop.f32.mrf.mxu0
      %v1219 = vadd.f32 0.0, %v1218
      %v1220 = vpop.f32.mrf.mxu0
      %1221 = vmatprep.mubr.bf16.mxu0 0
      %1222 = vmatmul.mubr.bf16.gmra.mxu0 %v1079
      %v1223 = vpop.f32.mrf.mxu0
      %v1224 = vadd.f32 0.0, %v1223
      %v1225 = vpop.f32.mrf.mxu0
      %v1226 = vpop.f32.mrf.mxu0
      %v1227 = vadd.f32 0.0, %v1226
      %v1228 = vpop.f32.mrf.mxu0
      %1229 = vmatprep.mubr.bf16.mxu0 0
      %1230 = vmatmul.mubr.bf16.gmra.mxu0 %v1082
      %v1231 = vpop.f32.mrf.mxu0
      %v1232 = vadd.f32 0.0, %v1231
      %v1233 = vpop.f32.mrf.mxu0
      %v1234 = vpop.f32.mrf.mxu0
      %v1235 = vadd.f32 0.0, %v1234
      %v1236 = vpop.f32.mrf.mxu0
      %1237 = vmatprep.mubr.bf16.mxu0 0
      %1238 = vmatmul.mubr.bf16.gmra.mxu0 %v1085
      %v1239 = vpop.f32.mrf.mxu0
      %v1240 = vadd.f32 0.0, %v1239
      %v1241 = vpop.f32.mrf.mxu0
      %v1242 = vpop.f32.mrf.mxu0
      %v1243 = vadd.f32 0.0, %v1242
      %v1244 = vpop.f32.mrf.mxu0
      %1245 = vmatprep.mubr.bf16.mxu0 0
      %1246 = vmatmul.mubr.bf16.gmra.mxu0 %v1088
      %v1247 = vpop.f32.mrf.mxu0
      %v1248 = vadd.f32 0.0, %v1247
      %v1249 = vpop.f32.mrf.mxu0
      %v1250 = vpop.f32.mrf.mxu0
      %v1251 = vadd.f32 0.0, %v1250
      %v1252 = vpop.f32.mrf.mxu0
      %1253 = vdwg.mxu0
      %v1254 = vadd.f32 %v959, %v1128
      %v1255 = vadd.f32 %v960, %v1131
      %v1256 = vadd.f32 %v961, %v1136
      %v1257 = vadd.f32 %v962, %v1139
      %v1258 = vadd.f32 %v963, %v1144
      %v1259 = vadd.f32 %v964, %v1147
      %v1260 = vadd.f32 %v965, %v1152
      %v1261 = vadd.f32 %v966, %v1155
      %v1262 = vadd.f32 %v967, %v1160
      %v1263 = vadd.f32 %v968, %v1163
      %v1264 = vadd.f32 %v969, %v1168
      %v1265 = vadd.f32 %v970, %v1171
      %v1266 = vadd.f32 %v971, %v1176
      %v1267 = vadd.f32 %v972, %v1179
      %v1268 = vadd.f32 %v973, %v1184
      %v1269 = vadd.f32 %v974, %v1187
      %v1270 = vadd.f32 %v975, %v1192
      %v1271 = vadd.f32 %v976, %v1195
      %v1272 = vadd.f32 %v977, %v1200
      %v1273 = vadd.f32 %v978, %v1203
      %v1274 = vadd.f32 %v979, %v1208
      %v1275 = vadd.f32 %v980, %v1211
      %v1276 = vadd.f32 %v981, %v1216
      %v1277 = vadd.f32 %v982, %v1219
      %v1278 = vadd.f32 %v983, %v1224
      %v1279 = vadd.f32 %v984, %v1227
      %v1280 = vadd.f32 %v985, %v1232
      %v1281 = vadd.f32 %v986, %v1235
      %v1282 = vadd.f32 %v987, %v1240
      %v1283 = vadd.f32 %v988, %v1243
      %v1284 = vadd.f32 %v989, %v1248
      %v1285 = vadd.f32 %v990, %v1251
      %v1286 = vld [vmem:[%s991 + $0x1] sm:$0xff]
      %v1287 = vld [vmem:[%s991 + $0x9] sm:$0xff]
      %v1288 = vld [vmem:[%s991 + $0x19] sm:$0xff]
      %v1289 = vld [vmem:[%s991 + $0x21] sm:$0xff]
      %v1290 = vld [vmem:[%s991 + $0x31] sm:$0xff]
      %v1291 = vld [vmem:[%s991 + $0x39] sm:$0xff]
      %v1292 = vld [vmem:[%s991 + $0x49] sm:$0xff]
      %v1293 = vld [vmem:[%s991 + $0x51] sm:$0xff]
      %v1294 = vld [vmem:[%s991 + $0x61] sm:$0xff]
      %v1295 = vld [vmem:[%s991 + $0x69] sm:$0xff]
      %v1296 = vld [vmem:[%s991 + $0x79] sm:$0xff]
      %v1297 = vld [vmem:[%s991 + $0x81] sm:$0xff]
      %v1298 = vld [vmem:[%s991 + $0x91] sm:$0xff]
      %v1299 = vld [vmem:[%s991 + $0x99] sm:$0xff]
      %v1300 = vld [vmem:[%s991 + $0xa9] sm:$0xff]
      %v1301 = vld [vmem:[%s991 + $0xb1] sm:$0xff]
      %v1302 = vld [vmem:[%s991 + $0xc1] sm:$0xff]
      %v1303 = vld [vmem:[%s991 + $0xc9] sm:$0xff]
      %v1304 = vld [vmem:[%s991 + $0xd9] sm:$0xff]
      %v1305 = vld [vmem:[%s991 + $0xe1] sm:$0xff]
      %v1306 = vld [vmem:[%s991 + $0xf1] sm:$0xff]
      %v1307 = vld [vmem:[%s991 + $0xf9] sm:$0xff]
      %v1308 = vld [vmem:[%s991 + $0x109] sm:$0xff]
      %v1309 = vld [vmem:[%s991 + $0x111] sm:$0xff]
      %v1310 = vld [vmem:[%s991 + $0x121] sm:$0xff]
      %v1311 = vld [vmem:[%s991 + $0x129] sm:$0xff]
      %v1312 = vld [vmem:[%s991 + $0x139] sm:$0xff]
      %v1313 = vld [vmem:[%s991 + $0x141] sm:$0xff]
      %v1314 = vld [vmem:[%s991 + $0x151] sm:$0xff]
      %v1315 = vld [vmem:[%s991 + $0x159] sm:$0xff]
      %v1316 = vld [vmem:[%s991 + $0x169] sm:$0xff]
      %v1317 = vld [vmem:[%s991 + $0x171] sm:$0xff]
      %v1318 = vpack.c.bf16 %v1287, %v1286
      %v1319 = vpack.c.bf16 %v1289, %v1288
      %v1320 = vpack.c.bf16 %v1291, %v1290
      %v1321 = vpack.c.bf16 %v1293, %v1292
      %v1322 = vpack.c.bf16 %v1295, %v1294
      %v1323 = vpack.c.bf16 %v1297, %v1296
      %v1324 = vpack.c.bf16 %v1299, %v1298
      %v1325 = vpack.c.bf16 %v1301, %v1300
      %v1326 = vpack.c.bf16 %v1303, %v1302
      %v1327 = vpack.c.bf16 %v1305, %v1304
      %v1328 = vpack.c.bf16 %v1307, %v1306
      %v1329 = vpack.c.bf16 %v1309, %v1308
      %v1330 = vpack.c.bf16 %v1311, %v1310
      %v1331 = vpack.c.bf16 %v1313, %v1312
      %v1332 = vpack.c.bf16 %v1315, %v1314
      %v1333 = vpack.c.bf16 %v1317, %v1316
      %s1334 = scalar_lea.vmem %s1, 8
      %v1335 = vld [vmem:[%s1334] sm:$0x3]
      %v1337 = vsel %vm271, %v1318, 0
      %v1340 = vsel %vm271, %v1319, 0
      %v1343 = vsel %vm271, %v1320, 0
      %v1346 = vsel %vm271, %v1321, 0
      %v1349 = vsel %vm271, %v1322, 0
      %v1352 = vsel %vm271, %v1323, 0
      %v1355 = vsel %vm271, %v1324, 0
      %v1358 = vsel %vm271, %v1325, 0
      %v1361 = vsel %vm271, %v1326, 0
      %v1364 = vsel %vm271, %v1327, 0
      %v1367 = vsel %vm271, %v1328, 0
      %v1370 = vsel %vm271, %v1329, 0
      %v1373 = vsel %vm271, %v1330, 0
      %v1376 = vsel %vm271, %v1331, 0
      %v1379 = vsel %vm271, %v1332, 0
      %v1382 = vsel %vm271, %v1333, 0
      %v1385 = vsel %vm320, %v1335, 0
      %1387 = vmatprep.subr.bf16.mxu0 0
      %1388 = vmatpush1.bf16.msra.mxu0 0
      %1389 = vmatprep.subr.bf16.mxu0 0
      %1390 = vmatpush1.bf16.msra.mxu0 0
      %1391 = vmatprep.subr.bf16.mxu0 0
      %1392 = vmatpush1.bf16.msra.mxu0 0
      %1393 = vmatprep.subr.bf16.mxu0 0
      %1394 = vmatpush1.bf16.msra.mxu0 0
      %1395 = vmatprep.subr.bf16.mxu0 0
      %1396 = vmatpush1.bf16.msra.mxu0 0
      %1397 = vmatprep.subr.bf16.mxu0 0
      %1398 = vmatpush1.bf16.msra.mxu0 0
      %1399 = vmatprep.subr.bf16.mxu0 0
      %1400 = vmatpush1.bf16.msra.mxu0 0
      %1401 = vmatprep.subr.bf16.mxu0 0
      %1402 = vmatpush1.bf16.msra.mxu0 %v1385
      %1403 = vmatprep.subr.bf16.mxu0 0
      %1404 = vmatpush2.bf16.msra.mxu0 0
      %1405 = vmatprep.subr.bf16.mxu0 0
      %1406 = vmatpush2.bf16.msra.mxu0 0
      %1407 = vmatprep.subr.bf16.mxu0 0
      %1408 = vmatpush2.bf16.msra.mxu0 0
      %1409 = vmatprep.subr.bf16.mxu0 0
      %1410 = vmatpush2.bf16.msra.mxu0 0
      %1411 = vmatprep.subr.bf16.mxu0 0
      %1412 = vmatpush2.bf16.msra.mxu0 0
      %1413 = vmatprep.subr.bf16.mxu0 0
      %1414 = vmatpush2.bf16.msra.mxu0 0
      %1415 = vmatprep.subr.bf16.mxu0 0
      %1416 = vmatpush2.bf16.msra.mxu0 0
      %1417 = vmatprep.subr.bf16.mxu0 0
      %1418 = vmatpush2.bf16.msra.mxu0 0
      %1419 = vmatprep.mubr.bf16.mxu0 0
      %1420 = vmatmul.mubr.bf16.gmra.mxu0 %v1337
      %v1421 = vpop.f32.mrf.mxu0
      %v1422 = vadd.f32 0.0, %v1421
      %v1423 = vpop.f32.mrf.mxu0
      %v1424 = vpop.f32.mrf.mxu0
      %v1425 = vadd.f32 0.0, %v1424
      %v1426 = vpop.f32.mrf.mxu0
      %1427 = vmatprep.mubr.bf16.mxu0 0
      %1428 = vmatmul.mubr.bf16.gmra.mxu0 %v1340
      %v1429 = vpop.f32.mrf.mxu0
      %v1430 = vadd.f32 0.0, %v1429
      %v1431 = vpop.f32.mrf.mxu0
      %v1432 = vpop.f32.mrf.mxu0
      %v1433 = vadd.f32 0.0, %v1432
      %v1434 = vpop.f32.mrf.mxu0
      %1435 = vmatprep.mubr.bf16.mxu0 0
      %1436 = vmatmul.mubr.bf16.gmra.mxu0 %v1343
      %v1437 = vpop.f32.mrf.mxu0
      %v1438 = vadd.f32 0.0, %v1437
      %v1439 = vpop.f32.mrf.mxu0
      %v1440 = vpop.f32.mrf.mxu0
      %v1441 = vadd.f32 0.0, %v1440
      %v1442 = vpop.f32.mrf.mxu0
      %1443 = vmatprep.mubr.bf16.mxu0 0
      %1444 = vmatmul.mubr.bf16.gmra.mxu0 %v1346
      %v1445 = vpop.f32.mrf.mxu0
      %v1446 = vadd.f32 0.0, %v1445
      %v1447 = vpop.f32.mrf.mxu0
      %v1448 = vpop.f32.mrf.mxu0
      %v1449 = vadd.f32 0.0, %v1448
      %v1450 = vpop.f32.mrf.mxu0
      %1451 = vmatprep.mubr.bf16.mxu0 0
      %1452 = vmatmul.mubr.bf16.gmra.mxu0 %v1349
      %v1453 = vpop.f32.mrf.mxu0
      %v1454 = vadd.f32 0.0, %v1453
      %v1455 = vpop.f32.mrf.mxu0
      %v1456 = vpop.f32.mrf.mxu0
      %v1457 = vadd.f32 0.0, %v1456
      %v1458 = vpop.f32.mrf.mxu0
      %1459 = vmatprep.mubr.bf16.mxu0 0
      %1460 = vmatmul.mubr.bf16.gmra.mxu0 %v1352
      %v1461 = vpop.f32.mrf.mxu0
      %v1462 = vadd.f32 0.0, %v1461
      %v1463 = vpop.f32.mrf.mxu0
      %v1464 = vpop.f32.mrf.mxu0
      %v1465 = vadd.f32 0.0, %v1464
      %v1466 = vpop.f32.mrf.mxu0
      %1467 = vmatprep.mubr.bf16.mxu0 0
      %1468 = vmatmul.mubr.bf16.gmra.mxu0 %v1355
      %v1469 = vpop.f32.mrf.mxu0
      %v1470 = vadd.f32 0.0, %v1469
      %v1471 = vpop.f32.mrf.mxu0
      %v1472 = vpop.f32.mrf.mxu0
      %v1473 = vadd.f32 0.0, %v1472
      %v1474 = vpop.f32.mrf.mxu0
      %1475 = vmatprep.mubr.bf16.mxu0 0
      %1476 = vmatmul.mubr.bf16.gmra.mxu0 %v1358
      %v1477 = vpop.f32.mrf.mxu0
      %v1478 = vadd.f32 0.0, %v1477
      %v1479 = vpop.f32.mrf.mxu0
      %v1480 = vpop.f32.mrf.mxu0
      %v1481 = vadd.f32 0.0, %v1480
      %v1482 = vpop.f32.mrf.mxu0
      %1483 = vmatprep.mubr.bf16.mxu0 0
      %1484 = vmatmul.mubr.bf16.gmra.mxu0 %v1361
      %v1485 = vpop.f32.mrf.mxu0
      %v1486 = vadd.f32 0.0, %v1485
      %v1487 = vpop.f32.mrf.mxu0
      %v1488 = vpop.f32.mrf.mxu0
      %v1489 = vadd.f32 0.0, %v1488
      %v1490 = vpop.f32.mrf.mxu0
      %1491 = vmatprep.mubr.bf16.mxu0 0
      %1492 = vmatmul.mubr.bf16.gmra.mxu0 %v1364
      %v1493 = vpop.f32.mrf.mxu0
      %v1494 = vadd.f32 0.0, %v1493
      %v1495 = vpop.f32.mrf.mxu0
      %v1496 = vpop.f32.mrf.mxu0
      %v1497 = vadd.f32 0.0, %v1496
      %v1498 = vpop.f32.mrf.mxu0
      %1499 = vmatprep.mubr.bf16.mxu0 0
      %1500 = vmatmul.mubr.bf16.gmra.mxu0 %v1367
      %v1501 = vpop.f32.mrf.mxu0
      %v1502 = vadd.f32 0.0, %v1501
      %v1503 = vpop.f32.mrf.mxu0
      %v1504 = vpop.f32.mrf.mxu0
      %v1505 = vadd.f32 0.0, %v1504
      %v1506 = vpop.f32.mrf.mxu0
      %1507 = vmatprep.mubr.bf16.mxu0 0
      %1508 = vmatmul.mubr.bf16.gmra.mxu0 %v1370
      %v1509 = vpop.f32.mrf.mxu0
      %v1510 = vadd.f32 0.0, %v1509
      %v1511 = vpop.f32.mrf.mxu0
      %v1512 = vpop.f32.mrf.mxu0
      %v1513 = vadd.f32 0.0, %v1512
      %v1514 = vpop.f32.mrf.mxu0
      %1515 = vmatprep.mubr.bf16.mxu0 0
      %1516 = vmatmul.mubr.bf16.gmra.mxu0 %v1373
      %v1517 = vpop.f32.mrf.mxu0
      %v1518 = vadd.f32 0.0, %v1517
      %v1519 = vpop.f32.mrf.mxu0
      %v1520 = vpop.f32.mrf.mxu0
      %v1521 = vadd.f32 0.0, %v1520
      %v1522 = vpop.f32.mrf.mxu0
      %1523 = vmatprep.mubr.bf16.mxu0 0
      %1524 = vmatmul.mubr.bf16.gmra.mxu0 %v1376
      %v1525 = vpop.f32.mrf.mxu0
      %v1526 = vadd.f32 0.0, %v1525
      %v1527 = vpop.f32.mrf.mxu0
      %v1528 = vpop.f32.mrf.mxu0
      %v1529 = vadd.f32 0.0, %v1528
      %v1530 = vpop.f32.mrf.mxu0
      %1531 = vmatprep.mubr.bf16.mxu0 0
      %1532 = vmatmul.mubr.bf16.gmra.mxu0 %v1379
      %v1533 = vpop.f32.mrf.mxu0
      %v1534 = vadd.f32 0.0, %v1533
      %v1535 = vpop.f32.mrf.mxu0
      %v1536 = vpop.f32.mrf.mxu0
      %v1537 = vadd.f32 0.0, %v1536
      %v1538 = vpop.f32.mrf.mxu0
      %1539 = vmatprep.mubr.bf16.mxu0 0
      %1540 = vmatmul.mubr.bf16.gmra.mxu0 %v1382
      %v1541 = vpop.f32.mrf.mxu0
      %v1542 = vadd.f32 0.0, %v1541
      %v1543 = vpop.f32.mrf.mxu0
      %v1544 = vpop.f32.mrf.mxu0
      %v1545 = vadd.f32 0.0, %v1544
      %v1546 = vpop.f32.mrf.mxu0
      %1547 = vdwg.mxu0
      %v1548 = vadd.f32 %v1254, %v1422
      %v1549 = vadd.f32 %v1255, %v1425
      %v1550 = vadd.f32 %v1256, %v1430
      %v1551 = vadd.f32 %v1257, %v1433
      %v1552 = vadd.f32 %v1258, %v1438
      %v1553 = vadd.f32 %v1259, %v1441
      %v1554 = vadd.f32 %v1260, %v1446
      %v1555 = vadd.f32 %v1261, %v1449
      %v1556 = vadd.f32 %v1262, %v1454
      %v1557 = vadd.f32 %v1263, %v1457
      %v1558 = vadd.f32 %v1264, %v1462
      %v1559 = vadd.f32 %v1265, %v1465
      %v1560 = vadd.f32 %v1266, %v1470
      %v1561 = vadd.f32 %v1267, %v1473
      %v1562 = vadd.f32 %v1268, %v1478
      %v1563 = vadd.f32 %v1269, %v1481
      %v1564 = vadd.f32 %v1270, %v1486
      %v1565 = vadd.f32 %v1271, %v1489
      %v1566 = vadd.f32 %v1272, %v1494
      %v1567 = vadd.f32 %v1273, %v1497
      %v1568 = vadd.f32 %v1274, %v1502
      %v1569 = vadd.f32 %v1275, %v1505
      %v1570 = vadd.f32 %v1276, %v1510
      %v1571 = vadd.f32 %v1277, %v1513
      %v1572 = vadd.f32 %v1278, %v1518
      %v1573 = vadd.f32 %v1279, %v1521
      %v1574 = vadd.f32 %v1280, %v1526
      %v1575 = vadd.f32 %v1281, %v1529
      %v1576 = vadd.f32 %v1282, %v1534
      %v1577 = vadd.f32 %v1283, %v1537
      %v1578 = vadd.f32 %v1284, %v1542
      %v1579 = vadd.f32 %v1285, %v1545
      %v1580 = vld [vmem:[%s991 + $0x2] sm:$0xff]
      %v1581 = vld [vmem:[%s991 + $0xa] sm:$0xff]
      %v1582 = vld [vmem:[%s991 + $0x1a] sm:$0xff]
      %v1583 = vld [vmem:[%s991 + $0x22] sm:$0xff]
      %v1584 = vld [vmem:[%s991 + $0x32] sm:$0xff]
      %v1585 = vld [vmem:[%s991 + $0x3a] sm:$0xff]
      %v1586 = vld [vmem:[%s991 + $0x4a] sm:$0xff]
      %v1587 = vld [vmem:[%s991 + $0x52] sm:$0xff]
      %v1588 = vld [vmem:[%s991 + $0x62] sm:$0xff]
      %v1589 = vld [vmem:[%s991 + $0x6a] sm:$0xff]
      %v1590 = vld [vmem:[%s991 + $0x7a] sm:$0xff]
      %v1591 = vld [vmem:[%s991 + $0x82] sm:$0xff]
      %v1592 = vld [vmem:[%s991 + $0x92] sm:$0xff]
      %v1593 = vld [vmem:[%s991 + $0x9a] sm:$0xff]
      %v1594 = vld [vmem:[%s991 + $0xaa] sm:$0xff]
      %v1595 = vld [vmem:[%s991 + $0xb2] sm:$0xff]
      %v1596 = vld [vmem:[%s991 + $0xc2] sm:$0xff]
      %v1597 = vld [vmem:[%s991 + $0xca] sm:$0xff]
      %v1598 = vld [vmem:[%s991 + $0xda] sm:$0xff]
      %v1599 = vld [vmem:[%s991 + $0xe2] sm:$0xff]
      %v1600 = vld [vmem:[%s991 + $0xf2] sm:$0xff]
      %v1601 = vld [vmem:[%s991 + $0xfa] sm:$0xff]
      %v1602 = vld [vmem:[%s991 + $0x10a] sm:$0xff]
      %v1603 = vld [vmem:[%s991 + $0x112] sm:$0xff]
      %v1604 = vld [vmem:[%s991 + $0x122] sm:$0xff]
      %v1605 = vld [vmem:[%s991 + $0x12a] sm:$0xff]
      %v1606 = vld [vmem:[%s991 + $0x13a] sm:$0xff]
      %v1607 = vld [vmem:[%s991 + $0x142] sm:$0xff]
      %v1608 = vld [vmem:[%s991 + $0x152] sm:$0xff]
      %v1609 = vld [vmem:[%s991 + $0x15a] sm:$0xff]
      %v1610 = vld [vmem:[%s991 + $0x16a] sm:$0xff]
      %v1611 = vld [vmem:[%s991 + $0x172] sm:$0xff]
      %v1612 = vpack.c.bf16 %v1581, %v1580
      %v1613 = vpack.c.bf16 %v1583, %v1582
      %v1614 = vpack.c.bf16 %v1585, %v1584
      %v1615 = vpack.c.bf16 %v1587, %v1586
      %v1616 = vpack.c.bf16 %v1589, %v1588
      %v1617 = vpack.c.bf16 %v1591, %v1590
      %v1618 = vpack.c.bf16 %v1593, %v1592
      %v1619 = vpack.c.bf16 %v1595, %v1594
      %v1620 = vpack.c.bf16 %v1597, %v1596
      %v1621 = vpack.c.bf16 %v1599, %v1598
      %v1622 = vpack.c.bf16 %v1601, %v1600
      %v1623 = vpack.c.bf16 %v1603, %v1602
      %v1624 = vpack.c.bf16 %v1605, %v1604
      %v1625 = vpack.c.bf16 %v1607, %v1606
      %v1626 = vpack.c.bf16 %v1609, %v1608
      %v1627 = vpack.c.bf16 %v1611, %v1610
      %s1628 = scalar_lea.vmem %s1, 10
      %v1629 = vld [vmem:[%s1628] sm:$0x3]
      %v1631 = vsel %vm271, %v1612, 0
      %v1634 = vsel %vm271, %v1613, 0
      %v1637 = vsel %vm271, %v1614, 0
      %v1640 = vsel %vm271, %v1615, 0
      %v1643 = vsel %vm271, %v1616, 0
      %v1646 = vsel %vm271, %v1617, 0
      %v1649 = vsel %vm271, %v1618, 0
      %v1652 = vsel %vm271, %v1619, 0
      %v1655 = vsel %vm271, %v1620, 0
      %v1658 = vsel %vm271, %v1621, 0
      %v1661 = vsel %vm271, %v1622, 0
      %v1664 = vsel %vm271, %v1623, 0
      %v1667 = vsel %vm271, %v1624, 0
      %v1670 = vsel %vm271, %v1625, 0
      %v1673 = vsel %vm271, %v1626, 0
      %v1676 = vsel %vm271, %v1627, 0
      %v1679 = vsel %vm320, %v1629, 0
      %1681 = vmatprep.subr.bf16.mxu0 0
      %1682 = vmatpush1.bf16.msra.mxu0 0
      %1683 = vmatprep.subr.bf16.mxu0 0
      %1684 = vmatpush1.bf16.msra.mxu0 0
      %1685 = vmatprep.subr.bf16.mxu0 0
      %1686 = vmatpush1.bf16.msra.mxu0 0
      %1687 = vmatprep.subr.bf16.mxu0 0
      %1688 = vmatpush1.bf16.msra.mxu0 0
      %1689 = vmatprep.subr.bf16.mxu0 0
      %1690 = vmatpush1.bf16.msra.mxu0 0
      %1691 = vmatprep.subr.bf16.mxu0 0
      %1692 = vmatpush1.bf16.msra.mxu0 0
      %1693 = vmatprep.subr.bf16.mxu0 0
      %1694 = vmatpush1.bf16.msra.mxu0 0
      %1695 = vmatprep.subr.bf16.mxu0 0
      %1696 = vmatpush1.bf16.msra.mxu0 %v1679
      %1697 = vmatprep.subr.bf16.mxu0 0
      %1698 = vmatpush2.bf16.msra.mxu0 0
      %1699 = vmatprep.subr.bf16.mxu0 0
      %1700 = vmatpush2.bf16.msra.mxu0 0
      %1701 = vmatprep.subr.bf16.mxu0 0
      %1702 = vmatpush2.bf16.msra.mxu0 0
      %1703 = vmatprep.subr.bf16.mxu0 0
      %1704 = vmatpush2.bf16.msra.mxu0 0
      %1705 = vmatprep.subr.bf16.mxu0 0
      %1706 = vmatpush2.bf16.msra.mxu0 0
      %1707 = vmatprep.subr.bf16.mxu0 0
      %1708 = vmatpush2.bf16.msra.mxu0 0
      %1709 = vmatprep.subr.bf16.mxu0 0
      %1710 = vmatpush2.bf16.msra.mxu0 0
      %1711 = vmatprep.subr.bf16.mxu0 0
      %1712 = vmatpush2.bf16.msra.mxu0 0
      %1713 = vmatprep.mubr.bf16.mxu0 0
      %1714 = vmatmul.mubr.bf16.gmra.mxu0 %v1631
      %v1715 = vpop.f32.mrf.mxu0
      %v1716 = vadd.f32 0.0, %v1715
      %v1717 = vpop.f32.mrf.mxu0
      %v1718 = vpop.f32.mrf.mxu0
      %v1719 = vadd.f32 0.0, %v1718
      %v1720 = vpop.f32.mrf.mxu0
      %1721 = vmatprep.mubr.bf16.mxu0 0
      %1722 = vmatmul.mubr.bf16.gmra.mxu0 %v1634
      %v1723 = vpop.f32.mrf.mxu0
      %v1724 = vadd.f32 0.0, %v1723
      %v1725 = vpop.f32.mrf.mxu0
      %v1726 = vpop.f32.mrf.mxu0
      %v1727 = vadd.f32 0.0, %v1726
      %v1728 = vpop.f32.mrf.mxu0
      %1729 = vmatprep.mubr.bf16.mxu0 0
      %1730 = vmatmul.mubr.bf16.gmra.mxu0 %v1637
      %v1731 = vpop.f32.mrf.mxu0
      %v1732 = vadd.f32 0.0, %v1731
      %v1733 = vpop.f32.mrf.mxu0
      %v1734 = vpop.f32.mrf.mxu0
      %v1735 = vadd.f32 0.0, %v1734
      %v1736 = vpop.f32.mrf.mxu0
      %1737 = vmatprep.mubr.bf16.mxu0 0
      %1738 = vmatmul.mubr.bf16.gmra.mxu0 %v1640
      %v1739 = vpop.f32.mrf.mxu0
      %v1740 = vadd.f32 0.0, %v1739
      %v1741 = vpop.f32.mrf.mxu0
      %v1742 = vpop.f32.mrf.mxu0
      %v1743 = vadd.f32 0.0, %v1742
      %v1744 = vpop.f32.mrf.mxu0
      %1745 = vmatprep.mubr.bf16.mxu0 0
      %1746 = vmatmul.mubr.bf16.gmra.mxu0 %v1643
      %v1747 = vpop.f32.mrf.mxu0
      %v1748 = vadd.f32 0.0, %v1747
      %v1749 = vpop.f32.mrf.mxu0
      %v1750 = vpop.f32.mrf.mxu0
      %v1751 = vadd.f32 0.0, %v1750
      %v1752 = vpop.f32.mrf.mxu0
      %1753 = vmatprep.mubr.bf16.mxu0 0
      %1754 = vmatmul.mubr.bf16.gmra.mxu0 %v1646
      %v1755 = vpop.f32.mrf.mxu0
      %v1756 = vadd.f32 0.0, %v1755
      %v1757 = vpop.f32.mrf.mxu0
      %v1758 = vpop.f32.mrf.mxu0
      %v1759 = vadd.f32 0.0, %v1758
      %v1760 = vpop.f32.mrf.mxu0
      %1761 = vmatprep.mubr.bf16.mxu0 0
      %1762 = vmatmul.mubr.bf16.gmra.mxu0 %v1649
      %v1763 = vpop.f32.mrf.mxu0
      %v1764 = vadd.f32 0.0, %v1763
      %v1765 = vpop.f32.mrf.mxu0
      %v1766 = vpop.f32.mrf.mxu0
      %v1767 = vadd.f32 0.0, %v1766
      %v1768 = vpop.f32.mrf.mxu0
      %1769 = vmatprep.mubr.bf16.mxu0 0
      %1770 = vmatmul.mubr.bf16.gmra.mxu0 %v1652
      %v1771 = vpop.f32.mrf.mxu0
      %v1772 = vadd.f32 0.0, %v1771
      %v1773 = vpop.f32.mrf.mxu0
      %v1774 = vpop.f32.mrf.mxu0
      %v1775 = vadd.f32 0.0, %v1774
      %v1776 = vpop.f32.mrf.mxu0
      %1777 = vmatprep.mubr.bf16.mxu0 0
      %1778 = vmatmul.mubr.bf16.gmra.mxu0 %v1655
      %v1779 = vpop.f32.mrf.mxu0
      %v1780 = vadd.f32 0.0, %v1779
      %v1781 = vpop.f32.mrf.mxu0
      %v1782 = vpop.f32.mrf.mxu0
      %v1783 = vadd.f32 0.0, %v1782
      %v1784 = vpop.f32.mrf.mxu0
      %1785 = vmatprep.mubr.bf16.mxu0 0
      %1786 = vmatmul.mubr.bf16.gmra.mxu0 %v1658
      %v1787 = vpop.f32.mrf.mxu0
      %v1788 = vadd.f32 0.0, %v1787
      %v1789 = vpop.f32.mrf.mxu0
      %v1790 = vpop.f32.mrf.mxu0
      %v1791 = vadd.f32 0.0, %v1790
      %v1792 = vpop.f32.mrf.mxu0
      %1793 = vmatprep.mubr.bf16.mxu0 0
      %1794 = vmatmul.mubr.bf16.gmra.mxu0 %v1661
      %v1795 = vpop.f32.mrf.mxu0
      %v1796 = vadd.f32 0.0, %v1795
      %v1797 = vpop.f32.mrf.mxu0
      %v1798 = vpop.f32.mrf.mxu0
      %v1799 = vadd.f32 0.0, %v1798
      %v1800 = vpop.f32.mrf.mxu0
      %1801 = vmatprep.mubr.bf16.mxu0 0
      %1802 = vmatmul.mubr.bf16.gmra.mxu0 %v1664
      %v1803 = vpop.f32.mrf.mxu0
      %v1804 = vadd.f32 0.0, %v1803
      %v1805 = vpop.f32.mrf.mxu0
      %v1806 = vpop.f32.mrf.mxu0
      %v1807 = vadd.f32 0.0, %v1806
      %v1808 = vpop.f32.mrf.mxu0
      %1809 = vmatprep.mubr.bf16.mxu0 0
      %1810 = vmatmul.mubr.bf16.gmra.mxu0 %v1667
      %v1811 = vpop.f32.mrf.mxu0
      %v1812 = vadd.f32 0.0, %v1811
      %v1813 = vpop.f32.mrf.mxu0
      %v1814 = vpop.f32.mrf.mxu0
      %v1815 = vadd.f32 0.0, %v1814
      %v1816 = vpop.f32.mrf.mxu0
      %1817 = vmatprep.mubr.bf16.mxu0 0
      %1818 = vmatmul.mubr.bf16.gmra.mxu0 %v1670
      %v1819 = vpop.f32.mrf.mxu0
      %v1820 = vadd.f32 0.0, %v1819
      %v1821 = vpop.f32.mrf.mxu0
      %v1822 = vpop.f32.mrf.mxu0
      %v1823 = vadd.f32 0.0, %v1822
      %v1824 = vpop.f32.mrf.mxu0
      %1825 = vmatprep.mubr.bf16.mxu0 0
      %1826 = vmatmul.mubr.bf16.gmra.mxu0 %v1673
      %v1827 = vpop.f32.mrf.mxu0
      %v1828 = vadd.f32 0.0, %v1827
      %v1829 = vpop.f32.mrf.mxu0
      %v1830 = vpop.f32.mrf.mxu0
      %v1831 = vadd.f32 0.0, %v1830
      %v1832 = vpop.f32.mrf.mxu0
      %1833 = vmatprep.mubr.bf16.mxu0 0
      %1834 = vmatmul.mubr.bf16.gmra.mxu0 %v1676
      %v1835 = vpop.f32.mrf.mxu0
      %v1836 = vadd.f32 0.0, %v1835
      %v1837 = vpop.f32.mrf.mxu0
      %v1838 = vpop.f32.mrf.mxu0
      %v1839 = vadd.f32 0.0, %v1838
      %v1840 = vpop.f32.mrf.mxu0
      %1841 = vdwg.mxu0
      %v1842 = vadd.f32 %v1548, %v1716
      %v1843 = vadd.f32 %v1549, %v1719
      %v1844 = vadd.f32 %v1550, %v1724
      %v1845 = vadd.f32 %v1551, %v1727
      %v1846 = vadd.f32 %v1552, %v1732
      %v1847 = vadd.f32 %v1553, %v1735
      %v1848 = vadd.f32 %v1554, %v1740
      %v1849 = vadd.f32 %v1555, %v1743
      %v1850 = vadd.f32 %v1556, %v1748
      %v1851 = vadd.f32 %v1557, %v1751
      %v1852 = vadd.f32 %v1558, %v1756
      %v1853 = vadd.f32 %v1559, %v1759
      %v1854 = vadd.f32 %v1560, %v1764
      %v1855 = vadd.f32 %v1561, %v1767
      %v1856 = vadd.f32 %v1562, %v1772
      %v1857 = vadd.f32 %v1563, %v1775
      %v1858 = vadd.f32 %v1564, %v1780
      %v1859 = vadd.f32 %v1565, %v1783
      %v1860 = vadd.f32 %v1566, %v1788
      %v1861 = vadd.f32 %v1567, %v1791
      %v1862 = vadd.f32 %v1568, %v1796
      %v1863 = vadd.f32 %v1569, %v1799
      %v1864 = vadd.f32 %v1570, %v1804
      %v1865 = vadd.f32 %v1571, %v1807
      %v1866 = vadd.f32 %v1572, %v1812
      %v1867 = vadd.f32 %v1573, %v1815
      %v1868 = vadd.f32 %v1574, %v1820
      %v1869 = vadd.f32 %v1575, %v1823
      %v1870 = vadd.f32 %v1576, %v1828
      %v1871 = vadd.f32 %v1577, %v1831
      %v1872 = vadd.f32 %v1578, %v1836
      %v1873 = vadd.f32 %v1579, %v1839
      %s1874 = scalar_lea.vmem %s165, 48
      %v1875 = vld [vmem:[%s1874] sm:$0xff]
      %v1876 = vld [vmem:[%s1874 + $0x8] sm:$0xff]
      %v1877 = vld [vmem:[%s1874 + $0x18] sm:$0xff]
      %v1878 = vld [vmem:[%s1874 + $0x20] sm:$0xff]
      %v1879 = vld [vmem:[%s1874 + $0x30] sm:$0xff]
      %v1880 = vld [vmem:[%s1874 + $0x38] sm:$0xff]
      %v1881 = vld [vmem:[%s1874 + $0x48] sm:$0xff]
      %v1882 = vld [vmem:[%s1874 + $0x50] sm:$0xff]
      %v1883 = vld [vmem:[%s1874 + $0x60] sm:$0xff]
      %v1884 = vld [vmem:[%s1874 + $0x68] sm:$0xff]
      %v1885 = vld [vmem:[%s1874 + $0x78] sm:$0xff]
      %v1886 = vld [vmem:[%s1874 + $0x80] sm:$0xff]
      %v1887 = vld [vmem:[%s1874 + $0x90] sm:$0xff]
      %v1888 = vld [vmem:[%s1874 + $0x98] sm:$0xff]
      %v1889 = vld [vmem:[%s1874 + $0xa8] sm:$0xff]
      %v1890 = vld [vmem:[%s1874 + $0xb0] sm:$0xff]
      %v1891 = vld [vmem:[%s1874 + $0xc0] sm:$0xff]
      %v1892 = vld [vmem:[%s1874 + $0xc8] sm:$0xff]
      %v1893 = vld [vmem:[%s1874 + $0xd8] sm:$0xff]
      %v1894 = vld [vmem:[%s1874 + $0xe0] sm:$0xff]
      %v1895 = vld [vmem:[%s1874 + $0xf0] sm:$0xff]
      %v1896 = vld [vmem:[%s1874 + $0xf8] sm:$0xff]
      %v1897 = vld [vmem:[%s1874 + $0x108] sm:$0xff]
      %v1898 = vld [vmem:[%s1874 + $0x110] sm:$0xff]
      %v1899 = vld [vmem:[%s1874 + $0x120] sm:$0xff]
      %v1900 = vld [vmem:[%s1874 + $0x128] sm:$0xff]
      %v1901 = vld [vmem:[%s1874 + $0x138] sm:$0xff]
      %v1902 = vld [vmem:[%s1874 + $0x140] sm:$0xff]
      %v1903 = vld [vmem:[%s1874 + $0x150] sm:$0xff]
      %v1904 = vld [vmem:[%s1874 + $0x158] sm:$0xff]
      %v1905 = vld [vmem:[%s1874 + $0x168] sm:$0xff]
      %v1906 = vld [vmem:[%s1874 + $0x170] sm:$0xff]
      %v1907 = vpack.c.bf16 %v1876, %v1875
      %v1908 = vpack.c.bf16 %v1878, %v1877
      %v1909 = vpack.c.bf16 %v1880, %v1879
      %v1910 = vpack.c.bf16 %v1882, %v1881
      %v1911 = vpack.c.bf16 %v1884, %v1883
      %v1912 = vpack.c.bf16 %v1886, %v1885
      %v1913 = vpack.c.bf16 %v1888, %v1887
      %v1914 = vpack.c.bf16 %v1890, %v1889
      %v1915 = vpack.c.bf16 %v1892, %v1891
      %v1916 = vpack.c.bf16 %v1894, %v1893
      %v1917 = vpack.c.bf16 %v1896, %v1895
      %v1918 = vpack.c.bf16 %v1898, %v1897
      %v1919 = vpack.c.bf16 %v1900, %v1899
      %v1920 = vpack.c.bf16 %v1902, %v1901
      %v1921 = vpack.c.bf16 %v1904, %v1903
      %v1922 = vpack.c.bf16 %v1906, %v1905
      %s1923 = scalar_lea.vmem %s1, 12
      %v1924 = vld [vmem:[%s1923] sm:$0x3]
      %v1926 = vsel %vm271, %v1907, 0
      %v1929 = vsel %vm271, %v1908, 0
      %v1932 = vsel %vm271, %v1909, 0
      %v1935 = vsel %vm271, %v1910, 0
      %v1938 = vsel %vm271, %v1911, 0
      %v1941 = vsel %vm271, %v1912, 0
      %v1944 = vsel %vm271, %v1913, 0
      %v1947 = vsel %vm271, %v1914, 0
      %v1950 = vsel %vm271, %v1915, 0
      %v1953 = vsel %vm271, %v1916, 0
      %v1956 = vsel %vm271, %v1917, 0
      %v1959 = vsel %vm271, %v1918, 0
      %v1962 = vsel %vm271, %v1919, 0
      %v1965 = vsel %vm271, %v1920, 0
      %v1968 = vsel %vm271, %v1921, 0
      %v1971 = vsel %vm271, %v1922, 0
      %v1974 = vsel %vm320, %v1924, 0
      %1976 = vmatprep.subr.bf16.mxu0 0
      %1977 = vmatpush1.bf16.msra.mxu0 0
      %1978 = vmatprep.subr.bf16.mxu0 0
      %1979 = vmatpush1.bf16.msra.mxu0 0
      %1980 = vmatprep.subr.bf16.mxu0 0
      %1981 = vmatpush1.bf16.msra.mxu0 0
      %1982 = vmatprep.subr.bf16.mxu0 0
      %1983 = vmatpush1.bf16.msra.mxu0 0
      %1984 = vmatprep.subr.bf16.mxu0 0
      %1985 = vmatpush1.bf16.msra.mxu0 0
      %1986 = vmatprep.subr.bf16.mxu0 0
      %1987 = vmatpush1.bf16.msra.mxu0 0
      %1988 = vmatprep.subr.bf16.mxu0 0
      %1989 = vmatpush1.bf16.msra.mxu0 0
      %1990 = vmatprep.subr.bf16.mxu0 0
      %1991 = vmatpush1.bf16.msra.mxu0 %v1974
      %1992 = vmatprep.subr.bf16.mxu0 0
      %1993 = vmatpush2.bf16.msra.mxu0 0
      %1994 = vmatprep.subr.bf16.mxu0 0
      %1995 = vmatpush2.bf16.msra.mxu0 0
      %1996 = vmatprep.subr.bf16.mxu0 0
      %1997 = vmatpush2.bf16.msra.mxu0 0
      %1998 = vmatprep.subr.bf16.mxu0 0
      %1999 = vmatpush2.bf16.msra.mxu0 0
      %2000 = vmatprep.subr.bf16.mxu0 0
      %2001 = vmatpush2.bf16.msra.mxu0 0
      %2002 = vmatprep.subr.bf16.mxu0 0
      %2003 = vmatpush2.bf16.msra.mxu0 0
      %2004 = vmatprep.subr.bf16.mxu0 0
      %2005 = vmatpush2.bf16.msra.mxu0 0
      %2006 = vmatprep.subr.bf16.mxu0 0
      %2007 = vmatpush2.bf16.msra.mxu0 0
      %2008 = vmatprep.mubr.bf16.mxu0 0
      %2009 = vmatmul.mubr.bf16.gmra.mxu0 %v1926
      %v2010 = vpop.f32.mrf.mxu0
      %v2011 = vadd.f32 0.0, %v2010
      %v2012 = vpop.f32.mrf.mxu0
      %v2013 = vpop.f32.mrf.mxu0
      %v2014 = vadd.f32 0.0, %v2013
      %v2015 = vpop.f32.mrf.mxu0
      %2016 = vmatprep.mubr.bf16.mxu0 0
      %2017 = vmatmul.mubr.bf16.gmra.mxu0 %v1929
      %v2018 = vpop.f32.mrf.mxu0
      %v2019 = vadd.f32 0.0, %v2018
      %v2020 = vpop.f32.mrf.mxu0
      %v2021 = vpop.f32.mrf.mxu0
      %v2022 = vadd.f32 0.0, %v2021
      %v2023 = vpop.f32.mrf.mxu0
      %2024 = vmatprep.mubr.bf16.mxu0 0
      %2025 = vmatmul.mubr.bf16.gmra.mxu0 %v1932
      %v2026 = vpop.f32.mrf.mxu0
      %v2027 = vadd.f32 0.0, %v2026
      %v2028 = vpop.f32.mrf.mxu0
      %v2029 = vpop.f32.mrf.mxu0
      %v2030 = vadd.f32 0.0, %v2029
      %v2031 = vpop.f32.mrf.mxu0
      %2032 = vmatprep.mubr.bf16.mxu0 0
      %2033 = vmatmul.mubr.bf16.gmra.mxu0 %v1935
      %v2034 = vpop.f32.mrf.mxu0
      %v2035 = vadd.f32 0.0, %v2034
      %v2036 = vpop.f32.mrf.mxu0
      %v2037 = vpop.f32.mrf.mxu0
      %v2038 = vadd.f32 0.0, %v2037
      %v2039 = vpop.f32.mrf.mxu0
      %2040 = vmatprep.mubr.bf16.mxu0 0
      %2041 = vmatmul.mubr.bf16.gmra.mxu0 %v1938
      %v2042 = vpop.f32.mrf.mxu0
      %v2043 = vadd.f32 0.0, %v2042
      %v2044 = vpop.f32.mrf.mxu0
      %v2045 = vpop.f32.mrf.mxu0
      %v2046 = vadd.f32 0.0, %v2045
      %v2047 = vpop.f32.mrf.mxu0
      %2048 = vmatprep.mubr.bf16.mxu0 0
      %2049 = vmatmul.mubr.bf16.gmra.mxu0 %v1941
      %v2050 = vpop.f32.mrf.mxu0
      %v2051 = vadd.f32 0.0, %v2050
      %v2052 = vpop.f32.mrf.mxu0
      %v2053 = vpop.f32.mrf.mxu0
      %v2054 = vadd.f32 0.0, %v2053
      %v2055 = vpop.f32.mrf.mxu0
      %2056 = vmatprep.mubr.bf16.mxu0 0
      %2057 = vmatmul.mubr.bf16.gmra.mxu0 %v1944
      %v2058 = vpop.f32.mrf.mxu0
      %v2059 = vadd.f32 0.0, %v2058
      %v2060 = vpop.f32.mrf.mxu0
      %v2061 = vpop.f32.mrf.mxu0
      %v2062 = vadd.f32 0.0, %v2061
      %v2063 = vpop.f32.mrf.mxu0
      %2064 = vmatprep.mubr.bf16.mxu0 0
      %2065 = vmatmul.mubr.bf16.gmra.mxu0 %v1947
      %v2066 = vpop.f32.mrf.mxu0
      %v2067 = vadd.f32 0.0, %v2066
      %v2068 = vpop.f32.mrf.mxu0
      %v2069 = vpop.f32.mrf.mxu0
      %v2070 = vadd.f32 0.0, %v2069
      %v2071 = vpop.f32.mrf.mxu0
      %2072 = vmatprep.mubr.bf16.mxu0 0
      %2073 = vmatmul.mubr.bf16.gmra.mxu0 %v1950
      %v2074 = vpop.f32.mrf.mxu0
      %v2075 = vadd.f32 0.0, %v2074
      %v2076 = vpop.f32.mrf.mxu0
      %v2077 = vpop.f32.mrf.mxu0
      %v2078 = vadd.f32 0.0, %v2077
      %v2079 = vpop.f32.mrf.mxu0
      %2080 = vmatprep.mubr.bf16.mxu0 0
      %2081 = vmatmul.mubr.bf16.gmra.mxu0 %v1953
      %v2082 = vpop.f32.mrf.mxu0
      %v2083 = vadd.f32 0.0, %v2082
      %v2084 = vpop.f32.mrf.mxu0
      %v2085 = vpop.f32.mrf.mxu0
      %v2086 = vadd.f32 0.0, %v2085
      %v2087 = vpop.f32.mrf.mxu0
      %2088 = vmatprep.mubr.bf16.mxu0 0
      %2089 = vmatmul.mubr.bf16.gmra.mxu0 %v1956
      %v2090 = vpop.f32.mrf.mxu0
      %v2091 = vadd.f32 0.0, %v2090
      %v2092 = vpop.f32.mrf.mxu0
      %v2093 = vpop.f32.mrf.mxu0
      %v2094 = vadd.f32 0.0, %v2093
      %v2095 = vpop.f32.mrf.mxu0
      %2096 = vmatprep.mubr.bf16.mxu0 0
      %2097 = vmatmul.mubr.bf16.gmra.mxu0 %v1959
      %v2098 = vpop.f32.mrf.mxu0
      %v2099 = vadd.f32 0.0, %v2098
      %v2100 = vpop.f32.mrf.mxu0
      %v2101 = vpop.f32.mrf.mxu0
      %v2102 = vadd.f32 0.0, %v2101
      %v2103 = vpop.f32.mrf.mxu0
      %2104 = vmatprep.mubr.bf16.mxu0 0
      %2105 = vmatmul.mubr.bf16.gmra.mxu0 %v1962
      %v2106 = vpop.f32.mrf.mxu0
      %v2107 = vadd.f32 0.0, %v2106
      %v2108 = vpop.f32.mrf.mxu0
      %v2109 = vpop.f32.mrf.mxu0
      %v2110 = vadd.f32 0.0, %v2109
      %v2111 = vpop.f32.mrf.mxu0
      %2112 = vmatprep.mubr.bf16.mxu0 0
      %2113 = vmatmul.mubr.bf16.gmra.mxu0 %v1965
      %v2114 = vpop.f32.mrf.mxu0
      %v2115 = vadd.f32 0.0, %v2114
      %v2116 = vpop.f32.mrf.mxu0
      %v2117 = vpop.f32.mrf.mxu0
      %v2118 = vadd.f32 0.0, %v2117
      %v2119 = vpop.f32.mrf.mxu0
      %2120 = vmatprep.mubr.bf16.mxu0 0
      %2121 = vmatmul.mubr.bf16.gmra.mxu0 %v1968
      %v2122 = vpop.f32.mrf.mxu0
      %v2123 = vadd.f32 0.0, %v2122
      %v2124 = vpop.f32.mrf.mxu0
      %v2125 = vpop.f32.mrf.mxu0
      %v2126 = vadd.f32 0.0, %v2125
      %v2127 = vpop.f32.mrf.mxu0
      %2128 = vmatprep.mubr.bf16.mxu0 0
      %2129 = vmatmul.mubr.bf16.gmra.mxu0 %v1971
      %v2130 = vpop.f32.mrf.mxu0
      %v2131 = vadd.f32 0.0, %v2130
      %v2132 = vpop.f32.mrf.mxu0
      %v2133 = vpop.f32.mrf.mxu0
      %v2134 = vadd.f32 0.0, %v2133
      %v2135 = vpop.f32.mrf.mxu0
      %2136 = vdwg.mxu0
      %v2137 = vadd.f32 %v1842, %v2011
      %v2138 = vadd.f32 %v1843, %v2014
      %v2139 = vadd.f32 %v1844, %v2019
      %v2140 = vadd.f32 %v1845, %v2022
      %v2141 = vadd.f32 %v1846, %v2027
      %v2142 = vadd.f32 %v1847, %v2030
      %v2143 = vadd.f32 %v1848, %v2035
      %v2144 = vadd.f32 %v1849, %v2038
      %v2145 = vadd.f32 %v1850, %v2043
      %v2146 = vadd.f32 %v1851, %v2046
      %v2147 = vadd.f32 %v1852, %v2051
      %v2148 = vadd.f32 %v1853, %v2054
      %v2149 = vadd.f32 %v1854, %v2059
      %v2150 = vadd.f32 %v1855, %v2062
      %v2151 = vadd.f32 %v1856, %v2067
      %v2152 = vadd.f32 %v1857, %v2070
      %v2153 = vadd.f32 %v1858, %v2075
      %v2154 = vadd.f32 %v1859, %v2078
      %v2155 = vadd.f32 %v1860, %v2083
      %v2156 = vadd.f32 %v1861, %v2086
      %v2157 = vadd.f32 %v1862, %v2091
      %v2158 = vadd.f32 %v1863, %v2094
      %v2159 = vadd.f32 %v1864, %v2099
      %v2160 = vadd.f32 %v1865, %v2102
      %v2161 = vadd.f32 %v1866, %v2107
      %v2162 = vadd.f32 %v1867, %v2110
      %v2163 = vadd.f32 %v1868, %v2115
      %v2164 = vadd.f32 %v1869, %v2118
      %v2165 = vadd.f32 %v1870, %v2123
      %v2166 = vadd.f32 %v1871, %v2126
      %v2167 = vadd.f32 %v1872, %v2131
      %v2168 = vadd.f32 %v1873, %v2134
      %v2169 = vld [vmem:[%s1874 + $0x1] sm:$0xff]
      %v2170 = vld [vmem:[%s1874 + $0x9] sm:$0xff]
      %v2171 = vld [vmem:[%s1874 + $0x19] sm:$0xff]
      %v2172 = vld [vmem:[%s1874 + $0x21] sm:$0xff]
      %v2173 = vld [vmem:[%s1874 + $0x31] sm:$0xff]
      %v2174 = vld [vmem:[%s1874 + $0x39] sm:$0xff]
      %v2175 = vld [vmem:[%s1874 + $0x49] sm:$0xff]
      %v2176 = vld [vmem:[%s1874 + $0x51] sm:$0xff]
      %v2177 = vld [vmem:[%s1874 + $0x61] sm:$0xff]
      %v2178 = vld [vmem:[%s1874 + $0x69] sm:$0xff]
      %v2179 = vld [vmem:[%s1874 + $0x79] sm:$0xff]
      %v2180 = vld [vmem:[%s1874 + $0x81] sm:$0xff]
      %v2181 = vld [vmem:[%s1874 + $0x91] sm:$0xff]
      %v2182 = vld [vmem:[%s1874 + $0x99] sm:$0xff]
      %v2183 = vld [vmem:[%s1874 + $0xa9] sm:$0xff]
      %v2184 = vld [vmem:[%s1874 + $0xb1] sm:$0xff]
      %v2185 = vld [vmem:[%s1874 + $0xc1] sm:$0xff]
      %v2186 = vld [vmem:[%s1874 + $0xc9] sm:$0xff]
      %v2187 = vld [vmem:[%s1874 + $0xd9] sm:$0xff]
      %v2188 = vld [vmem:[%s1874 + $0xe1] sm:$0xff]
      %v2189 = vld [vmem:[%s1874 + $0xf1] sm:$0xff]
      %v2190 = vld [vmem:[%s1874 + $0xf9] sm:$0xff]
      %v2191 = vld [vmem:[%s1874 + $0x109] sm:$0xff]
      %v2192 = vld [vmem:[%s1874 + $0x111] sm:$0xff]
      %v2193 = vld [vmem:[%s1874 + $0x121] sm:$0xff]
      %v2194 = vld [vmem:[%s1874 + $0x129] sm:$0xff]
      %v2195 = vld [vmem:[%s1874 + $0x139] sm:$0xff]
      %v2196 = vld [vmem:[%s1874 + $0x141] sm:$0xff]
      %v2197 = vld [vmem:[%s1874 + $0x151] sm:$0xff]
      %v2198 = vld [vmem:[%s1874 + $0x159] sm:$0xff]
      %v2199 = vld [vmem:[%s1874 + $0x169] sm:$0xff]
      %v2200 = vld [vmem:[%s1874 + $0x171] sm:$0xff]
      %v2201 = vpack.c.bf16 %v2170, %v2169
      %v2202 = vpack.c.bf16 %v2172, %v2171
      %v2203 = vpack.c.bf16 %v2174, %v2173
      %v2204 = vpack.c.bf16 %v2176, %v2175
      %v2205 = vpack.c.bf16 %v2178, %v2177
      %v2206 = vpack.c.bf16 %v2180, %v2179
      %v2207 = vpack.c.bf16 %v2182, %v2181
      %v2208 = vpack.c.bf16 %v2184, %v2183
      %v2209 = vpack.c.bf16 %v2186, %v2185
      %v2210 = vpack.c.bf16 %v2188, %v2187
      %v2211 = vpack.c.bf16 %v2190, %v2189
      %v2212 = vpack.c.bf16 %v2192, %v2191
      %v2213 = vpack.c.bf16 %v2194, %v2193
      %v2214 = vpack.c.bf16 %v2196, %v2195
      %v2215 = vpack.c.bf16 %v2198, %v2197
      %v2216 = vpack.c.bf16 %v2200, %v2199
      %s2217 = scalar_lea.vmem %s1, 14
      %v2218 = vld [vmem:[%s2217] sm:$0x3]
      %v2220 = vsel %vm271, %v2201, 0
      %v2223 = vsel %vm271, %v2202, 0
      %v2226 = vsel %vm271, %v2203, 0
      %v2229 = vsel %vm271, %v2204, 0
      %v2232 = vsel %vm271, %v2205, 0
      %v2235 = vsel %vm271, %v2206, 0
      %v2238 = vsel %vm271, %v2207, 0
      %v2241 = vsel %vm271, %v2208, 0
      %v2244 = vsel %vm271, %v2209, 0
      %v2247 = vsel %vm271, %v2210, 0
      %v2250 = vsel %vm271, %v2211, 0
      %v2253 = vsel %vm271, %v2212, 0
      %v2256 = vsel %vm271, %v2213, 0
      %v2259 = vsel %vm271, %v2214, 0
      %v2262 = vsel %vm271, %v2215, 0
      %v2265 = vsel %vm271, %v2216, 0
      %v2268 = vsel %vm320, %v2218, 0
      %2270 = vmatprep.subr.bf16.mxu0 0
      %2271 = vmatpush1.bf16.msra.mxu0 0
      %2272 = vmatprep.subr.bf16.mxu0 0
      %2273 = vmatpush1.bf16.msra.mxu0 0
      %2274 = vmatprep.subr.bf16.mxu0 0
      %2275 = vmatpush1.bf16.msra.mxu0 0
      %2276 = vmatprep.subr.bf16.mxu0 0
      %2277 = vmatpush1.bf16.msra.mxu0 0
      %2278 = vmatprep.subr.bf16.mxu0 0
      %2279 = vmatpush1.bf16.msra.mxu0 0
      %2280 = vmatprep.subr.bf16.mxu0 0
      %2281 = vmatpush1.bf16.msra.mxu0 0
      %2282 = vmatprep.subr.bf16.mxu0 0
      %2283 = vmatpush1.bf16.msra.mxu0 0
      %2284 = vmatprep.subr.bf16.mxu0 0
      %2285 = vmatpush1.bf16.msra.mxu0 %v2268
      %2286 = vmatprep.subr.bf16.mxu0 0
      %2287 = vmatpush2.bf16.msra.mxu0 0
      %2288 = vmatprep.subr.bf16.mxu0 0
      %2289 = vmatpush2.bf16.msra.mxu0 0
      %2290 = vmatprep.subr.bf16.mxu0 0
      %2291 = vmatpush2.bf16.msra.mxu0 0
      %2292 = vmatprep.subr.bf16.mxu0 0
      %2293 = vmatpush2.bf16.msra.mxu0 0
      %2294 = vmatprep.subr.bf16.mxu0 0
      %2295 = vmatpush2.bf16.msra.mxu0 0
      %2296 = vmatprep.subr.bf16.mxu0 0
      %2297 = vmatpush2.bf16.msra.mxu0 0
      %2298 = vmatprep.subr.bf16.mxu0 0
      %2299 = vmatpush2.bf16.msra.mxu0 0
      %2300 = vmatprep.subr.bf16.mxu0 0
      %2301 = vmatpush2.bf16.msra.mxu0 0
      %2302 = vmatprep.mubr.bf16.mxu0 0
      %2303 = vmatmul.mubr.bf16.gmra.mxu0 %v2220
      %v2304 = vpop.f32.mrf.mxu0
      %v2305 = vadd.f32 0.0, %v2304
      %v2306 = vpop.f32.mrf.mxu0
      %v2307 = vpop.f32.mrf.mxu0
      %v2308 = vadd.f32 0.0, %v2307
      %v2309 = vpop.f32.mrf.mxu0
      %2310 = vmatprep.mubr.bf16.mxu0 0
      %2311 = vmatmul.mubr.bf16.gmra.mxu0 %v2223
      %v2312 = vpop.f32.mrf.mxu0
      %v2313 = vadd.f32 0.0, %v2312
      %v2314 = vpop.f32.mrf.mxu0
      %v2315 = vpop.f32.mrf.mxu0
      %v2316 = vadd.f32 0.0, %v2315
      %v2317 = vpop.f32.mrf.mxu0
      %2318 = vmatprep.mubr.bf16.mxu0 0
      %2319 = vmatmul.mubr.bf16.gmra.mxu0 %v2226
      %v2320 = vpop.f32.mrf.mxu0
      %v2321 = vadd.f32 0.0, %v2320
      %v2322 = vpop.f32.mrf.mxu0
      %v2323 = vpop.f32.mrf.mxu0
      %v2324 = vadd.f32 0.0, %v2323
      %v2325 = vpop.f32.mrf.mxu0
      %2326 = vmatprep.mubr.bf16.mxu0 0
      %2327 = vmatmul.mubr.bf16.gmra.mxu0 %v2229
      %v2328 = vpop.f32.mrf.mxu0
      %v2329 = vadd.f32 0.0, %v2328
      %v2330 = vpop.f32.mrf.mxu0
      %v2331 = vpop.f32.mrf.mxu0
      %v2332 = vadd.f32 0.0, %v2331
      %v2333 = vpop.f32.mrf.mxu0
      %2334 = vmatprep.mubr.bf16.mxu0 0
      %2335 = vmatmul.mubr.bf16.gmra.mxu0 %v2232
      %v2336 = vpop.f32.mrf.mxu0
      %v2337 = vadd.f32 0.0, %v2336
      %v2338 = vpop.f32.mrf.mxu0
      %v2339 = vpop.f32.mrf.mxu0
      %v2340 = vadd.f32 0.0, %v2339
      %v2341 = vpop.f32.mrf.mxu0
      %2342 = vmatprep.mubr.bf16.mxu0 0
      %2343 = vmatmul.mubr.bf16.gmra.mxu0 %v2235
      %v2344 = vpop.f32.mrf.mxu0
      %v2345 = vadd.f32 0.0, %v2344
      %v2346 = vpop.f32.mrf.mxu0
      %v2347 = vpop.f32.mrf.mxu0
      %v2348 = vadd.f32 0.0, %v2347
      %v2349 = vpop.f32.mrf.mxu0
      %2350 = vmatprep.mubr.bf16.mxu0 0
      %2351 = vmatmul.mubr.bf16.gmra.mxu0 %v2238
      %v2352 = vpop.f32.mrf.mxu0
      %v2353 = vadd.f32 0.0, %v2352
      %v2354 = vpop.f32.mrf.mxu0
      %v2355 = vpop.f32.mrf.mxu0
      %v2356 = vadd.f32 0.0, %v2355
      %v2357 = vpop.f32.mrf.mxu0
      %2358 = vmatprep.mubr.bf16.mxu0 0
      %2359 = vmatmul.mubr.bf16.gmra.mxu0 %v2241
      %v2360 = vpop.f32.mrf.mxu0
      %v2361 = vadd.f32 0.0, %v2360
      %v2362 = vpop.f32.mrf.mxu0
      %v2363 = vpop.f32.mrf.mxu0
      %v2364 = vadd.f32 0.0, %v2363
      %v2365 = vpop.f32.mrf.mxu0
      %2366 = vmatprep.mubr.bf16.mxu0 0
      %2367 = vmatmul.mubr.bf16.gmra.mxu0 %v2244
      %v2368 = vpop.f32.mrf.mxu0
      %v2369 = vadd.f32 0.0, %v2368
      %v2370 = vpop.f32.mrf.mxu0
      %v2371 = vpop.f32.mrf.mxu0
      %v2372 = vadd.f32 0.0, %v2371
      %v2373 = vpop.f32.mrf.mxu0
      %2374 = vmatprep.mubr.bf16.mxu0 0
      %2375 = vmatmul.mubr.bf16.gmra.mxu0 %v2247
      %v2376 = vpop.f32.mrf.mxu0
      %v2377 = vadd.f32 0.0, %v2376
      %v2378 = vpop.f32.mrf.mxu0
      %v2379 = vpop.f32.mrf.mxu0
      %v2380 = vadd.f32 0.0, %v2379
      %v2381 = vpop.f32.mrf.mxu0
      %2382 = vmatprep.mubr.bf16.mxu0 0
      %2383 = vmatmul.mubr.bf16.gmra.mxu0 %v2250
      %v2384 = vpop.f32.mrf.mxu0
      %v2385 = vadd.f32 0.0, %v2384
      %v2386 = vpop.f32.mrf.mxu0
      %v2387 = vpop.f32.mrf.mxu0
      %v2388 = vadd.f32 0.0, %v2387
      %v2389 = vpop.f32.mrf.mxu0
      %2390 = vmatprep.mubr.bf16.mxu0 0
      %2391 = vmatmul.mubr.bf16.gmra.mxu0 %v2253
      %v2392 = vpop.f32.mrf.mxu0
      %v2393 = vadd.f32 0.0, %v2392
      %v2394 = vpop.f32.mrf.mxu0
      %v2395 = vpop.f32.mrf.mxu0
      %v2396 = vadd.f32 0.0, %v2395
      %v2397 = vpop.f32.mrf.mxu0
      %2398 = vmatprep.mubr.bf16.mxu0 0
      %2399 = vmatmul.mubr.bf16.gmra.mxu0 %v2256
      %v2400 = vpop.f32.mrf.mxu0
      %v2401 = vadd.f32 0.0, %v2400
      %v2402 = vpop.f32.mrf.mxu0
      %v2403 = vpop.f32.mrf.mxu0
      %v2404 = vadd.f32 0.0, %v2403
      %v2405 = vpop.f32.mrf.mxu0
      %2406 = vmatprep.mubr.bf16.mxu0 0
      %2407 = vmatmul.mubr.bf16.gmra.mxu0 %v2259
      %v2408 = vpop.f32.mrf.mxu0
      %v2409 = vadd.f32 0.0, %v2408
      %v2410 = vpop.f32.mrf.mxu0
      %v2411 = vpop.f32.mrf.mxu0
      %v2412 = vadd.f32 0.0, %v2411
      %v2413 = vpop.f32.mrf.mxu0
      %2414 = vmatprep.mubr.bf16.mxu0 0
      %2415 = vmatmul.mubr.bf16.gmra.mxu0 %v2262
      %v2416 = vpop.f32.mrf.mxu0
      %v2417 = vadd.f32 0.0, %v2416
      %v2418 = vpop.f32.mrf.mxu0
      %v2419 = vpop.f32.mrf.mxu0
      %v2420 = vadd.f32 0.0, %v2419
      %v2421 = vpop.f32.mrf.mxu0
      %2422 = vmatprep.mubr.bf16.mxu0 0
      %2423 = vmatmul.mubr.bf16.gmra.mxu0 %v2265
      %v2424 = vpop.f32.mrf.mxu0
      %v2425 = vadd.f32 0.0, %v2424
      %v2426 = vpop.f32.mrf.mxu0
      %v2427 = vpop.f32.mrf.mxu0
      %v2428 = vadd.f32 0.0, %v2427
      %v2429 = vpop.f32.mrf.mxu0
      %2430 = vdwg.mxu0
      %v2431 = vadd.f32 %v2137, %v2305
      %v2432 = vadd.f32 %v2138, %v2308
      %v2433 = vadd.f32 %v2139, %v2313
      %v2434 = vadd.f32 %v2140, %v2316
      %v2435 = vadd.f32 %v2141, %v2321
      %v2436 = vadd.f32 %v2142, %v2324
      %v2437 = vadd.f32 %v2143, %v2329
      %v2438 = vadd.f32 %v2144, %v2332
      %v2439 = vadd.f32 %v2145, %v2337
      %v2440 = vadd.f32 %v2146, %v2340
      %v2441 = vadd.f32 %v2147, %v2345
      %v2442 = vadd.f32 %v2148, %v2348
      %v2443 = vadd.f32 %v2149, %v2353
      %v2444 = vadd.f32 %v2150, %v2356
      %v2445 = vadd.f32 %v2151, %v2361
      %v2446 = vadd.f32 %v2152, %v2364
      %v2447 = vadd.f32 %v2153, %v2369
      %v2448 = vadd.f32 %v2154, %v2372
      %v2449 = vadd.f32 %v2155, %v2377
      %v2450 = vadd.f32 %v2156, %v2380
      %v2451 = vadd.f32 %v2157, %v2385
      %v2452 = vadd.f32 %v2158, %v2388
      %v2453 = vadd.f32 %v2159, %v2393
      %v2454 = vadd.f32 %v2160, %v2396
      %v2455 = vadd.f32 %v2161, %v2401
      %v2456 = vadd.f32 %v2162, %v2404
      %v2457 = vadd.f32 %v2163, %v2409
      %v2458 = vadd.f32 %v2164, %v2412
      %v2459 = vadd.f32 %v2165, %v2417
      %v2460 = vadd.f32 %v2166, %v2420
      %v2461 = vadd.f32 %v2167, %v2425
      %v2462 = vadd.f32 %v2168, %v2428
      %v2463 = vld [vmem:[%s1874 + $0x2] sm:$0xff]
      %v2464 = vld [vmem:[%s1874 + $0xa] sm:$0xff]
      %v2465 = vld [vmem:[%s1874 + $0x1a] sm:$0xff]
      %v2466 = vld [vmem:[%s1874 + $0x22] sm:$0xff]
      %v2467 = vld [vmem:[%s1874 + $0x32] sm:$0xff]
      %v2468 = vld [vmem:[%s1874 + $0x3a] sm:$0xff]
      %v2469 = vld [vmem:[%s1874 + $0x4a] sm:$0xff]
      %v2470 = vld [vmem:[%s1874 + $0x52] sm:$0xff]
      %v2471 = vld [vmem:[%s1874 + $0x62] sm:$0xff]
      %v2472 = vld [vmem:[%s1874 + $0x6a] sm:$0xff]
      %v2473 = vld [vmem:[%s1874 + $0x7a] sm:$0xff]
      %v2474 = vld [vmem:[%s1874 + $0x82] sm:$0xff]
      %v2475 = vld [vmem:[%s1874 + $0x92] sm:$0xff]
      %v2476 = vld [vmem:[%s1874 + $0x9a] sm:$0xff]
      %v2477 = vld [vmem:[%s1874 + $0xaa] sm:$0xff]
      %v2478 = vld [vmem:[%s1874 + $0xb2] sm:$0xff]
      %v2479 = vld [vmem:[%s1874 + $0xc2] sm:$0xff]
      %v2480 = vld [vmem:[%s1874 + $0xca] sm:$0xff]
      %v2481 = vld [vmem:[%s1874 + $0xda] sm:$0xff]
      %v2482 = vld [vmem:[%s1874 + $0xe2] sm:$0xff]
      %v2483 = vld [vmem:[%s1874 + $0xf2] sm:$0xff]
      %v2484 = vld [vmem:[%s1874 + $0xfa] sm:$0xff]
      %v2485 = vld [vmem:[%s1874 + $0x10a] sm:$0xff]
      %v2486 = vld [vmem:[%s1874 + $0x112] sm:$0xff]
      %v2487 = vld [vmem:[%s1874 + $0x122] sm:$0xff]
      %v2488 = vld [vmem:[%s1874 + $0x12a] sm:$0xff]
      %v2489 = vld [vmem:[%s1874 + $0x13a] sm:$0xff]
      %v2490 = vld [vmem:[%s1874 + $0x142] sm:$0xff]
      %v2491 = vld [vmem:[%s1874 + $0x152] sm:$0xff]
      %v2492 = vld [vmem:[%s1874 + $0x15a] sm:$0xff]
      %v2493 = vld [vmem:[%s1874 + $0x16a] sm:$0xff]
      %v2494 = vld [vmem:[%s1874 + $0x172] sm:$0xff]
      %v2495 = vpack.c.bf16 %v2464, %v2463
      %v2496 = vpack.c.bf16 %v2466, %v2465
      %v2497 = vpack.c.bf16 %v2468, %v2467
      %v2498 = vpack.c.bf16 %v2470, %v2469
      %v2499 = vpack.c.bf16 %v2472, %v2471
      %v2500 = vpack.c.bf16 %v2474, %v2473
      %v2501 = vpack.c.bf16 %v2476, %v2475
      %v2502 = vpack.c.bf16 %v2478, %v2477
      %v2503 = vpack.c.bf16 %v2480, %v2479
      %v2504 = vpack.c.bf16 %v2482, %v2481
      %v2505 = vpack.c.bf16 %v2484, %v2483
      %v2506 = vpack.c.bf16 %v2486, %v2485
      %v2507 = vpack.c.bf16 %v2488, %v2487
      %v2508 = vpack.c.bf16 %v2490, %v2489
      %v2509 = vpack.c.bf16 %v2492, %v2491
      %v2510 = vpack.c.bf16 %v2494, %v2493
      %s2511 = scalar_lea.vmem %s1, 16
      %v2512 = vld [vmem:[%s2511] sm:$0x3]
      %v2514 = vsel %vm271, %v2495, 0
      %v2517 = vsel %vm271, %v2496, 0
      %v2520 = vsel %vm271, %v2497, 0
      %v2523 = vsel %vm271, %v2498, 0
      %v2526 = vsel %vm271, %v2499, 0
      %v2529 = vsel %vm271, %v2500, 0
      %v2532 = vsel %vm271, %v2501, 0
      %v2535 = vsel %vm271, %v2502, 0
      %v2538 = vsel %vm271, %v2503, 0
      %v2541 = vsel %vm271, %v2504, 0
      %v2544 = vsel %vm271, %v2505, 0
      %v2547 = vsel %vm271, %v2506, 0
      %v2550 = vsel %vm271, %v2507, 0
      %v2553 = vsel %vm271, %v2508, 0
      %v2556 = vsel %vm271, %v2509, 0
      %v2559 = vsel %vm271, %v2510, 0
      %v2562 = vsel %vm320, %v2512, 0
      %2564 = vmatprep.subr.bf16.mxu0 0
      %2565 = vmatpush1.bf16.msra.mxu0 0
      %2566 = vmatprep.subr.bf16.mxu0 0
      %2567 = vmatpush1.bf16.msra.mxu0 0
      %2568 = vmatprep.subr.bf16.mxu0 0
      %2569 = vmatpush1.bf16.msra.mxu0 0
      %2570 = vmatprep.subr.bf16.mxu0 0
      %2571 = vmatpush1.bf16.msra.mxu0 0
      %2572 = vmatprep.subr.bf16.mxu0 0
      %2573 = vmatpush1.bf16.msra.mxu0 0
      %2574 = vmatprep.subr.bf16.mxu0 0
      %2575 = vmatpush1.bf16.msra.mxu0 0
      %2576 = vmatprep.subr.bf16.mxu0 0
      %2577 = vmatpush1.bf16.msra.mxu0 0
      %2578 = vmatprep.subr.bf16.mxu0 0
      %2579 = vmatpush1.bf16.msra.mxu0 %v2562
      %2580 = vmatprep.subr.bf16.mxu0 0
      %2581 = vmatpush2.bf16.msra.mxu0 0
      %2582 = vmatprep.subr.bf16.mxu0 0
      %2583 = vmatpush2.bf16.msra.mxu0 0
      %2584 = vmatprep.subr.bf16.mxu0 0
      %2585 = vmatpush2.bf16.msra.mxu0 0
      %2586 = vmatprep.subr.bf16.mxu0 0
      %2587 = vmatpush2.bf16.msra.mxu0 0
      %2588 = vmatprep.subr.bf16.mxu0 0
      %2589 = vmatpush2.bf16.msra.mxu0 0
      %2590 = vmatprep.subr.bf16.mxu0 0
      %2591 = vmatpush2.bf16.msra.mxu0 0
      %2592 = vmatprep.subr.bf16.mxu0 0
      %2593 = vmatpush2.bf16.msra.mxu0 0
      %2594 = vmatprep.subr.bf16.mxu0 0
      %2595 = vmatpush2.bf16.msra.mxu0 0
      %2596 = vmatprep.mubr.bf16.mxu0 0
      %2597 = vmatmul.mubr.bf16.gmra.mxu0 %v2514
      %v2598 = vpop.f32.mrf.mxu0
      %v2599 = vadd.f32 0.0, %v2598
      %v2600 = vpop.f32.mrf.mxu0
      %v2601 = vpop.f32.mrf.mxu0
      %v2602 = vadd.f32 0.0, %v2601
      %v2603 = vpop.f32.mrf.mxu0
      %2604 = vmatprep.mubr.bf16.mxu0 0
      %2605 = vmatmul.mubr.bf16.gmra.mxu0 %v2517
      %v2606 = vpop.f32.mrf.mxu0
      %v2607 = vadd.f32 0.0, %v2606
      %v2608 = vpop.f32.mrf.mxu0
      %v2609 = vpop.f32.mrf.mxu0
      %v2610 = vadd.f32 0.0, %v2609
      %v2611 = vpop.f32.mrf.mxu0
      %2612 = vmatprep.mubr.bf16.mxu0 0
      %2613 = vmatmul.mubr.bf16.gmra.mxu0 %v2520
      %v2614 = vpop.f32.mrf.mxu0
      %v2615 = vadd.f32 0.0, %v2614
      %v2616 = vpop.f32.mrf.mxu0
      %v2617 = vpop.f32.mrf.mxu0
      %v2618 = vadd.f32 0.0, %v2617
      %v2619 = vpop.f32.mrf.mxu0
      %2620 = vmatprep.mubr.bf16.mxu0 0
      %2621 = vmatmul.mubr.bf16.gmra.mxu0 %v2523
      %v2622 = vpop.f32.mrf.mxu0
      %v2623 = vadd.f32 0.0, %v2622
      %v2624 = vpop.f32.mrf.mxu0
      %v2625 = vpop.f32.mrf.mxu0
      %v2626 = vadd.f32 0.0, %v2625
      %v2627 = vpop.f32.mrf.mxu0
      %2628 = vmatprep.mubr.bf16.mxu0 0
      %2629 = vmatmul.mubr.bf16.gmra.mxu0 %v2526
      %v2630 = vpop.f32.mrf.mxu0
      %v2631 = vadd.f32 0.0, %v2630
      %v2632 = vpop.f32.mrf.mxu0
      %v2633 = vpop.f32.mrf.mxu0
      %v2634 = vadd.f32 0.0, %v2633
      %v2635 = vpop.f32.mrf.mxu0
      %2636 = vmatprep.mubr.bf16.mxu0 0
      %2637 = vmatmul.mubr.bf16.gmra.mxu0 %v2529
      %v2638 = vpop.f32.mrf.mxu0
      %v2639 = vadd.f32 0.0, %v2638
      %v2640 = vpop.f32.mrf.mxu0
      %v2641 = vpop.f32.mrf.mxu0
      %v2642 = vadd.f32 0.0, %v2641
      %v2643 = vpop.f32.mrf.mxu0
      %2644 = vmatprep.mubr.bf16.mxu0 0
      %2645 = vmatmul.mubr.bf16.gmra.mxu0 %v2532
      %v2646 = vpop.f32.mrf.mxu0
      %v2647 = vadd.f32 0.0, %v2646
      %v2648 = vpop.f32.mrf.mxu0
      %v2649 = vpop.f32.mrf.mxu0
      %v2650 = vadd.f32 0.0, %v2649
      %v2651 = vpop.f32.mrf.mxu0
      %2652 = vmatprep.mubr.bf16.mxu0 0
      %2653 = vmatmul.mubr.bf16.gmra.mxu0 %v2535
      %v2654 = vpop.f32.mrf.mxu0
      %v2655 = vadd.f32 0.0, %v2654
      %v2656 = vpop.f32.mrf.mxu0
      %v2657 = vpop.f32.mrf.mxu0
      %v2658 = vadd.f32 0.0, %v2657
      %v2659 = vpop.f32.mrf.mxu0
      %2660 = vmatprep.mubr.bf16.mxu0 0
      %2661 = vmatmul.mubr.bf16.gmra.mxu0 %v2538
      %v2662 = vpop.f32.mrf.mxu0
      %v2663 = vadd.f32 0.0, %v2662
      %v2664 = vpop.f32.mrf.mxu0
      %v2665 = vpop.f32.mrf.mxu0
      %v2666 = vadd.f32 0.0, %v2665
      %v2667 = vpop.f32.mrf.mxu0
      %2668 = vmatprep.mubr.bf16.mxu0 0
      %2669 = vmatmul.mubr.bf16.gmra.mxu0 %v2541
      %v2670 = vpop.f32.mrf.mxu0
      %v2671 = vadd.f32 0.0, %v2670
      %v2672 = vpop.f32.mrf.mxu0
      %v2673 = vpop.f32.mrf.mxu0
      %v2674 = vadd.f32 0.0, %v2673
      %v2675 = vpop.f32.mrf.mxu0
      %2676 = vmatprep.mubr.bf16.mxu0 0
      %2677 = vmatmul.mubr.bf16.gmra.mxu0 %v2544
      %v2678 = vpop.f32.mrf.mxu0
      %v2679 = vadd.f32 0.0, %v2678
      %v2680 = vpop.f32.mrf.mxu0
      %v2681 = vpop.f32.mrf.mxu0
      %v2682 = vadd.f32 0.0, %v2681
      %v2683 = vpop.f32.mrf.mxu0
      %2684 = vmatprep.mubr.bf16.mxu0 0
      %2685 = vmatmul.mubr.bf16.gmra.mxu0 %v2547
      %v2686 = vpop.f32.mrf.mxu0
      %v2687 = vadd.f32 0.0, %v2686
      %v2688 = vpop.f32.mrf.mxu0
      %v2689 = vpop.f32.mrf.mxu0
      %v2690 = vadd.f32 0.0, %v2689
      %v2691 = vpop.f32.mrf.mxu0
      %2692 = vmatprep.mubr.bf16.mxu0 0
      %2693 = vmatmul.mubr.bf16.gmra.mxu0 %v2550
      %v2694 = vpop.f32.mrf.mxu0
      %v2695 = vadd.f32 0.0, %v2694
      %v2696 = vpop.f32.mrf.mxu0
      %v2697 = vpop.f32.mrf.mxu0
      %v2698 = vadd.f32 0.0, %v2697
      %v2699 = vpop.f32.mrf.mxu0
      %2700 = vmatprep.mubr.bf16.mxu0 0
      %2701 = vmatmul.mubr.bf16.gmra.mxu0 %v2553
      %v2702 = vpop.f32.mrf.mxu0
      %v2703 = vadd.f32 0.0, %v2702
      %v2704 = vpop.f32.mrf.mxu0
      %v2705 = vpop.f32.mrf.mxu0
      %v2706 = vadd.f32 0.0, %v2705
      %v2707 = vpop.f32.mrf.mxu0
      %2708 = vmatprep.mubr.bf16.mxu0 0
      %2709 = vmatmul.mubr.bf16.gmra.mxu0 %v2556
      %v2710 = vpop.f32.mrf.mxu0
      %v2711 = vadd.f32 0.0, %v2710
      %v2712 = vpop.f32.mrf.mxu0
      %v2713 = vpop.f32.mrf.mxu0
      %v2714 = vadd.f32 0.0, %v2713
      %v2715 = vpop.f32.mrf.mxu0
      %2716 = vmatprep.mubr.bf16.mxu0 0
      %2717 = vmatmul.mubr.bf16.gmra.mxu0 %v2559
      %v2718 = vpop.f32.mrf.mxu0
      %v2719 = vadd.f32 0.0, %v2718
      %v2720 = vpop.f32.mrf.mxu0
      %v2721 = vpop.f32.mrf.mxu0
      %v2722 = vadd.f32 0.0, %v2721
      %v2723 = vpop.f32.mrf.mxu0
      %2724 = vdwg.mxu0
      %v2725 = vadd.f32 %v2431, %v2599
      %v2726 = vadd.f32 %v2432, %v2602
      %v2727 = vadd.f32 %v2433, %v2607
      %v2728 = vadd.f32 %v2434, %v2610
      %v2729 = vadd.f32 %v2435, %v2615
      %v2730 = vadd.f32 %v2436, %v2618
      %v2731 = vadd.f32 %v2437, %v2623
      %v2732 = vadd.f32 %v2438, %v2626
      %v2733 = vadd.f32 %v2439, %v2631
      %v2734 = vadd.f32 %v2440, %v2634
      %v2735 = vadd.f32 %v2441, %v2639
      %v2736 = vadd.f32 %v2442, %v2642
      %v2737 = vadd.f32 %v2443, %v2647
      %v2738 = vadd.f32 %v2444, %v2650
      %v2739 = vadd.f32 %v2445, %v2655
      %v2740 = vadd.f32 %v2446, %v2658
      %v2741 = vadd.f32 %v2447, %v2663
      %v2742 = vadd.f32 %v2448, %v2666
      %v2743 = vadd.f32 %v2449, %v2671
      %v2744 = vadd.f32 %v2450, %v2674
      %v2745 = vadd.f32 %v2451, %v2679
      %v2746 = vadd.f32 %v2452, %v2682
      %v2747 = vadd.f32 %v2453, %v2687
      %v2748 = vadd.f32 %v2454, %v2690
      %v2749 = vadd.f32 %v2455, %v2695
      %v2750 = vadd.f32 %v2456, %v2698
      %v2751 = vadd.f32 %v2457, %v2703
      %v2752 = vadd.f32 %v2458, %v2706
      %v2753 = vadd.f32 %v2459, %v2711
      %v2754 = vadd.f32 %v2460, %v2714
      %v2755 = vadd.f32 %v2461, %v2719
      %v2756 = vadd.f32 %v2462, %v2722
      %v2757 = vld [vmem:[%s2] sm:$0x1]
      %v2759 = vlaneseq
      %v2760 = vshrl.u32 %v2759, 7
      %v2761 = vsub.s32 0, %v2760
      %v2762 = vrot.slane %v2757, %v2761
      %v2764 = vadd.f32 %v2725, %v2762
      %v2765 = vadd.f32 %v2726, %v2762
      %v2766 = vadd.f32 %v2727, %v2762
      %v2767 = vadd.f32 %v2728, %v2762
      %v2768 = vadd.f32 %v2729, %v2762
      %v2769 = vadd.f32 %v2730, %v2762
      %v2770 = vadd.f32 %v2731, %v2762
      %v2771 = vadd.f32 %v2732, %v2762
      %v2772 = vadd.f32 %v2733, %v2762
      %v2773 = vadd.f32 %v2734, %v2762
      %v2774 = vadd.f32 %v2735, %v2762
      %v2775 = vadd.f32 %v2736, %v2762
      %v2776 = vadd.f32 %v2737, %v2762
      %v2777 = vadd.f32 %v2738, %v2762
      %v2778 = vadd.f32 %v2739, %v2762
      %v2779 = vadd.f32 %v2740, %v2762
      %v2780 = vadd.f32 %v2741, %v2762
      %v2781 = vadd.f32 %v2742, %v2762
      %v2782 = vadd.f32 %v2743, %v2762
      %v2783 = vadd.f32 %v2744, %v2762
      %v2784 = vadd.f32 %v2745, %v2762
      %v2785 = vadd.f32 %v2746, %v2762
      %v2786 = vadd.f32 %v2747, %v2762
      %v2787 = vadd.f32 %v2748, %v2762
      %v2788 = vadd.f32 %v2749, %v2762
      %v2789 = vadd.f32 %v2750, %v2762
      %v2790 = vadd.f32 %v2751, %v2762
      %v2791 = vadd.f32 %v2752, %v2762
      %v2792 = vadd.f32 %v2753, %v2762
      %v2793 = vadd.f32 %v2754, %v2762
      %v2794 = vadd.f32 %v2755, %v2762
      %v2795 = vadd.f32 %v2756, %v2762
      %v2796 = vmax.f32 %v2764, 0.0
      %v2797 = vmax.f32 %v2765, 0.0
      %v2798 = vmax.f32 %v2766, 0.0
      %v2799 = vmax.f32 %v2767, 0.0
      %v2800 = vmax.f32 %v2768, 0.0
      %v2801 = vmax.f32 %v2769, 0.0
      %v2802 = vmax.f32 %v2770, 0.0
      %v2803 = vmax.f32 %v2771, 0.0
      %v2804 = vmax.f32 %v2772, 0.0
      %v2805 = vmax.f32 %v2773, 0.0
      %v2806 = vmax.f32 %v2774, 0.0
      %v2807 = vmax.f32 %v2775, 0.0
      %v2808 = vmax.f32 %v2776, 0.0
      %v2809 = vmax.f32 %v2777, 0.0
      %v2810 = vmax.f32 %v2778, 0.0
      %v2811 = vmax.f32 %v2779, 0.0
      %v2812 = vmax.f32 %v2780, 0.0
      %v2813 = vmax.f32 %v2781, 0.0
      %v2814 = vmax.f32 %v2782, 0.0
      %v2815 = vmax.f32 %v2783, 0.0
      %v2816 = vmax.f32 %v2784, 0.0
      %v2817 = vmax.f32 %v2785, 0.0
      %v2818 = vmax.f32 %v2786, 0.0
      %v2819 = vmax.f32 %v2787, 0.0
      %v2820 = vmax.f32 %v2788, 0.0
      %v2821 = vmax.f32 %v2789, 0.0
      %v2822 = vmax.f32 %v2790, 0.0
      %v2823 = vmax.f32 %v2791, 0.0
      %v2824 = vmax.f32 %v2792, 0.0
      %v2825 = vmax.f32 %v2793, 0.0
      %v2826 = vmax.f32 %v2794, 0.0
      %v2827 = vmax.f32 %v2795, 0.0
      %2828 = vst.msk [vmem:[%s170] sm:$0xff] %vm271, %v2796
      %2829 = vst.msk [vmem:[%s170 + $0x8] sm:$0xff] %vm271, %v2797
      %2830 = vst.msk [vmem:[%s170 + $0x10] sm:$0xff] %vm271, %v2798
      %2831 = vst.msk [vmem:[%s170 + $0x18] sm:$0xff] %vm271, %v2799
      %2832 = vst.msk [vmem:[%s170 + $0x20] sm:$0xff] %vm271, %v2800
      %2833 = vst.msk [vmem:[%s170 + $0x28] sm:$0xff] %vm271, %v2801
      %2834 = vst.msk [vmem:[%s170 + $0x30] sm:$0xff] %vm271, %v2802
      %2835 = vst.msk [vmem:[%s170 + $0x38] sm:$0xff] %vm271, %v2803
      %2836 = vst.msk [vmem:[%s170 + $0x40] sm:$0xff] %vm271, %v2804
      %2837 = vst.msk [vmem:[%s170 + $0x48] sm:$0xff] %vm271, %v2805
      %2838 = vst.msk [vmem:[%s170 + $0x50] sm:$0xff] %vm271, %v2806
      %2839 = vst.msk [vmem:[%s170 + $0x58] sm:$0xff] %vm271, %v2807
      %2840 = vst.msk [vmem:[%s170 + $0x60] sm:$0xff] %vm271, %v2808
      %2841 = vst.msk [vmem:[%s170 + $0x68] sm:$0xff] %vm271, %v2809
      %2842 = vst.msk [vmem:[%s170 + $0x70] sm:$0xff] %vm271, %v2810
      %2843 = vst.msk [vmem:[%s170 + $0x78] sm:$0xff] %vm271, %v2811
      %2844 = vst.msk [vmem:[%s170 + $0x80] sm:$0xff] %vm271, %v2812
      %2845 = vst.msk [vmem:[%s170 + $0x88] sm:$0xff] %vm271, %v2813
      %2846 = vst.msk [vmem:[%s170 + $0x90] sm:$0xff] %vm271, %v2814
      %2847 = vst.msk [vmem:[%s170 + $0x98] sm:$0xff] %vm271, %v2815
      %2848 = vst.msk [vmem:[%s170 + $0xa0] sm:$0xff] %vm271, %v2816
      %2849 = vst.msk [vmem:[%s170 + $0xa8] sm:$0xff] %vm271, %v2817
      %2850 = vst.msk [vmem:[%s170 + $0xb0] sm:$0xff] %vm271, %v2818
      %2851 = vst.msk [vmem:[%s170 + $0xb8] sm:$0xff] %vm271, %v2819
      %2852 = vst.msk [vmem:[%s170 + $0xc0] sm:$0xff] %vm271, %v2820
      %2853 = vst.msk [vmem:[%s170 + $0xc8] sm:$0xff] %vm271, %v2821
      %2854 = vst.msk [vmem:[%s170 + $0xd0] sm:$0xff] %vm271, %v2822
      %2855 = vst.msk [vmem:[%s170 + $0xd8] sm:$0xff] %vm271, %v2823
      %2856 = vst.msk [vmem:[%s170 + $0xe0] sm:$0xff] %vm271, %v2824
      %2857 = vst.msk [vmem:[%s170 + $0xe8] sm:$0xff] %vm271, %v2825
      %2858 = vst.msk [vmem:[%s170 + $0xf0] sm:$0xff] %vm271, %v2826
      %2859 = vst.msk [vmem:[%s170 + $0xf8] sm:$0xff] %vm271, %v2827
      %p2860 = scmp.lt.s32.totalorder %s14, 1
      %s2861 = scalar_select %p2860, %s14, 1
      %s2862 = smul.addr %s2861, 32
      %s2863 = smul.addr %s2862, 8
      %s2864 = scalar_lea.vmem %s3, %s2863
      // Predicated region
      $region33: #{decoder_forward.5} parent=31 // pred_check
        %p2865 = pneg %p100
      $region34: #{decoder_forward.5} parent=31 // pred_check_branch
        %2867 = sbr.rel (%p2865) target = $region36
      $region35: #{decoder_forward.5} parent=31 // pred_region
        _
      $region36: #{decoder_forward.5} parent=31 // pred_fallthru
        _
    $region32: #{decoder_forward.5} parent=5 // pred_fallthru
      _
    %p2868 = scmp.le.s32.totalorder 2, %s9
    // Predicated region
    $region37: #{decoder_forward.5} parent=5 // pred_check
      %p2869 = pneg %p2868
    $region38: #{decoder_forward.5} parent=5 // pred_check_branch
      %2871 = sbr.rel (%p2869) target = $region40
    $region39: #{decoder_forward.5} parent=5 // pred_region
      %s2872 = ssub.s32 %s9, 2
      // Predicated region
      $region41: #{decoder_forward.5} parent=39 // pred_check
        %p2873 = pneg %p106
      $region42: #{decoder_forward.5} parent=39 // pred_check_branch
        %2875 = sbr.rel (%p2873) target = $region44
      $region43: #{decoder_forward.5} parent=39 // pred_region
        %p2876 = scmp.lt.s32.totalorder %s15, 1
        %s2877 = scalar_select %p2876, %s15, 1
        %s2878 = smul.addr %s2877, 32
        %s2879 = smul.addr %s2878, 8
        %s2880 = scalar_lea.vmem %s3, %s2879
      $region44: #{decoder_forward.5} parent=39 // pred_fallthru
        _
    $region40: #{decoder_forward.5} parent=5 // pred_fallthru
      _
  $region6: #{decoder_forward.5} parent=0 // loop_footer
    %s13 = sadd.s32 1, %s9
  $region7: #{decoder_forward.5} parent=0 // loop_footer_branch
    %8 = sbr.rel target = $region3
  $region8: #{decoder_forward.5} parent=0 // loop_exit
    _

// kernel: decoder_forward.9
$region0: #{decoder_forward.9}
  #allocation0 [shape = 'u32[]', space=smem, size = 0x4, offset = 0x4, fixed_abs, tag = 'smem constant byte address 0x4 - core index']
  #allocation1 [shape = 'u32[144,128]{1,0:T(1,128)}', space=vmem, size = 0x12000, scoped, tag = 'internal scratch']
  %s0 = inlined_call_operand.vmem [shape: f32[2,18,18,4], index: 0, kind: input, shape index: {}]
  %s1 = inlined_call_operand.vmem [shape: bf16[4,4,4,8], index: 1, kind: input, shape index: {}]
  %s2 = inlined_call_operand.vmem [shape: f32[1,8], index: 2, kind: input, shape index: {}]
  %s3 = inlined_call_operand.vmem [shape: f32[2,4,256,8], index: 3, kind: output, shape index: {}]
  %s4 = sld [smem:[#allocation0]]
  $region45: #{decoder_forward.9} parent=0
    _
  %s6 = ssub.s32 1, %s4
  %s7 = scalar_select 0, %s6, %s4
  loop: start=0, step=1, limit=4
  $region2: #{decoder_forward.9} parent=0 // loop_pre_header
    _
  $region3: #{decoder_forward.9} parent=0 // loop_header
    %s9 = sphi 0, %s13
    %p10 = scmp.ge.s32.totalorder %s9, 4
    %s19 = sphi 0, %s21
    %s22 = sphi 0, %s19
    %s23 = sphi 0, %s22
    %s39 = sphi 0, %s23
    %s43 = sphi 0, %s43
    %s45 = sphi 0, %s43
    %s46 = sphi 0, %s45
    %s60 = sphi 0, %s46
    %s64 = sphi 0, %s64
    %s66 = sphi 0, %s64
    %s67 = sphi 0, %s66
    %s81 = sphi 0, %s67
    %s87 = sphi 0, %s89
    %s90 = sphi 0, %s87
    %s91 = sphi 0, %s90
    %s107 = sphi 0, %s91
  $region4: #{decoder_forward.9} parent=0 // loop_header_branch
    %12 = sbr.rel (%p10) target = $region8
  $region5: #{decoder_forward.9} parent=0 // loop_body
    %s14 = ssub.s32 %s9, 1
    %s15 = ssub.s32 %s9, 2
    %s16 = sadd.s32 %s9, 1
    %s17 = ssub.s32 %s9, %s16
    %p18 = scmp.eq.s32.totalorder %s17, 0
    %s20 = sadd.s32 %s19, 1
    %s21 = scalar_select %p18, %s19, %s20
    %p24 = pneg %p18
    %p25 = scmp.eq.s32.totalorder %s9, 1
    %p26 = por %p24, %p25
    %p27 = scmp.ne.s32.totalorder %s19, %s22
    %p28 = scmp.eq.s32.totalorder %s9, 0
    %p29 = por %p27, %p28
    %p30 = scmp.ne.s32.totalorder %s19, %s22
    %p31 = scmp.eq.s32.totalorder %s14, 1
    %p32 = por %p30, %p31
    %p33 = scmp.ne.s32.totalorder %s22, %s23
    %p34 = scmp.eq.s32.totalorder %s14, 0
    %p35 = por %p33, %p34
    %p36 = scmp.ne.s32.totalorder %s22, %s23
    %p37 = scmp.eq.s32.totalorder %s15, 1
    %p38 = por %p36, %p37
    %p40 = scmp.ne.s32.totalorder %s23, %s39
    %p41 = scmp.eq.s32.totalorder %s15, 0
    %p42 = por %p40, %p41
    %s44 = sadd.s32 %s43, 1
    %p47 = scmp.eq.s32.totalorder %s9, 1
    %p48 = scmp.ne.s32.totalorder %s43, %s45
    %p49 = scmp.eq.s32.totalorder %s9, 0
    %p50 = por %p48, %p49
    %p51 = scmp.ne.s32.totalorder %s43, %s45
    %p52 = scmp.eq.s32.totalorder %s14, 1
    %p53 = por %p51, %p52
    %p54 = scmp.ne.s32.totalorder %s45, %s46
    %p55 = scmp.eq.s32.totalorder %s14, 0
    %p56 = por %p54, %p55
    %p57 = scmp.ne.s32.totalorder %s45, %s46
    %p58 = scmp.eq.s32.totalorder %s15, 1
    %p59 = por %p57, %p58
    %p61 = scmp.ne.s32.totalorder %s46, %s60
    %p62 = scmp.eq.s32.totalorder %s15, 0
    %p63 = por %p61, %p62
    %s65 = sadd.s32 %s64, 1
    %p68 = scmp.eq.s32.totalorder %s9, 1
    %p69 = scmp.ne.s32.totalorder %s64, %s66
    %p70 = scmp.eq.s32.totalorder %s9, 0
    %p71 = por %p69, %p70
    %p72 = scmp.ne.s32.totalorder %s64, %s66
    %p73 = scmp.eq.s32.totalorder %s14, 1
    %p74 = por %p72, %p73
    %p75 = scmp.ne.s32.totalorder %s66, %s67
    %p76 = scmp.eq.s32.totalorder %s14, 0
    %p77 = por %p75, %p76
    %p78 = scmp.ne.s32.totalorder %s66, %s67
    %p79 = scmp.eq.s32.totalorder %s15, 1
    %p80 = por %p78, %p79
    %p82 = scmp.ne.s32.totalorder %s67, %s81
    %p83 = scmp.eq.s32.totalorder %s15, 0
    %p84 = por %p82, %p83
    %s85 = ssub.s32 %s9, %s16
    %p86 = scmp.eq.s32.totalorder %s85, 0
    %s88 = sadd.s32 %s87, 1
    %s89 = scalar_select %p86, %s87, %s88
    %p92 = pneg %p86
    %p93 = scmp.eq.s32.totalorder %s9, 1
    %p94 = por %p92, %p93
    %p95 = scmp.ne.s32.totalorder %s87, %s90
    %p96 = scmp.eq.s32.totalorder %s9, 0
    %p97 = por %p95, %p96
    %p98 = scmp.ne.s32.totalorder %s87, %s90
    %p99 = scmp.eq.s32.totalorder %s14, 1
    %p100 = por %p98, %p99
    %p101 = scmp.ne.s32.totalorder %s90, %s91
    %p102 = scmp.eq.s32.totalorder %s14, 0
    %p103 = por %p101, %p102
    %p104 = scmp.ne.s32.totalorder %s90, %s91
    %p105 = scmp.eq.s32.totalorder %s15, 1
    %p106 = por %p104, %p105
    %p108 = scmp.ne.s32.totalorder %s91, %s107
    %p109 = scmp.eq.s32.totalorder %s15, 0
    %p110 = por %p108, %p109
    %p111 = scmp.le.s32.totalorder 1, %s9
    %p112 = scmp.lt.s32.totalorder %s9, 3
    %p113 = pnand %p111, %p112
    %p114 = pneg %p113
    // Predicated region
    $region9: #{decoder_forward.9} parent=5 // pred_check
      _
    $region10: #{decoder_forward.9} parent=5 // pred_check_branch
      %116 = sbr.rel (%p113) target = $region12
    $region11: #{decoder_forward.9} parent=5 // pred_region
      %s117 = ssub.s32 %s9, 1
      // Predicated region
      $region13: #{decoder_forward.9} parent=11 // pred_check
        %p118 = pneg %p56
      $region14: #{decoder_forward.9} parent=11 // pred_check_branch
        %120 = sbr.rel (%p118) target = $region16
      $region15: #{decoder_forward.9} parent=11 // pred_region
        _
      $region16: #{decoder_forward.9} parent=11 // pred_fallthru
        _
      // Predicated region
      $region17: #{decoder_forward.9} parent=11 // pred_check
        %p121 = pneg %p77
      $region18: #{decoder_forward.9} parent=11 // pred_check_branch
        %123 = sbr.rel (%p121) target = $region20
      $region19: #{decoder_forward.9} parent=11 // pred_region
        _
      $region20: #{decoder_forward.9} parent=11 // pred_fallthru
        _
    $region12: #{decoder_forward.9} parent=5 // pred_fallthru
      _
    %p124 = scmp.lt.s32.totalorder %s9, 2
    // Predicated region
    $region21: #{decoder_forward.9} parent=5 // pred_check
      %p125 = pneg %p124
    $region22: #{decoder_forward.9} parent=5 // pred_check_branch
      %127 = sbr.rel (%p125) target = $region24
    $region23: #{decoder_forward.9} parent=5 // pred_region
      // Predicated region
      $region25: #{decoder_forward.9} parent=23 // pred_check
        %p128 = pneg %p29
      $region26: #{decoder_forward.9} parent=23 // pred_check_branch
        %130 = sbr.rel (%p128) target = $region28
      $region27: #{decoder_forward.9} parent=23 // pred_region
        %p131 = scmp.lt.s32.totalorder %s9, 1
        %s132 = scalar_select %p131, %s9, 1
        %s133 = smul.addr %s132, 54
        %s134 = smul.addr %s133, 8
        %s135 = scalar_lea.vmem %s0, %s134
      $region28: #{decoder_forward.9} parent=23 // pred_fallthru
        _
    $region24: #{decoder_forward.9} parent=5 // pred_fallthru
      _
    %p136 = scmp.le.s32.totalorder 1, %s9
    %p137 = scmp.lt.s32.totalorder %s9, 3
    %p138 = pnand %p136, %p137
    %p139 = pneg %p138
    // Predicated region
    $region29: #{decoder_forward.9} parent=5 // pred_check
      _
    $region30: #{decoder_forward.9} parent=5 // pred_check_branch
      %141 = sbr.rel (%p138) target = $region32
    $region31: #{decoder_forward.9} parent=5 // pred_region
      %s142 = ssub.s32 %s9, 1
      %p143 = scmp.lt.s32.totalorder %s14, 1
      %s144 = scalar_select %p143, %s14, 1
      %s145 = smul.addr %s144, 54
      %s146 = smul.addr %s145, 8
      %s147 = scalar_lea.vmem %s0, %s146
      %p148 = pneg %p35
      %p149 = pneg %p32
      %p150 = pneg %p56
      %p151 = pneg %p53
      %p152 = pneg %p77
      %p153 = pneg %p74
      %p154 = pneg %p103
      %p155 = pneg %p100
      %p156 = scmp.lt.s32.totalorder %s14, 1
      %s157 = scalar_select %p156, %s14, 1
      %s158 = smul.addr %s157, 128
      %s159 = smul.addr %s158, 8
      %s160 = scalar_lea.vmem %s3, %s159
      %p161 = scmp.lt.s32.totalorder %s14, 1
      %s162 = scalar_select %p161, %s14, 1
      %s163 = smul.addr %s162, 54
      %s164 = smul.addr %s163, 8
      %s165 = scalar_lea.vmem %s0, %s164
      %p166 = scmp.lt.s32.totalorder %s14, 1
      %s167 = scalar_select %p166, %s14, 1
      %s168 = smul.addr %s167, 128
      %s169 = smul.addr %s168, 8
      %s170 = scalar_lea.vmem %s3, %s169
      %v172 = vld [vmem:[%s165] sm:$0xff]
      %v173 = vld [vmem:[%s165 + $0x8] sm:$0xff]
      %v174 = vld [vmem:[%s165 + $0x18] sm:$0xff]
      %v175 = vld [vmem:[%s165 + $0x20] sm:$0xff]
      %v176 = vld [vmem:[%s165 + $0x30] sm:$0xff]
      %v177 = vld [vmem:[%s165 + $0x38] sm:$0xff]
      %v178 = vld [vmem:[%s165 + $0x48] sm:$0xff]
      %v179 = vld [vmem:[%s165 + $0x50] sm:$0xff]
      %v180 = vld [vmem:[%s165 + $0x60] sm:$0xff]
      %v181 = vld [vmem:[%s165 + $0x68] sm:$0xff]
      %v182 = vld [vmem:[%s165 + $0x78] sm:$0xff]
      %v183 = vld [vmem:[%s165 + $0x80] sm:$0xff]
      %v184 = vld [vmem:[%s165 + $0x90] sm:$0xff]
      %v185 = vld [vmem:[%s165 + $0x98] sm:$0xff]
      %v186 = vld [vmem:[%s165 + $0xa8] sm:$0xff]
      %v187 = vld [vmem:[%s165 + $0xb0] sm:$0xff]
      %v188 = vld [vmem:[%s165 + $0xc0] sm:$0xff]
      %v189 = vld [vmem:[%s165 + $0xc8] sm:$0xff]
      %v190 = vld [vmem:[%s165 + $0xd8] sm:$0xff]
      %v191 = vld [vmem:[%s165 + $0xe0] sm:$0xff]
      %v192 = vld [vmem:[%s165 + $0xf0] sm:$0xff]
      %v193 = vld [vmem:[%s165 + $0xf8] sm:$0xff]
      %v194 = vld [vmem:[%s165 + $0x108] sm:$0xff]
      %v195 = vld [vmem:[%s165 + $0x110] sm:$0xff]
      %v196 = vld [vmem:[%s165 + $0x120] sm:$0xff]
      %v197 = vld [vmem:[%s165 + $0x128] sm:$0xff]
      %v198 = vld [vmem:[%s165 + $0x138] sm:$0xff]
      %v199 = vld [vmem:[%s165 + $0x140] sm:$0xff]
      %v200 = vld [vmem:[%s165 + $0x150] sm:$0xff]
      %v201 = vld [vmem:[%s165 + $0x158] sm:$0xff]
      %v202 = vld [vmem:[%s165 + $0x168] sm:$0xff]
      %v203 = vld [vmem:[%s165 + $0x170] sm:$0xff]
      %v204 = vpack.c.bf16 %v173, %v172
      %v205 = vpack.c.bf16 %v175, %v174
      %v206 = vpack.c.bf16 %v177, %v176
      %v207 = vpack.c.bf16 %v179, %v178
      %v208 = vpack.c.bf16 %v181, %v180
      %v209 = vpack.c.bf16 %v183, %v182
      %v210 = vpack.c.bf16 %v185, %v184
      %v211 = vpack.c.bf16 %v187, %v186
      %v212 = vpack.c.bf16 %v189, %v188
      %v213 = vpack.c.bf16 %v191, %v190
      %v214 = vpack.c.bf16 %v193, %v192
      %v215 = vpack.c.bf16 %v195, %v194
      %v216 = vpack.c.bf16 %v197, %v196
      %v217 = vpack.c.bf16 %v199, %v198
      %v218 = vpack.c.bf16 %v201, %v200
      %v219 = vpack.c.bf16 %v203, %v202
      %v220 = vld [vmem:[%s1] sm:$0x3]
      %v221 = vld [vmem:[%s165 + $0x1] sm:$0xff]
      %v222 = vld [vmem:[%s165 + $0x9] sm:$0xff]
      %v223 = vld [vmem:[%s165 + $0x19] sm:$0xff]
      %v224 = vld [vmem:[%s165 + $0x21] sm:$0xff]
      %v225 = vld [vmem:[%s165 + $0x31] sm:$0xff]
      %v226 = vld [vmem:[%s165 + $0x39] sm:$0xff]
      %v227 = vld [vmem:[%s165 + $0x49] sm:$0xff]
      %v228 = vld [vmem:[%s165 + $0x51] sm:$0xff]
      %v229 = vld [vmem:[%s165 + $0x61] sm:$0xff]
      %v230 = vld [vmem:[%s165 + $0x69] sm:$0xff]
      %v231 = vld [vmem:[%s165 + $0x79] sm:$0xff]
      %v232 = vld [vmem:[%s165 + $0x81] sm:$0xff]
      %v233 = vld [vmem:[%s165 + $0x91] sm:$0xff]
      %v234 = vld [vmem:[%s165 + $0x99] sm:$0xff]
      %v235 = vld [vmem:[%s165 + $0xa9] sm:$0xff]
      %v236 = vld [vmem:[%s165 + $0xb1] sm:$0xff]
      %v237 = vld [vmem:[%s165 + $0xc1] sm:$0xff]
      %v238 = vld [vmem:[%s165 + $0xc9] sm:$0xff]
      %v239 = vld [vmem:[%s165 + $0xd9] sm:$0xff]
      %v240 = vld [vmem:[%s165 + $0xe1] sm:$0xff]
      %v241 = vld [vmem:[%s165 + $0xf1] sm:$0xff]
      %v242 = vld [vmem:[%s165 + $0xf9] sm:$0xff]
      %v243 = vld [vmem:[%s165 + $0x109] sm:$0xff]
      %v244 = vld [vmem:[%s165 + $0x111] sm:$0xff]
      %v245 = vld [vmem:[%s165 + $0x121] sm:$0xff]
      %v246 = vld [vmem:[%s165 + $0x129] sm:$0xff]
      %v247 = vld [vmem:[%s165 + $0x139] sm:$0xff]
      %v248 = vld [vmem:[%s165 + $0x141] sm:$0xff]
      %v249 = vld [vmem:[%s165 + $0x151] sm:$0xff]
      %v250 = vld [vmem:[%s165 + $0x159] sm:$0xff]
      %v251 = vld [vmem:[%s165 + $0x169] sm:$0xff]
      %v252 = vld [vmem:[%s165 + $0x171] sm:$0xff]
      %v253 = vpack.c.bf16 %v222, %v221
      %v254 = vpack.c.bf16 %v224, %v223
      %v255 = vpack.c.bf16 %v226, %v225
      %v256 = vpack.c.bf16 %v228, %v227
      %v257 = vpack.c.bf16 %v230, %v229
      %v258 = vpack.c.bf16 %v232, %v231
      %v259 = vpack.c.bf16 %v234, %v233
      %v260 = vpack.c.bf16 %v236, %v235
      %v261 = vpack.c.bf16 %v238, %v237
      %v262 = vpack.c.bf16 %v240, %v239
      %v263 = vpack.c.bf16 %v242, %v241
      %v264 = vpack.c.bf16 %v244, %v243
      %v265 = vpack.c.bf16 %v246, %v245
      %v266 = vpack.c.bf16 %v248, %v247
      %v267 = vpack.c.bf16 %v250, %v249
      %v268 = vpack.c.bf16 %v252, %v251
      %s269 = scalar_lea.vmem %s1, 2
      %v270 = vld [vmem:[%s269] sm:$0x3]
      %vm271 = vcmask 31744
      %v273 = vsel %vm271, %v253, 0
      %v276 = vsel %vm271, %v254, 0
      %v279 = vsel %vm271, %v255, 0
      %v282 = vsel %vm271, %v256, 0
      %v285 = vsel %vm271, %v257, 0
      %v288 = vsel %vm271, %v258, 0
      %v291 = vsel %vm271, %v259, 0
      %v294 = vsel %vm271, %v260, 0
      %v297 = vsel %vm271, %v261, 0
      %v300 = vsel %vm271, %v262, 0
      %v303 = vsel %vm271, %v263, 0
      %v306 = vsel %vm271, %v264, 0
      %v309 = vsel %vm271, %v265, 0
      %v312 = vsel %vm271, %v266, 0
      %v315 = vsel %vm271, %v267, 0
      %v318 = vsel %vm271, %v268, 0
      %vm320 = vcmask 1041408
      %v322 = vsel %vm320, %v270, 0
      %324 = vmatprep.subr.bf16.mxu0 0
      %325 = vmatpush1.bf16.msra.mxu0 0
      %326 = vmatprep.subr.bf16.mxu0 0
      %327 = vmatpush1.bf16.msra.mxu0 0
      %328 = vmatprep.subr.bf16.mxu0 0
      %329 = vmatpush1.bf16.msra.mxu0 0
      %330 = vmatprep.subr.bf16.mxu0 0
      %331 = vmatpush1.bf16.msra.mxu0 0
      %332 = vmatprep.subr.bf16.mxu0 0
      %333 = vmatpush1.bf16.msra.mxu0 0
      %334 = vmatprep.subr.bf16.mxu0 0
      %335 = vmatpush1.bf16.msra.mxu0 0
      %336 = vmatprep.subr.bf16.mxu0 0
      %337 = vmatpush1.bf16.msra.mxu0 0
      %338 = vmatprep.subr.bf16.mxu0 0
      %339 = vmatpush1.bf16.msra.mxu0 %v322
      %340 = vmatprep.subr.bf16.mxu0 0
      %341 = vmatpush2.bf16.msra.mxu0 0
      %342 = vmatprep.subr.bf16.mxu0 0
      %343 = vmatpush2.bf16.msra.mxu0 0
      %344 = vmatprep.subr.bf16.mxu0 0
      %345 = vmatpush2.bf16.msra.mxu0 0
      %346 = vmatprep.subr.bf16.mxu0 0
      %347 = vmatpush2.bf16.msra.mxu0 0
      %348 = vmatprep.subr.bf16.mxu0 0
      %349 = vmatpush2.bf16.msra.mxu0 0
      %350 = vmatprep.subr.bf16.mxu0 0
      %351 = vmatpush2.bf16.msra.mxu0 0
      %352 = vmatprep.subr.bf16.mxu0 0
      %353 = vmatpush2.bf16.msra.mxu0 0
      %354 = vmatprep.subr.bf16.mxu0 0
      %355 = vmatpush2.bf16.msra.mxu0 0
      %356 = vmatprep.mubr.bf16.mxu0 0
      %357 = vmatmul.mubr.bf16.gmra.mxu0 %v273
      %v358 = vpop.f32.mrf.mxu0
      %v359 = vadd.f32 0.0, %v358
      %v360 = vpop.f32.mrf.mxu0
      %v361 = vpop.f32.mrf.mxu0
      %v362 = vadd.f32 0.0, %v361
      %v363 = vpop.f32.mrf.mxu0
      %364 = vmatprep.mubr.bf16.mxu0 0
      %365 = vmatmul.mubr.bf16.gmra.mxu0 %v276
      %v366 = vpop.f32.mrf.mxu0
      %v367 = vadd.f32 0.0, %v366
      %v368 = vpop.f32.mrf.mxu0
      %v369 = vpop.f32.mrf.mxu0
      %v370 = vadd.f32 0.0, %v369
      %v371 = vpop.f32.mrf.mxu0
      %372 = vmatprep.mubr.bf16.mxu0 0
      %373 = vmatmul.mubr.bf16.gmra.mxu0 %v279
      %v374 = vpop.f32.mrf.mxu0
      %v375 = vadd.f32 0.0, %v374
      %v376 = vpop.f32.mrf.mxu0
      %v377 = vpop.f32.mrf.mxu0
      %v378 = vadd.f32 0.0, %v377
      %v379 = vpop.f32.mrf.mxu0
      %380 = vmatprep.mubr.bf16.mxu0 0
      %381 = vmatmul.mubr.bf16.gmra.mxu0 %v282
      %v382 = vpop.f32.mrf.mxu0
      %v383 = vadd.f32 0.0, %v382
      %v384 = vpop.f32.mrf.mxu0
      %v385 = vpop.f32.mrf.mxu0
      %v386 = vadd.f32 0.0, %v385
      %v387 = vpop.f32.mrf.mxu0
      %388 = vmatprep.mubr.bf16.mxu0 0
      %389 = vmatmul.mubr.bf16.gmra.mxu0 %v285
      %v390 = vpop.f32.mrf.mxu0
      %v391 = vadd.f32 0.0, %v390
      %v392 = vpop.f32.mrf.mxu0
      %v393 = vpop.f32.mrf.mxu0
      %v394 = vadd.f32 0.0, %v393
      %v395 = vpop.f32.mrf.mxu0
      %396 = vmatprep.mubr.bf16.mxu0 0
      %397 = vmatmul.mubr.bf16.gmra.mxu0 %v288
      %v398 = vpop.f32.mrf.mxu0
      %v399 = vadd.f32 0.0, %v398
      %v400 = vpop.f32.mrf.mxu0
      %v401 = vpop.f32.mrf.mxu0
      %v402 = vadd.f32 0.0, %v401
      %v403 = vpop.f32.mrf.mxu0
      %404 = vmatprep.mubr.bf16.mxu0 0
      %405 = vmatmul.mubr.bf16.gmra.mxu0 %v291
      %v406 = vpop.f32.mrf.mxu0
      %v407 = vadd.f32 0.0, %v406
      %v408 = vpop.f32.mrf.mxu0
      %v409 = vpop.f32.mrf.mxu0
      %v410 = vadd.f32 0.0, %v409
      %v411 = vpop.f32.mrf.mxu0
      %412 = vmatprep.mubr.bf16.mxu0 0
      %413 = vmatmul.mubr.bf16.gmra.mxu0 %v294
      %v414 = vpop.f32.mrf.mxu0
      %v415 = vadd.f32 0.0, %v414
      %v416 = vpop.f32.mrf.mxu0
      %v417 = vpop.f32.mrf.mxu0
      %v418 = vadd.f32 0.0, %v417
      %v419 = vpop.f32.mrf.mxu0
      %420 = vmatprep.mubr.bf16.mxu0 0
      %421 = vmatmul.mubr.bf16.gmra.mxu0 %v297
      %v422 = vpop.f32.mrf.mxu0
      %v423 = vadd.f32 0.0, %v422
      %v424 = vpop.f32.mrf.mxu0
      %v425 = vpop.f32.mrf.mxu0
      %v426 = vadd.f32 0.0, %v425
      %v427 = vpop.f32.mrf.mxu0
      %428 = vmatprep.mubr.bf16.mxu0 0
      %429 = vmatmul.mubr.bf16.gmra.mxu0 %v300
      %v430 = vpop.f32.mrf.mxu0
      %v431 = vadd.f32 0.0, %v430
      %v432 = vpop.f32.mrf.mxu0
      %v433 = vpop.f32.mrf.mxu0
      %v434 = vadd.f32 0.0, %v433
      %v435 = vpop.f32.mrf.mxu0
      %436 = vmatprep.mubr.bf16.mxu0 0
      %437 = vmatmul.mubr.bf16.gmra.mxu0 %v303
      %v438 = vpop.f32.mrf.mxu0
      %v439 = vadd.f32 0.0, %v438
      %v440 = vpop.f32.mrf.mxu0
      %v441 = vpop.f32.mrf.mxu0
      %v442 = vadd.f32 0.0, %v441
      %v443 = vpop.f32.mrf.mxu0
      %444 = vmatprep.mubr.bf16.mxu0 0
      %445 = vmatmul.mubr.bf16.gmra.mxu0 %v306
      %v446 = vpop.f32.mrf.mxu0
      %v447 = vadd.f32 0.0, %v446
      %v448 = vpop.f32.mrf.mxu0
      %v449 = vpop.f32.mrf.mxu0
      %v450 = vadd.f32 0.0, %v449
      %v451 = vpop.f32.mrf.mxu0
      %452 = vmatprep.mubr.bf16.mxu0 0
      %453 = vmatmul.mubr.bf16.gmra.mxu0 %v309
      %v454 = vpop.f32.mrf.mxu0
      %v455 = vadd.f32 0.0, %v454
      %v456 = vpop.f32.mrf.mxu0
      %v457 = vpop.f32.mrf.mxu0
      %v458 = vadd.f32 0.0, %v457
      %v459 = vpop.f32.mrf.mxu0
      %460 = vmatprep.mubr.bf16.mxu0 0
      %461 = vmatmul.mubr.bf16.gmra.mxu0 %v312
      %v462 = vpop.f32.mrf.mxu0
      %v463 = vadd.f32 0.0, %v462
      %v464 = vpop.f32.mrf.mxu0
      %v465 = vpop.f32.mrf.mxu0
      %v466 = vadd.f32 0.0, %v465
      %v467 = vpop.f32.mrf.mxu0
      %468 = vmatprep.mubr.bf16.mxu0 0
      %469 = vmatmul.mubr.bf16.gmra.mxu0 %v315
      %v470 = vpop.f32.mrf.mxu0
      %v471 = vadd.f32 0.0, %v470
      %v472 = vpop.f32.mrf.mxu0
      %v473 = vpop.f32.mrf.mxu0
      %v474 = vadd.f32 0.0, %v473
      %v475 = vpop.f32.mrf.mxu0
      %476 = vmatprep.mubr.bf16.mxu0 0
      %477 = vmatmul.mubr.bf16.gmra.mxu0 %v318
      %v478 = vpop.f32.mrf.mxu0
      %v479 = vadd.f32 0.0, %v478
      %v480 = vpop.f32.mrf.mxu0
      %v481 = vpop.f32.mrf.mxu0
      %v482 = vadd.f32 0.0, %v481
      %v483 = vpop.f32.mrf.mxu0
      %484 = vdwg.mxu0
      %v486 = vsel %vm271, %v204, 0
      %v489 = vsel %vm271, %v205, 0
      %v492 = vsel %vm271, %v206, 0
      %v495 = vsel %vm271, %v207, 0
      %v498 = vsel %vm271, %v208, 0
      %v501 = vsel %vm271, %v209, 0
      %v504 = vsel %vm271, %v210, 0
      %v507 = vsel %vm271, %v211, 0
      %v510 = vsel %vm271, %v212, 0
      %v513 = vsel %vm271, %v213, 0
      %v516 = vsel %vm271, %v214, 0
      %v519 = vsel %vm271, %v215, 0
      %v522 = vsel %vm271, %v216, 0
      %v525 = vsel %vm271, %v217, 0
      %v528 = vsel %vm271, %v218, 0
      %v531 = vsel %vm271, %v219, 0
      %v534 = vsel %vm320, %v220, 0
      %536 = vmatprep.subr.bf16.mxu0 0
      %537 = vmatpush1.bf16.msra.mxu0 0
      %538 = vmatprep.subr.bf16.mxu0 0
      %539 = vmatpush1.bf16.msra.mxu0 0
      %540 = vmatprep.subr.bf16.mxu0 0
      %541 = vmatpush1.bf16.msra.mxu0 0
      %542 = vmatprep.subr.bf16.mxu0 0
      %543 = vmatpush1.bf16.msra.mxu0 0
      %544 = vmatprep.subr.bf16.mxu0 0
      %545 = vmatpush1.bf16.msra.mxu0 0
      %546 = vmatprep.subr.bf16.mxu0 0
      %547 = vmatpush1.bf16.msra.mxu0 0
      %548 = vmatprep.subr.bf16.mxu0 0
      %549 = vmatpush1.bf16.msra.mxu0 0
      %550 = vmatprep.subr.bf16.mxu0 0
      %551 = vmatpush1.bf16.msra.mxu0 %v534
      %552 = vmatprep.subr.bf16.mxu0 0
      %553 = vmatpush2.bf16.msra.mxu0 0
      %554 = vmatprep.subr.bf16.mxu0 0
      %555 = vmatpush2.bf16.msra.mxu0 0
      %556 = vmatprep.subr.bf16.mxu0 0
      %557 = vmatpush2.bf16.msra.mxu0 0
      %558 = vmatprep.subr.bf16.mxu0 0
      %559 = vmatpush2.bf16.msra.mxu0 0
      %560 = vmatprep.subr.bf16.mxu0 0
      %561 = vmatpush2.bf16.msra.mxu0 0
      %562 = vmatprep.subr.bf16.mxu0 0
      %563 = vmatpush2.bf16.msra.mxu0 0
      %564 = vmatprep.subr.bf16.mxu0 0
      %565 = vmatpush2.bf16.msra.mxu0 0
      %566 = vmatprep.subr.bf16.mxu0 0
      %567 = vmatpush2.bf16.msra.mxu0 0
      %568 = vmatprep.mubr.bf16.mxu0 0
      %569 = vmatmul.mubr.bf16.gmra.mxu0 %v486
      %v570 = vpop.f32.mrf.mxu0
      %v571 = vadd.f32 %v359, %v570
      %v572 = vpop.f32.mrf.mxu0
      %v573 = vpop.f32.mrf.mxu0
      %v574 = vadd.f32 %v362, %v573
      %v575 = vpop.f32.mrf.mxu0
      %576 = vmatprep.mubr.bf16.mxu0 0
      %577 = vmatmul.mubr.bf16.gmra.mxu0 %v489
      %v578 = vpop.f32.mrf.mxu0
      %v579 = vadd.f32 %v367, %v578
      %v580 = vpop.f32.mrf.mxu0
      %v581 = vpop.f32.mrf.mxu0
      %v582 = vadd.f32 %v370, %v581
      %v583 = vpop.f32.mrf.mxu0
      %584 = vmatprep.mubr.bf16.mxu0 0
      %585 = vmatmul.mubr.bf16.gmra.mxu0 %v492
      %v586 = vpop.f32.mrf.mxu0
      %v587 = vadd.f32 %v375, %v586
      %v588 = vpop.f32.mrf.mxu0
      %v589 = vpop.f32.mrf.mxu0
      %v590 = vadd.f32 %v378, %v589
      %v591 = vpop.f32.mrf.mxu0
      %592 = vmatprep.mubr.bf16.mxu0 0
      %593 = vmatmul.mubr.bf16.gmra.mxu0 %v495
      %v594 = vpop.f32.mrf.mxu0
      %v595 = vadd.f32 %v383, %v594
      %v596 = vpop.f32.mrf.mxu0
      %v597 = vpop.f32.mrf.mxu0
      %v598 = vadd.f32 %v386, %v597
      %v599 = vpop.f32.mrf.mxu0
      %600 = vmatprep.mubr.bf16.mxu0 0
      %601 = vmatmul.mubr.bf16.gmra.mxu0 %v498
      %v602 = vpop.f32.mrf.mxu0
      %v603 = vadd.f32 %v391, %v602
      %v604 = vpop.f32.mrf.mxu0
      %v605 = vpop.f32.mrf.mxu0
      %v606 = vadd.f32 %v394, %v605
      %v607 = vpop.f32.mrf.mxu0
      %608 = vmatprep.mubr.bf16.mxu0 0
      %609 = vmatmul.mubr.bf16.gmra.mxu0 %v501
      %v610 = vpop.f32.mrf.mxu0
      %v611 = vadd.f32 %v399, %v610
      %v612 = vpop.f32.mrf.mxu0
      %v613 = vpop.f32.mrf.mxu0
      %v614 = vadd.f32 %v402, %v613
      %v615 = vpop.f32.mrf.mxu0
      %616 = vmatprep.mubr.bf16.mxu0 0
      %617 = vmatmul.mubr.bf16.gmra.mxu0 %v504
      %v618 = vpop.f32.mrf.mxu0
      %v619 = vadd.f32 %v407, %v618
      %v620 = vpop.f32.mrf.mxu0
      %v621 = vpop.f32.mrf.mxu0
      %v622 = vadd.f32 %v410, %v621
      %v623 = vpop.f32.mrf.mxu0
      %624 = vmatprep.mubr.bf16.mxu0 0
      %625 = vmatmul.mubr.bf16.gmra.mxu0 %v507
      %v626 = vpop.f32.mrf.mxu0
      %v627 = vadd.f32 %v415, %v626
      %v628 = vpop.f32.mrf.mxu0
      %v629 = vpop.f32.mrf.mxu0
      %v630 = vadd.f32 %v418, %v629
      %v631 = vpop.f32.mrf.mxu0
      %632 = vmatprep.mubr.bf16.mxu0 0
      %633 = vmatmul.mubr.bf16.gmra.mxu0 %v510
      %v634 = vpop.f32.mrf.mxu0
      %v635 = vadd.f32 %v423, %v634
      %v636 = vpop.f32.mrf.mxu0
      %v637 = vpop.f32.mrf.mxu0
      %v638 = vadd.f32 %v426, %v637
      %v639 = vpop.f32.mrf.mxu0
      %640 = vmatprep.mubr.bf16.mxu0 0
      %641 = vmatmul.mubr.bf16.gmra.mxu0 %v513
      %v642 = vpop.f32.mrf.mxu0
      %v643 = vadd.f32 %v431, %v642
      %v644 = vpop.f32.mrf.mxu0
      %v645 = vpop.f32.mrf.mxu0
      %v646 = vadd.f32 %v434, %v645
      %v647 = vpop.f32.mrf.mxu0
      %648 = vmatprep.mubr.bf16.mxu0 0
      %649 = vmatmul.mubr.bf16.gmra.mxu0 %v516
      %v650 = vpop.f32.mrf.mxu0
      %v651 = vadd.f32 %v439, %v650
      %v652 = vpop.f32.mrf.mxu0
      %v653 = vpop.f32.mrf.mxu0
      %v654 = vadd.f32 %v442, %v653
      %v655 = vpop.f32.mrf.mxu0
      %656 = vmatprep.mubr.bf16.mxu0 0
      %657 = vmatmul.mubr.bf16.gmra.mxu0 %v519
      %v658 = vpop.f32.mrf.mxu0
      %v659 = vadd.f32 %v447, %v658
      %v660 = vpop.f32.mrf.mxu0
      %v661 = vpop.f32.mrf.mxu0
      %v662 = vadd.f32 %v450, %v661
      %v663 = vpop.f32.mrf.mxu0
      %664 = vmatprep.mubr.bf16.mxu0 0
      %665 = vmatmul.mubr.bf16.gmra.mxu0 %v522
      %v666 = vpop.f32.mrf.mxu0
      %v667 = vadd.f32 %v455, %v666
      %v668 = vpop.f32.mrf.mxu0
      %v669 = vpop.f32.mrf.mxu0
      %v670 = vadd.f32 %v458, %v669
      %v671 = vpop.f32.mrf.mxu0
      %672 = vmatprep.mubr.bf16.mxu0 0
      %673 = vmatmul.mubr.bf16.gmra.mxu0 %v525
      %v674 = vpop.f32.mrf.mxu0
      %v675 = vadd.f32 %v463, %v674
      %v676 = vpop.f32.mrf.mxu0
      %v677 = vpop.f32.mrf.mxu0
      %v678 = vadd.f32 %v466, %v677
      %v679 = vpop.f32.mrf.mxu0
      %680 = vmatprep.mubr.bf16.mxu0 0
      %681 = vmatmul.mubr.bf16.gmra.mxu0 %v528
      %v682 = vpop.f32.mrf.mxu0
      %v683 = vadd.f32 %v471, %v682
      %v684 = vpop.f32.mrf.mxu0
      %v685 = vpop.f32.mrf.mxu0
      %v686 = vadd.f32 %v474, %v685
      %v687 = vpop.f32.mrf.mxu0
      %688 = vmatprep.mubr.bf16.mxu0 0
      %689 = vmatmul.mubr.bf16.gmra.mxu0 %v531
      %v690 = vpop.f32.mrf.mxu0
      %v691 = vadd.f32 %v479, %v690
      %v692 = vpop.f32.mrf.mxu0
      %v693 = vpop.f32.mrf.mxu0
      %v694 = vadd.f32 %v482, %v693
      %v695 = vpop.f32.mrf.mxu0
      %696 = vdwg.mxu0
      %s697 = scalar_lea.vmem %s165, 24
      %v698 = vld [vmem:[%s697] sm:$0xff]
      %v699 = vld [vmem:[%s697 + $0x8] sm:$0xff]
      %v700 = vld [vmem:[%s697 + $0x18] sm:$0xff]
      %v701 = vld [vmem:[%s697 + $0x20] sm:$0xff]
      %v702 = vld [vmem:[%s697 + $0x30] sm:$0xff]
      %v703 = vld [vmem:[%s697 + $0x38] sm:$0xff]
      %v704 = vld [vmem:[%s697 + $0x48] sm:$0xff]
      %v705 = vld [vmem:[%s697 + $0x50] sm:$0xff]
      %v706 = vld [vmem:[%s697 + $0x60] sm:$0xff]
      %v707 = vld [vmem:[%s697 + $0x68] sm:$0xff]
      %v708 = vld [vmem:[%s697 + $0x78] sm:$0xff]
      %v709 = vld [vmem:[%s697 + $0x80] sm:$0xff]
      %v710 = vld [vmem:[%s697 + $0x90] sm:$0xff]
      %v711 = vld [vmem:[%s697 + $0x98] sm:$0xff]
      %v712 = vld [vmem:[%s697 + $0xa8] sm:$0xff]
      %v713 = vld [vmem:[%s697 + $0xb0] sm:$0xff]
      %v714 = vld [vmem:[%s697 + $0xc0] sm:$0xff]
      %v715 = vld [vmem:[%s697 + $0xc8] sm:$0xff]
      %v716 = vld [vmem:[%s697 + $0xd8] sm:$0xff]
      %v717 = vld [vmem:[%s697 + $0xe0] sm:$0xff]
      %v718 = vld [vmem:[%s697 + $0xf0] sm:$0xff]
      %v719 = vld [vmem:[%s697 + $0xf8] sm:$0xff]
      %v720 = vld [vmem:[%s697 + $0x108] sm:$0xff]
      %v721 = vld [vmem:[%s697 + $0x110] sm:$0xff]
      %v722 = vld [vmem:[%s697 + $0x120] sm:$0xff]
      %v723 = vld [vmem:[%s697 + $0x128] sm:$0xff]
      %v724 = vld [vmem:[%s697 + $0x138] sm:$0xff]
      %v725 = vld [vmem:[%s697 + $0x140] sm:$0xff]
      %v726 = vld [vmem:[%s697 + $0x150] sm:$0xff]
      %v727 = vld [vmem:[%s697 + $0x158] sm:$0xff]
      %v728 = vld [vmem:[%s697 + $0x168] sm:$0xff]
      %v729 = vld [vmem:[%s697 + $0x170] sm:$0xff]
      %v730 = vpack.c.bf16 %v699, %v698
      %v731 = vpack.c.bf16 %v701, %v700
      %v732 = vpack.c.bf16 %v703, %v702
      %v733 = vpack.c.bf16 %v705, %v704
      %v734 = vpack.c.bf16 %v707, %v706
      %v735 = vpack.c.bf16 %v709, %v708
      %v736 = vpack.c.bf16 %v711, %v710
      %v737 = vpack.c.bf16 %v713, %v712
      %v738 = vpack.c.bf16 %v715, %v714
      %v739 = vpack.c.bf16 %v717, %v716
      %v740 = vpack.c.bf16 %v719, %v718
      %v741 = vpack.c.bf16 %v721, %v720
      %v742 = vpack.c.bf16 %v723, %v722
      %v743 = vpack.c.bf16 %v725, %v724
      %v744 = vpack.c.bf16 %v727, %v726
      %v745 = vpack.c.bf16 %v729, %v728
      %s746 = scalar_lea.vmem %s1, 4
      %v747 = vld [vmem:[%s746] sm:$0x3]
      %v749 = vsel %vm271, %v730, 0
      %v752 = vsel %vm271, %v731, 0
      %v755 = vsel %vm271, %v732, 0
      %v758 = vsel %vm271, %v733, 0
      %v761 = vsel %vm271, %v734, 0
      %v764 = vsel %vm271, %v735, 0
      %v767 = vsel %vm271, %v736, 0
      %v770 = vsel %vm271, %v737, 0
      %v773 = vsel %vm271, %v738, 0
      %v776 = vsel %vm271, %v739, 0
      %v779 = vsel %vm271, %v740, 0
      %v782 = vsel %vm271, %v741, 0
      %v785 = vsel %vm271, %v742, 0
      %v788 = vsel %vm271, %v743, 0
      %v791 = vsel %vm271, %v744, 0
      %v794 = vsel %vm271, %v745, 0
      %v797 = vsel %vm320, %v747, 0
      %799 = vmatprep.subr.bf16.mxu0 0
      %800 = vmatpush1.bf16.msra.mxu0 0
      %801 = vmatprep.subr.bf16.mxu0 0
      %802 = vmatpush1.bf16.msra.mxu0 0
      %803 = vmatprep.subr.bf16.mxu0 0
      %804 = vmatpush1.bf16.msra.mxu0 0
      %805 = vmatprep.subr.bf16.mxu0 0
      %806 = vmatpush1.bf16.msra.mxu0 0
      %807 = vmatprep.subr.bf16.mxu0 0
      %808 = vmatpush1.bf16.msra.mxu0 0
      %809 = vmatprep.subr.bf16.mxu0 0
      %810 = vmatpush1.bf16.msra.mxu0 0
      %811 = vmatprep.subr.bf16.mxu0 0
      %812 = vmatpush1.bf16.msra.mxu0 0
      %813 = vmatprep.subr.bf16.mxu0 0
      %814 = vmatpush1.bf16.msra.mxu0 %v797
      %815 = vmatprep.subr.bf16.mxu0 0
      %816 = vmatpush2.bf16.msra.mxu0 0
      %817 = vmatprep.subr.bf16.mxu0 0
      %818 = vmatpush2.bf16.msra.mxu0 0
      %819 = vmatprep.subr.bf16.mxu0 0
      %820 = vmatpush2.bf16.msra.mxu0 0
      %821 = vmatprep.subr.bf16.mxu0 0
      %822 = vmatpush2.bf16.msra.mxu0 0
      %823 = vmatprep.subr.bf16.mxu0 0
      %824 = vmatpush2.bf16.msra.mxu0 0
      %825 = vmatprep.subr.bf16.mxu0 0
      %826 = vmatpush2.bf16.msra.mxu0 0
      %827 = vmatprep.subr.bf16.mxu0 0
      %828 = vmatpush2.bf16.msra.mxu0 0
      %829 = vmatprep.subr.bf16.mxu0 0
      %830 = vmatpush2.bf16.msra.mxu0 0
      %831 = vmatprep.mubr.bf16.mxu0 0
      %832 = vmatmul.mubr.bf16.gmra.mxu0 %v749
      %v833 = vpop.f32.mrf.mxu0
      %v834 = vadd.f32 0.0, %v833
      %v835 = vpop.f32.mrf.mxu0
      %v836 = vpop.f32.mrf.mxu0
      %v837 = vadd.f32 0.0, %v836
      %v838 = vpop.f32.mrf.mxu0
      %839 = vmatprep.mubr.bf16.mxu0 0
      %840 = vmatmul.mubr.bf16.gmra.mxu0 %v752
      %v841 = vpop.f32.mrf.mxu0
      %v842 = vadd.f32 0.0, %v841
      %v843 = vpop.f32.mrf.mxu0
      %v844 = vpop.f32.mrf.mxu0
      %v845 = vadd.f32 0.0, %v844
      %v846 = vpop.f32.mrf.mxu0
      %847 = vmatprep.mubr.bf16.mxu0 0
      %848 = vmatmul.mubr.bf16.gmra.mxu0 %v755
      %v849 = vpop.f32.mrf.mxu0
      %v850 = vadd.f32 0.0, %v849
      %v851 = vpop.f32.mrf.mxu0
      %v852 = vpop.f32.mrf.mxu0
      %v853 = vadd.f32 0.0, %v852
      %v854 = vpop.f32.mrf.mxu0
      %855 = vmatprep.mubr.bf16.mxu0 0
      %856 = vmatmul.mubr.bf16.gmra.mxu0 %v758
      %v857 = vpop.f32.mrf.mxu0
      %v858 = vadd.f32 0.0, %v857
      %v859 = vpop.f32.mrf.mxu0
      %v860 = vpop.f32.mrf.mxu0
      %v861 = vadd.f32 0.0, %v860
      %v862 = vpop.f32.mrf.mxu0
      %863 = vmatprep.mubr.bf16.mxu0 0
      %864 = vmatmul.mubr.bf16.gmra.mxu0 %v761
      %v865 = vpop.f32.mrf.mxu0
      %v866 = vadd.f32 0.0, %v865
      %v867 = vpop.f32.mrf.mxu0
      %v868 = vpop.f32.mrf.mxu0
      %v869 = vadd.f32 0.0, %v868
      %v870 = vpop.f32.mrf.mxu0
      %871 = vmatprep.mubr.bf16.mxu0 0
      %872 = vmatmul.mubr.bf16.gmra.mxu0 %v764
      %v873 = vpop.f32.mrf.mxu0
      %v874 = vadd.f32 0.0, %v873
      %v875 = vpop.f32.mrf.mxu0
      %v876 = vpop.f32.mrf.mxu0
      %v877 = vadd.f32 0.0, %v876
      %v878 = vpop.f32.mrf.mxu0
      %879 = vmatprep.mubr.bf16.mxu0 0
      %880 = vmatmul.mubr.bf16.gmra.mxu0 %v767
      %v881 = vpop.f32.mrf.mxu0
      %v882 = vadd.f32 0.0, %v881
      %v883 = vpop.f32.mrf.mxu0
      %v884 = vpop.f32.mrf.mxu0
      %v885 = vadd.f32 0.0, %v884
      %v886 = vpop.f32.mrf.mxu0
      %887 = vmatprep.mubr.bf16.mxu0 0
      %888 = vmatmul.mubr.bf16.gmra.mxu0 %v770
      %v889 = vpop.f32.mrf.mxu0
      %v890 = vadd.f32 0.0, %v889
      %v891 = vpop.f32.mrf.mxu0
      %v892 = vpop.f32.mrf.mxu0
      %v893 = vadd.f32 0.0, %v892
      %v894 = vpop.f32.mrf.mxu0
      %895 = vmatprep.mubr.bf16.mxu0 0
      %896 = vmatmul.mubr.bf16.gmra.mxu0 %v773
      %v897 = vpop.f32.mrf.mxu0
      %v898 = vadd.f32 0.0, %v897
      %v899 = vpop.f32.mrf.mxu0
      %v900 = vpop.f32.mrf.mxu0
      %v901 = vadd.f32 0.0, %v900
      %v902 = vpop.f32.mrf.mxu0
      %903 = vmatprep.mubr.bf16.mxu0 0
      %904 = vmatmul.mubr.bf16.gmra.mxu0 %v776
      %v905 = vpop.f32.mrf.mxu0
      %v906 = vadd.f32 0.0, %v905
      %v907 = vpop.f32.mrf.mxu0
      %v908 = vpop.f32.mrf.mxu0
      %v909 = vadd.f32 0.0, %v908
      %v910 = vpop.f32.mrf.mxu0
      %911 = vmatprep.mubr.bf16.mxu0 0
      %912 = vmatmul.mubr.bf16.gmra.mxu0 %v779
      %v913 = vpop.f32.mrf.mxu0
      %v914 = vadd.f32 0.0, %v913
      %v915 = vpop.f32.mrf.mxu0
      %v916 = vpop.f32.mrf.mxu0
      %v917 = vadd.f32 0.0, %v916
      %v918 = vpop.f32.mrf.mxu0
      %919 = vmatprep.mubr.bf16.mxu0 0
      %920 = vmatmul.mubr.bf16.gmra.mxu0 %v782
      %v921 = vpop.f32.mrf.mxu0
      %v922 = vadd.f32 0.0, %v921
      %v923 = vpop.f32.mrf.mxu0
      %v924 = vpop.f32.mrf.mxu0
      %v925 = vadd.f32 0.0, %v924
      %v926 = vpop.f32.mrf.mxu0
      %927 = vmatprep.mubr.bf16.mxu0 0
      %928 = vmatmul.mubr.bf16.gmra.mxu0 %v785
      %v929 = vpop.f32.mrf.mxu0
      %v930 = vadd.f32 0.0, %v929
      %v931 = vpop.f32.mrf.mxu0
      %v932 = vpop.f32.mrf.mxu0
      %v933 = vadd.f32 0.0, %v932
      %v934 = vpop.f32.mrf.mxu0
      %935 = vmatprep.mubr.bf16.mxu0 0
      %936 = vmatmul.mubr.bf16.gmra.mxu0 %v788
      %v937 = vpop.f32.mrf.mxu0
      %v938 = vadd.f32 0.0, %v937
      %v939 = vpop.f32.mrf.mxu0
      %v940 = vpop.f32.mrf.mxu0
      %v941 = vadd.f32 0.0, %v940
      %v942 = vpop.f32.mrf.mxu0
      %943 = vmatprep.mubr.bf16.mxu0 0
      %944 = vmatmul.mubr.bf16.gmra.mxu0 %v791
      %v945 = vpop.f32.mrf.mxu0
      %v946 = vadd.f32 0.0, %v945
      %v947 = vpop.f32.mrf.mxu0
      %v948 = vpop.f32.mrf.mxu0
      %v949 = vadd.f32 0.0, %v948
      %v950 = vpop.f32.mrf.mxu0
      %951 = vmatprep.mubr.bf16.mxu0 0
      %952 = vmatmul.mubr.bf16.gmra.mxu0 %v794
      %v953 = vpop.f32.mrf.mxu0
      %v954 = vadd.f32 0.0, %v953
      %v955 = vpop.f32.mrf.mxu0
      %v956 = vpop.f32.mrf.mxu0
      %v957 = vadd.f32 0.0, %v956
      %v958 = vpop.f32.mrf.mxu0
      %959 = vdwg.mxu0
      %v960 = vadd.f32 %v571, %v834
      %v961 = vadd.f32 %v574, %v837
      %v962 = vadd.f32 %v579, %v842
      %v963 = vadd.f32 %v582, %v845
      %v964 = vadd.f32 %v587, %v850
      %v965 = vadd.f32 %v590, %v853
      %v966 = vadd.f32 %v595, %v858
      %v967 = vadd.f32 %v598, %v861
      %v968 = vadd.f32 %v603, %v866
      %v969 = vadd.f32 %v606, %v869
      %v970 = vadd.f32 %v611, %v874
      %v971 = vadd.f32 %v614, %v877
      %v972 = vadd.f32 %v619, %v882
      %v973 = vadd.f32 %v622, %v885
      %v974 = vadd.f32 %v627, %v890
      %v975 = vadd.f32 %v630, %v893
      %v976 = vadd.f32 %v635, %v898
      %v977 = vadd.f32 %v638, %v901
      %v978 = vadd.f32 %v643, %v906
      %v979 = vadd.f32 %v646, %v909
      %v980 = vadd.f32 %v651, %v914
      %v981 = vadd.f32 %v654, %v917
      %v982 = vadd.f32 %v659, %v922
      %v983 = vadd.f32 %v662, %v925
      %v984 = vadd.f32 %v667, %v930
      %v985 = vadd.f32 %v670, %v933
      %v986 = vadd.f32 %v675, %v938
      %v987 = vadd.f32 %v678, %v941
      %v988 = vadd.f32 %v683, %v946
      %v989 = vadd.f32 %v686, %v949
      %v990 = vadd.f32 %v691, %v954
      %v991 = vadd.f32 %v694, %v957
      %v992 = vld [vmem:[%s697 + $0x1] sm:$0xff]
      %v993 = vld [vmem:[%s697 + $0x9] sm:$0xff]
      %v994 = vld [vmem:[%s697 + $0x19] sm:$0xff]
      %v995 = vld [vmem:[%s697 + $0x21] sm:$0xff]
      %v996 = vld [vmem:[%s697 + $0x31] sm:$0xff]
      %v997 = vld [vmem:[%s697 + $0x39] sm:$0xff]
      %v998 = vld [vmem:[%s697 + $0x49] sm:$0xff]
      %v999 = vld [vmem:[%s697 + $0x51] sm:$0xff]
      %v1000 = vld [vmem:[%s697 + $0x61] sm:$0xff]
      %v1001 = vld [vmem:[%s697 + $0x69] sm:$0xff]
      %v1002 = vld [vmem:[%s697 + $0x79] sm:$0xff]
      %v1003 = vld [vmem:[%s697 + $0x81] sm:$0xff]
      %v1004 = vld [vmem:[%s697 + $0x91] sm:$0xff]
      %v1005 = vld [vmem:[%s697 + $0x99] sm:$0xff]
      %v1006 = vld [vmem:[%s697 + $0xa9] sm:$0xff]
      %v1007 = vld [vmem:[%s697 + $0xb1] sm:$0xff]
      %v1008 = vld [vmem:[%s697 + $0xc1] sm:$0xff]
      %v1009 = vld [vmem:[%s697 + $0xc9] sm:$0xff]
      %v1010 = vld [vmem:[%s697 + $0xd9] sm:$0xff]
      %v1011 = vld [vmem:[%s697 + $0xe1] sm:$0xff]
      %v1012 = vld [vmem:[%s697 + $0xf1] sm:$0xff]
      %v1013 = vld [vmem:[%s697 + $0xf9] sm:$0xff]
      %v1014 = vld [vmem:[%s697 + $0x109] sm:$0xff]
      %v1015 = vld [vmem:[%s697 + $0x111] sm:$0xff]
      %v1016 = vld [vmem:[%s697 + $0x121] sm:$0xff]
      %v1017 = vld [vmem:[%s697 + $0x129] sm:$0xff]
      %v1018 = vld [vmem:[%s697 + $0x139] sm:$0xff]
      %v1019 = vld [vmem:[%s697 + $0x141] sm:$0xff]
      %v1020 = vld [vmem:[%s697 + $0x151] sm:$0xff]
      %v1021 = vld [vmem:[%s697 + $0x159] sm:$0xff]
      %v1022 = vld [vmem:[%s697 + $0x169] sm:$0xff]
      %v1023 = vld [vmem:[%s697 + $0x171] sm:$0xff]
      %v1024 = vpack.c.bf16 %v993, %v992
      %v1025 = vpack.c.bf16 %v995, %v994
      %v1026 = vpack.c.bf16 %v997, %v996
      %v1027 = vpack.c.bf16 %v999, %v998
      %v1028 = vpack.c.bf16 %v1001, %v1000
      %v1029 = vpack.c.bf16 %v1003, %v1002
      %v1030 = vpack.c.bf16 %v1005, %v1004
      %v1031 = vpack.c.bf16 %v1007, %v1006
      %v1032 = vpack.c.bf16 %v1009, %v1008
      %v1033 = vpack.c.bf16 %v1011, %v1010
      %v1034 = vpack.c.bf16 %v1013, %v1012
      %v1035 = vpack.c.bf16 %v1015, %v1014
      %v1036 = vpack.c.bf16 %v1017, %v1016
      %v1037 = vpack.c.bf16 %v1019, %v1018
      %v1038 = vpack.c.bf16 %v1021, %v1020
      %v1039 = vpack.c.bf16 %v1023, %v1022
      %s1040 = scalar_lea.vmem %s1, 6
      %v1041 = vld [vmem:[%s1040] sm:$0x3]
      %v1043 = vsel %vm271, %v1024, 0
      %v1046 = vsel %vm271, %v1025, 0
      %v1049 = vsel %vm271, %v1026, 0
      %v1052 = vsel %vm271, %v1027, 0
      %v1055 = vsel %vm271, %v1028, 0
      %v1058 = vsel %vm271, %v1029, 0
      %v1061 = vsel %vm271, %v1030, 0
      %v1064 = vsel %vm271, %v1031, 0
      %v1067 = vsel %vm271, %v1032, 0
      %v1070 = vsel %vm271, %v1033, 0
      %v1073 = vsel %vm271, %v1034, 0
      %v1076 = vsel %vm271, %v1035, 0
      %v1079 = vsel %vm271, %v1036, 0
      %v1082 = vsel %vm271, %v1037, 0
      %v1085 = vsel %vm271, %v1038, 0
      %v1088 = vsel %vm271, %v1039, 0
      %v1091 = vsel %vm320, %v1041, 0
      %1093 = vmatprep.subr.bf16.mxu0 0
      %1094 = vmatpush1.bf16.msra.mxu0 0
      %1095 = vmatprep.subr.bf16.mxu0 0
      %1096 = vmatpush1.bf16.msra.mxu0 0
      %1097 = vmatprep.subr.bf16.mxu0 0
      %1098 = vmatpush1.bf16.msra.mxu0 0
      %1099 = vmatprep.subr.bf16.mxu0 0
      %1100 = vmatpush1.bf16.msra.mxu0 0
      %1101 = vmatprep.subr.bf16.mxu0 0
      %1102 = vmatpush1.bf16.msra.mxu0 0
      %1103 = vmatprep.subr.bf16.mxu0 0
      %1104 = vmatpush1.bf16.msra.mxu0 0
      %1105 = vmatprep.subr.bf16.mxu0 0
      %1106 = vmatpush1.bf16.msra.mxu0 0
      %1107 = vmatprep.subr.bf16.mxu0 0
      %1108 = vmatpush1.bf16.msra.mxu0 %v1091
      %1109 = vmatprep.subr.bf16.mxu0 0
      %1110 = vmatpush2.bf16.msra.mxu0 0
      %1111 = vmatprep.subr.bf16.mxu0 0
      %1112 = vmatpush2.bf16.msra.mxu0 0
      %1113 = vmatprep.subr.bf16.mxu0 0
      %1114 = vmatpush2.bf16.msra.mxu0 0
      %1115 = vmatprep.subr.bf16.mxu0 0
      %1116 = vmatpush2.bf16.msra.mxu0 0
      %1117 = vmatprep.subr.bf16.mxu0 0
      %1118 = vmatpush2.bf16.msra.mxu0 0
      %1119 = vmatprep.subr.bf16.mxu0 0
      %1120 = vmatpush2.bf16.msra.mxu0 0
      %1121 = vmatprep.subr.bf16.mxu0 0
      %1122 = vmatpush2.bf16.msra.mxu0 0
      %1123 = vmatprep.subr.bf16.mxu0 0
      %1124 = vmatpush2.bf16.msra.mxu0 0
      %1125 = vmatprep.mubr.bf16.mxu0 0
      %1126 = vmatmul.mubr.bf16.gmra.mxu0 %v1043
      %v1127 = vpop.f32.mrf.mxu0
      %v1128 = vadd.f32 0.0, %v1127
      %v1129 = vpop.f32.mrf.mxu0
      %v1130 = vpop.f32.mrf.mxu0
      %v1131 = vadd.f32 0.0, %v1130
      %v1132 = vpop.f32.mrf.mxu0
      %1133 = vmatprep.mubr.bf16.mxu0 0
      %1134 = vmatmul.mubr.bf16.gmra.mxu0 %v1046
      %v1135 = vpop.f32.mrf.mxu0
      %v1136 = vadd.f32 0.0, %v1135
      %v1137 = vpop.f32.mrf.mxu0
      %v1138 = vpop.f32.mrf.mxu0
      %v1139 = vadd.f32 0.0, %v1138
      %v1140 = vpop.f32.mrf.mxu0
      %1141 = vmatprep.mubr.bf16.mxu0 0
      %1142 = vmatmul.mubr.bf16.gmra.mxu0 %v1049
      %v1143 = vpop.f32.mrf.mxu0
      %v1144 = vadd.f32 0.0, %v1143
      %v1145 = vpop.f32.mrf.mxu0
      %v1146 = vpop.f32.mrf.mxu0
      %v1147 = vadd.f32 0.0, %v1146
      %v1148 = vpop.f32.mrf.mxu0
      %1149 = vmatprep.mubr.bf16.mxu0 0
      %1150 = vmatmul.mubr.bf16.gmra.mxu0 %v1052
      %v1151 = vpop.f32.mrf.mxu0
      %v1152 = vadd.f32 0.0, %v1151
      %v1153 = vpop.f32.mrf.mxu0
      %v1154 = vpop.f32.mrf.mxu0
      %v1155 = vadd.f32 0.0, %v1154
      %v1156 = vpop.f32.mrf.mxu0
      %1157 = vmatprep.mubr.bf16.mxu0 0
      %1158 = vmatmul.mubr.bf16.gmra.mxu0 %v1055
      %v1159 = vpop.f32.mrf.mxu0
      %v1160 = vadd.f32 0.0, %v1159
      %v1161 = vpop.f32.mrf.mxu0
      %v1162 = vpop.f32.mrf.mxu0
      %v1163 = vadd.f32 0.0, %v1162
      %v1164 = vpop.f32.mrf.mxu0
      %1165 = vmatprep.mubr.bf16.mxu0 0
      %1166 = vmatmul.mubr.bf16.gmra.mxu0 %v1058
      %v1167 = vpop.f32.mrf.mxu0
      %v1168 = vadd.f32 0.0, %v1167
      %v1169 = vpop.f32.mrf.mxu0
      %v1170 = vpop.f32.mrf.mxu0
      %v1171 = vadd.f32 0.0, %v1170
      %v1172 = vpop.f32.mrf.mxu0
      %1173 = vmatprep.mubr.bf16.mxu0 0
      %1174 = vmatmul.mubr.bf16.gmra.mxu0 %v1061
      %v1175 = vpop.f32.mrf.mxu0
      %v1176 = vadd.f32 0.0, %v1175
      %v1177 = vpop.f32.mrf.mxu0
      %v1178 = vpop.f32.mrf.mxu0
      %v1179 = vadd.f32 0.0, %v1178
      %v1180 = vpop.f32.mrf.mxu0
      %1181 = vmatprep.mubr.bf16.mxu0 0
      %1182 = vmatmul.mubr.bf16.gmra.mxu0 %v1064
      %v1183 = vpop.f32.mrf.mxu0
      %v1184 = vadd.f32 0.0, %v1183
      %v1185 = vpop.f32.mrf.mxu0
      %v1186 = vpop.f32.mrf.mxu0
      %v1187 = vadd.f32 0.0, %v1186
      %v1188 = vpop.f32.mrf.mxu0
      %1189 = vmatprep.mubr.bf16.mxu0 0
      %1190 = vmatmul.mubr.bf16.gmra.mxu0 %v1067
      %v1191 = vpop.f32.mrf.mxu0
      %v1192 = vadd.f32 0.0, %v1191
      %v1193 = vpop.f32.mrf.mxu0
      %v1194 = vpop.f32.mrf.mxu0
      %v1195 = vadd.f32 0.0, %v1194
      %v1196 = vpop.f32.mrf.mxu0
      %1197 = vmatprep.mubr.bf16.mxu0 0
      %1198 = vmatmul.mubr.bf16.gmra.mxu0 %v1070
      %v1199 = vpop.f32.mrf.mxu0
      %v1200 = vadd.f32 0.0, %v1199
      %v1201 = vpop.f32.mrf.mxu0
      %v1202 = vpop.f32.mrf.mxu0
      %v1203 = vadd.f32 0.0, %v1202
      %v1204 = vpop.f32.mrf.mxu0
      %1205 = vmatprep.mubr.bf16.mxu0 0
      %1206 = vmatmul.mubr.bf16.gmra.mxu0 %v1073
      %v1207 = vpop.f32.mrf.mxu0
      %v1208 = vadd.f32 0.0, %v1207
      %v1209 = vpop.f32.mrf.mxu0
      %v1210 = vpop.f32.mrf.mxu0
      %v1211 = vadd.f32 0.0, %v1210
      %v1212 = vpop.f32.mrf.mxu0
      %1213 = vmatprep.mubr.bf16.mxu0 0
      %1214 = vmatmul.mubr.bf16.gmra.mxu0 %v1076
      %v1215 = vpop.f32.mrf.mxu0
      %v1216 = vadd.f32 0.0, %v1215
      %v1217 = vpop.f32.mrf.mxu0
      %v1218 = vpop.f32.mrf.mxu0
      %v1219 = vadd.f32 0.0, %v1218
      %v1220 = vpop.f32.mrf.mxu0
      %1221 = vmatprep.mubr.bf16.mxu0 0
      %1222 = vmatmul.mubr.bf16.gmra.mxu0 %v1079
      %v1223 = vpop.f32.mrf.mxu0
      %v1224 = vadd.f32 0.0, %v1223
      %v1225 = vpop.f32.mrf.mxu0
      %v1226 = vpop.f32.mrf.mxu0
      %v1227 = vadd.f32 0.0, %v1226
      %v1228 = vpop.f32.mrf.mxu0
      %1229 = vmatprep.mubr.bf16.mxu0 0
      %1230 = vmatmul.mubr.bf16.gmra.mxu0 %v1082
      %v1231 = vpop.f32.mrf.mxu0
      %v1232 = vadd.f32 0.0, %v1231
      %v1233 = vpop.f32.mrf.mxu0
      %v1234 = vpop.f32.mrf.mxu0
      %v1235 = vadd.f32 0.0, %v1234
      %v1236 = vpop.f32.mrf.mxu0
      %1237 = vmatprep.mubr.bf16.mxu0 0
      %1238 = vmatmul.mubr.bf16.gmra.mxu0 %v1085
      %v1239 = vpop.f32.mrf.mxu0
      %v1240 = vadd.f32 0.0, %v1239
      %v1241 = vpop.f32.mrf.mxu0
      %v1242 = vpop.f32.mrf.mxu0
      %v1243 = vadd.f32 0.0, %v1242
      %v1244 = vpop.f32.mrf.mxu0
      %1245 = vmatprep.mubr.bf16.mxu0 0
      %1246 = vmatmul.mubr.bf16.gmra.mxu0 %v1088
      %v1247 = vpop.f32.mrf.mxu0
      %v1248 = vadd.f32 0.0, %v1247
      %v1249 = vpop.f32.mrf.mxu0
      %v1250 = vpop.f32.mrf.mxu0
      %v1251 = vadd.f32 0.0, %v1250
      %v1252 = vpop.f32.mrf.mxu0
      %1253 = vdwg.mxu0
      %v1254 = vadd.f32 %v960, %v1128
      %v1255 = vadd.f32 %v961, %v1131
      %v1256 = vadd.f32 %v962, %v1136
      %v1257 = vadd.f32 %v963, %v1139
      %v1258 = vadd.f32 %v964, %v1144
      %v1259 = vadd.f32 %v965, %v1147
      %v1260 = vadd.f32 %v966, %v1152
      %v1261 = vadd.f32 %v967, %v1155
      %v1262 = vadd.f32 %v968, %v1160
      %v1263 = vadd.f32 %v969, %v1163
      %v1264 = vadd.f32 %v970, %v1168
      %v1265 = vadd.f32 %v971, %v1171
      %v1266 = vadd.f32 %v972, %v1176
      %v1267 = vadd.f32 %v973, %v1179
      %v1268 = vadd.f32 %v974, %v1184
      %v1269 = vadd.f32 %v975, %v1187
      %v1270 = vadd.f32 %v976, %v1192
      %v1271 = vadd.f32 %v977, %v1195
      %v1272 = vadd.f32 %v978, %v1200
      %v1273 = vadd.f32 %v979, %v1203
      %v1274 = vadd.f32 %v980, %v1208
      %v1275 = vadd.f32 %v981, %v1211
      %v1276 = vadd.f32 %v982, %v1216
      %v1277 = vadd.f32 %v983, %v1219
      %v1278 = vadd.f32 %v984, %v1224
      %v1279 = vadd.f32 %v985, %v1227
      %v1280 = vadd.f32 %v986, %v1232
      %v1281 = vadd.f32 %v987, %v1235
      %v1282 = vadd.f32 %v988, %v1240
      %v1283 = vadd.f32 %v989, %v1243
      %v1284 = vadd.f32 %v990, %v1248
      %v1285 = vadd.f32 %v991, %v1251
      %v1286 = vld [vmem:[%s2] sm:$0x1]
      %v1288 = vlaneseq
      %v1289 = vshrl.u32 %v1288, 7
      %v1290 = vsub.s32 0, %v1289
      %v1291 = vrot.slane %v1286, %v1290
      %v1293 = vadd.f32 %v1254, %v1291
      %v1294 = vadd.f32 %v1255, %v1291
      %v1295 = vadd.f32 %v1256, %v1291
      %v1296 = vadd.f32 %v1257, %v1291
      %v1297 = vadd.f32 %v1258, %v1291
      %v1298 = vadd.f32 %v1259, %v1291
      %v1299 = vadd.f32 %v1260, %v1291
      %v1300 = vadd.f32 %v1261, %v1291
      %v1301 = vadd.f32 %v1262, %v1291
      %v1302 = vadd.f32 %v1263, %v1291
      %v1303 = vadd.f32 %v1264, %v1291
      %v1304 = vadd.f32 %v1265, %v1291
      %v1305 = vadd.f32 %v1266, %v1291
      %v1306 = vadd.f32 %v1267, %v1291
      %v1307 = vadd.f32 %v1268, %v1291
      %v1308 = vadd.f32 %v1269, %v1291
      %v1309 = vadd.f32 %v1270, %v1291
      %v1310 = vadd.f32 %v1271, %v1291
      %v1311 = vadd.f32 %v1272, %v1291
      %v1312 = vadd.f32 %v1273, %v1291
      %v1313 = vadd.f32 %v1274, %v1291
      %v1314 = vadd.f32 %v1275, %v1291
      %v1315 = vadd.f32 %v1276, %v1291
      %v1316 = vadd.f32 %v1277, %v1291
      %v1317 = vadd.f32 %v1278, %v1291
      %v1318 = vadd.f32 %v1279, %v1291
      %v1319 = vadd.f32 %v1280, %v1291
      %v1320 = vadd.f32 %v1281, %v1291
      %v1321 = vadd.f32 %v1282, %v1291
      %v1322 = vadd.f32 %v1283, %v1291
      %v1323 = vadd.f32 %v1284, %v1291
      %v1324 = vadd.f32 %v1285, %v1291
      %vm1325 = vcmask 64512
      %1326 = vst.msk [vmem:[%s170] sm:$0xff] %vm1325, %v1293
      %1327 = vst.msk [vmem:[%s170 + $0x8] sm:$0xff] %vm1325, %v1294
      %1328 = vst.msk [vmem:[%s170 + $0x10] sm:$0xff] %vm1325, %v1295
      %1329 = vst.msk [vmem:[%s170 + $0x18] sm:$0xff] %vm1325, %v1296
      %1330 = vst.msk [vmem:[%s170 + $0x20] sm:$0xff] %vm1325, %v1297
      %1331 = vst.msk [vmem:[%s170 + $0x28] sm:$0xff] %vm1325, %v1298
      %1332 = vst.msk [vmem:[%s170 + $0x30] sm:$0xff] %vm1325, %v1299
      %1333 = vst.msk [vmem:[%s170 + $0x38] sm:$0xff] %vm1325, %v1300
      %1334 = vst.msk [vmem:[%s170 + $0x40] sm:$0xff] %vm1325, %v1301
      %1335 = vst.msk [vmem:[%s170 + $0x48] sm:$0xff] %vm1325, %v1302
      %1336 = vst.msk [vmem:[%s170 + $0x50] sm:$0xff] %vm1325, %v1303
      %1337 = vst.msk [vmem:[%s170 + $0x58] sm:$0xff] %vm1325, %v1304
      %1338 = vst.msk [vmem:[%s170 + $0x60] sm:$0xff] %vm1325, %v1305
      %1339 = vst.msk [vmem:[%s170 + $0x68] sm:$0xff] %vm1325, %v1306
      %1340 = vst.msk [vmem:[%s170 + $0x70] sm:$0xff] %vm1325, %v1307
      %1341 = vst.msk [vmem:[%s170 + $0x78] sm:$0xff] %vm1325, %v1308
      %1342 = vst.msk [vmem:[%s170 + $0x80] sm:$0xff] %vm1325, %v1309
      %1343 = vst.msk [vmem:[%s170 + $0x88] sm:$0xff] %vm1325, %v1310
      %1344 = vst.msk [vmem:[%s170 + $0x90] sm:$0xff] %vm1325, %v1311
      %1345 = vst.msk [vmem:[%s170 + $0x98] sm:$0xff] %vm1325, %v1312
      %1346 = vst.msk [vmem:[%s170 + $0xa0] sm:$0xff] %vm1325, %v1313
      %1347 = vst.msk [vmem:[%s170 + $0xa8] sm:$0xff] %vm1325, %v1314
      %1348 = vst.msk [vmem:[%s170 + $0xb0] sm:$0xff] %vm1325, %v1315
      %1349 = vst.msk [vmem:[%s170 + $0xb8] sm:$0xff] %vm1325, %v1316
      %1350 = vst.msk [vmem:[%s170 + $0xc0] sm:$0xff] %vm1325, %v1317
      %1351 = vst.msk [vmem:[%s170 + $0xc8] sm:$0xff] %vm1325, %v1318
      %1352 = vst.msk [vmem:[%s170 + $0xd0] sm:$0xff] %vm1325, %v1319
      %1353 = vst.msk [vmem:[%s170 + $0xd8] sm:$0xff] %vm1325, %v1320
      %1354 = vst.msk [vmem:[%s170 + $0xe0] sm:$0xff] %vm1325, %v1321
      %1355 = vst.msk [vmem:[%s170 + $0xe8] sm:$0xff] %vm1325, %v1322
      %1356 = vst.msk [vmem:[%s170 + $0xf0] sm:$0xff] %vm1325, %v1323
      %1357 = vst.msk [vmem:[%s170 + $0xf8] sm:$0xff] %vm1325, %v1324
      %v1358 = vld [vmem:[%s165 + $0x1] sm:$0xff]
      %v1359 = vld [vmem:[%s165 + $0x9] sm:$0xff]
      %v1360 = vld [vmem:[%s165 + $0x19] sm:$0xff]
      %v1361 = vld [vmem:[%s165 + $0x21] sm:$0xff]
      %v1362 = vld [vmem:[%s165 + $0x31] sm:$0xff]
      %v1363 = vld [vmem:[%s165 + $0x39] sm:$0xff]
      %v1364 = vld [vmem:[%s165 + $0x49] sm:$0xff]
      %v1365 = vld [vmem:[%s165 + $0x51] sm:$0xff]
      %v1366 = vld [vmem:[%s165 + $0x61] sm:$0xff]
      %v1367 = vld [vmem:[%s165 + $0x69] sm:$0xff]
      %v1368 = vld [vmem:[%s165 + $0x79] sm:$0xff]
      %v1369 = vld [vmem:[%s165 + $0x81] sm:$0xff]
      %v1370 = vld [vmem:[%s165 + $0x91] sm:$0xff]
      %v1371 = vld [vmem:[%s165 + $0x99] sm:$0xff]
      %v1372 = vld [vmem:[%s165 + $0xa9] sm:$0xff]
      %v1373 = vld [vmem:[%s165 + $0xb1] sm:$0xff]
      %v1374 = vld [vmem:[%s165 + $0xc1] sm:$0xff]
      %v1375 = vld [vmem:[%s165 + $0xc9] sm:$0xff]
      %v1376 = vld [vmem:[%s165 + $0xd9] sm:$0xff]
      %v1377 = vld [vmem:[%s165 + $0xe1] sm:$0xff]
      %v1378 = vld [vmem:[%s165 + $0xf1] sm:$0xff]
      %v1379 = vld [vmem:[%s165 + $0xf9] sm:$0xff]
      %v1380 = vld [vmem:[%s165 + $0x109] sm:$0xff]
      %v1381 = vld [vmem:[%s165 + $0x111] sm:$0xff]
      %v1382 = vld [vmem:[%s165 + $0x121] sm:$0xff]
      %v1383 = vld [vmem:[%s165 + $0x129] sm:$0xff]
      %v1384 = vld [vmem:[%s165 + $0x139] sm:$0xff]
      %v1385 = vld [vmem:[%s165 + $0x141] sm:$0xff]
      %v1386 = vld [vmem:[%s165 + $0x151] sm:$0xff]
      %v1387 = vld [vmem:[%s165 + $0x159] sm:$0xff]
      %v1388 = vld [vmem:[%s165 + $0x169] sm:$0xff]
      %v1389 = vld [vmem:[%s165 + $0x171] sm:$0xff]
      %v1390 = vpack.c.bf16 %v1359, %v1358
      %v1391 = vpack.c.bf16 %v1361, %v1360
      %v1392 = vpack.c.bf16 %v1363, %v1362
      %v1393 = vpack.c.bf16 %v1365, %v1364
      %v1394 = vpack.c.bf16 %v1367, %v1366
      %v1395 = vpack.c.bf16 %v1369, %v1368
      %v1396 = vpack.c.bf16 %v1371, %v1370
      %v1397 = vpack.c.bf16 %v1373, %v1372
      %v1398 = vpack.c.bf16 %v1375, %v1374
      %v1399 = vpack.c.bf16 %v1377, %v1376
      %v1400 = vpack.c.bf16 %v1379, %v1378
      %v1401 = vpack.c.bf16 %v1381, %v1380
      %v1402 = vpack.c.bf16 %v1383, %v1382
      %v1403 = vpack.c.bf16 %v1385, %v1384
      %v1404 = vpack.c.bf16 %v1387, %v1386
      %v1405 = vpack.c.bf16 %v1389, %v1388
      %s1406 = scalar_lea.vmem %s1, 8
      %v1407 = vld [vmem:[%s1406] sm:$0x3]
      %v1408 = vld [vmem:[%s165 + $0x2] sm:$0xff]
      %v1409 = vld [vmem:[%s165 + $0xa] sm:$0xff]
      %v1410 = vld [vmem:[%s165 + $0x1a] sm:$0xff]
      %v1411 = vld [vmem:[%s165 + $0x22] sm:$0xff]
      %v1412 = vld [vmem:[%s165 + $0x32] sm:$0xff]
      %v1413 = vld [vmem:[%s165 + $0x3a] sm:$0xff]
      %v1414 = vld [vmem:[%s165 + $0x4a] sm:$0xff]
      %v1415 = vld [vmem:[%s165 + $0x52] sm:$0xff]
      %v1416 = vld [vmem:[%s165 + $0x62] sm:$0xff]
      %v1417 = vld [vmem:[%s165 + $0x6a] sm:$0xff]
      %v1418 = vld [vmem:[%s165 + $0x7a] sm:$0xff]
      %v1419 = vld [vmem:[%s165 + $0x82] sm:$0xff]
      %v1420 = vld [vmem:[%s165 + $0x92] sm:$0xff]
      %v1421 = vld [vmem:[%s165 + $0x9a] sm:$0xff]
      %v1422 = vld [vmem:[%s165 + $0xaa] sm:$0xff]
      %v1423 = vld [vmem:[%s165 + $0xb2] sm:$0xff]
      %v1424 = vld [vmem:[%s165 + $0xc2] sm:$0xff]
      %v1425 = vld [vmem:[%s165 + $0xca] sm:$0xff]
      %v1426 = vld [vmem:[%s165 + $0xda] sm:$0xff]
      %v1427 = vld [vmem:[%s165 + $0xe2] sm:$0xff]
      %v1428 = vld [vmem:[%s165 + $0xf2] sm:$0xff]
      %v1429 = vld [vmem:[%s165 + $0xfa] sm:$0xff]
      %v1430 = vld [vmem:[%s165 + $0x10a] sm:$0xff]
      %v1431 = vld [vmem:[%s165 + $0x112] sm:$0xff]
      %v1432 = vld [vmem:[%s165 + $0x122] sm:$0xff]
      %v1433 = vld [vmem:[%s165 + $0x12a] sm:$0xff]
      %v1434 = vld [vmem:[%s165 + $0x13a] sm:$0xff]
      %v1435 = vld [vmem:[%s165 + $0x142] sm:$0xff]
      %v1436 = vld [vmem:[%s165 + $0x152] sm:$0xff]
      %v1437 = vld [vmem:[%s165 + $0x15a] sm:$0xff]
      %v1438 = vld [vmem:[%s165 + $0x16a] sm:$0xff]
      %v1439 = vld [vmem:[%s165 + $0x172] sm:$0xff]
      %v1440 = vpack.c.bf16 %v1409, %v1408
      %v1441 = vpack.c.bf16 %v1411, %v1410
      %v1442 = vpack.c.bf16 %v1413, %v1412
      %v1443 = vpack.c.bf16 %v1415, %v1414
      %v1444 = vpack.c.bf16 %v1417, %v1416
      %v1445 = vpack.c.bf16 %v1419, %v1418
      %v1446 = vpack.c.bf16 %v1421, %v1420
      %v1447 = vpack.c.bf16 %v1423, %v1422
      %v1448 = vpack.c.bf16 %v1425, %v1424
      %v1449 = vpack.c.bf16 %v1427, %v1426
      %v1450 = vpack.c.bf16 %v1429, %v1428
      %v1451 = vpack.c.bf16 %v1431, %v1430
      %v1452 = vpack.c.bf16 %v1433, %v1432
      %v1453 = vpack.c.bf16 %v1435, %v1434
      %v1454 = vpack.c.bf16 %v1437, %v1436
      %v1455 = vpack.c.bf16 %v1439, %v1438
      %s1456 = scalar_lea.vmem %s1, 10
      %v1457 = vld [vmem:[%s1456] sm:$0x3]
      %v1459 = vsel %vm271, %v1440, 0
      %v1462 = vsel %vm271, %v1441, 0
      %v1465 = vsel %vm271, %v1442, 0
      %v1468 = vsel %vm271, %v1443, 0
      %v1471 = vsel %vm271, %v1444, 0
      %v1474 = vsel %vm271, %v1445, 0
      %v1477 = vsel %vm271, %v1446, 0
      %v1480 = vsel %vm271, %v1447, 0
      %v1483 = vsel %vm271, %v1448, 0
      %v1486 = vsel %vm271, %v1449, 0
      %v1489 = vsel %vm271, %v1450, 0
      %v1492 = vsel %vm271, %v1451, 0
      %v1495 = vsel %vm271, %v1452, 0
      %v1498 = vsel %vm271, %v1453, 0
      %v1501 = vsel %vm271, %v1454, 0
      %v1504 = vsel %vm271, %v1455, 0
      %v1507 = vsel %vm320, %v1457, 0
      %1509 = vmatprep.subr.bf16.mxu0 0
      %1510 = vmatpush1.bf16.msra.mxu0 0
      %1511 = vmatprep.subr.bf16.mxu0 0
      %1512 = vmatpush1.bf16.msra.mxu0 0
      %1513 = vmatprep.subr.bf16.mxu0 0
      %1514 = vmatpush1.bf16.msra.mxu0 0
      %1515 = vmatprep.subr.bf16.mxu0 0
      %1516 = vmatpush1.bf16.msra.mxu0 0
      %1517 = vmatprep.subr.bf16.mxu0 0
      %1518 = vmatpush1.bf16.msra.mxu0 0
      %1519 = vmatprep.subr.bf16.mxu0 0
      %1520 = vmatpush1.bf16.msra.mxu0 0
      %1521 = vmatprep.subr.bf16.mxu0 0
      %1522 = vmatpush1.bf16.msra.mxu0 0
      %1523 = vmatprep.subr.bf16.mxu0 0
      %1524 = vmatpush1.bf16.msra.mxu0 %v1507
      %1525 = vmatprep.subr.bf16.mxu0 0
      %1526 = vmatpush2.bf16.msra.mxu0 0
      %1527 = vmatprep.subr.bf16.mxu0 0
      %1528 = vmatpush2.bf16.msra.mxu0 0
      %1529 = vmatprep.subr.bf16.mxu0 0
      %1530 = vmatpush2.bf16.msra.mxu0 0
      %1531 = vmatprep.subr.bf16.mxu0 0
      %1532 = vmatpush2.bf16.msra.mxu0 0
      %1533 = vmatprep.subr.bf16.mxu0 0
      %1534 = vmatpush2.bf16.msra.mxu0 0
      %1535 = vmatprep.subr.bf16.mxu0 0
      %1536 = vmatpush2.bf16.msra.mxu0 0
      %1537 = vmatprep.subr.bf16.mxu0 0
      %1538 = vmatpush2.bf16.msra.mxu0 0
      %1539 = vmatprep.subr.bf16.mxu0 0
      %1540 = vmatpush2.bf16.msra.mxu0 0
      %1541 = vmatprep.mubr.bf16.mxu0 0
      %1542 = vmatmul.mubr.bf16.gmra.mxu0 %v1459
      %v1543 = vpop.f32.mrf.mxu0
      %v1544 = vadd.f32 0.0, %v1543
      %v1545 = vpop.f32.mrf.mxu0
      %v1546 = vpop.f32.mrf.mxu0
      %v1547 = vadd.f32 0.0, %v1546
      %v1548 = vpop.f32.mrf.mxu0
      %1549 = vmatprep.mubr.bf16.mxu0 0
      %1550 = vmatmul.mubr.bf16.gmra.mxu0 %v1462
      %v1551 = vpop.f32.mrf.mxu0
      %v1552 = vadd.f32 0.0, %v1551
      %v1553 = vpop.f32.mrf.mxu0
      %v1554 = vpop.f32.mrf.mxu0
      %v1555 = vadd.f32 0.0, %v1554
      %v1556 = vpop.f32.mrf.mxu0
      %1557 = vmatprep.mubr.bf16.mxu0 0
      %1558 = vmatmul.mubr.bf16.gmra.mxu0 %v1465
      %v1559 = vpop.f32.mrf.mxu0
      %v1560 = vadd.f32 0.0, %v1559
      %v1561 = vpop.f32.mrf.mxu0
      %v1562 = vpop.f32.mrf.mxu0
      %v1563 = vadd.f32 0.0, %v1562
      %v1564 = vpop.f32.mrf.mxu0
      %1565 = vmatprep.mubr.bf16.mxu0 0
      %1566 = vmatmul.mubr.bf16.gmra.mxu0 %v1468
      %v1567 = vpop.f32.mrf.mxu0
      %v1568 = vadd.f32 0.0, %v1567
      %v1569 = vpop.f32.mrf.mxu0
      %v1570 = vpop.f32.mrf.mxu0
      %v1571 = vadd.f32 0.0, %v1570
      %v1572 = vpop.f32.mrf.mxu0
      %1573 = vmatprep.mubr.bf16.mxu0 0
      %1574 = vmatmul.mubr.bf16.gmra.mxu0 %v1471
      %v1575 = vpop.f32.mrf.mxu0
      %v1576 = vadd.f32 0.0, %v1575
      %v1577 = vpop.f32.mrf.mxu0
      %v1578 = vpop.f32.mrf.mxu0
      %v1579 = vadd.f32 0.0, %v1578
      %v1580 = vpop.f32.mrf.mxu0
      %1581 = vmatprep.mubr.bf16.mxu0 0
      %1582 = vmatmul.mubr.bf16.gmra.mxu0 %v1474
      %v1583 = vpop.f32.mrf.mxu0
      %v1584 = vadd.f32 0.0, %v1583
      %v1585 = vpop.f32.mrf.mxu0
      %v1586 = vpop.f32.mrf.mxu0
      %v1587 = vadd.f32 0.0, %v1586
      %v1588 = vpop.f32.mrf.mxu0
      %1589 = vmatprep.mubr.bf16.mxu0 0
      %1590 = vmatmul.mubr.bf16.gmra.mxu0 %v1477
      %v1591 = vpop.f32.mrf.mxu0
      %v1592 = vadd.f32 0.0, %v1591
      %v1593 = vpop.f32.mrf.mxu0
      %v1594 = vpop.f32.mrf.mxu0
      %v1595 = vadd.f32 0.0, %v1594
      %v1596 = vpop.f32.mrf.mxu0
      %1597 = vmatprep.mubr.bf16.mxu0 0
      %1598 = vmatmul.mubr.bf16.gmra.mxu0 %v1480
      %v1599 = vpop.f32.mrf.mxu0
      %v1600 = vadd.f32 0.0, %v1599
      %v1601 = vpop.f32.mrf.mxu0
      %v1602 = vpop.f32.mrf.mxu0
      %v1603 = vadd.f32 0.0, %v1602
      %v1604 = vpop.f32.mrf.mxu0
      %1605 = vmatprep.mubr.bf16.mxu0 0
      %1606 = vmatmul.mubr.bf16.gmra.mxu0 %v1483
      %v1607 = vpop.f32.mrf.mxu0
      %v1608 = vadd.f32 0.0, %v1607
      %v1609 = vpop.f32.mrf.mxu0
      %v1610 = vpop.f32.mrf.mxu0
      %v1611 = vadd.f32 0.0, %v1610
      %v1612 = vpop.f32.mrf.mxu0
      %1613 = vmatprep.mubr.bf16.mxu0 0
      %1614 = vmatmul.mubr.bf16.gmra.mxu0 %v1486
      %v1615 = vpop.f32.mrf.mxu0
      %v1616 = vadd.f32 0.0, %v1615
      %v1617 = vpop.f32.mrf.mxu0
      %v1618 = vpop.f32.mrf.mxu0
      %v1619 = vadd.f32 0.0, %v1618
      %v1620 = vpop.f32.mrf.mxu0
      %1621 = vmatprep.mubr.bf16.mxu0 0
      %1622 = vmatmul.mubr.bf16.gmra.mxu0 %v1489
      %v1623 = vpop.f32.mrf.mxu0
      %v1624 = vadd.f32 0.0, %v1623
      %v1625 = vpop.f32.mrf.mxu0
      %v1626 = vpop.f32.mrf.mxu0
      %v1627 = vadd.f32 0.0, %v1626
      %v1628 = vpop.f32.mrf.mxu0
      %1629 = vmatprep.mubr.bf16.mxu0 0
      %1630 = vmatmul.mubr.bf16.gmra.mxu0 %v1492
      %v1631 = vpop.f32.mrf.mxu0
      %v1632 = vadd.f32 0.0, %v1631
      %v1633 = vpop.f32.mrf.mxu0
      %v1634 = vpop.f32.mrf.mxu0
      %v1635 = vadd.f32 0.0, %v1634
      %v1636 = vpop.f32.mrf.mxu0
      %1637 = vmatprep.mubr.bf16.mxu0 0
      %1638 = vmatmul.mubr.bf16.gmra.mxu0 %v1495
      %v1639 = vpop.f32.mrf.mxu0
      %v1640 = vadd.f32 0.0, %v1639
      %v1641 = vpop.f32.mrf.mxu0
      %v1642 = vpop.f32.mrf.mxu0
      %v1643 = vadd.f32 0.0, %v1642
      %v1644 = vpop.f32.mrf.mxu0
      %1645 = vmatprep.mubr.bf16.mxu0 0
      %1646 = vmatmul.mubr.bf16.gmra.mxu0 %v1498
      %v1647 = vpop.f32.mrf.mxu0
      %v1648 = vadd.f32 0.0, %v1647
      %v1649 = vpop.f32.mrf.mxu0
      %v1650 = vpop.f32.mrf.mxu0
      %v1651 = vadd.f32 0.0, %v1650
      %v1652 = vpop.f32.mrf.mxu0
      %1653 = vmatprep.mubr.bf16.mxu0 0
      %1654 = vmatmul.mubr.bf16.gmra.mxu0 %v1501
      %v1655 = vpop.f32.mrf.mxu0
      %v1656 = vadd.f32 0.0, %v1655
      %v1657 = vpop.f32.mrf.mxu0
      %v1658 = vpop.f32.mrf.mxu0
      %v1659 = vadd.f32 0.0, %v1658
      %v1660 = vpop.f32.mrf.mxu0
      %1661 = vmatprep.mubr.bf16.mxu0 0
      %1662 = vmatmul.mubr.bf16.gmra.mxu0 %v1504
      %v1663 = vpop.f32.mrf.mxu0
      %v1664 = vadd.f32 0.0, %v1663
      %v1665 = vpop.f32.mrf.mxu0
      %v1666 = vpop.f32.mrf.mxu0
      %v1667 = vadd.f32 0.0, %v1666
      %v1668 = vpop.f32.mrf.mxu0
      %1669 = vdwg.mxu0
      %v1671 = vsel %vm271, %v1390, 0
      %v1674 = vsel %vm271, %v1391, 0
      %v1677 = vsel %vm271, %v1392, 0
      %v1680 = vsel %vm271, %v1393, 0
      %v1683 = vsel %vm271, %v1394, 0
      %v1686 = vsel %vm271, %v1395, 0
      %v1689 = vsel %vm271, %v1396, 0
      %v1692 = vsel %vm271, %v1397, 0
      %v1695 = vsel %vm271, %v1398, 0
      %v1698 = vsel %vm271, %v1399, 0
      %v1701 = vsel %vm271, %v1400, 0
      %v1704 = vsel %vm271, %v1401, 0
      %v1707 = vsel %vm271, %v1402, 0
      %v1710 = vsel %vm271, %v1403, 0
      %v1713 = vsel %vm271, %v1404, 0
      %v1716 = vsel %vm271, %v1405, 0
      %v1719 = vsel %vm320, %v1407, 0
      %1721 = vmatprep.subr.bf16.mxu0 0
      %1722 = vmatpush1.bf16.msra.mxu0 0
      %1723 = vmatprep.subr.bf16.mxu0 0
      %1724 = vmatpush1.bf16.msra.mxu0 0
      %1725 = vmatprep.subr.bf16.mxu0 0
      %1726 = vmatpush1.bf16.msra.mxu0 0
      %1727 = vmatprep.subr.bf16.mxu0 0
      %1728 = vmatpush1.bf16.msra.mxu0 0
      %1729 = vmatprep.subr.bf16.mxu0 0
      %1730 = vmatpush1.bf16.msra.mxu0 0
      %1731 = vmatprep.subr.bf16.mxu0 0
      %1732 = vmatpush1.bf16.msra.mxu0 0
      %1733 = vmatprep.subr.bf16.mxu0 0
      %1734 = vmatpush1.bf16.msra.mxu0 0
      %1735 = vmatprep.subr.bf16.mxu0 0
      %1736 = vmatpush1.bf16.msra.mxu0 %v1719
      %1737 = vmatprep.subr.bf16.mxu0 0
      %1738 = vmatpush2.bf16.msra.mxu0 0
      %1739 = vmatprep.subr.bf16.mxu0 0
      %1740 = vmatpush2.bf16.msra.mxu0 0
      %1741 = vmatprep.subr.bf16.mxu0 0
      %1742 = vmatpush2.bf16.msra.mxu0 0
      %1743 = vmatprep.subr.bf16.mxu0 0
      %1744 = vmatpush2.bf16.msra.mxu0 0
      %1745 = vmatprep.subr.bf16.mxu0 0
      %1746 = vmatpush2.bf16.msra.mxu0 0
      %1747 = vmatprep.subr.bf16.mxu0 0
      %1748 = vmatpush2.bf16.msra.mxu0 0
      %1749 = vmatprep.subr.bf16.mxu0 0
      %1750 = vmatpush2.bf16.msra.mxu0 0
      %1751 = vmatprep.subr.bf16.mxu0 0
      %1752 = vmatpush2.bf16.msra.mxu0 0
      %1753 = vmatprep.mubr.bf16.mxu0 0
      %1754 = vmatmul.mubr.bf16.gmra.mxu0 %v1671
      %v1755 = vpop.f32.mrf.mxu0
      %v1756 = vadd.f32 %v1544, %v1755
      %v1757 = vpop.f32.mrf.mxu0
      %v1758 = vpop.f32.mrf.mxu0
      %v1759 = vadd.f32 %v1547, %v1758
      %v1760 = vpop.f32.mrf.mxu0
      %1761 = vmatprep.mubr.bf16.mxu0 0
      %1762 = vmatmul.mubr.bf16.gmra.mxu0 %v1674
      %v1763 = vpop.f32.mrf.mxu0
      %v1764 = vadd.f32 %v1552, %v1763
      %v1765 = vpop.f32.mrf.mxu0
      %v1766 = vpop.f32.mrf.mxu0
      %v1767 = vadd.f32 %v1555, %v1766
      %v1768 = vpop.f32.mrf.mxu0
      %1769 = vmatprep.mubr.bf16.mxu0 0
      %1770 = vmatmul.mubr.bf16.gmra.mxu0 %v1677
      %v1771 = vpop.f32.mrf.mxu0
      %v1772 = vadd.f32 %v1560, %v1771
      %v1773 = vpop.f32.mrf.mxu0
      %v1774 = vpop.f32.mrf.mxu0
      %v1775 = vadd.f32 %v1563, %v1774
      %v1776 = vpop.f32.mrf.mxu0
      %1777 = vmatprep.mubr.bf16.mxu0 0
      %1778 = vmatmul.mubr.bf16.gmra.mxu0 %v1680
      %v1779 = vpop.f32.mrf.mxu0
      %v1780 = vadd.f32 %v1568, %v1779
      %v1781 = vpop.f32.mrf.mxu0
      %v1782 = vpop.f32.mrf.mxu0
      %v1783 = vadd.f32 %v1571, %v1782
      %v1784 = vpop.f32.mrf.mxu0
      %1785 = vmatprep.mubr.bf16.mxu0 0
      %1786 = vmatmul.mubr.bf16.gmra.mxu0 %v1683
      %v1787 = vpop.f32.mrf.mxu0
      %v1788 = vadd.f32 %v1576, %v1787
      %v1789 = vpop.f32.mrf.mxu0
      %v1790 = vpop.f32.mrf.mxu0
      %v1791 = vadd.f32 %v1579, %v1790
      %v1792 = vpop.f32.mrf.mxu0
      %1793 = vmatprep.mubr.bf16.mxu0 0
      %1794 = vmatmul.mubr.bf16.gmra.mxu0 %v1686
      %v1795 = vpop.f32.mrf.mxu0
      %v1796 = vadd.f32 %v1584, %v1795
      %v1797 = vpop.f32.mrf.mxu0
      %v1798 = vpop.f32.mrf.mxu0
      %v1799 = vadd.f32 %v1587, %v1798
      %v1800 = vpop.f32.mrf.mxu0
      %1801 = vmatprep.mubr.bf16.mxu0 0
      %1802 = vmatmul.mubr.bf16.gmra.mxu0 %v1689
      %v1803 = vpop.f32.mrf.mxu0
      %v1804 = vadd.f32 %v1592, %v1803
      %v1805 = vpop.f32.mrf.mxu0
      %v1806 = vpop.f32.mrf.mxu0
      %v1807 = vadd.f32 %v1595, %v1806
      %v1808 = vpop.f32.mrf.mxu0
      %1809 = vmatprep.mubr.bf16.mxu0 0
      %1810 = vmatmul.mubr.bf16.gmra.mxu0 %v1692
      %v1811 = vpop.f32.mrf.mxu0
      %v1812 = vadd.f32 %v1600, %v1811
      %v1813 = vpop.f32.mrf.mxu0
      %v1814 = vpop.f32.mrf.mxu0
      %v1815 = vadd.f32 %v1603, %v1814
      %v1816 = vpop.f32.mrf.mxu0
      %1817 = vmatprep.mubr.bf16.mxu0 0
      %1818 = vmatmul.mubr.bf16.gmra.mxu0 %v1695
      %v1819 = vpop.f32.mrf.mxu0
      %v1820 = vadd.f32 %v1608, %v1819
      %v1821 = vpop.f32.mrf.mxu0
      %v1822 = vpop.f32.mrf.mxu0
      %v1823 = vadd.f32 %v1611, %v1822
      %v1824 = vpop.f32.mrf.mxu0
      %1825 = vmatprep.mubr.bf16.mxu0 0
      %1826 = vmatmul.mubr.bf16.gmra.mxu0 %v1698
      %v1827 = vpop.f32.mrf.mxu0
      %v1828 = vadd.f32 %v1616, %v1827
      %v1829 = vpop.f32.mrf.mxu0
      %v1830 = vpop.f32.mrf.mxu0
      %v1831 = vadd.f32 %v1619, %v1830
      %v1832 = vpop.f32.mrf.mxu0
      %1833 = vmatprep.mubr.bf16.mxu0 0
      %1834 = vmatmul.mubr.bf16.gmra.mxu0 %v1701
      %v1835 = vpop.f32.mrf.mxu0
      %v1836 = vadd.f32 %v1624, %v1835
      %v1837 = vpop.f32.mrf.mxu0
      %v1838 = vpop.f32.mrf.mxu0
      %v1839 = vadd.f32 %v1627, %v1838
      %v1840 = vpop.f32.mrf.mxu0
      %1841 = vmatprep.mubr.bf16.mxu0 0
      %1842 = vmatmul.mubr.bf16.gmra.mxu0 %v1704
      %v1843 = vpop.f32.mrf.mxu0
      %v1844 = vadd.f32 %v1632, %v1843
      %v1845 = vpop.f32.mrf.mxu0
      %v1846 = vpop.f32.mrf.mxu0
      %v1847 = vadd.f32 %v1635, %v1846
      %v1848 = vpop.f32.mrf.mxu0
      %1849 = vmatprep.mubr.bf16.mxu0 0
      %1850 = vmatmul.mubr.bf16.gmra.mxu0 %v1707
      %v1851 = vpop.f32.mrf.mxu0
      %v1852 = vadd.f32 %v1640, %v1851
      %v1853 = vpop.f32.mrf.mxu0
      %v1854 = vpop.f32.mrf.mxu0
      %v1855 = vadd.f32 %v1643, %v1854
      %v1856 = vpop.f32.mrf.mxu0
      %1857 = vmatprep.mubr.bf16.mxu0 0
      %1858 = vmatmul.mubr.bf16.gmra.mxu0 %v1710
      %v1859 = vpop.f32.mrf.mxu0
      %v1860 = vadd.f32 %v1648, %v1859
      %v1861 = vpop.f32.mrf.mxu0
      %v1862 = vpop.f32.mrf.mxu0
      %v1863 = vadd.f32 %v1651, %v1862
      %v1864 = vpop.f32.mrf.mxu0
      %1865 = vmatprep.mubr.bf16.mxu0 0
      %1866 = vmatmul.mubr.bf16.gmra.mxu0 %v1713
      %v1867 = vpop.f32.mrf.mxu0
      %v1868 = vadd.f32 %v1656, %v1867
      %v1869 = vpop.f32.mrf.mxu0
      %v1870 = vpop.f32.mrf.mxu0
      %v1871 = vadd.f32 %v1659, %v1870
      %v1872 = vpop.f32.mrf.mxu0
      %1873 = vmatprep.mubr.bf16.mxu0 0
      %1874 = vmatmul.mubr.bf16.gmra.mxu0 %v1716
      %v1875 = vpop.f32.mrf.mxu0
      %v1876 = vadd.f32 %v1664, %v1875
      %v1877 = vpop.f32.mrf.mxu0
      %v1878 = vpop.f32.mrf.mxu0
      %v1879 = vadd.f32 %v1667, %v1878
      %v1880 = vpop.f32.mrf.mxu0
      %1881 = vdwg.mxu0
      %v1882 = vld [vmem:[%s697 + $0x1] sm:$0xff]
      %v1883 = vld [vmem:[%s697 + $0x9] sm:$0xff]
      %v1884 = vld [vmem:[%s697 + $0x19] sm:$0xff]
      %v1885 = vld [vmem:[%s697 + $0x21] sm:$0xff]
      %v1886 = vld [vmem:[%s697 + $0x31] sm:$0xff]
      %v1887 = vld [vmem:[%s697 + $0x39] sm:$0xff]
      %v1888 = vld [vmem:[%s697 + $0x49] sm:$0xff]
      %v1889 = vld [vmem:[%s697 + $0x51] sm:$0xff]
      %v1890 = vld [vmem:[%s697 + $0x61] sm:$0xff]
      %v1891 = vld [vmem:[%s697 + $0x69] sm:$0xff]
      %v1892 = vld [vmem:[%s697 + $0x79] sm:$0xff]
      %v1893 = vld [vmem:[%s697 + $0x81] sm:$0xff]
      %v1894 = vld [vmem:[%s697 + $0x91] sm:$0xff]
      %v1895 = vld [vmem:[%s697 + $0x99] sm:$0xff]
      %v1896 = vld [vmem:[%s697 + $0xa9] sm:$0xff]
      %v1897 = vld [vmem:[%s697 + $0xb1] sm:$0xff]
      %v1898 = vld [vmem:[%s697 + $0xc1] sm:$0xff]
      %v1899 = vld [vmem:[%s697 + $0xc9] sm:$0xff]
      %v1900 = vld [vmem:[%s697 + $0xd9] sm:$0xff]
      %v1901 = vld [vmem:[%s697 + $0xe1] sm:$0xff]
      %v1902 = vld [vmem:[%s697 + $0xf1] sm:$0xff]
      %v1903 = vld [vmem:[%s697 + $0xf9] sm:$0xff]
      %v1904 = vld [vmem:[%s697 + $0x109] sm:$0xff]
      %v1905 = vld [vmem:[%s697 + $0x111] sm:$0xff]
      %v1906 = vld [vmem:[%s697 + $0x121] sm:$0xff]
      %v1907 = vld [vmem:[%s697 + $0x129] sm:$0xff]
      %v1908 = vld [vmem:[%s697 + $0x139] sm:$0xff]
      %v1909 = vld [vmem:[%s697 + $0x141] sm:$0xff]
      %v1910 = vld [vmem:[%s697 + $0x151] sm:$0xff]
      %v1911 = vld [vmem:[%s697 + $0x159] sm:$0xff]
      %v1912 = vld [vmem:[%s697 + $0x169] sm:$0xff]
      %v1913 = vld [vmem:[%s697 + $0x171] sm:$0xff]
      %v1914 = vpack.c.bf16 %v1883, %v1882
      %v1915 = vpack.c.bf16 %v1885, %v1884
      %v1916 = vpack.c.bf16 %v1887, %v1886
      %v1917 = vpack.c.bf16 %v1889, %v1888
      %v1918 = vpack.c.bf16 %v1891, %v1890
      %v1919 = vpack.c.bf16 %v1893, %v1892
      %v1920 = vpack.c.bf16 %v1895, %v1894
      %v1921 = vpack.c.bf16 %v1897, %v1896
      %v1922 = vpack.c.bf16 %v1899, %v1898
      %v1923 = vpack.c.bf16 %v1901, %v1900
      %v1924 = vpack.c.bf16 %v1903, %v1902
      %v1925 = vpack.c.bf16 %v1905, %v1904
      %v1926 = vpack.c.bf16 %v1907, %v1906
      %v1927 = vpack.c.bf16 %v1909, %v1908
      %v1928 = vpack.c.bf16 %v1911, %v1910
      %v1929 = vpack.c.bf16 %v1913, %v1912
      %s1930 = scalar_lea.vmem %s1, 12
      %v1931 = vld [vmem:[%s1930] sm:$0x3]
      %v1933 = vsel %vm271, %v1914, 0
      %v1936 = vsel %vm271, %v1915, 0
      %v1939 = vsel %vm271, %v1916, 0
      %v1942 = vsel %vm271, %v1917, 0
      %v1945 = vsel %vm271, %v1918, 0
      %v1948 = vsel %vm271, %v1919, 0
      %v1951 = vsel %vm271, %v1920, 0
      %v1954 = vsel %vm271, %v1921, 0
      %v1957 = vsel %vm271, %v1922, 0
      %v1960 = vsel %vm271, %v1923, 0
      %v1963 = vsel %vm271, %v1924, 0
      %v1966 = vsel %vm271, %v1925, 0
      %v1969 = vsel %vm271, %v1926, 0
      %v1972 = vsel %vm271, %v1927, 0
      %v1975 = vsel %vm271, %v1928, 0
      %v1978 = vsel %vm271, %v1929, 0
      %v1981 = vsel %vm320, %v1931, 0
      %1983 = vmatprep.subr.bf16.mxu0 0
      %1984 = vmatpush1.bf16.msra.mxu0 0
      %1985 = vmatprep.subr.bf16.mxu0 0
      %1986 = vmatpush1.bf16.msra.mxu0 0
      %1987 = vmatprep.subr.bf16.mxu0 0
      %1988 = vmatpush1.bf16.msra.mxu0 0
      %1989 = vmatprep.subr.bf16.mxu0 0
      %1990 = vmatpush1.bf16.msra.mxu0 0
      %1991 = vmatprep.subr.bf16.mxu0 0
      %1992 = vmatpush1.bf16.msra.mxu0 0
      %1993 = vmatprep.subr.bf16.mxu0 0
      %1994 = vmatpush1.bf16.msra.mxu0 0
      %1995 = vmatprep.subr.bf16.mxu0 0
      %1996 = vmatpush1.bf16.msra.mxu0 0
      %1997 = vmatprep.subr.bf16.mxu0 0
      %1998 = vmatpush1.bf16.msra.mxu0 %v1981
      %1999 = vmatprep.subr.bf16.mxu0 0
      %2000 = vmatpush2.bf16.msra.mxu0 0
      %2001 = vmatprep.subr.bf16.mxu0 0
      %2002 = vmatpush2.bf16.msra.mxu0 0
      %2003 = vmatprep.subr.bf16.mxu0 0
      %2004 = vmatpush2.bf16.msra.mxu0 0
      %2005 = vmatprep.subr.bf16.mxu0 0
      %2006 = vmatpush2.bf16.msra.mxu0 0
      %2007 = vmatprep.subr.bf16.mxu0 0
      %2008 = vmatpush2.bf16.msra.mxu0 0
      %2009 = vmatprep.subr.bf16.mxu0 0
      %2010 = vmatpush2.bf16.msra.mxu0 0
      %2011 = vmatprep.subr.bf16.mxu0 0
      %2012 = vmatpush2.bf16.msra.mxu0 0
      %2013 = vmatprep.subr.bf16.mxu0 0
      %2014 = vmatpush2.bf16.msra.mxu0 0
      %2015 = vmatprep.mubr.bf16.mxu0 0
      %2016 = vmatmul.mubr.bf16.gmra.mxu0 %v1933
      %v2017 = vpop.f32.mrf.mxu0
      %v2018 = vadd.f32 0.0, %v2017
      %v2019 = vpop.f32.mrf.mxu0
      %v2020 = vpop.f32.mrf.mxu0
      %v2021 = vadd.f32 0.0, %v2020
      %v2022 = vpop.f32.mrf.mxu0
      %2023 = vmatprep.mubr.bf16.mxu0 0
      %2024 = vmatmul.mubr.bf16.gmra.mxu0 %v1936
      %v2025 = vpop.f32.mrf.mxu0
      %v2026 = vadd.f32 0.0, %v2025
      %v2027 = vpop.f32.mrf.mxu0
      %v2028 = vpop.f32.mrf.mxu0
      %v2029 = vadd.f32 0.0, %v2028
      %v2030 = vpop.f32.mrf.mxu0
      %2031 = vmatprep.mubr.bf16.mxu0 0
      %2032 = vmatmul.mubr.bf16.gmra.mxu0 %v1939
      %v2033 = vpop.f32.mrf.mxu0
      %v2034 = vadd.f32 0.0, %v2033
      %v2035 = vpop.f32.mrf.mxu0
      %v2036 = vpop.f32.mrf.mxu0
      %v2037 = vadd.f32 0.0, %v2036
      %v2038 = vpop.f32.mrf.mxu0
      %2039 = vmatprep.mubr.bf16.mxu0 0
      %2040 = vmatmul.mubr.bf16.gmra.mxu0 %v1942
      %v2041 = vpop.f32.mrf.mxu0
      %v2042 = vadd.f32 0.0, %v2041
      %v2043 = vpop.f32.mrf.mxu0
      %v2044 = vpop.f32.mrf.mxu0
      %v2045 = vadd.f32 0.0, %v2044
      %v2046 = vpop.f32.mrf.mxu0
      %2047 = vmatprep.mubr.bf16.mxu0 0
      %2048 = vmatmul.mubr.bf16.gmra.mxu0 %v1945
      %v2049 = vpop.f32.mrf.mxu0
      %v2050 = vadd.f32 0.0, %v2049
      %v2051 = vpop.f32.mrf.mxu0
      %v2052 = vpop.f32.mrf.mxu0
      %v2053 = vadd.f32 0.0, %v2052
      %v2054 = vpop.f32.mrf.mxu0
      %2055 = vmatprep.mubr.bf16.mxu0 0
      %2056 = vmatmul.mubr.bf16.gmra.mxu0 %v1948
      %v2057 = vpop.f32.mrf.mxu0
      %v2058 = vadd.f32 0.0, %v2057
      %v2059 = vpop.f32.mrf.mxu0
      %v2060 = vpop.f32.mrf.mxu0
      %v2061 = vadd.f32 0.0, %v2060
      %v2062 = vpop.f32.mrf.mxu0
      %2063 = vmatprep.mubr.bf16.mxu0 0
      %2064 = vmatmul.mubr.bf16.gmra.mxu0 %v1951
      %v2065 = vpop.f32.mrf.mxu0
      %v2066 = vadd.f32 0.0, %v2065
      %v2067 = vpop.f32.mrf.mxu0
      %v2068 = vpop.f32.mrf.mxu0
      %v2069 = vadd.f32 0.0, %v2068
      %v2070 = vpop.f32.mrf.mxu0
      %2071 = vmatprep.mubr.bf16.mxu0 0
      %2072 = vmatmul.mubr.bf16.gmra.mxu0 %v1954
      %v2073 = vpop.f32.mrf.mxu0
      %v2074 = vadd.f32 0.0, %v2073
      %v2075 = vpop.f32.mrf.mxu0
      %v2076 = vpop.f32.mrf.mxu0
      %v2077 = vadd.f32 0.0, %v2076
      %v2078 = vpop.f32.mrf.mxu0
      %2079 = vmatprep.mubr.bf16.mxu0 0
      %2080 = vmatmul.mubr.bf16.gmra.mxu0 %v1957
      %v2081 = vpop.f32.mrf.mxu0
      %v2082 = vadd.f32 0.0, %v2081
      %v2083 = vpop.f32.mrf.mxu0
      %v2084 = vpop.f32.mrf.mxu0
      %v2085 = vadd.f32 0.0, %v2084
      %v2086 = vpop.f32.mrf.mxu0
      %2087 = vmatprep.mubr.bf16.mxu0 0
      %2088 = vmatmul.mubr.bf16.gmra.mxu0 %v1960
      %v2089 = vpop.f32.mrf.mxu0
      %v2090 = vadd.f32 0.0, %v2089
      %v2091 = vpop.f32.mrf.mxu0
      %v2092 = vpop.f32.mrf.mxu0
      %v2093 = vadd.f32 0.0, %v2092
      %v2094 = vpop.f32.mrf.mxu0
      %2095 = vmatprep.mubr.bf16.mxu0 0
      %2096 = vmatmul.mubr.bf16.gmra.mxu0 %v1963
      %v2097 = vpop.f32.mrf.mxu0
      %v2098 = vadd.f32 0.0, %v2097
      %v2099 = vpop.f32.mrf.mxu0
      %v2100 = vpop.f32.mrf.mxu0
      %v2101 = vadd.f32 0.0, %v2100
      %v2102 = vpop.f32.mrf.mxu0
      %2103 = vmatprep.mubr.bf16.mxu0 0
      %2104 = vmatmul.mubr.bf16.gmra.mxu0 %v1966
      %v2105 = vpop.f32.mrf.mxu0
      %v2106 = vadd.f32 0.0, %v2105
      %v2107 = vpop.f32.mrf.mxu0
      %v2108 = vpop.f32.mrf.mxu0
      %v2109 = vadd.f32 0.0, %v2108
      %v2110 = vpop.f32.mrf.mxu0
      %2111 = vmatprep.mubr.bf16.mxu0 0
      %2112 = vmatmul.mubr.bf16.gmra.mxu0 %v1969
      %v2113 = vpop.f32.mrf.mxu0
      %v2114 = vadd.f32 0.0, %v2113
      %v2115 = vpop.f32.mrf.mxu0
      %v2116 = vpop.f32.mrf.mxu0
      %v2117 = vadd.f32 0.0, %v2116
      %v2118 = vpop.f32.mrf.mxu0
      %2119 = vmatprep.mubr.bf16.mxu0 0
      %2120 = vmatmul.mubr.bf16.gmra.mxu0 %v1972
      %v2121 = vpop.f32.mrf.mxu0
      %v2122 = vadd.f32 0.0, %v2121
      %v2123 = vpop.f32.mrf.mxu0
      %v2124 = vpop.f32.mrf.mxu0
      %v2125 = vadd.f32 0.0, %v2124
      %v2126 = vpop.f32.mrf.mxu0
      %2127 = vmatprep.mubr.bf16.mxu0 0
      %2128 = vmatmul.mubr.bf16.gmra.mxu0 %v1975
      %v2129 = vpop.f32.mrf.mxu0
      %v2130 = vadd.f32 0.0, %v2129
      %v2131 = vpop.f32.mrf.mxu0
      %v2132 = vpop.f32.mrf.mxu0
      %v2133 = vadd.f32 0.0, %v2132
      %v2134 = vpop.f32.mrf.mxu0
      %2135 = vmatprep.mubr.bf16.mxu0 0
      %2136 = vmatmul.mubr.bf16.gmra.mxu0 %v1978
      %v2137 = vpop.f32.mrf.mxu0
      %v2138 = vadd.f32 0.0, %v2137
      %v2139 = vpop.f32.mrf.mxu0
      %v2140 = vpop.f32.mrf.mxu0
      %v2141 = vadd.f32 0.0, %v2140
      %v2142 = vpop.f32.mrf.mxu0
      %2143 = vdwg.mxu0
      %v2144 = vadd.f32 %v1756, %v2018
      %v2145 = vadd.f32 %v1759, %v2021
      %v2146 = vadd.f32 %v1764, %v2026
      %v2147 = vadd.f32 %v1767, %v2029
      %v2148 = vadd.f32 %v1772, %v2034
      %v2149 = vadd.f32 %v1775, %v2037
      %v2150 = vadd.f32 %v1780, %v2042
      %v2151 = vadd.f32 %v1783, %v2045
      %v2152 = vadd.f32 %v1788, %v2050
      %v2153 = vadd.f32 %v1791, %v2053
      %v2154 = vadd.f32 %v1796, %v2058
      %v2155 = vadd.f32 %v1799, %v2061
      %v2156 = vadd.f32 %v1804, %v2066
      %v2157 = vadd.f32 %v1807, %v2069
      %v2158 = vadd.f32 %v1812, %v2074
      %v2159 = vadd.f32 %v1815, %v2077
      %v2160 = vadd.f32 %v1820, %v2082
      %v2161 = vadd.f32 %v1823, %v2085
      %v2162 = vadd.f32 %v1828, %v2090
      %v2163 = vadd.f32 %v1831, %v2093
      %v2164 = vadd.f32 %v1836, %v2098
      %v2165 = vadd.f32 %v1839, %v2101
      %v2166 = vadd.f32 %v1844, %v2106
      %v2167 = vadd.f32 %v1847, %v2109
      %v2168 = vadd.f32 %v1852, %v2114
      %v2169 = vadd.f32 %v1855, %v2117
      %v2170 = vadd.f32 %v1860, %v2122
      %v2171 = vadd.f32 %v1863, %v2125
      %v2172 = vadd.f32 %v1868, %v2130
      %v2173 = vadd.f32 %v1871, %v2133
      %v2174 = vadd.f32 %v1876, %v2138
      %v2175 = vadd.f32 %v1879, %v2141
      %v2176 = vld [vmem:[%s697 + $0x2] sm:$0xff]
      %v2177 = vld [vmem:[%s697 + $0xa] sm:$0xff]
      %v2178 = vld [vmem:[%s697 + $0x1a] sm:$0xff]
      %v2179 = vld [vmem:[%s697 + $0x22] sm:$0xff]
      %v2180 = vld [vmem:[%s697 + $0x32] sm:$0xff]
      %v2181 = vld [vmem:[%s697 + $0x3a] sm:$0xff]
      %v2182 = vld [vmem:[%s697 + $0x4a] sm:$0xff]
      %v2183 = vld [vmem:[%s697 + $0x52] sm:$0xff]
      %v2184 = vld [vmem:[%s697 + $0x62] sm:$0xff]
      %v2185 = vld [vmem:[%s697 + $0x6a] sm:$0xff]
      %v2186 = vld [vmem:[%s697 + $0x7a] sm:$0xff]
      %v2187 = vld [vmem:[%s697 + $0x82] sm:$0xff]
      %v2188 = vld [vmem:[%s697 + $0x92] sm:$0xff]
      %v2189 = vld [vmem:[%s697 + $0x9a] sm:$0xff]
      %v2190 = vld [vmem:[%s697 + $0xaa] sm:$0xff]
      %v2191 = vld [vmem:[%s697 + $0xb2] sm:$0xff]
      %v2192 = vld [vmem:[%s697 + $0xc2] sm:$0xff]
      %v2193 = vld [vmem:[%s697 + $0xca] sm:$0xff]
      %v2194 = vld [vmem:[%s697 + $0xda] sm:$0xff]
      %v2195 = vld [vmem:[%s697 + $0xe2] sm:$0xff]
      %v2196 = vld [vmem:[%s697 + $0xf2] sm:$0xff]
      %v2197 = vld [vmem:[%s697 + $0xfa] sm:$0xff]
      %v2198 = vld [vmem:[%s697 + $0x10a] sm:$0xff]
      %v2199 = vld [vmem:[%s697 + $0x112] sm:$0xff]
      %v2200 = vld [vmem:[%s697 + $0x122] sm:$0xff]
      %v2201 = vld [vmem:[%s697 + $0x12a] sm:$0xff]
      %v2202 = vld [vmem:[%s697 + $0x13a] sm:$0xff]
      %v2203 = vld [vmem:[%s697 + $0x142] sm:$0xff]
      %v2204 = vld [vmem:[%s697 + $0x152] sm:$0xff]
      %v2205 = vld [vmem:[%s697 + $0x15a] sm:$0xff]
      %v2206 = vld [vmem:[%s697 + $0x16a] sm:$0xff]
      %v2207 = vld [vmem:[%s697 + $0x172] sm:$0xff]
      %v2208 = vpack.c.bf16 %v2177, %v2176
      %v2209 = vpack.c.bf16 %v2179, %v2178
      %v2210 = vpack.c.bf16 %v2181, %v2180
      %v2211 = vpack.c.bf16 %v2183, %v2182
      %v2212 = vpack.c.bf16 %v2185, %v2184
      %v2213 = vpack.c.bf16 %v2187, %v2186
      %v2214 = vpack.c.bf16 %v2189, %v2188
      %v2215 = vpack.c.bf16 %v2191, %v2190
      %v2216 = vpack.c.bf16 %v2193, %v2192
      %v2217 = vpack.c.bf16 %v2195, %v2194
      %v2218 = vpack.c.bf16 %v2197, %v2196
      %v2219 = vpack.c.bf16 %v2199, %v2198
      %v2220 = vpack.c.bf16 %v2201, %v2200
      %v2221 = vpack.c.bf16 %v2203, %v2202
      %v2222 = vpack.c.bf16 %v2205, %v2204
      %v2223 = vpack.c.bf16 %v2207, %v2206
      %s2224 = scalar_lea.vmem %s1, 14
      %v2225 = vld [vmem:[%s2224] sm:$0x3]
      %v2227 = vsel %vm271, %v2208, 0
      %v2230 = vsel %vm271, %v2209, 0
      %v2233 = vsel %vm271, %v2210, 0
      %v2236 = vsel %vm271, %v2211, 0
      %v2239 = vsel %vm271, %v2212, 0
      %v2242 = vsel %vm271, %v2213, 0
      %v2245 = vsel %vm271, %v2214, 0
      %v2248 = vsel %vm271, %v2215, 0
      %v2251 = vsel %vm271, %v2216, 0
      %v2254 = vsel %vm271, %v2217, 0
      %v2257 = vsel %vm271, %v2218, 0
      %v2260 = vsel %vm271, %v2219, 0
      %v2263 = vsel %vm271, %v2220, 0
      %v2266 = vsel %vm271, %v2221, 0
      %v2269 = vsel %vm271, %v2222, 0
      %v2272 = vsel %vm271, %v2223, 0
      %v2275 = vsel %vm320, %v2225, 0
      %2277 = vmatprep.subr.bf16.mxu0 0
      %2278 = vmatpush1.bf16.msra.mxu0 0
      %2279 = vmatprep.subr.bf16.mxu0 0
      %2280 = vmatpush1.bf16.msra.mxu0 0
      %2281 = vmatprep.subr.bf16.mxu0 0
      %2282 = vmatpush1.bf16.msra.mxu0 0
      %2283 = vmatprep.subr.bf16.mxu0 0
      %2284 = vmatpush1.bf16.msra.mxu0 0
      %2285 = vmatprep.subr.bf16.mxu0 0
      %2286 = vmatpush1.bf16.msra.mxu0 0
      %2287 = vmatprep.subr.bf16.mxu0 0
      %2288 = vmatpush1.bf16.msra.mxu0 0
      %2289 = vmatprep.subr.bf16.mxu0 0
      %2290 = vmatpush1.bf16.msra.mxu0 0
      %2291 = vmatprep.subr.bf16.mxu0 0
      %2292 = vmatpush1.bf16.msra.mxu0 %v2275
      %2293 = vmatprep.subr.bf16.mxu0 0
      %2294 = vmatpush2.bf16.msra.mxu0 0
      %2295 = vmatprep.subr.bf16.mxu0 0
      %2296 = vmatpush2.bf16.msra.mxu0 0
      %2297 = vmatprep.subr.bf16.mxu0 0
      %2298 = vmatpush2.bf16.msra.mxu0 0
      %2299 = vmatprep.subr.bf16.mxu0 0
      %2300 = vmatpush2.bf16.msra.mxu0 0
      %2301 = vmatprep.subr.bf16.mxu0 0
      %2302 = vmatpush2.bf16.msra.mxu0 0
      %2303 = vmatprep.subr.bf16.mxu0 0
      %2304 = vmatpush2.bf16.msra.mxu0 0
      %2305 = vmatprep.subr.bf16.mxu0 0
      %2306 = vmatpush2.bf16.msra.mxu0 0
      %2307 = vmatprep.subr.bf16.mxu0 0
      %2308 = vmatpush2.bf16.msra.mxu0 0
      %2309 = vmatprep.mubr.bf16.mxu0 0
      %2310 = vmatmul.mubr.bf16.gmra.mxu0 %v2227
      %v2311 = vpop.f32.mrf.mxu0
      %v2312 = vadd.f32 0.0, %v2311
      %v2313 = vpop.f32.mrf.mxu0
      %v2314 = vpop.f32.mrf.mxu0
      %v2315 = vadd.f32 0.0, %v2314
      %v2316 = vpop.f32.mrf.mxu0
      %2317 = vmatprep.mubr.bf16.mxu0 0
      %2318 = vmatmul.mubr.bf16.gmra.mxu0 %v2230
      %v2319 = vpop.f32.mrf.mxu0
      %v2320 = vadd.f32 0.0, %v2319
      %v2321 = vpop.f32.mrf.mxu0
      %v2322 = vpop.f32.mrf.mxu0
      %v2323 = vadd.f32 0.0, %v2322
      %v2324 = vpop.f32.mrf.mxu0
      %2325 = vmatprep.mubr.bf16.mxu0 0
      %2326 = vmatmul.mubr.bf16.gmra.mxu0 %v2233
      %v2327 = vpop.f32.mrf.mxu0
      %v2328 = vadd.f32 0.0, %v2327
      %v2329 = vpop.f32.mrf.mxu0
      %v2330 = vpop.f32.mrf.mxu0
      %v2331 = vadd.f32 0.0, %v2330
      %v2332 = vpop.f32.mrf.mxu0
      %2333 = vmatprep.mubr.bf16.mxu0 0
      %2334 = vmatmul.mubr.bf16.gmra.mxu0 %v2236
      %v2335 = vpop.f32.mrf.mxu0
      %v2336 = vadd.f32 0.0, %v2335
      %v2337 = vpop.f32.mrf.mxu0
      %v2338 = vpop.f32.mrf.mxu0
      %v2339 = vadd.f32 0.0, %v2338
      %v2340 = vpop.f32.mrf.mxu0
      %2341 = vmatprep.mubr.bf16.mxu0 0
      %2342 = vmatmul.mubr.bf16.gmra.mxu0 %v2239
      %v2343 = vpop.f32.mrf.mxu0
      %v2344 = vadd.f32 0.0, %v2343
      %v2345 = vpop.f32.mrf.mxu0
      %v2346 = vpop.f32.mrf.mxu0
      %v2347 = vadd.f32 0.0, %v2346
      %v2348 = vpop.f32.mrf.mxu0
      %2349 = vmatprep.mubr.bf16.mxu0 0
      %2350 = vmatmul.mubr.bf16.gmra.mxu0 %v2242
      %v2351 = vpop.f32.mrf.mxu0
      %v2352 = vadd.f32 0.0, %v2351
      %v2353 = vpop.f32.mrf.mxu0
      %v2354 = vpop.f32.mrf.mxu0
      %v2355 = vadd.f32 0.0, %v2354
      %v2356 = vpop.f32.mrf.mxu0
      %2357 = vmatprep.mubr.bf16.mxu0 0
      %2358 = vmatmul.mubr.bf16.gmra.mxu0 %v2245
      %v2359 = vpop.f32.mrf.mxu0
      %v2360 = vadd.f32 0.0, %v2359
      %v2361 = vpop.f32.mrf.mxu0
      %v2362 = vpop.f32.mrf.mxu0
      %v2363 = vadd.f32 0.0, %v2362
      %v2364 = vpop.f32.mrf.mxu0
      %2365 = vmatprep.mubr.bf16.mxu0 0
      %2366 = vmatmul.mubr.bf16.gmra.mxu0 %v2248
      %v2367 = vpop.f32.mrf.mxu0
      %v2368 = vadd.f32 0.0, %v2367
      %v2369 = vpop.f32.mrf.mxu0
      %v2370 = vpop.f32.mrf.mxu0
      %v2371 = vadd.f32 0.0, %v2370
      %v2372 = vpop.f32.mrf.mxu0
      %2373 = vmatprep.mubr.bf16.mxu0 0
      %2374 = vmatmul.mubr.bf16.gmra.mxu0 %v2251
      %v2375 = vpop.f32.mrf.mxu0
      %v2376 = vadd.f32 0.0, %v2375
      %v2377 = vpop.f32.mrf.mxu0
      %v2378 = vpop.f32.mrf.mxu0
      %v2379 = vadd.f32 0.0, %v2378
      %v2380 = vpop.f32.mrf.mxu0
      %2381 = vmatprep.mubr.bf16.mxu0 0
      %2382 = vmatmul.mubr.bf16.gmra.mxu0 %v2254
      %v2383 = vpop.f32.mrf.mxu0
      %v2384 = vadd.f32 0.0, %v2383
      %v2385 = vpop.f32.mrf.mxu0
      %v2386 = vpop.f32.mrf.mxu0
      %v2387 = vadd.f32 0.0, %v2386
      %v2388 = vpop.f32.mrf.mxu0
      %2389 = vmatprep.mubr.bf16.mxu0 0
      %2390 = vmatmul.mubr.bf16.gmra.mxu0 %v2257
      %v2391 = vpop.f32.mrf.mxu0
      %v2392 = vadd.f32 0.0, %v2391
      %v2393 = vpop.f32.mrf.mxu0
      %v2394 = vpop.f32.mrf.mxu0
      %v2395 = vadd.f32 0.0, %v2394
      %v2396 = vpop.f32.mrf.mxu0
      %2397 = vmatprep.mubr.bf16.mxu0 0
      %2398 = vmatmul.mubr.bf16.gmra.mxu0 %v2260
      %v2399 = vpop.f32.mrf.mxu0
      %v2400 = vadd.f32 0.0, %v2399
      %v2401 = vpop.f32.mrf.mxu0
      %v2402 = vpop.f32.mrf.mxu0
      %v2403 = vadd.f32 0.0, %v2402
      %v2404 = vpop.f32.mrf.mxu0
      %2405 = vmatprep.mubr.bf16.mxu0 0
      %2406 = vmatmul.mubr.bf16.gmra.mxu0 %v2263
      %v2407 = vpop.f32.mrf.mxu0
      %v2408 = vadd.f32 0.0, %v2407
      %v2409 = vpop.f32.mrf.mxu0
      %v2410 = vpop.f32.mrf.mxu0
      %v2411 = vadd.f32 0.0, %v2410
      %v2412 = vpop.f32.mrf.mxu0
      %2413 = vmatprep.mubr.bf16.mxu0 0
      %2414 = vmatmul.mubr.bf16.gmra.mxu0 %v2266
      %v2415 = vpop.f32.mrf.mxu0
      %v2416 = vadd.f32 0.0, %v2415
      %v2417 = vpop.f32.mrf.mxu0
      %v2418 = vpop.f32.mrf.mxu0
      %v2419 = vadd.f32 0.0, %v2418
      %v2420 = vpop.f32.mrf.mxu0
      %2421 = vmatprep.mubr.bf16.mxu0 0
      %2422 = vmatmul.mubr.bf16.gmra.mxu0 %v2269
      %v2423 = vpop.f32.mrf.mxu0
      %v2424 = vadd.f32 0.0, %v2423
      %v2425 = vpop.f32.mrf.mxu0
      %v2426 = vpop.f32.mrf.mxu0
      %v2427 = vadd.f32 0.0, %v2426
      %v2428 = vpop.f32.mrf.mxu0
      %2429 = vmatprep.mubr.bf16.mxu0 0
      %2430 = vmatmul.mubr.bf16.gmra.mxu0 %v2272
      %v2431 = vpop.f32.mrf.mxu0
      %v2432 = vadd.f32 0.0, %v2431
      %v2433 = vpop.f32.mrf.mxu0
      %v2434 = vpop.f32.mrf.mxu0
      %v2435 = vadd.f32 0.0, %v2434
      %v2436 = vpop.f32.mrf.mxu0
      %2437 = vdwg.mxu0
      %v2438 = vadd.f32 %v2144, %v2312
      %v2439 = vadd.f32 %v2145, %v2315
      %v2440 = vadd.f32 %v2146, %v2320
      %v2441 = vadd.f32 %v2147, %v2323
      %v2442 = vadd.f32 %v2148, %v2328
      %v2443 = vadd.f32 %v2149, %v2331
      %v2444 = vadd.f32 %v2150, %v2336
      %v2445 = vadd.f32 %v2151, %v2339
      %v2446 = vadd.f32 %v2152, %v2344
      %v2447 = vadd.f32 %v2153, %v2347
      %v2448 = vadd.f32 %v2154, %v2352
      %v2449 = vadd.f32 %v2155, %v2355
      %v2450 = vadd.f32 %v2156, %v2360
      %v2451 = vadd.f32 %v2157, %v2363
      %v2452 = vadd.f32 %v2158, %v2368
      %v2453 = vadd.f32 %v2159, %v2371
      %v2454 = vadd.f32 %v2160, %v2376
      %v2455 = vadd.f32 %v2161, %v2379
      %v2456 = vadd.f32 %v2162, %v2384
      %v2457 = vadd.f32 %v2163, %v2387
      %v2458 = vadd.f32 %v2164, %v2392
      %v2459 = vadd.f32 %v2165, %v2395
      %v2460 = vadd.f32 %v2166, %v2400
      %v2461 = vadd.f32 %v2167, %v2403
      %v2462 = vadd.f32 %v2168, %v2408
      %v2463 = vadd.f32 %v2169, %v2411
      %v2464 = vadd.f32 %v2170, %v2416
      %v2465 = vadd.f32 %v2171, %v2419
      %v2466 = vadd.f32 %v2172, %v2424
      %v2467 = vadd.f32 %v2173, %v2427
      %v2468 = vadd.f32 %v2174, %v2432
      %v2469 = vadd.f32 %v2175, %v2435
      %v2470 = vld [vmem:[%s2] sm:$0x1]
      %v2472 = vlaneseq
      %v2473 = vshrl.u32 %v2472, 7
      %v2474 = vsub.s32 0, %v2473
      %v2475 = vrot.slane %v2470, %v2474
      %v2477 = vadd.f32 %v2438, %v2475
      %v2478 = vadd.f32 %v2439, %v2475
      %v2479 = vadd.f32 %v2440, %v2475
      %v2480 = vadd.f32 %v2441, %v2475
      %v2481 = vadd.f32 %v2442, %v2475
      %v2482 = vadd.f32 %v2443, %v2475
      %v2483 = vadd.f32 %v2444, %v2475
      %v2484 = vadd.f32 %v2445, %v2475
      %v2485 = vadd.f32 %v2446, %v2475
      %v2486 = vadd.f32 %v2447, %v2475
      %v2487 = vadd.f32 %v2448, %v2475
      %v2488 = vadd.f32 %v2449, %v2475
      %v2489 = vadd.f32 %v2450, %v2475
      %v2490 = vadd.f32 %v2451, %v2475
      %v2491 = vadd.f32 %v2452, %v2475
      %v2492 = vadd.f32 %v2453, %v2475
      %v2493 = vadd.f32 %v2454, %v2475
      %v2494 = vadd.f32 %v2455, %v2475
      %v2495 = vadd.f32 %v2456, %v2475
      %v2496 = vadd.f32 %v2457, %v2475
      %v2497 = vadd.f32 %v2458, %v2475
      %v2498 = vadd.f32 %v2459, %v2475
      %v2499 = vadd.f32 %v2460, %v2475
      %v2500 = vadd.f32 %v2461, %v2475
      %v2501 = vadd.f32 %v2462, %v2475
      %v2502 = vadd.f32 %v2463, %v2475
      %v2503 = vadd.f32 %v2464, %v2475
      %v2504 = vadd.f32 %v2465, %v2475
      %v2505 = vadd.f32 %v2466, %v2475
      %v2506 = vadd.f32 %v2467, %v2475
      %v2507 = vadd.f32 %v2468, %v2475
      %v2508 = vadd.f32 %v2469, %v2475
      %s2509 = scalar_lea.vmem %s170, 256
      %2510 = vst.msk [vmem:[%s2509] sm:$0xff] %vm1325, %v2477
      %2511 = vst.msk [vmem:[%s2509 + $0x8] sm:$0xff] %vm1325, %v2478
      %2512 = vst.msk [vmem:[%s2509 + $0x10] sm:$0xff] %vm1325, %v2479
      %2513 = vst.msk [vmem:[%s2509 + $0x18] sm:$0xff] %vm1325, %v2480
      %2514 = vst.msk [vmem:[%s2509 + $0x20] sm:$0xff] %vm1325, %v2481
      %2515 = vst.msk [vmem:[%s2509 + $0x28] sm:$0xff] %vm1325, %v2482
      %2516 = vst.msk [vmem:[%s2509 + $0x30] sm:$0xff] %vm1325, %v2483
      %2517 = vst.msk [vmem:[%s2509 + $0x38] sm:$0xff] %vm1325, %v2484
      %2518 = vst.msk [vmem:[%s2509 + $0x40] sm:$0xff] %vm1325, %v2485
      %2519 = vst.msk [vmem:[%s2509 + $0x48] sm:$0xff] %vm1325, %v2486
      %2520 = vst.msk [vmem:[%s2509 + $0x50] sm:$0xff] %vm1325, %v2487
      %2521 = vst.msk [vmem:[%s2509 + $0x58] sm:$0xff] %vm1325, %v2488
      %2522 = vst.msk [vmem:[%s2509 + $0x60] sm:$0xff] %vm1325, %v2489
      %2523 = vst.msk [vmem:[%s2509 + $0x68] sm:$0xff] %vm1325, %v2490
      %2524 = vst.msk [vmem:[%s2509 + $0x70] sm:$0xff] %vm1325, %v2491
      %2525 = vst.msk [vmem:[%s2509 + $0x78] sm:$0xff] %vm1325, %v2492
      %2526 = vst.msk [vmem:[%s2509 + $0x80] sm:$0xff] %vm1325, %v2493
      %2527 = vst.msk [vmem:[%s2509 + $0x88] sm:$0xff] %vm1325, %v2494
      %2528 = vst.msk [vmem:[%s2509 + $0x90] sm:$0xff] %vm1325, %v2495
      %2529 = vst.msk [vmem:[%s2509 + $0x98] sm:$0xff] %vm1325, %v2496
      %2530 = vst.msk [vmem:[%s2509 + $0xa0] sm:$0xff] %vm1325, %v2497
      %2531 = vst.msk [vmem:[%s2509 + $0xa8] sm:$0xff] %vm1325, %v2498
      %2532 = vst.msk [vmem:[%s2509 + $0xb0] sm:$0xff] %vm1325, %v2499
      %2533 = vst.msk [vmem:[%s2509 + $0xb8] sm:$0xff] %vm1325, %v2500
      %2534 = vst.msk [vmem:[%s2509 + $0xc0] sm:$0xff] %vm1325, %v2501
      %2535 = vst.msk [vmem:[%s2509 + $0xc8] sm:$0xff] %vm1325, %v2502
      %2536 = vst.msk [vmem:[%s2509 + $0xd0] sm:$0xff] %vm1325, %v2503
      %2537 = vst.msk [vmem:[%s2509 + $0xd8] sm:$0xff] %vm1325, %v2504
      %2538 = vst.msk [vmem:[%s2509 + $0xe0] sm:$0xff] %vm1325, %v2505
      %2539 = vst.msk [vmem:[%s2509 + $0xe8] sm:$0xff] %vm1325, %v2506
      %2540 = vst.msk [vmem:[%s2509 + $0xf0] sm:$0xff] %vm1325, %v2507
      %2541 = vst.msk [vmem:[%s2509 + $0xf8] sm:$0xff] %vm1325, %v2508
      %v2542 = vld [vmem:[%s697] sm:$0xff]
      %v2543 = vld [vmem:[%s697 + $0x8] sm:$0xff]
      %v2544 = vld [vmem:[%s697 + $0x18] sm:$0xff]
      %v2545 = vld [vmem:[%s697 + $0x20] sm:$0xff]
      %v2546 = vld [vmem:[%s697 + $0x30] sm:$0xff]
      %v2547 = vld [vmem:[%s697 + $0x38] sm:$0xff]
      %v2548 = vld [vmem:[%s697 + $0x48] sm:$0xff]
      %v2549 = vld [vmem:[%s697 + $0x50] sm:$0xff]
      %v2550 = vld [vmem:[%s697 + $0x60] sm:$0xff]
      %v2551 = vld [vmem:[%s697 + $0x68] sm:$0xff]
      %v2552 = vld [vmem:[%s697 + $0x78] sm:$0xff]
      %v2553 = vld [vmem:[%s697 + $0x80] sm:$0xff]
      %v2554 = vld [vmem:[%s697 + $0x90] sm:$0xff]
      %v2555 = vld [vmem:[%s697 + $0x98] sm:$0xff]
      %v2556 = vld [vmem:[%s697 + $0xa8] sm:$0xff]
      %v2557 = vld [vmem:[%s697 + $0xb0] sm:$0xff]
      %v2558 = vld [vmem:[%s697 + $0xc0] sm:$0xff]
      %v2559 = vld [vmem:[%s697 + $0xc8] sm:$0xff]
      %v2560 = vld [vmem:[%s697 + $0xd8] sm:$0xff]
      %v2561 = vld [vmem:[%s697 + $0xe0] sm:$0xff]
      %v2562 = vld [vmem:[%s697 + $0xf0] sm:$0xff]
      %v2563 = vld [vmem:[%s697 + $0xf8] sm:$0xff]
      %v2564 = vld [vmem:[%s697 + $0x108] sm:$0xff]
      %v2565 = vld [vmem:[%s697 + $0x110] sm:$0xff]
      %v2566 = vld [vmem:[%s697 + $0x120] sm:$0xff]
      %v2567 = vld [vmem:[%s697 + $0x128] sm:$0xff]
      %v2568 = vld [vmem:[%s697 + $0x138] sm:$0xff]
      %v2569 = vld [vmem:[%s697 + $0x140] sm:$0xff]
      %v2570 = vld [vmem:[%s697 + $0x150] sm:$0xff]
      %v2571 = vld [vmem:[%s697 + $0x158] sm:$0xff]
      %v2572 = vld [vmem:[%s697 + $0x168] sm:$0xff]
      %v2573 = vld [vmem:[%s697 + $0x170] sm:$0xff]
      %v2574 = vpack.c.bf16 %v2543, %v2542
      %v2575 = vpack.c.bf16 %v2545, %v2544
      %v2576 = vpack.c.bf16 %v2547, %v2546
      %v2577 = vpack.c.bf16 %v2549, %v2548
      %v2578 = vpack.c.bf16 %v2551, %v2550
      %v2579 = vpack.c.bf16 %v2553, %v2552
      %v2580 = vpack.c.bf16 %v2555, %v2554
      %v2581 = vpack.c.bf16 %v2557, %v2556
      %v2582 = vpack.c.bf16 %v2559, %v2558
      %v2583 = vpack.c.bf16 %v2561, %v2560
      %v2584 = vpack.c.bf16 %v2563, %v2562
      %v2585 = vpack.c.bf16 %v2565, %v2564
      %v2586 = vpack.c.bf16 %v2567, %v2566
      %v2587 = vpack.c.bf16 %v2569, %v2568
      %v2588 = vpack.c.bf16 %v2571, %v2570
      %v2589 = vpack.c.bf16 %v2573, %v2572
      %s2590 = scalar_lea.vmem %s1, 16
      %v2591 = vld [vmem:[%s2590] sm:$0x3]
      %v2592 = vld [vmem:[%s697 + $0x1] sm:$0xff]
      %v2593 = vld [vmem:[%s697 + $0x9] sm:$0xff]
      %v2594 = vld [vmem:[%s697 + $0x19] sm:$0xff]
      %v2595 = vld [vmem:[%s697 + $0x21] sm:$0xff]
      %v2596 = vld [vmem:[%s697 + $0x31] sm:$0xff]
      %v2597 = vld [vmem:[%s697 + $0x39] sm:$0xff]
      %v2598 = vld [vmem:[%s697 + $0x49] sm:$0xff]
      %v2599 = vld [vmem:[%s697 + $0x51] sm:$0xff]
      %v2600 = vld [vmem:[%s697 + $0x61] sm:$0xff]
      %v2601 = vld [vmem:[%s697 + $0x69] sm:$0xff]
      %v2602 = vld [vmem:[%s697 + $0x79] sm:$0xff]
      %v2603 = vld [vmem:[%s697 + $0x81] sm:$0xff]
      %v2604 = vld [vmem:[%s697 + $0x91] sm:$0xff]
      %v2605 = vld [vmem:[%s697 + $0x99] sm:$0xff]
      %v2606 = vld [vmem:[%s697 + $0xa9] sm:$0xff]
      %v2607 = vld [vmem:[%s697 + $0xb1] sm:$0xff]
      %v2608 = vld [vmem:[%s697 + $0xc1] sm:$0xff]
      %v2609 = vld [vmem:[%s697 + $0xc9] sm:$0xff]
      %v2610 = vld [vmem:[%s697 + $0xd9] sm:$0xff]
      %v2611 = vld [vmem:[%s697 + $0xe1] sm:$0xff]
      %v2612 = vld [vmem:[%s697 + $0xf1] sm:$0xff]
      %v2613 = vld [vmem:[%s697 + $0xf9] sm:$0xff]
      %v2614 = vld [vmem:[%s697 + $0x109] sm:$0xff]
      %v2615 = vld [vmem:[%s697 + $0x111] sm:$0xff]
      %v2616 = vld [vmem:[%s697 + $0x121] sm:$0xff]
      %v2617 = vld [vmem:[%s697 + $0x129] sm:$0xff]
      %v2618 = vld [vmem:[%s697 + $0x139] sm:$0xff]
      %v2619 = vld [vmem:[%s697 + $0x141] sm:$0xff]
      %v2620 = vld [vmem:[%s697 + $0x151] sm:$0xff]
      %v2621 = vld [vmem:[%s697 + $0x159] sm:$0xff]
      %v2622 = vld [vmem:[%s697 + $0x169] sm:$0xff]
      %v2623 = vld [vmem:[%s697 + $0x171] sm:$0xff]
      %v2624 = vpack.c.bf16 %v2593, %v2592
      %v2625 = vpack.c.bf16 %v2595, %v2594
      %v2626 = vpack.c.bf16 %v2597, %v2596
      %v2627 = vpack.c.bf16 %v2599, %v2598
      %v2628 = vpack.c.bf16 %v2601, %v2600
      %v2629 = vpack.c.bf16 %v2603, %v2602
      %v2630 = vpack.c.bf16 %v2605, %v2604
      %v2631 = vpack.c.bf16 %v2607, %v2606
      %v2632 = vpack.c.bf16 %v2609, %v2608
      %v2633 = vpack.c.bf16 %v2611, %v2610
      %v2634 = vpack.c.bf16 %v2613, %v2612
      %v2635 = vpack.c.bf16 %v2615, %v2614
      %v2636 = vpack.c.bf16 %v2617, %v2616
      %v2637 = vpack.c.bf16 %v2619, %v2618
      %v2638 = vpack.c.bf16 %v2621, %v2620
      %v2639 = vpack.c.bf16 %v2623, %v2622
      %s2640 = scalar_lea.vmem %s1, 18
      %v2641 = vld [vmem:[%s2640] sm:$0x3]
      %v2643 = vsel %vm271, %v2624, 0
      %v2646 = vsel %vm271, %v2625, 0
      %v2649 = vsel %vm271, %v2626, 0
      %v2652 = vsel %vm271, %v2627, 0
      %v2655 = vsel %vm271, %v2628, 0
      %v2658 = vsel %vm271, %v2629, 0
      %v2661 = vsel %vm271, %v2630, 0
      %v2664 = vsel %vm271, %v2631, 0
      %v2667 = vsel %vm271, %v2632, 0
      %v2670 = vsel %vm271, %v2633, 0
      %v2673 = vsel %vm271, %v2634, 0
      %v2676 = vsel %vm271, %v2635, 0
      %v2679 = vsel %vm271, %v2636, 0
      %v2682 = vsel %vm271, %v2637, 0
      %v2685 = vsel %vm271, %v2638, 0
      %v2688 = vsel %vm271, %v2639, 0
      %v2691 = vsel %vm320, %v2641, 0
      %2693 = vmatprep.subr.bf16.mxu0 0
      %2694 = vmatpush1.bf16.msra.mxu0 0
      %2695 = vmatprep.subr.bf16.mxu0 0
      %2696 = vmatpush1.bf16.msra.mxu0 0
      %2697 = vmatprep.subr.bf16.mxu0 0
      %2698 = vmatpush1.bf16.msra.mxu0 0
      %2699 = vmatprep.subr.bf16.mxu0 0
      %2700 = vmatpush1.bf16.msra.mxu0 0
      %2701 = vmatprep.subr.bf16.mxu0 0
      %2702 = vmatpush1.bf16.msra.mxu0 0
      %2703 = vmatprep.subr.bf16.mxu0 0
      %2704 = vmatpush1.bf16.msra.mxu0 0
      %2705 = vmatprep.subr.bf16.mxu0 0
      %2706 = vmatpush1.bf16.msra.mxu0 0
      %2707 = vmatprep.subr.bf16.mxu0 0
      %2708 = vmatpush1.bf16.msra.mxu0 %v2691
      %2709 = vmatprep.subr.bf16.mxu0 0
      %2710 = vmatpush2.bf16.msra.mxu0 0
      %2711 = vmatprep.subr.bf16.mxu0 0
      %2712 = vmatpush2.bf16.msra.mxu0 0
      %2713 = vmatprep.subr.bf16.mxu0 0
      %2714 = vmatpush2.bf16.msra.mxu0 0
      %2715 = vmatprep.subr.bf16.mxu0 0
      %2716 = vmatpush2.bf16.msra.mxu0 0
      %2717 = vmatprep.subr.bf16.mxu0 0
      %2718 = vmatpush2.bf16.msra.mxu0 0
      %2719 = vmatprep.subr.bf16.mxu0 0
      %2720 = vmatpush2.bf16.msra.mxu0 0
      %2721 = vmatprep.subr.bf16.mxu0 0
      %2722 = vmatpush2.bf16.msra.mxu0 0
      %2723 = vmatprep.subr.bf16.mxu0 0
      %2724 = vmatpush2.bf16.msra.mxu0 0
      %2725 = vmatprep.mubr.bf16.mxu0 0
      %2726 = vmatmul.mubr.bf16.gmra.mxu0 %v2643
      %v2727 = vpop.f32.mrf.mxu0
      %v2728 = vadd.f32 0.0, %v2727
      %v2729 = vpop.f32.mrf.mxu0
      %v2730 = vpop.f32.mrf.mxu0
      %v2731 = vadd.f32 0.0, %v2730
      %v2732 = vpop.f32.mrf.mxu0
      %2733 = vmatprep.mubr.bf16.mxu0 0
      %2734 = vmatmul.mubr.bf16.gmra.mxu0 %v2646
      %v2735 = vpop.f32.mrf.mxu0
      %v2736 = vadd.f32 0.0, %v2735
      %v2737 = vpop.f32.mrf.mxu0
      %v2738 = vpop.f32.mrf.mxu0
      %v2739 = vadd.f32 0.0, %v2738
      %v2740 = vpop.f32.mrf.mxu0
      %2741 = vmatprep.mubr.bf16.mxu0 0
      %2742 = vmatmul.mubr.bf16.gmra.mxu0 %v2649
      %v2743 = vpop.f32.mrf.mxu0
      %v2744 = vadd.f32 0.0, %v2743
      %v2745 = vpop.f32.mrf.mxu0
      %v2746 = vpop.f32.mrf.mxu0
      %v2747 = vadd.f32 0.0, %v2746
      %v2748 = vpop.f32.mrf.mxu0
      %2749 = vmatprep.mubr.bf16.mxu0 0
      %2750 = vmatmul.mubr.bf16.gmra.mxu0 %v2652
      %v2751 = vpop.f32.mrf.mxu0
      %v2752 = vadd.f32 0.0, %v2751
      %v2753 = vpop.f32.mrf.mxu0
      %v2754 = vpop.f32.mrf.mxu0
      %v2755 = vadd.f32 0.0, %v2754
      %v2756 = vpop.f32.mrf.mxu0
      %2757 = vmatprep.mubr.bf16.mxu0 0
      %2758 = vmatmul.mubr.bf16.gmra.mxu0 %v2655
      %v2759 = vpop.f32.mrf.mxu0
      %v2760 = vadd.f32 0.0, %v2759
      %v2761 = vpop.f32.mrf.mxu0
      %v2762 = vpop.f32.mrf.mxu0
      %v2763 = vadd.f32 0.0, %v2762
      %v2764 = vpop.f32.mrf.mxu0
      %2765 = vmatprep.mubr.bf16.mxu0 0
      %2766 = vmatmul.mubr.bf16.gmra.mxu0 %v2658
      %v2767 = vpop.f32.mrf.mxu0
      %v2768 = vadd.f32 0.0, %v2767
      %v2769 = vpop.f32.mrf.mxu0
      %v2770 = vpop.f32.mrf.mxu0
      %v2771 = vadd.f32 0.0, %v2770
      %v2772 = vpop.f32.mrf.mxu0
      %2773 = vmatprep.mubr.bf16.mxu0 0
      %2774 = vmatmul.mubr.bf16.gmra.mxu0 %v2661
      %v2775 = vpop.f32.mrf.mxu0
      %v2776 = vadd.f32 0.0, %v2775
      %v2777 = vpop.f32.mrf.mxu0
      %v2778 = vpop.f32.mrf.mxu0
      %v2779 = vadd.f32 0.0, %v2778
      %v2780 = vpop.f32.mrf.mxu0
      %2781 = vmatprep.mubr.bf16.mxu0 0
      %2782 = vmatmul.mubr.bf16.gmra.mxu0 %v2664
      %v2783 = vpop.f32.mrf.mxu0
      %v2784 = vadd.f32 0.0, %v2783
      %v2785 = vpop.f32.mrf.mxu0
      %v2786 = vpop.f32.mrf.mxu0
      %v2787 = vadd.f32 0.0, %v2786
      %v2788 = vpop.f32.mrf.mxu0
      %2789 = vmatprep.mubr.bf16.mxu0 0
      %2790 = vmatmul.mubr.bf16.gmra.mxu0 %v2667
      %v2791 = vpop.f32.mrf.mxu0
      %v2792 = vadd.f32 0.0, %v2791
      %v2793 = vpop.f32.mrf.mxu0
      %v2794 = vpop.f32.mrf.mxu0
      %v2795 = vadd.f32 0.0, %v2794
      %v2796 = vpop.f32.mrf.mxu0
      %2797 = vmatprep.mubr.bf16.mxu0 0
      %2798 = vmatmul.mubr.bf16.gmra.mxu0 %v2670
      %v2799 = vpop.f32.mrf.mxu0
      %v2800 = vadd.f32 0.0, %v2799
      %v2801 = vpop.f32.mrf.mxu0
      %v2802 = vpop.f32.mrf.mxu0
      %v2803 = vadd.f32 0.0, %v2802
      %v2804 = vpop.f32.mrf.mxu0
      %2805 = vmatprep.mubr.bf16.mxu0 0
      %2806 = vmatmul.mubr.bf16.gmra.mxu0 %v2673
      %v2807 = vpop.f32.mrf.mxu0
      %v2808 = vadd.f32 0.0, %v2807
      %v2809 = vpop.f32.mrf.mxu0
      %v2810 = vpop.f32.mrf.mxu0
      %v2811 = vadd.f32 0.0, %v2810
      %v2812 = vpop.f32.mrf.mxu0
      %2813 = vmatprep.mubr.bf16.mxu0 0
      %2814 = vmatmul.mubr.bf16.gmra.mxu0 %v2676
      %v2815 = vpop.f32.mrf.mxu0
      %v2816 = vadd.f32 0.0, %v2815
      %v2817 = vpop.f32.mrf.mxu0
      %v2818 = vpop.f32.mrf.mxu0
      %v2819 = vadd.f32 0.0, %v2818
      %v2820 = vpop.f32.mrf.mxu0
      %2821 = vmatprep.mubr.bf16.mxu0 0
      %2822 = vmatmul.mubr.bf16.gmra.mxu0 %v2679
      %v2823 = vpop.f32.mrf.mxu0
      %v2824 = vadd.f32 0.0, %v2823
      %v2825 = vpop.f32.mrf.mxu0
      %v2826 = vpop.f32.mrf.mxu0
      %v2827 = vadd.f32 0.0, %v2826
      %v2828 = vpop.f32.mrf.mxu0
      %2829 = vmatprep.mubr.bf16.mxu0 0
      %2830 = vmatmul.mubr.bf16.gmra.mxu0 %v2682
      %v2831 = vpop.f32.mrf.mxu0
      %v2832 = vadd.f32 0.0, %v2831
      %v2833 = vpop.f32.mrf.mxu0
      %v2834 = vpop.f32.mrf.mxu0
      %v2835 = vadd.f32 0.0, %v2834
      %v2836 = vpop.f32.mrf.mxu0
      %2837 = vmatprep.mubr.bf16.mxu0 0
      %2838 = vmatmul.mubr.bf16.gmra.mxu0 %v2685
      %v2839 = vpop.f32.mrf.mxu0
      %v2840 = vadd.f32 0.0, %v2839
      %v2841 = vpop.f32.mrf.mxu0
      %v2842 = vpop.f32.mrf.mxu0
      %v2843 = vadd.f32 0.0, %v2842
      %v2844 = vpop.f32.mrf.mxu0
      %2845 = vmatprep.mubr.bf16.mxu0 0
      %2846 = vmatmul.mubr.bf16.gmra.mxu0 %v2688
      %v2847 = vpop.f32.mrf.mxu0
      %v2848 = vadd.f32 0.0, %v2847
      %v2849 = vpop.f32.mrf.mxu0
      %v2850 = vpop.f32.mrf.mxu0
      %v2851 = vadd.f32 0.0, %v2850
      %v2852 = vpop.f32.mrf.mxu0
      %2853 = vdwg.mxu0
      %v2855 = vsel %vm271, %v2574, 0
      %v2858 = vsel %vm271, %v2575, 0
      %v2861 = vsel %vm271, %v2576, 0
      %v2864 = vsel %vm271, %v2577, 0
      %v2867 = vsel %vm271, %v2578, 0
      %v2870 = vsel %vm271, %v2579, 0
      %v2873 = vsel %vm271, %v2580, 0
      %v2876 = vsel %vm271, %v2581, 0
      %v2879 = vsel %vm271, %v2582, 0
      %v2882 = vsel %vm271, %v2583, 0
      %v2885 = vsel %vm271, %v2584, 0
      %v2888 = vsel %vm271, %v2585, 0
      %v2891 = vsel %vm271, %v2586, 0
      %v2894 = vsel %vm271, %v2587, 0
      %v2897 = vsel %vm271, %v2588, 0
      %v2900 = vsel %vm271, %v2589, 0
      %v2903 = vsel %vm320, %v2591, 0
      %2905 = vmatprep.subr.bf16.mxu0 0
      %2906 = vmatpush1.bf16.msra.mxu0 0
      %2907 = vmatprep.subr.bf16.mxu0 0
      %2908 = vmatpush1.bf16.msra.mxu0 0
      %2909 = vmatprep.subr.bf16.mxu0 0
      %2910 = vmatpush1.bf16.msra.mxu0 0
      %2911 = vmatprep.subr.bf16.mxu0 0
      %2912 = vmatpush1.bf16.msra.mxu0 0
      %2913 = vmatprep.subr.bf16.mxu0 0
      %2914 = vmatpush1.bf16.msra.mxu0 0
      %2915 = vmatprep.subr.bf16.mxu0 0
      %2916 = vmatpush1.bf16.msra.mxu0 0
      %2917 = vmatprep.subr.bf16.mxu0 0
      %2918 = vmatpush1.bf16.msra.mxu0 0
      %2919 = vmatprep.subr.bf16.mxu0 0
      %2920 = vmatpush1.bf16.msra.mxu0 %v2903
      %2921 = vmatprep.subr.bf16.mxu0 0
      %2922 = vmatpush2.bf16.msra.mxu0 0
      %2923 = vmatprep.subr.bf16.mxu0 0
      %2924 = vmatpush2.bf16.msra.mxu0 0
      %2925 = vmatprep.subr.bf16.mxu0 0
      %2926 = vmatpush2.bf16.msra.mxu0 0
      %2927 = vmatprep.subr.bf16.mxu0 0
      %2928 = vmatpush2.bf16.msra.mxu0 0
      %2929 = vmatprep.subr.bf16.mxu0 0
      %2930 = vmatpush2.bf16.msra.mxu0 0
      %2931 = vmatprep.subr.bf16.mxu0 0
      %2932 = vmatpush2.bf16.msra.mxu0 0
      %2933 = vmatprep.subr.bf16.mxu0 0
      %2934 = vmatpush2.bf16.msra.mxu0 0
      %2935 = vmatprep.subr.bf16.mxu0 0
      %2936 = vmatpush2.bf16.msra.mxu0 0
      %2937 = vmatprep.mubr.bf16.mxu0 0
      %2938 = vmatmul.mubr.bf16.gmra.mxu0 %v2855
      %v2939 = vpop.f32.mrf.mxu0
      %v2940 = vadd.f32 %v2728, %v2939
      %v2941 = vpop.f32.mrf.mxu0
      %v2942 = vpop.f32.mrf.mxu0
      %v2943 = vadd.f32 %v2731, %v2942
      %v2944 = vpop.f32.mrf.mxu0
      %2945 = vmatprep.mubr.bf16.mxu0 0
      %2946 = vmatmul.mubr.bf16.gmra.mxu0 %v2858
      %v2947 = vpop.f32.mrf.mxu0
      %v2948 = vadd.f32 %v2736, %v2947
      %v2949 = vpop.f32.mrf.mxu0
      %v2950 = vpop.f32.mrf.mxu0
      %v2951 = vadd.f32 %v2739, %v2950
      %v2952 = vpop.f32.mrf.mxu0
      %2953 = vmatprep.mubr.bf16.mxu0 0
      %2954 = vmatmul.mubr.bf16.gmra.mxu0 %v2861
      %v2955 = vpop.f32.mrf.mxu0
      %v2956 = vadd.f32 %v2744, %v2955
      %v2957 = vpop.f32.mrf.mxu0
      %v2958 = vpop.f32.mrf.mxu0
      %v2959 = vadd.f32 %v2747, %v2958
      %v2960 = vpop.f32.mrf.mxu0
      %2961 = vmatprep.mubr.bf16.mxu0 0
      %2962 = vmatmul.mubr.bf16.gmra.mxu0 %v2864
      %v2963 = vpop.f32.mrf.mxu0
      %v2964 = vadd.f32 %v2752, %v2963
      %v2965 = vpop.f32.mrf.mxu0
      %v2966 = vpop.f32.mrf.mxu0
      %v2967 = vadd.f32 %v2755, %v2966
      %v2968 = vpop.f32.mrf.mxu0
      %2969 = vmatprep.mubr.bf16.mxu0 0
      %2970 = vmatmul.mubr.bf16.gmra.mxu0 %v2867
      %v2971 = vpop.f32.mrf.mxu0
      %v2972 = vadd.f32 %v2760, %v2971
      %v2973 = vpop.f32.mrf.mxu0
      %v2974 = vpop.f32.mrf.mxu0
      %v2975 = vadd.f32 %v2763, %v2974
      %v2976 = vpop.f32.mrf.mxu0
      %2977 = vmatprep.mubr.bf16.mxu0 0
      %2978 = vmatmul.mubr.bf16.gmra.mxu0 %v2870
      %v2979 = vpop.f32.mrf.mxu0
      %v2980 = vadd.f32 %v2768, %v2979
      %v2981 = vpop.f32.mrf.mxu0
      %v2982 = vpop.f32.mrf.mxu0
      %v2983 = vadd.f32 %v2771, %v2982
      %v2984 = vpop.f32.mrf.mxu0
      %2985 = vmatprep.mubr.bf16.mxu0 0
      %2986 = vmatmul.mubr.bf16.gmra.mxu0 %v2873
      %v2987 = vpop.f32.mrf.mxu0
      %v2988 = vadd.f32 %v2776, %v2987
      %v2989 = vpop.f32.mrf.mxu0
      %v2990 = vpop.f32.mrf.mxu0
      %v2991 = vadd.f32 %v2779, %v2990
      %v2992 = vpop.f32.mrf.mxu0
      %2993 = vmatprep.mubr.bf16.mxu0 0
      %2994 = vmatmul.mubr.bf16.gmra.mxu0 %v2876
      %v2995 = vpop.f32.mrf.mxu0
      %v2996 = vadd.f32 %v2784, %v2995
      %v2997 = vpop.f32.mrf.mxu0
      %v2998 = vpop.f32.mrf.mxu0
      %v2999 = vadd.f32 %v2787, %v2998
      %v3000 = vpop.f32.mrf.mxu0
      %3001 = vmatprep.mubr.bf16.mxu0 0
      %3002 = vmatmul.mubr.bf16.gmra.mxu0 %v2879
      %v3003 = vpop.f32.mrf.mxu0
      %v3004 = vadd.f32 %v2792, %v3003
      %v3005 = vpop.f32.mrf.mxu0
      %v3006 = vpop.f32.mrf.mxu0
      %v3007 = vadd.f32 %v2795, %v3006
      %v3008 = vpop.f32.mrf.mxu0
      %3009 = vmatprep.mubr.bf16.mxu0 0
      %3010 = vmatmul.mubr.bf16.gmra.mxu0 %v2882
      %v3011 = vpop.f32.mrf.mxu0
      %v3012 = vadd.f32 %v2800, %v3011
      %v3013 = vpop.f32.mrf.mxu0
      %v3014 = vpop.f32.mrf.mxu0
      %v3015 = vadd.f32 %v2803, %v3014
      %v3016 = vpop.f32.mrf.mxu0
      %3017 = vmatprep.mubr.bf16.mxu0 0
      %3018 = vmatmul.mubr.bf16.gmra.mxu0 %v2885
      %v3019 = vpop.f32.mrf.mxu0
      %v3020 = vadd.f32 %v2808, %v3019
      %v3021 = vpop.f32.mrf.mxu0
      %v3022 = vpop.f32.mrf.mxu0
      %v3023 = vadd.f32 %v2811, %v3022
      %v3024 = vpop.f32.mrf.mxu0
      %3025 = vmatprep.mubr.bf16.mxu0 0
      %3026 = vmatmul.mubr.bf16.gmra.mxu0 %v2888
      %v3027 = vpop.f32.mrf.mxu0
      %v3028 = vadd.f32 %v2816, %v3027
      %v3029 = vpop.f32.mrf.mxu0
      %v3030 = vpop.f32.mrf.mxu0
      %v3031 = vadd.f32 %v2819, %v3030
      %v3032 = vpop.f32.mrf.mxu0
      %3033 = vmatprep.mubr.bf16.mxu0 0
      %3034 = vmatmul.mubr.bf16.gmra.mxu0 %v2891
      %v3035 = vpop.f32.mrf.mxu0
      %v3036 = vadd.f32 %v2824, %v3035
      %v3037 = vpop.f32.mrf.mxu0
      %v3038 = vpop.f32.mrf.mxu0
      %v3039 = vadd.f32 %v2827, %v3038
      %v3040 = vpop.f32.mrf.mxu0
      %3041 = vmatprep.mubr.bf16.mxu0 0
      %3042 = vmatmul.mubr.bf16.gmra.mxu0 %v2894
      %v3043 = vpop.f32.mrf.mxu0
      %v3044 = vadd.f32 %v2832, %v3043
      %v3045 = vpop.f32.mrf.mxu0
      %v3046 = vpop.f32.mrf.mxu0
      %v3047 = vadd.f32 %v2835, %v3046
      %v3048 = vpop.f32.mrf.mxu0
      %3049 = vmatprep.mubr.bf16.mxu0 0
      %3050 = vmatmul.mubr.bf16.gmra.mxu0 %v2897
      %v3051 = vpop.f32.mrf.mxu0
      %v3052 = vadd.f32 %v2840, %v3051
      %v3053 = vpop.f32.mrf.mxu0
      %v3054 = vpop.f32.mrf.mxu0
      %v3055 = vadd.f32 %v2843, %v3054
      %v3056 = vpop.f32.mrf.mxu0
      %3057 = vmatprep.mubr.bf16.mxu0 0
      %3058 = vmatmul.mubr.bf16.gmra.mxu0 %v2900
      %v3059 = vpop.f32.mrf.mxu0
      %v3060 = vadd.f32 %v2848, %v3059
      %v3061 = vpop.f32.mrf.mxu0
      %v3062 = vpop.f32.mrf.mxu0
      %v3063 = vadd.f32 %v2851, %v3062
      %v3064 = vpop.f32.mrf.mxu0
      %3065 = vdwg.mxu0
      %s3066 = scalar_lea.vmem %s165, 48
      %v3067 = vld [vmem:[%s3066] sm:$0xff]
      %v3068 = vld [vmem:[%s3066 + $0x8] sm:$0xff]
      %v3069 = vld [vmem:[%s3066 + $0x18] sm:$0xff]
      %v3070 = vld [vmem:[%s3066 + $0x20] sm:$0xff]
      %v3071 = vld [vmem:[%s3066 + $0x30] sm:$0xff]
      %v3072 = vld [vmem:[%s3066 + $0x38] sm:$0xff]
      %v3073 = vld [vmem:[%s3066 + $0x48] sm:$0xff]
      %v3074 = vld [vmem:[%s3066 + $0x50] sm:$0xff]
      %v3075 = vld [vmem:[%s3066 + $0x60] sm:$0xff]
      %v3076 = vld [vmem:[%s3066 + $0x68] sm:$0xff]
      %v3077 = vld [vmem:[%s3066 + $0x78] sm:$0xff]
      %v3078 = vld [vmem:[%s3066 + $0x80] sm:$0xff]
      %v3079 = vld [vmem:[%s3066 + $0x90] sm:$0xff]
      %v3080 = vld [vmem:[%s3066 + $0x98] sm:$0xff]
      %v3081 = vld [vmem:[%s3066 + $0xa8] sm:$0xff]
      %v3082 = vld [vmem:[%s3066 + $0xb0] sm:$0xff]
      %v3083 = vld [vmem:[%s3066 + $0xc0] sm:$0xff]
      %v3084 = vld [vmem:[%s3066 + $0xc8] sm:$0xff]
      %v3085 = vld [vmem:[%s3066 + $0xd8] sm:$0xff]
      %v3086 = vld [vmem:[%s3066 + $0xe0] sm:$0xff]
      %v3087 = vld [vmem:[%s3066 + $0xf0] sm:$0xff]
      %v3088 = vld [vmem:[%s3066 + $0xf8] sm:$0xff]
      %v3089 = vld [vmem:[%s3066 + $0x108] sm:$0xff]
      %v3090 = vld [vmem:[%s3066 + $0x110] sm:$0xff]
      %v3091 = vld [vmem:[%s3066 + $0x120] sm:$0xff]
      %v3092 = vld [vmem:[%s3066 + $0x128] sm:$0xff]
      %v3093 = vld [vmem:[%s3066 + $0x138] sm:$0xff]
      %v3094 = vld [vmem:[%s3066 + $0x140] sm:$0xff]
      %v3095 = vld [vmem:[%s3066 + $0x150] sm:$0xff]
      %v3096 = vld [vmem:[%s3066 + $0x158] sm:$0xff]
      %v3097 = vld [vmem:[%s3066 + $0x168] sm:$0xff]
      %v3098 = vld [vmem:[%s3066 + $0x170] sm:$0xff]
      %v3099 = vpack.c.bf16 %v3068, %v3067
      %v3100 = vpack.c.bf16 %v3070, %v3069
      %v3101 = vpack.c.bf16 %v3072, %v3071
      %v3102 = vpack.c.bf16 %v3074, %v3073
      %v3103 = vpack.c.bf16 %v3076, %v3075
      %v3104 = vpack.c.bf16 %v3078, %v3077
      %v3105 = vpack.c.bf16 %v3080, %v3079
      %v3106 = vpack.c.bf16 %v3082, %v3081
      %v3107 = vpack.c.bf16 %v3084, %v3083
      %v3108 = vpack.c.bf16 %v3086, %v3085
      %v3109 = vpack.c.bf16 %v3088, %v3087
      %v3110 = vpack.c.bf16 %v3090, %v3089
      %v3111 = vpack.c.bf16 %v3092, %v3091
      %v3112 = vpack.c.bf16 %v3094, %v3093
      %v3113 = vpack.c.bf16 %v3096, %v3095
      %v3114 = vpack.c.bf16 %v3098, %v3097
      %s3115 = scalar_lea.vmem %s1, 20
      %v3116 = vld [vmem:[%s3115] sm:$0x3]
      %v3118 = vsel %vm271, %v3099, 0
      %v3121 = vsel %vm271, %v3100, 0
      %v3124 = vsel %vm271, %v3101, 0
      %v3127 = vsel %vm271, %v3102, 0
      %v3130 = vsel %vm271, %v3103, 0
      %v3133 = vsel %vm271, %v3104, 0
      %v3136 = vsel %vm271, %v3105, 0
      %v3139 = vsel %vm271, %v3106, 0
      %v3142 = vsel %vm271, %v3107, 0
      %v3145 = vsel %vm271, %v3108, 0
      %v3148 = vsel %vm271, %v3109, 0
      %v3151 = vsel %vm271, %v3110, 0
      %v3154 = vsel %vm271, %v3111, 0
      %v3157 = vsel %vm271, %v3112, 0
      %v3160 = vsel %vm271, %v3113, 0
      %v3163 = vsel %vm271, %v3114, 0
      %v3166 = vsel %vm320, %v3116, 0
      %3168 = vmatprep.subr.bf16.mxu0 0
      %3169 = vmatpush1.bf16.msra.mxu0 0
      %3170 = vmatprep.subr.bf16.mxu0 0
      %3171 = vmatpush1.bf16.msra.mxu0 0
      %3172 = vmatprep.subr.bf16.mxu0 0
      %3173 = vmatpush1.bf16.msra.mxu0 0
      %3174 = vmatprep.subr.bf16.mxu0 0
      %3175 = vmatpush1.bf16.msra.mxu0 0
      %3176 = vmatprep.subr.bf16.mxu0 0
      %3177 = vmatpush1.bf16.msra.mxu0 0
      %3178 = vmatprep.subr.bf16.mxu0 0
      %3179 = vmatpush1.bf16.msra.mxu0 0
      %3180 = vmatprep.subr.bf16.mxu0 0
      %3181 = vmatpush1.bf16.msra.mxu0 0
      %3182 = vmatprep.subr.bf16.mxu0 0
      %3183 = vmatpush1.bf16.msra.mxu0 %v3166
      %3184 = vmatprep.subr.bf16.mxu0 0
      %3185 = vmatpush2.bf16.msra.mxu0 0
      %3186 = vmatprep.subr.bf16.mxu0 0
      %3187 = vmatpush2.bf16.msra.mxu0 0
      %3188 = vmatprep.subr.bf16.mxu0 0
      %3189 = vmatpush2.bf16.msra.mxu0 0
      %3190 = vmatprep.subr.bf16.mxu0 0
      %3191 = vmatpush2.bf16.msra.mxu0 0
      %3192 = vmatprep.subr.bf16.mxu0 0
      %3193 = vmatpush2.bf16.msra.mxu0 0
      %3194 = vmatprep.subr.bf16.mxu0 0
      %3195 = vmatpush2.bf16.msra.mxu0 0
      %3196 = vmatprep.subr.bf16.mxu0 0
      %3197 = vmatpush2.bf16.msra.mxu0 0
      %3198 = vmatprep.subr.bf16.mxu0 0
      %3199 = vmatpush2.bf16.msra.mxu0 0
      %3200 = vmatprep.mubr.bf16.mxu0 0
      %3201 = vmatmul.mubr.bf16.gmra.mxu0 %v3118
      %v3202 = vpop.f32.mrf.mxu0
      %v3203 = vadd.f32 0.0, %v3202
      %v3204 = vpop.f32.mrf.mxu0
      %v3205 = vpop.f32.mrf.mxu0
      %v3206 = vadd.f32 0.0, %v3205
      %v3207 = vpop.f32.mrf.mxu0
      %3208 = vmatprep.mubr.bf16.mxu0 0
      %3209 = vmatmul.mubr.bf16.gmra.mxu0 %v3121
      %v3210 = vpop.f32.mrf.mxu0
      %v3211 = vadd.f32 0.0, %v3210
      %v3212 = vpop.f32.mrf.mxu0
      %v3213 = vpop.f32.mrf.mxu0
      %v3214 = vadd.f32 0.0, %v3213
      %v3215 = vpop.f32.mrf.mxu0
      %3216 = vmatprep.mubr.bf16.mxu0 0
      %3217 = vmatmul.mubr.bf16.gmra.mxu0 %v3124
      %v3218 = vpop.f32.mrf.mxu0
      %v3219 = vadd.f32 0.0, %v3218
      %v3220 = vpop.f32.mrf.mxu0
      %v3221 = vpop.f32.mrf.mxu0
      %v3222 = vadd.f32 0.0, %v3221
      %v3223 = vpop.f32.mrf.mxu0
      %3224 = vmatprep.mubr.bf16.mxu0 0
      %3225 = vmatmul.mubr.bf16.gmra.mxu0 %v3127
      %v3226 = vpop.f32.mrf.mxu0
      %v3227 = vadd.f32 0.0, %v3226
      %v3228 = vpop.f32.mrf.mxu0
      %v3229 = vpop.f32.mrf.mxu0
      %v3230 = vadd.f32 0.0, %v3229
      %v3231 = vpop.f32.mrf.mxu0
      %3232 = vmatprep.mubr.bf16.mxu0 0
      %3233 = vmatmul.mubr.bf16.gmra.mxu0 %v3130
      %v3234 = vpop.f32.mrf.mxu0
      %v3235 = vadd.f32 0.0, %v3234
      %v3236 = vpop.f32.mrf.mxu0
      %v3237 = vpop.f32.mrf.mxu0
      %v3238 = vadd.f32 0.0, %v3237
      %v3239 = vpop.f32.mrf.mxu0
      %3240 = vmatprep.mubr.bf16.mxu0 0
      %3241 = vmatmul.mubr.bf16.gmra.mxu0 %v3133
      %v3242 = vpop.f32.mrf.mxu0
      %v3243 = vadd.f32 0.0, %v3242
      %v3244 = vpop.f32.mrf.mxu0
      %v3245 = vpop.f32.mrf.mxu0
      %v3246 = vadd.f32 0.0, %v3245
      %v3247 = vpop.f32.mrf.mxu0
      %3248 = vmatprep.mubr.bf16.mxu0 0
      %3249 = vmatmul.mubr.bf16.gmra.mxu0 %v3136
      %v3250 = vpop.f32.mrf.mxu0
      %v3251 = vadd.f32 0.0, %v3250
      %v3252 = vpop.f32.mrf.mxu0
      %v3253 = vpop.f32.mrf.mxu0
      %v3254 = vadd.f32 0.0, %v3253
      %v3255 = vpop.f32.mrf.mxu0
      %3256 = vmatprep.mubr.bf16.mxu0 0
      %3257 = vmatmul.mubr.bf16.gmra.mxu0 %v3139
      %v3258 = vpop.f32.mrf.mxu0
      %v3259 = vadd.f32 0.0, %v3258
      %v3260 = vpop.f32.mrf.mxu0
      %v3261 = vpop.f32.mrf.mxu0
      %v3262 = vadd.f32 0.0, %v3261
      %v3263 = vpop.f32.mrf.mxu0
      %3264 = vmatprep.mubr.bf16.mxu0 0
      %3265 = vmatmul.mubr.bf16.gmra.mxu0 %v3142
      %v3266 = vpop.f32.mrf.mxu0
      %v3267 = vadd.f32 0.0, %v3266
      %v3268 = vpop.f32.mrf.mxu0
      %v3269 = vpop.f32.mrf.mxu0
      %v3270 = vadd.f32 0.0, %v3269
      %v3271 = vpop.f32.mrf.mxu0
      %3272 = vmatprep.mubr.bf16.mxu0 0
      %3273 = vmatmul.mubr.bf16.gmra.mxu0 %v3145
      %v3274 = vpop.f32.mrf.mxu0
      %v3275 = vadd.f32 0.0, %v3274
      %v3276 = vpop.f32.mrf.mxu0
      %v3277 = vpop.f32.mrf.mxu0
      %v3278 = vadd.f32 0.0, %v3277
      %v3279 = vpop.f32.mrf.mxu0
      %3280 = vmatprep.mubr.bf16.mxu0 0
      %3281 = vmatmul.mubr.bf16.gmra.mxu0 %v3148
      %v3282 = vpop.f32.mrf.mxu0
      %v3283 = vadd.f32 0.0, %v3282
      %v3284 = vpop.f32.mrf.mxu0
      %v3285 = vpop.f32.mrf.mxu0
      %v3286 = vadd.f32 0.0, %v3285
      %v3287 = vpop.f32.mrf.mxu0
      %3288 = vmatprep.mubr.bf16.mxu0 0
      %3289 = vmatmul.mubr.bf16.gmra.mxu0 %v3151
      %v3290 = vpop.f32.mrf.mxu0
      %v3291 = vadd.f32 0.0, %v3290
      %v3292 = vpop.f32.mrf.mxu0
      %v3293 = vpop.f32.mrf.mxu0
      %v3294 = vadd.f32 0.0, %v3293
      %v3295 = vpop.f32.mrf.mxu0
      %3296 = vmatprep.mubr.bf16.mxu0 0
      %3297 = vmatmul.mubr.bf16.gmra.mxu0 %v3154
      %v3298 = vpop.f32.mrf.mxu0
      %v3299 = vadd.f32 0.0, %v3298
      %v3300 = vpop.f32.mrf.mxu0
      %v3301 = vpop.f32.mrf.mxu0
      %v3302 = vadd.f32 0.0, %v3301
      %v3303 = vpop.f32.mrf.mxu0
      %3304 = vmatprep.mubr.bf16.mxu0 0
      %3305 = vmatmul.mubr.bf16.gmra.mxu0 %v3157
      %v3306 = vpop.f32.mrf.mxu0
      %v3307 = vadd.f32 0.0, %v3306
      %v3308 = vpop.f32.mrf.mxu0
      %v3309 = vpop.f32.mrf.mxu0
      %v3310 = vadd.f32 0.0, %v3309
      %v3311 = vpop.f32.mrf.mxu0
      %3312 = vmatprep.mubr.bf16.mxu0 0
      %3313 = vmatmul.mubr.bf16.gmra.mxu0 %v3160
      %v3314 = vpop.f32.mrf.mxu0
      %v3315 = vadd.f32 0.0, %v3314
      %v3316 = vpop.f32.mrf.mxu0
      %v3317 = vpop.f32.mrf.mxu0
      %v3318 = vadd.f32 0.0, %v3317
      %v3319 = vpop.f32.mrf.mxu0
      %3320 = vmatprep.mubr.bf16.mxu0 0
      %3321 = vmatmul.mubr.bf16.gmra.mxu0 %v3163
      %v3322 = vpop.f32.mrf.mxu0
      %v3323 = vadd.f32 0.0, %v3322
      %v3324 = vpop.f32.mrf.mxu0
      %v3325 = vpop.f32.mrf.mxu0
      %v3326 = vadd.f32 0.0, %v3325
      %v3327 = vpop.f32.mrf.mxu0
      %3328 = vdwg.mxu0
      %v3329 = vadd.f32 %v2940, %v3203
      %v3330 = vadd.f32 %v2943, %v3206
      %v3331 = vadd.f32 %v2948, %v3211
      %v3332 = vadd.f32 %v2951, %v3214
      %v3333 = vadd.f32 %v2956, %v3219
      %v3334 = vadd.f32 %v2959, %v3222
      %v3335 = vadd.f32 %v2964, %v3227
      %v3336 = vadd.f32 %v2967, %v3230
      %v3337 = vadd.f32 %v2972, %v3235
      %v3338 = vadd.f32 %v2975, %v3238
      %v3339 = vadd.f32 %v2980, %v3243
      %v3340 = vadd.f32 %v2983, %v3246
      %v3341 = vadd.f32 %v2988, %v3251
      %v3342 = vadd.f32 %v2991, %v3254
      %v3343 = vadd.f32 %v2996, %v3259
      %v3344 = vadd.f32 %v2999, %v3262
      %v3345 = vadd.f32 %v3004, %v3267
      %v3346 = vadd.f32 %v3007, %v3270
      %v3347 = vadd.f32 %v3012, %v3275
      %v3348 = vadd.f32 %v3015, %v3278
      %v3349 = vadd.f32 %v3020, %v3283
      %v3350 = vadd.f32 %v3023, %v3286
      %v3351 = vadd.f32 %v3028, %v3291
      %v3352 = vadd.f32 %v3031, %v3294
      %v3353 = vadd.f32 %v3036, %v3299
      %v3354 = vadd.f32 %v3039, %v3302
      %v3355 = vadd.f32 %v3044, %v3307
      %v3356 = vadd.f32 %v3047, %v3310
      %v3357 = vadd.f32 %v3052, %v3315
      %v3358 = vadd.f32 %v3055, %v3318
      %v3359 = vadd.f32 %v3060, %v3323
      %v3360 = vadd.f32 %v3063, %v3326
      %v3361 = vld [vmem:[%s3066 + $0x1] sm:$0xff]
      %v3362 = vld [vmem:[%s3066 + $0x9] sm:$0xff]
      %v3363 = vld [vmem:[%s3066 + $0x19] sm:$0xff]
      %v3364 = vld [vmem:[%s3066 + $0x21] sm:$0xff]
      %v3365 = vld [vmem:[%s3066 + $0x31] sm:$0xff]
      %v3366 = vld [vmem:[%s3066 + $0x39] sm:$0xff]
      %v3367 = vld [vmem:[%s3066 + $0x49] sm:$0xff]
      %v3368 = vld [vmem:[%s3066 + $0x51] sm:$0xff]
      %v3369 = vld [vmem:[%s3066 + $0x61] sm:$0xff]
      %v3370 = vld [vmem:[%s3066 + $0x69] sm:$0xff]
      %v3371 = vld [vmem:[%s3066 + $0x79] sm:$0xff]
      %v3372 = vld [vmem:[%s3066 + $0x81] sm:$0xff]
      %v3373 = vld [vmem:[%s3066 + $0x91] sm:$0xff]
      %v3374 = vld [vmem:[%s3066 + $0x99] sm:$0xff]
      %v3375 = vld [vmem:[%s3066 + $0xa9] sm:$0xff]
      %v3376 = vld [vmem:[%s3066 + $0xb1] sm:$0xff]
      %v3377 = vld [vmem:[%s3066 + $0xc1] sm:$0xff]
      %v3378 = vld [vmem:[%s3066 + $0xc9] sm:$0xff]
      %v3379 = vld [vmem:[%s3066 + $0xd9] sm:$0xff]
      %v3380 = vld [vmem:[%s3066 + $0xe1] sm:$0xff]
      %v3381 = vld [vmem:[%s3066 + $0xf1] sm:$0xff]
      %v3382 = vld [vmem:[%s3066 + $0xf9] sm:$0xff]
      %v3383 = vld [vmem:[%s3066 + $0x109] sm:$0xff]
      %v3384 = vld [vmem:[%s3066 + $0x111] sm:$0xff]
      %v3385 = vld [vmem:[%s3066 + $0x121] sm:$0xff]
      %v3386 = vld [vmem:[%s3066 + $0x129] sm:$0xff]
      %v3387 = vld [vmem:[%s3066 + $0x139] sm:$0xff]
      %v3388 = vld [vmem:[%s3066 + $0x141] sm:$0xff]
      %v3389 = vld [vmem:[%s3066 + $0x151] sm:$0xff]
      %v3390 = vld [vmem:[%s3066 + $0x159] sm:$0xff]
      %v3391 = vld [vmem:[%s3066 + $0x169] sm:$0xff]
      %v3392 = vld [vmem:[%s3066 + $0x171] sm:$0xff]
      %v3393 = vpack.c.bf16 %v3362, %v3361
      %v3394 = vpack.c.bf16 %v3364, %v3363
      %v3395 = vpack.c.bf16 %v3366, %v3365
      %v3396 = vpack.c.bf16 %v3368, %v3367
      %v3397 = vpack.c.bf16 %v3370, %v3369
      %v3398 = vpack.c.bf16 %v3372, %v3371
      %v3399 = vpack.c.bf16 %v3374, %v3373
      %v3400 = vpack.c.bf16 %v3376, %v3375
      %v3401 = vpack.c.bf16 %v3378, %v3377
      %v3402 = vpack.c.bf16 %v3380, %v3379
      %v3403 = vpack.c.bf16 %v3382, %v3381
      %v3404 = vpack.c.bf16 %v3384, %v3383
      %v3405 = vpack.c.bf16 %v3386, %v3385
      %v3406 = vpack.c.bf16 %v3388, %v3387
      %v3407 = vpack.c.bf16 %v3390, %v3389
      %v3408 = vpack.c.bf16 %v3392, %v3391
      %s3409 = scalar_lea.vmem %s1, 22
      %v3410 = vld [vmem:[%s3409] sm:$0x3]
      %v3412 = vsel %vm271, %v3393, 0
      %v3415 = vsel %vm271, %v3394, 0
      %v3418 = vsel %vm271, %v3395, 0
      %v3421 = vsel %vm271, %v3396, 0
      %v3424 = vsel %vm271, %v3397, 0
      %v3427 = vsel %vm271, %v3398, 0
      %v3430 = vsel %vm271, %v3399, 0
      %v3433 = vsel %vm271, %v3400, 0
      %v3436 = vsel %vm271, %v3401, 0
      %v3439 = vsel %vm271, %v3402, 0
      %v3442 = vsel %vm271, %v3403, 0
      %v3445 = vsel %vm271, %v3404, 0
      %v3448 = vsel %vm271, %v3405, 0
      %v3451 = vsel %vm271, %v3406, 0
      %v3454 = vsel %vm271, %v3407, 0
      %v3457 = vsel %vm271, %v3408, 0
      %v3460 = vsel %vm320, %v3410, 0
      %3462 = vmatprep.subr.bf16.mxu0 0
      %3463 = vmatpush1.bf16.msra.mxu0 0
      %3464 = vmatprep.subr.bf16.mxu0 0
      %3465 = vmatpush1.bf16.msra.mxu0 0
      %3466 = vmatprep.subr.bf16.mxu0 0
      %3467 = vmatpush1.bf16.msra.mxu0 0
      %3468 = vmatprep.subr.bf16.mxu0 0
      %3469 = vmatpush1.bf16.msra.mxu0 0
      %3470 = vmatprep.subr.bf16.mxu0 0
      %3471 = vmatpush1.bf16.msra.mxu0 0
      %3472 = vmatprep.subr.bf16.mxu0 0
      %3473 = vmatpush1.bf16.msra.mxu0 0
      %3474 = vmatprep.subr.bf16.mxu0 0
      %3475 = vmatpush1.bf16.msra.mxu0 0
      %3476 = vmatprep.subr.bf16.mxu0 0
      %3477 = vmatpush1.bf16.msra.mxu0 %v3460
      %3478 = vmatprep.subr.bf16.mxu0 0
      %3479 = vmatpush2.bf16.msra.mxu0 0
      %3480 = vmatprep.subr.bf16.mxu0 0
      %3481 = vmatpush2.bf16.msra.mxu0 0
      %3482 = vmatprep.subr.bf16.mxu0 0
      %3483 = vmatpush2.bf16.msra.mxu0 0
      %3484 = vmatprep.subr.bf16.mxu0 0
      %3485 = vmatpush2.bf16.msra.mxu0 0
      %3486 = vmatprep.subr.bf16.mxu0 0
      %3487 = vmatpush2.bf16.msra.mxu0 0
      %3488 = vmatprep.subr.bf16.mxu0 0
      %3489 = vmatpush2.bf16.msra.mxu0 0
      %3490 = vmatprep.subr.bf16.mxu0 0
      %3491 = vmatpush2.bf16.msra.mxu0 0
      %3492 = vmatprep.subr.bf16.mxu0 0
      %3493 = vmatpush2.bf16.msra.mxu0 0
      %3494 = vmatprep.mubr.bf16.mxu0 0
      %3495 = vmatmul.mubr.bf16.gmra.mxu0 %v3412
      %v3496 = vpop.f32.mrf.mxu0
      %v3497 = vadd.f32 0.0, %v3496
      %v3498 = vpop.f32.mrf.mxu0
      %v3499 = vpop.f32.mrf.mxu0
      %v3500 = vadd.f32 0.0, %v3499
      %v3501 = vpop.f32.mrf.mxu0
      %3502 = vmatprep.mubr.bf16.mxu0 0
      %3503 = vmatmul.mubr.bf16.gmra.mxu0 %v3415
      %v3504 = vpop.f32.mrf.mxu0
      %v3505 = vadd.f32 0.0, %v3504
      %v3506 = vpop.f32.mrf.mxu0
      %v3507 = vpop.f32.mrf.mxu0
      %v3508 = vadd.f32 0.0, %v3507
      %v3509 = vpop.f32.mrf.mxu0
      %3510 = vmatprep.mubr.bf16.mxu0 0
      %3511 = vmatmul.mubr.bf16.gmra.mxu0 %v3418
      %v3512 = vpop.f32.mrf.mxu0
      %v3513 = vadd.f32 0.0, %v3512
      %v3514 = vpop.f32.mrf.mxu0
      %v3515 = vpop.f32.mrf.mxu0
      %v3516 = vadd.f32 0.0, %v3515
      %v3517 = vpop.f32.mrf.mxu0
      %3518 = vmatprep.mubr.bf16.mxu0 0
      %3519 = vmatmul.mubr.bf16.gmra.mxu0 %v3421
      %v3520 = vpop.f32.mrf.mxu0
      %v3521 = vadd.f32 0.0, %v3520
      %v3522 = vpop.f32.mrf.mxu0
      %v3523 = vpop.f32.mrf.mxu0
      %v3524 = vadd.f32 0.0, %v3523
      %v3525 = vpop.f32.mrf.mxu0
      %3526 = vmatprep.mubr.bf16.mxu0 0
      %3527 = vmatmul.mubr.bf16.gmra.mxu0 %v3424
      %v3528 = vpop.f32.mrf.mxu0
      %v3529 = vadd.f32 0.0, %v3528
      %v3530 = vpop.f32.mrf.mxu0
      %v3531 = vpop.f32.mrf.mxu0
      %v3532 = vadd.f32 0.0, %v3531
      %v3533 = vpop.f32.mrf.mxu0
      %3534 = vmatprep.mubr.bf16.mxu0 0
      %3535 = vmatmul.mubr.bf16.gmra.mxu0 %v3427
      %v3536 = vpop.f32.mrf.mxu0
      %v3537 = vadd.f32 0.0, %v3536
      %v3538 = vpop.f32.mrf.mxu0
      %v3539 = vpop.f32.mrf.mxu0
      %v3540 = vadd.f32 0.0, %v3539
      %v3541 = vpop.f32.mrf.mxu0
      %3542 = vmatprep.mubr.bf16.mxu0 0
      %3543 = vmatmul.mubr.bf16.gmra.mxu0 %v3430
      %v3544 = vpop.f32.mrf.mxu0
      %v3545 = vadd.f32 0.0, %v3544
      %v3546 = vpop.f32.mrf.mxu0
      %v3547 = vpop.f32.mrf.mxu0
      %v3548 = vadd.f32 0.0, %v3547
      %v3549 = vpop.f32.mrf.mxu0
      %3550 = vmatprep.mubr.bf16.mxu0 0
      %3551 = vmatmul.mubr.bf16.gmra.mxu0 %v3433
      %v3552 = vpop.f32.mrf.mxu0
      %v3553 = vadd.f32 0.0, %v3552
      %v3554 = vpop.f32.mrf.mxu0
      %v3555 = vpop.f32.mrf.mxu0
      %v3556 = vadd.f32 0.0, %v3555
      %v3557 = vpop.f32.mrf.mxu0
      %3558 = vmatprep.mubr.bf16.mxu0 0
      %3559 = vmatmul.mubr.bf16.gmra.mxu0 %v3436
      %v3560 = vpop.f32.mrf.mxu0
      %v3561 = vadd.f32 0.0, %v3560
      %v3562 = vpop.f32.mrf.mxu0
      %v3563 = vpop.f32.mrf.mxu0
      %v3564 = vadd.f32 0.0, %v3563
      %v3565 = vpop.f32.mrf.mxu0
      %3566 = vmatprep.mubr.bf16.mxu0 0
      %3567 = vmatmul.mubr.bf16.gmra.mxu0 %v3439
      %v3568 = vpop.f32.mrf.mxu0
      %v3569 = vadd.f32 0.0, %v3568
      %v3570 = vpop.f32.mrf.mxu0
      %v3571 = vpop.f32.mrf.mxu0
      %v3572 = vadd.f32 0.0, %v3571
      %v3573 = vpop.f32.mrf.mxu0
      %3574 = vmatprep.mubr.bf16.mxu0 0
      %3575 = vmatmul.mubr.bf16.gmra.mxu0 %v3442
      %v3576 = vpop.f32.mrf.mxu0
      %v3577 = vadd.f32 0.0, %v3576
      %v3578 = vpop.f32.mrf.mxu0
      %v3579 = vpop.f32.mrf.mxu0
      %v3580 = vadd.f32 0.0, %v3579
      %v3581 = vpop.f32.mrf.mxu0
      %3582 = vmatprep.mubr.bf16.mxu0 0
      %3583 = vmatmul.mubr.bf16.gmra.mxu0 %v3445
      %v3584 = vpop.f32.mrf.mxu0
      %v3585 = vadd.f32 0.0, %v3584
      %v3586 = vpop.f32.mrf.mxu0
      %v3587 = vpop.f32.mrf.mxu0
      %v3588 = vadd.f32 0.0, %v3587
      %v3589 = vpop.f32.mrf.mxu0
      %3590 = vmatprep.mubr.bf16.mxu0 0
      %3591 = vmatmul.mubr.bf16.gmra.mxu0 %v3448
      %v3592 = vpop.f32.mrf.mxu0
      %v3593 = vadd.f32 0.0, %v3592
      %v3594 = vpop.f32.mrf.mxu0
      %v3595 = vpop.f32.mrf.mxu0
      %v3596 = vadd.f32 0.0, %v3595
      %v3597 = vpop.f32.mrf.mxu0
      %3598 = vmatprep.mubr.bf16.mxu0 0
      %3599 = vmatmul.mubr.bf16.gmra.mxu0 %v3451
      %v3600 = vpop.f32.mrf.mxu0
      %v3601 = vadd.f32 0.0, %v3600
      %v3602 = vpop.f32.mrf.mxu0
      %v3603 = vpop.f32.mrf.mxu0
      %v3604 = vadd.f32 0.0, %v3603
      %v3605 = vpop.f32.mrf.mxu0
      %3606 = vmatprep.mubr.bf16.mxu0 0
      %3607 = vmatmul.mubr.bf16.gmra.mxu0 %v3454
      %v3608 = vpop.f32.mrf.mxu0
      %v3609 = vadd.f32 0.0, %v3608
      %v3610 = vpop.f32.mrf.mxu0
      %v3611 = vpop.f32.mrf.mxu0
      %v3612 = vadd.f32 0.0, %v3611
      %v3613 = vpop.f32.mrf.mxu0
      %3614 = vmatprep.mubr.bf16.mxu0 0
      %3615 = vmatmul.mubr.bf16.gmra.mxu0 %v3457
      %v3616 = vpop.f32.mrf.mxu0
      %v3617 = vadd.f32 0.0, %v3616
      %v3618 = vpop.f32.mrf.mxu0
      %v3619 = vpop.f32.mrf.mxu0
      %v3620 = vadd.f32 0.0, %v3619
      %v3621 = vpop.f32.mrf.mxu0
      %3622 = vdwg.mxu0
      %v3623 = vadd.f32 %v3329, %v3497
      %v3624 = vadd.f32 %v3330, %v3500
      %v3625 = vadd.f32 %v3331, %v3505
      %v3626 = vadd.f32 %v3332, %v3508
      %v3627 = vadd.f32 %v3333, %v3513
      %v3628 = vadd.f32 %v3334, %v3516
      %v3629 = vadd.f32 %v3335, %v3521
      %v3630 = vadd.f32 %v3336, %v3524
      %v3631 = vadd.f32 %v3337, %v3529
      %v3632 = vadd.f32 %v3338, %v3532
      %v3633 = vadd.f32 %v3339, %v3537
      %v3634 = vadd.f32 %v3340, %v3540
      %v3635 = vadd.f32 %v3341, %v3545
      %v3636 = vadd.f32 %v3342, %v3548
      %v3637 = vadd.f32 %v3343, %v3553
      %v3638 = vadd.f32 %v3344, %v3556
      %v3639 = vadd.f32 %v3345, %v3561
      %v3640 = vadd.f32 %v3346, %v3564
      %v3641 = vadd.f32 %v3347, %v3569
      %v3642 = vadd.f32 %v3348, %v3572
      %v3643 = vadd.f32 %v3349, %v3577
      %v3644 = vadd.f32 %v3350, %v3580
      %v3645 = vadd.f32 %v3351, %v3585
      %v3646 = vadd.f32 %v3352, %v3588
      %v3647 = vadd.f32 %v3353, %v3593
      %v3648 = vadd.f32 %v3354, %v3596
      %v3649 = vadd.f32 %v3355, %v3601
      %v3650 = vadd.f32 %v3356, %v3604
      %v3651 = vadd.f32 %v3357, %v3609
      %v3652 = vadd.f32 %v3358, %v3612
      %v3653 = vadd.f32 %v3359, %v3617
      %v3654 = vadd.f32 %v3360, %v3620
      %v3655 = vld [vmem:[%s2] sm:$0x1]
      %v3657 = vlaneseq
      %v3658 = vshrl.u32 %v3657, 7
      %v3659 = vsub.s32 0, %v3658
      %v3660 = vrot.slane %v3655, %v3659
      %v3662 = vadd.f32 %v3623, %v3660
      %v3663 = vadd.f32 %v3624, %v3660
      %v3664 = vadd.f32 %v3625, %v3660
      %v3665 = vadd.f32 %v3626, %v3660
      %v3666 = vadd.f32 %v3627, %v3660
      %v3667 = vadd.f32 %v3628, %v3660
      %v3668 = vadd.f32 %v3629, %v3660
      %v3669 = vadd.f32 %v3630, %v3660
      %v3670 = vadd.f32 %v3631, %v3660
      %v3671 = vadd.f32 %v3632, %v3660
      %v3672 = vadd.f32 %v3633, %v3660
      %v3673 = vadd.f32 %v3634, %v3660
      %v3674 = vadd.f32 %v3635, %v3660
      %v3675 = vadd.f32 %v3636, %v3660
      %v3676 = vadd.f32 %v3637, %v3660
      %v3677 = vadd.f32 %v3638, %v3660
      %v3678 = vadd.f32 %v3639, %v3660
      %v3679 = vadd.f32 %v3640, %v3660
      %v3680 = vadd.f32 %v3641, %v3660
      %v3681 = vadd.f32 %v3642, %v3660
      %v3682 = vadd.f32 %v3643, %v3660
      %v3683 = vadd.f32 %v3644, %v3660
      %v3684 = vadd.f32 %v3645, %v3660
      %v3685 = vadd.f32 %v3646, %v3660
      %v3686 = vadd.f32 %v3647, %v3660
      %v3687 = vadd.f32 %v3648, %v3660
      %v3688 = vadd.f32 %v3649, %v3660
      %v3689 = vadd.f32 %v3650, %v3660
      %v3690 = vadd.f32 %v3651, %v3660
      %v3691 = vadd.f32 %v3652, %v3660
      %v3692 = vadd.f32 %v3653, %v3660
      %v3693 = vadd.f32 %v3654, %v3660
      %s3694 = scalar_lea.vmem %s170, 512
      %3695 = vst.msk [vmem:[%s3694] sm:$0xff] %vm1325, %v3662
      %3696 = vst.msk [vmem:[%s3694 + $0x8] sm:$0xff] %vm1325, %v3663
      %3697 = vst.msk [vmem:[%s3694 + $0x10] sm:$0xff] %vm1325, %v3664
      %3698 = vst.msk [vmem:[%s3694 + $0x18] sm:$0xff] %vm1325, %v3665
      %3699 = vst.msk [vmem:[%s3694 + $0x20] sm:$0xff] %vm1325, %v3666
      %3700 = vst.msk [vmem:[%s3694 + $0x28] sm:$0xff] %vm1325, %v3667
      %3701 = vst.msk [vmem:[%s3694 + $0x30] sm:$0xff] %vm1325, %v3668
      %3702 = vst.msk [vmem:[%s3694 + $0x38] sm:$0xff] %vm1325, %v3669
      %3703 = vst.msk [vmem:[%s3694 + $0x40] sm:$0xff] %vm1325, %v3670
      %3704 = vst.msk [vmem:[%s3694 + $0x48] sm:$0xff] %vm1325, %v3671
      %3705 = vst.msk [vmem:[%s3694 + $0x50] sm:$0xff] %vm1325, %v3672
      %3706 = vst.msk [vmem:[%s3694 + $0x58] sm:$0xff] %vm1325, %v3673
      %3707 = vst.msk [vmem:[%s3694 + $0x60] sm:$0xff] %vm1325, %v3674
      %3708 = vst.msk [vmem:[%s3694 + $0x68] sm:$0xff] %vm1325, %v3675
      %3709 = vst.msk [vmem:[%s3694 + $0x70] sm:$0xff] %vm1325, %v3676
      %3710 = vst.msk [vmem:[%s3694 + $0x78] sm:$0xff] %vm1325, %v3677
      %3711 = vst.msk [vmem:[%s3694 + $0x80] sm:$0xff] %vm1325, %v3678
      %3712 = vst.msk [vmem:[%s3694 + $0x88] sm:$0xff] %vm1325, %v3679
      %3713 = vst.msk [vmem:[%s3694 + $0x90] sm:$0xff] %vm1325, %v3680
      %3714 = vst.msk [vmem:[%s3694 + $0x98] sm:$0xff] %vm1325, %v3681
      %3715 = vst.msk [vmem:[%s3694 + $0xa0] sm:$0xff] %vm1325, %v3682
      %3716 = vst.msk [vmem:[%s3694 + $0xa8] sm:$0xff] %vm1325, %v3683
      %3717 = vst.msk [vmem:[%s3694 + $0xb0] sm:$0xff] %vm1325, %v3684
      %3718 = vst.msk [vmem:[%s3694 + $0xb8] sm:$0xff] %vm1325, %v3685
      %3719 = vst.msk [vmem:[%s3694 + $0xc0] sm:$0xff] %vm1325, %v3686
      %3720 = vst.msk [vmem:[%s3694 + $0xc8] sm:$0xff] %vm1325, %v3687
      %3721 = vst.msk [vmem:[%s3694 + $0xd0] sm:$0xff] %vm1325, %v3688
      %3722 = vst.msk [vmem:[%s3694 + $0xd8] sm:$0xff] %vm1325, %v3689
      %3723 = vst.msk [vmem:[%s3694 + $0xe0] sm:$0xff] %vm1325, %v3690
      %3724 = vst.msk [vmem:[%s3694 + $0xe8] sm:$0xff] %vm1325, %v3691
      %3725 = vst.msk [vmem:[%s3694 + $0xf0] sm:$0xff] %vm1325, %v3692
      %3726 = vst.msk [vmem:[%s3694 + $0xf8] sm:$0xff] %vm1325, %v3693
      %v3727 = vld [vmem:[%s697 + $0x1] sm:$0xff]
      %v3728 = vld [vmem:[%s697 + $0x9] sm:$0xff]
      %v3729 = vld [vmem:[%s697 + $0x19] sm:$0xff]
      %v3730 = vld [vmem:[%s697 + $0x21] sm:$0xff]
      %v3731 = vld [vmem:[%s697 + $0x31] sm:$0xff]
      %v3732 = vld [vmem:[%s697 + $0x39] sm:$0xff]
      %v3733 = vld [vmem:[%s697 + $0x49] sm:$0xff]
      %v3734 = vld [vmem:[%s697 + $0x51] sm:$0xff]
      %v3735 = vld [vmem:[%s697 + $0x61] sm:$0xff]
      %v3736 = vld [vmem:[%s697 + $0x69] sm:$0xff]
      %v3737 = vld [vmem:[%s697 + $0x79] sm:$0xff]
      %v3738 = vld [vmem:[%s697 + $0x81] sm:$0xff]
      %v3739 = vld [vmem:[%s697 + $0x91] sm:$0xff]
      %v3740 = vld [vmem:[%s697 + $0x99] sm:$0xff]
      %v3741 = vld [vmem:[%s697 + $0xa9] sm:$0xff]
      %v3742 = vld [vmem:[%s697 + $0xb1] sm:$0xff]
      %v3743 = vld [vmem:[%s697 + $0xc1] sm:$0xff]
      %v3744 = vld [vmem:[%s697 + $0xc9] sm:$0xff]
      %v3745 = vld [vmem:[%s697 + $0xd9] sm:$0xff]
      %v3746 = vld [vmem:[%s697 + $0xe1] sm:$0xff]
      %v3747 = vld [vmem:[%s697 + $0xf1] sm:$0xff]
      %v3748 = vld [vmem:[%s697 + $0xf9] sm:$0xff]
      %v3749 = vld [vmem:[%s697 + $0x109] sm:$0xff]
      %v3750 = vld [vmem:[%s697 + $0x111] sm:$0xff]
      %v3751 = vld [vmem:[%s697 + $0x121] sm:$0xff]
      %v3752 = vld [vmem:[%s697 + $0x129] sm:$0xff]
      %v3753 = vld [vmem:[%s697 + $0x139] sm:$0xff]
      %v3754 = vld [vmem:[%s697 + $0x141] sm:$0xff]
      %v3755 = vld [vmem:[%s697 + $0x151] sm:$0xff]
      %v3756 = vld [vmem:[%s697 + $0x159] sm:$0xff]
      %v3757 = vld [vmem:[%s697 + $0x169] sm:$0xff]
      %v3758 = vld [vmem:[%s697 + $0x171] sm:$0xff]
      %v3759 = vpack.c.bf16 %v3728, %v3727
      %v3760 = vpack.c.bf16 %v3730, %v3729
      %v3761 = vpack.c.bf16 %v3732, %v3731
      %v3762 = vpack.c.bf16 %v3734, %v3733
      %v3763 = vpack.c.bf16 %v3736, %v3735
      %v3764 = vpack.c.bf16 %v3738, %v3737
      %v3765 = vpack.c.bf16 %v3740, %v3739
      %v3766 = vpack.c.bf16 %v3742, %v3741
      %v3767 = vpack.c.bf16 %v3744, %v3743
      %v3768 = vpack.c.bf16 %v3746, %v3745
      %v3769 = vpack.c.bf16 %v3748, %v3747
      %v3770 = vpack.c.bf16 %v3750, %v3749
      %v3771 = vpack.c.bf16 %v3752, %v3751
      %v3772 = vpack.c.bf16 %v3754, %v3753
      %v3773 = vpack.c.bf16 %v3756, %v3755
      %v3774 = vpack.c.bf16 %v3758, %v3757
      %s3775 = scalar_lea.vmem %s1, 24
      %v3776 = vld [vmem:[%s3775] sm:$0x3]
      %v3777 = vld [vmem:[%s697 + $0x2] sm:$0xff]
      %v3778 = vld [vmem:[%s697 + $0xa] sm:$0xff]
      %v3779 = vld [vmem:[%s697 + $0x1a] sm:$0xff]
      %v3780 = vld [vmem:[%s697 + $0x22] sm:$0xff]
      %v3781 = vld [vmem:[%s697 + $0x32] sm:$0xff]
      %v3782 = vld [vmem:[%s697 + $0x3a] sm:$0xff]
      %v3783 = vld [vmem:[%s697 + $0x4a] sm:$0xff]
      %v3784 = vld [vmem:[%s697 + $0x52] sm:$0xff]
      %v3785 = vld [vmem:[%s697 + $0x62] sm:$0xff]
      %v3786 = vld [vmem:[%s697 + $0x6a] sm:$0xff]
      %v3787 = vld [vmem:[%s697 + $0x7a] sm:$0xff]
      %v3788 = vld [vmem:[%s697 + $0x82] sm:$0xff]
      %v3789 = vld [vmem:[%s697 + $0x92] sm:$0xff]
      %v3790 = vld [vmem:[%s697 + $0x9a] sm:$0xff]
      %v3791 = vld [vmem:[%s697 + $0xaa] sm:$0xff]
      %v3792 = vld [vmem:[%s697 + $0xb2] sm:$0xff]
      %v3793 = vld [vmem:[%s697 + $0xc2] sm:$0xff]
      %v3794 = vld [vmem:[%s697 + $0xca] sm:$0xff]
      %v3795 = vld [vmem:[%s697 + $0xda] sm:$0xff]
      %v3796 = vld [vmem:[%s697 + $0xe2] sm:$0xff]
      %v3797 = vld [vmem:[%s697 + $0xf2] sm:$0xff]
      %v3798 = vld [vmem:[%s697 + $0xfa] sm:$0xff]
      %v3799 = vld [vmem:[%s697 + $0x10a] sm:$0xff]
      %v3800 = vld [vmem:[%s697 + $0x112] sm:$0xff]
      %v3801 = vld [vmem:[%s697 + $0x122] sm:$0xff]
      %v3802 = vld [vmem:[%s697 + $0x12a] sm:$0xff]
      %v3803 = vld [vmem:[%s697 + $0x13a] sm:$0xff]
      %v3804 = vld [vmem:[%s697 + $0x142] sm:$0xff]
      %v3805 = vld [vmem:[%s697 + $0x152] sm:$0xff]
      %v3806 = vld [vmem:[%s697 + $0x15a] sm:$0xff]
      %v3807 = vld [vmem:[%s697 + $0x16a] sm:$0xff]
      %v3808 = vld [vmem:[%s697 + $0x172] sm:$0xff]
      %v3809 = vpack.c.bf16 %v3778, %v3777
      %v3810 = vpack.c.bf16 %v3780, %v3779
      %v3811 = vpack.c.bf16 %v3782, %v3781
      %v3812 = vpack.c.bf16 %v3784, %v3783
      %v3813 = vpack.c.bf16 %v3786, %v3785
      %v3814 = vpack.c.bf16 %v3788, %v3787
      %v3815 = vpack.c.bf16 %v3790, %v3789
      %v3816 = vpack.c.bf16 %v3792, %v3791
      %v3817 = vpack.c.bf16 %v3794, %v3793
      %v3818 = vpack.c.bf16 %v3796, %v3795
      %v3819 = vpack.c.bf16 %v3798, %v3797
      %v3820 = vpack.c.bf16 %v3800, %v3799
      %v3821 = vpack.c.bf16 %v3802, %v3801
      %v3822 = vpack.c.bf16 %v3804, %v3803
      %v3823 = vpack.c.bf16 %v3806, %v3805
      %v3824 = vpack.c.bf16 %v3808, %v3807
      %s3825 = scalar_lea.vmem %s1, 26
      %v3826 = vld [vmem:[%s3825] sm:$0x3]
      %v3828 = vsel %vm271, %v3809, 0
      %v3831 = vsel %vm271, %v3810, 0
      %v3834 = vsel %vm271, %v3811, 0
      %v3837 = vsel %vm271, %v3812, 0
      %v3840 = vsel %vm271, %v3813, 0
      %v3843 = vsel %vm271, %v3814, 0
      %v3846 = vsel %vm271, %v3815, 0
      %v3849 = vsel %vm271, %v3816, 0
      %v3852 = vsel %vm271, %v3817, 0
      %v3855 = vsel %vm271, %v3818, 0
      %v3858 = vsel %vm271, %v3819, 0
      %v3861 = vsel %vm271, %v3820, 0
      %v3864 = vsel %vm271, %v3821, 0
      %v3867 = vsel %vm271, %v3822, 0
      %v3870 = vsel %vm271, %v3823, 0
      %v3873 = vsel %vm271, %v3824, 0
      %v3876 = vsel %vm320, %v3826, 0
      %3878 = vmatprep.subr.bf16.mxu0 0
      %3879 = vmatpush1.bf16.msra.mxu0 0
      %3880 = vmatprep.subr.bf16.mxu0 0
      %3881 = vmatpush1.bf16.msra.mxu0 0
      %3882 = vmatprep.subr.bf16.mxu0 0
      %3883 = vmatpush1.bf16.msra.mxu0 0
      %3884 = vmatprep.subr.bf16.mxu0 0
      %3885 = vmatpush1.bf16.msra.mxu0 0
      %3886 = vmatprep.subr.bf16.mxu0 0
      %3887 = vmatpush1.bf16.msra.mxu0 0
      %3888 = vmatprep.subr.bf16.mxu0 0
      %3889 = vmatpush1.bf16.msra.mxu0 0
      %3890 = vmatprep.subr.bf16.mxu0 0
      %3891 = vmatpush1.bf16.msra.mxu0 0
      %3892 = vmatprep.subr.bf16.mxu0 0
      %3893 = vmatpush1.bf16.msra.mxu0 %v3876
      %3894 = vmatprep.subr.bf16.mxu0 0
      %3895 = vmatpush2.bf16.msra.mxu0 0
      %3896 = vmatprep.subr.bf16.mxu0 0
      %3897 = vmatpush2.bf16.msra.mxu0 0
      %3898 = vmatprep.subr.bf16.mxu0 0
      %3899 = vmatpush2.bf16.msra.mxu0 0
      %3900 = vmatprep.subr.bf16.mxu0 0
      %3901 = vmatpush2.bf16.msra.mxu0 0
      %3902 = vmatprep.subr.bf16.mxu0 0
      %3903 = vmatpush2.bf16.msra.mxu0 0
      %3904 = vmatprep.subr.bf16.mxu0 0
      %3905 = vmatpush2.bf16.msra.mxu0 0
      %3906 = vmatprep.subr.bf16.mxu0 0
      %3907 = vmatpush2.bf16.msra.mxu0 0
      %3908 = vmatprep.subr.bf16.mxu0 0
      %3909 = vmatpush2.bf16.msra.mxu0 0
      %3910 = vmatprep.mubr.bf16.mxu0 0
      %3911 = vmatmul.mubr.bf16.gmra.mxu0 %v3828
      %v3912 = vpop.f32.mrf.mxu0
      %v3913 = vadd.f32 0.0, %v3912
      %v3914 = vpop.f32.mrf.mxu0
      %v3915 = vpop.f32.mrf.mxu0
      %v3916 = vadd.f32 0.0, %v3915
      %v3917 = vpop.f32.mrf.mxu0
      %3918 = vmatprep.mubr.bf16.mxu0 0
      %3919 = vmatmul.mubr.bf16.gmra.mxu0 %v3831
      %v3920 = vpop.f32.mrf.mxu0
      %v3921 = vadd.f32 0.0, %v3920
      %v3922 = vpop.f32.mrf.mxu0
      %v3923 = vpop.f32.mrf.mxu0
      %v3924 = vadd.f32 0.0, %v3923
      %v3925 = vpop.f32.mrf.mxu0
      %3926 = vmatprep.mubr.bf16.mxu0 0
      %3927 = vmatmul.mubr.bf16.gmra.mxu0 %v3834
      %v3928 = vpop.f32.mrf.mxu0
      %v3929 = vadd.f32 0.0, %v3928
      %v3930 = vpop.f32.mrf.mxu0
      %v3931 = vpop.f32.mrf.mxu0
      %v3932 = vadd.f32 0.0, %v3931
      %v3933 = vpop.f32.mrf.mxu0
      %3934 = vmatprep.mubr.bf16.mxu0 0
      %3935 = vmatmul.mubr.bf16.gmra.mxu0 %v3837
      %v3936 = vpop.f32.mrf.mxu0
      %v3937 = vadd.f32 0.0, %v3936
      %v3938 = vpop.f32.mrf.mxu0
      %v3939 = vpop.f32.mrf.mxu0
      %v3940 = vadd.f32 0.0, %v3939
      %v3941 = vpop.f32.mrf.mxu0
      %3942 = vmatprep.mubr.bf16.mxu0 0
      %3943 = vmatmul.mubr.bf16.gmra.mxu0 %v3840
      %v3944 = vpop.f32.mrf.mxu0
      %v3945 = vadd.f32 0.0, %v3944
      %v3946 = vpop.f32.mrf.mxu0
      %v3947 = vpop.f32.mrf.mxu0
      %v3948 = vadd.f32 0.0, %v3947
      %v3949 = vpop.f32.mrf.mxu0
      %3950 = vmatprep.mubr.bf16.mxu0 0
      %3951 = vmatmul.mubr.bf16.gmra.mxu0 %v3843
      %v3952 = vpop.f32.mrf.mxu0
      %v3953 = vadd.f32 0.0, %v3952
      %v3954 = vpop.f32.mrf.mxu0
      %v3955 = vpop.f32.mrf.mxu0
      %v3956 = vadd.f32 0.0, %v3955
      %v3957 = vpop.f32.mrf.mxu0
      %3958 = vmatprep.mubr.bf16.mxu0 0
      %3959 = vmatmul.mubr.bf16.gmra.mxu0 %v3846
      %v3960 = vpop.f32.mrf.mxu0
      %v3961 = vadd.f32 0.0, %v3960
      %v3962 = vpop.f32.mrf.mxu0
      %v3963 = vpop.f32.mrf.mxu0
      %v3964 = vadd.f32 0.0, %v3963
      %v3965 = vpop.f32.mrf.mxu0
      %3966 = vmatprep.mubr.bf16.mxu0 0
      %3967 = vmatmul.mubr.bf16.gmra.mxu0 %v3849
      %v3968 = vpop.f32.mrf.mxu0
      %v3969 = vadd.f32 0.0, %v3968
      %v3970 = vpop.f32.mrf.mxu0
      %v3971 = vpop.f32.mrf.mxu0
      %v3972 = vadd.f32 0.0, %v3971
      %v3973 = vpop.f32.mrf.mxu0
      %3974 = vmatprep.mubr.bf16.mxu0 0
      %3975 = vmatmul.mubr.bf16.gmra.mxu0 %v3852
      %v3976 = vpop.f32.mrf.mxu0
      %v3977 = vadd.f32 0.0, %v3976
      %v3978 = vpop.f32.mrf.mxu0
      %v3979 = vpop.f32.mrf.mxu0
      %v3980 = vadd.f32 0.0, %v3979
      %v3981 = vpop.f32.mrf.mxu0
      %3982 = vmatprep.mubr.bf16.mxu0 0
      %3983 = vmatmul.mubr.bf16.gmra.mxu0 %v3855
      %v3984 = vpop.f32.mrf.mxu0
      %v3985 = vadd.f32 0.0, %v3984
      %v3986 = vpop.f32.mrf.mxu0
      %v3987 = vpop.f32.mrf.mxu0
      %v3988 = vadd.f32 0.0, %v3987
      %v3989 = vpop.f32.mrf.mxu0
      %3990 = vmatprep.mubr.bf16.mxu0 0
      %3991 = vmatmul.mubr.bf16.gmra.mxu0 %v3858
      %v3992 = vpop.f32.mrf.mxu0
      %v3993 = vadd.f32 0.0, %v3992
      %v3994 = vpop.f32.mrf.mxu0
      %v3995 = vpop.f32.mrf.mxu0
      %v3996 = vadd.f32 0.0, %v3995
      %v3997 = vpop.f32.mrf.mxu0
      %3998 = vmatprep.mubr.bf16.mxu0 0
      %3999 = vmatmul.mubr.bf16.gmra.mxu0 %v3861
      %v4000 = vpop.f32.mrf.mxu0
      %v4001 = vadd.f32 0.0, %v4000
      %v4002 = vpop.f32.mrf.mxu0
      %v4003 = vpop.f32.mrf.mxu0
      %v4004 = vadd.f32 0.0, %v4003
      %v4005 = vpop.f32.mrf.mxu0
      %4006 = vmatprep.mubr.bf16.mxu0 0
      %4007 = vmatmul.mubr.bf16.gmra.mxu0 %v3864
      %v4008 = vpop.f32.mrf.mxu0
      %v4009 = vadd.f32 0.0, %v4008
      %v4010 = vpop.f32.mrf.mxu0
      %v4011 = vpop.f32.mrf.mxu0
      %v4012 = vadd.f32 0.0, %v4011
      %v4013 = vpop.f32.mrf.mxu0
      %4014 = vmatprep.mubr.bf16.mxu0 0
      %4015 = vmatmul.mubr.bf16.gmra.mxu0 %v3867
      %v4016 = vpop.f32.mrf.mxu0
      %v4017 = vadd.f32 0.0, %v4016
      %v4018 = vpop.f32.mrf.mxu0
      %v4019 = vpop.f32.mrf.mxu0
      %v4020 = vadd.f32 0.0, %v4019
      %v4021 = vpop.f32.mrf.mxu0
      %4022 = vmatprep.mubr.bf16.mxu0 0
      %4023 = vmatmul.mubr.bf16.gmra.mxu0 %v3870
      %v4024 = vpop.f32.mrf.mxu0
      %v4025 = vadd.f32 0.0, %v4024
      %v4026 = vpop.f32.mrf.mxu0
      %v4027 = vpop.f32.mrf.mxu0
      %v4028 = vadd.f32 0.0, %v4027
      %v4029 = vpop.f32.mrf.mxu0
      %4030 = vmatprep.mubr.bf16.mxu0 0
      %4031 = vmatmul.mubr.bf16.gmra.mxu0 %v3873
      %v4032 = vpop.f32.mrf.mxu0
      %v4033 = vadd.f32 0.0, %v4032
      %v4034 = vpop.f32.mrf.mxu0
      %v4035 = vpop.f32.mrf.mxu0
      %v4036 = vadd.f32 0.0, %v4035
      %v4037 = vpop.f32.mrf.mxu0
      %4038 = vdwg.mxu0
      %v4040 = vsel %vm271, %v3759, 0
      %v4043 = vsel %vm271, %v3760, 0
      %v4046 = vsel %vm271, %v3761, 0
      %v4049 = vsel %vm271, %v3762, 0
      %v4052 = vsel %vm271, %v3763, 0
      %v4055 = vsel %vm271, %v3764, 0
      %v4058 = vsel %vm271, %v3765, 0
      %v4061 = vsel %vm271, %v3766, 0
      %v4064 = vsel %vm271, %v3767, 0
      %v4067 = vsel %vm271, %v3768, 0
      %v4070 = vsel %vm271, %v3769, 0
      %v4073 = vsel %vm271, %v3770, 0
      %v4076 = vsel %vm271, %v3771, 0
      %v4079 = vsel %vm271, %v3772, 0
      %v4082 = vsel %vm271, %v3773, 0
      %v4085 = vsel %vm271, %v3774, 0
      %v4088 = vsel %vm320, %v3776, 0
      %4090 = vmatprep.subr.bf16.mxu0 0
      %4091 = vmatpush1.bf16.msra.mxu0 0
      %4092 = vmatprep.subr.bf16.mxu0 0
      %4093 = vmatpush1.bf16.msra.mxu0 0
      %4094 = vmatprep.subr.bf16.mxu0 0
      %4095 = vmatpush1.bf16.msra.mxu0 0
      %4096 = vmatprep.subr.bf16.mxu0 0
      %4097 = vmatpush1.bf16.msra.mxu0 0
      %4098 = vmatprep.subr.bf16.mxu0 0
      %4099 = vmatpush1.bf16.msra.mxu0 0
      %4100 = vmatprep.subr.bf16.mxu0 0
      %4101 = vmatpush1.bf16.msra.mxu0 0
      %4102 = vmatprep.subr.bf16.mxu0 0
      %4103 = vmatpush1.bf16.msra.mxu0 0
      %4104 = vmatprep.subr.bf16.mxu0 0
      %4105 = vmatpush1.bf16.msra.mxu0 %v4088
      %4106 = vmatprep.subr.bf16.mxu0 0
      %4107 = vmatpush2.bf16.msra.mxu0 0
      %4108 = vmatprep.subr.bf16.mxu0 0
      %4109 = vmatpush2.bf16.msra.mxu0 0
      %4110 = vmatprep.subr.bf16.mxu0 0
      %4111 = vmatpush2.bf16.msra.mxu0 0
      %4112 = vmatprep.subr.bf16.mxu0 0
      %4113 = vmatpush2.bf16.msra.mxu0 0
      %4114 = vmatprep.subr.bf16.mxu0 0
      %4115 = vmatpush2.bf16.msra.mxu0 0
      %4116 = vmatprep.subr.bf16.mxu0 0
      %4117 = vmatpush2.bf16.msra.mxu0 0
      %4118 = vmatprep.subr.bf16.mxu0 0
      %4119 = vmatpush2.bf16.msra.mxu0 0
      %4120 = vmatprep.subr.bf16.mxu0 0
      %4121 = vmatpush2.bf16.msra.mxu0 0
      %4122 = vmatprep.mubr.bf16.mxu0 0
      %4123 = vmatmul.mubr.bf16.gmra.mxu0 %v4040
      %v4124 = vpop.f32.mrf.mxu0
      %v4125 = vadd.f32 %v3913, %v4124
      %v4126 = vpop.f32.mrf.mxu0
      %v4127 = vpop.f32.mrf.mxu0
      %v4128 = vadd.f32 %v3916, %v4127
      %v4129 = vpop.f32.mrf.mxu0
      %4130 = vmatprep.mubr.bf16.mxu0 0
      %4131 = vmatmul.mubr.bf16.gmra.mxu0 %v4043
      %v4132 = vpop.f32.mrf.mxu0
      %v4133 = vadd.f32 %v3921, %v4132
      %v4134 = vpop.f32.mrf.mxu0
      %v4135 = vpop.f32.mrf.mxu0
      %v4136 = vadd.f32 %v3924, %v4135
      %v4137 = vpop.f32.mrf.mxu0
      %4138 = vmatprep.mubr.bf16.mxu0 0
      %4139 = vmatmul.mubr.bf16.gmra.mxu0 %v4046
      %v4140 = vpop.f32.mrf.mxu0
      %v4141 = vadd.f32 %v3929, %v4140
      %v4142 = vpop.f32.mrf.mxu0
      %v4143 = vpop.f32.mrf.mxu0
      %v4144 = vadd.f32 %v3932, %v4143
      %v4145 = vpop.f32.mrf.mxu0
      %4146 = vmatprep.mubr.bf16.mxu0 0
      %4147 = vmatmul.mubr.bf16.gmra.mxu0 %v4049
      %v4148 = vpop.f32.mrf.mxu0
      %v4149 = vadd.f32 %v3937, %v4148
      %v4150 = vpop.f32.mrf.mxu0
      %v4151 = vpop.f32.mrf.mxu0
      %v4152 = vadd.f32 %v3940, %v4151
      %v4153 = vpop.f32.mrf.mxu0
      %4154 = vmatprep.mubr.bf16.mxu0 0
      %4155 = vmatmul.mubr.bf16.gmra.mxu0 %v4052
      %v4156 = vpop.f32.mrf.mxu0
      %v4157 = vadd.f32 %v3945, %v4156
      %v4158 = vpop.f32.mrf.mxu0
      %v4159 = vpop.f32.mrf.mxu0
      %v4160 = vadd.f32 %v3948, %v4159
      %v4161 = vpop.f32.mrf.mxu0
      %4162 = vmatprep.mubr.bf16.mxu0 0
      %4163 = vmatmul.mubr.bf16.gmra.mxu0 %v4055
      %v4164 = vpop.f32.mrf.mxu0
      %v4165 = vadd.f32 %v3953, %v4164
      %v4166 = vpop.f32.mrf.mxu0
      %v4167 = vpop.f32.mrf.mxu0
      %v4168 = vadd.f32 %v3956, %v4167
      %v4169 = vpop.f32.mrf.mxu0
      %4170 = vmatprep.mubr.bf16.mxu0 0
      %4171 = vmatmul.mubr.bf16.gmra.mxu0 %v4058
      %v4172 = vpop.f32.mrf.mxu0
      %v4173 = vadd.f32 %v3961, %v4172
      %v4174 = vpop.f32.mrf.mxu0
      %v4175 = vpop.f32.mrf.mxu0
      %v4176 = vadd.f32 %v3964, %v4175
      %v4177 = vpop.f32.mrf.mxu0
      %4178 = vmatprep.mubr.bf16.mxu0 0
      %4179 = vmatmul.mubr.bf16.gmra.mxu0 %v4061
      %v4180 = vpop.f32.mrf.mxu0
      %v4181 = vadd.f32 %v3969, %v4180
      %v4182 = vpop.f32.mrf.mxu0
      %v4183 = vpop.f32.mrf.mxu0
      %v4184 = vadd.f32 %v3972, %v4183
      %v4185 = vpop.f32.mrf.mxu0
      %4186 = vmatprep.mubr.bf16.mxu0 0
      %4187 = vmatmul.mubr.bf16.gmra.mxu0 %v4064
      %v4188 = vpop.f32.mrf.mxu0
      %v4189 = vadd.f32 %v3977, %v4188
      %v4190 = vpop.f32.mrf.mxu0
      %v4191 = vpop.f32.mrf.mxu0
      %v4192 = vadd.f32 %v3980, %v4191
      %v4193 = vpop.f32.mrf.mxu0
      %4194 = vmatprep.mubr.bf16.mxu0 0
      %4195 = vmatmul.mubr.bf16.gmra.mxu0 %v4067
      %v4196 = vpop.f32.mrf.mxu0
      %v4197 = vadd.f32 %v3985, %v4196
      %v4198 = vpop.f32.mrf.mxu0
      %v4199 = vpop.f32.mrf.mxu0
      %v4200 = vadd.f32 %v3988, %v4199
      %v4201 = vpop.f32.mrf.mxu0
      %4202 = vmatprep.mubr.bf16.mxu0 0
      %4203 = vmatmul.mubr.bf16.gmra.mxu0 %v4070
      %v4204 = vpop.f32.mrf.mxu0
      %v4205 = vadd.f32 %v3993, %v4204
      %v4206 = vpop.f32.mrf.mxu0
      %v4207 = vpop.f32.mrf.mxu0
      %v4208 = vadd.f32 %v3996, %v4207
      %v4209 = vpop.f32.mrf.mxu0
      %4210 = vmatprep.mubr.bf16.mxu0 0
      %4211 = vmatmul.mubr.bf16.gmra.mxu0 %v4073
      %v4212 = vpop.f32.mrf.mxu0
      %v4213 = vadd.f32 %v4001, %v4212
      %v4214 = vpop.f32.mrf.mxu0
      %v4215 = vpop.f32.mrf.mxu0
      %v4216 = vadd.f32 %v4004, %v4215
      %v4217 = vpop.f32.mrf.mxu0
      %4218 = vmatprep.mubr.bf16.mxu0 0
      %4219 = vmatmul.mubr.bf16.gmra.mxu0 %v4076
      %v4220 = vpop.f32.mrf.mxu0
      %v4221 = vadd.f32 %v4009, %v4220
      %v4222 = vpop.f32.mrf.mxu0
      %v4223 = vpop.f32.mrf.mxu0
      %v4224 = vadd.f32 %v4012, %v4223
      %v4225 = vpop.f32.mrf.mxu0
      %4226 = vmatprep.mubr.bf16.mxu0 0
      %4227 = vmatmul.mubr.bf16.gmra.mxu0 %v4079
      %v4228 = vpop.f32.mrf.mxu0
      %v4229 = vadd.f32 %v4017, %v4228
      %v4230 = vpop.f32.mrf.mxu0
      %v4231 = vpop.f32.mrf.mxu0
      %v4232 = vadd.f32 %v4020, %v4231
      %v4233 = vpop.f32.mrf.mxu0
      %4234 = vmatprep.mubr.bf16.mxu0 0
      %4235 = vmatmul.mubr.bf16.gmra.mxu0 %v4082
      %v4236 = vpop.f32.mrf.mxu0
      %v4237 = vadd.f32 %v4025, %v4236
      %v4238 = vpop.f32.mrf.mxu0
      %v4239 = vpop.f32.mrf.mxu0
      %v4240 = vadd.f32 %v4028, %v4239
      %v4241 = vpop.f32.mrf.mxu0
      %4242 = vmatprep.mubr.bf16.mxu0 0
      %4243 = vmatmul.mubr.bf16.gmra.mxu0 %v4085
      %v4244 = vpop.f32.mrf.mxu0
      %v4245 = vadd.f32 %v4033, %v4244
      %v4246 = vpop.f32.mrf.mxu0
      %v4247 = vpop.f32.mrf.mxu0
      %v4248 = vadd.f32 %v4036, %v4247
      %v4249 = vpop.f32.mrf.mxu0
      %4250 = vdwg.mxu0
      %v4251 = vld [vmem:[%s3066 + $0x1] sm:$0xff]
      %v4252 = vld [vmem:[%s3066 + $0x9] sm:$0xff]
      %v4253 = vld [vmem:[%s3066 + $0x19] sm:$0xff]
      %v4254 = vld [vmem:[%s3066 + $0x21] sm:$0xff]
      %v4255 = vld [vmem:[%s3066 + $0x31] sm:$0xff]
      %v4256 = vld [vmem:[%s3066 + $0x39] sm:$0xff]
      %v4257 = vld [vmem:[%s3066 + $0x49] sm:$0xff]
      %v4258 = vld [vmem:[%s3066 + $0x51] sm:$0xff]
      %v4259 = vld [vmem:[%s3066 + $0x61] sm:$0xff]
      %v4260 = vld [vmem:[%s3066 + $0x69] sm:$0xff]
      %v4261 = vld [vmem:[%s3066 + $0x79] sm:$0xff]
      %v4262 = vld [vmem:[%s3066 + $0x81] sm:$0xff]
      %v4263 = vld [vmem:[%s3066 + $0x91] sm:$0xff]
      %v4264 = vld [vmem:[%s3066 + $0x99] sm:$0xff]
      %v4265 = vld [vmem:[%s3066 + $0xa9] sm:$0xff]
      %v4266 = vld [vmem:[%s3066 + $0xb1] sm:$0xff]
      %v4267 = vld [vmem:[%s3066 + $0xc1] sm:$0xff]
      %v4268 = vld [vmem:[%s3066 + $0xc9] sm:$0xff]
      %v4269 = vld [vmem:[%s3066 + $0xd9] sm:$0xff]
      %v4270 = vld [vmem:[%s3066 + $0xe1] sm:$0xff]
      %v4271 = vld [vmem:[%s3066 + $0xf1] sm:$0xff]
      %v4272 = vld [vmem:[%s3066 + $0xf9] sm:$0xff]
      %v4273 = vld [vmem:[%s3066 + $0x109] sm:$0xff]
      %v4274 = vld [vmem:[%s3066 + $0x111] sm:$0xff]
      %v4275 = vld [vmem:[%s3066 + $0x121] sm:$0xff]
      %v4276 = vld [vmem:[%s3066 + $0x129] sm:$0xff]
      %v4277 = vld [vmem:[%s3066 + $0x139] sm:$0xff]
      %v4278 = vld [vmem:[%s3066 + $0x141] sm:$0xff]
      %v4279 = vld [vmem:[%s3066 + $0x151] sm:$0xff]
      %v4280 = vld [vmem:[%s3066 + $0x159] sm:$0xff]
      %v4281 = vld [vmem:[%s3066 + $0x169] sm:$0xff]
      %v4282 = vld [vmem:[%s3066 + $0x171] sm:$0xff]
      %v4283 = vpack.c.bf16 %v4252, %v4251
      %v4284 = vpack.c.bf16 %v4254, %v4253
      %v4285 = vpack.c.bf16 %v4256, %v4255
      %v4286 = vpack.c.bf16 %v4258, %v4257
      %v4287 = vpack.c.bf16 %v4260, %v4259
      %v4288 = vpack.c.bf16 %v4262, %v4261
      %v4289 = vpack.c.bf16 %v4264, %v4263
      %v4290 = vpack.c.bf16 %v4266, %v4265
      %v4291 = vpack.c.bf16 %v4268, %v4267
      %v4292 = vpack.c.bf16 %v4270, %v4269
      %v4293 = vpack.c.bf16 %v4272, %v4271
      %v4294 = vpack.c.bf16 %v4274, %v4273
      %v4295 = vpack.c.bf16 %v4276, %v4275
      %v4296 = vpack.c.bf16 %v4278, %v4277
      %v4297 = vpack.c.bf16 %v4280, %v4279
      %v4298 = vpack.c.bf16 %v4282, %v4281
      %s4299 = scalar_lea.vmem %s1, 28
      %v4300 = vld [vmem:[%s4299] sm:$0x3]
      %v4302 = vsel %vm271, %v4283, 0
      %v4305 = vsel %vm271, %v4284, 0
      %v4308 = vsel %vm271, %v4285, 0
      %v4311 = vsel %vm271, %v4286, 0
      %v4314 = vsel %vm271, %v4287, 0
      %v4317 = vsel %vm271, %v4288, 0
      %v4320 = vsel %vm271, %v4289, 0
      %v4323 = vsel %vm271, %v4290, 0
      %v4326 = vsel %vm271, %v4291, 0
      %v4329 = vsel %vm271, %v4292, 0
      %v4332 = vsel %vm271, %v4293, 0
      %v4335 = vsel %vm271, %v4294, 0
      %v4338 = vsel %vm271, %v4295, 0
      %v4341 = vsel %vm271, %v4296, 0
      %v4344 = vsel %vm271, %v4297, 0
      %v4347 = vsel %vm271, %v4298, 0
      %v4350 = vsel %vm320, %v4300, 0
      %4352 = vmatprep.subr.bf16.mxu0 0
      %4353 = vmatpush1.bf16.msra.mxu0 0
      %4354 = vmatprep.subr.bf16.mxu0 0
      %4355 = vmatpush1.bf16.msra.mxu0 0
      %4356 = vmatprep.subr.bf16.mxu0 0
      %4357 = vmatpush1.bf16.msra.mxu0 0
      %4358 = vmatprep.subr.bf16.mxu0 0
      %4359 = vmatpush1.bf16.msra.mxu0 0
      %4360 = vmatprep.subr.bf16.mxu0 0
      %4361 = vmatpush1.bf16.msra.mxu0 0
      %4362 = vmatprep.subr.bf16.mxu0 0
      %4363 = vmatpush1.bf16.msra.mxu0 0
      %4364 = vmatprep.subr.bf16.mxu0 0
      %4365 = vmatpush1.bf16.msra.mxu0 0
      %4366 = vmatprep.subr.bf16.mxu0 0
      %4367 = vmatpush1.bf16.msra.mxu0 %v4350
      %4368 = vmatprep.subr.bf16.mxu0 0
      %4369 = vmatpush2.bf16.msra.mxu0 0
      %4370 = vmatprep.subr.bf16.mxu0 0
      %4371 = vmatpush2.bf16.msra.mxu0 0
      %4372 = vmatprep.subr.bf16.mxu0 0
      %4373 = vmatpush2.bf16.msra.mxu0 0
      %4374 = vmatprep.subr.bf16.mxu0 0
      %4375 = vmatpush2.bf16.msra.mxu0 0
      %4376 = vmatprep.subr.bf16.mxu0 0
      %4377 = vmatpush2.bf16.msra.mxu0 0
      %4378 = vmatprep.subr.bf16.mxu0 0
      %4379 = vmatpush2.bf16.msra.mxu0 0
      %4380 = vmatprep.subr.bf16.mxu0 0
      %4381 = vmatpush2.bf16.msra.mxu0 0
      %4382 = vmatprep.subr.bf16.mxu0 0
      %4383 = vmatpush2.bf16.msra.mxu0 0
      %4384 = vmatprep.mubr.bf16.mxu0 0
      %4385 = vmatmul.mubr.bf16.gmra.mxu0 %v4302
      %v4386 = vpop.f32.mrf.mxu0
      %v4387 = vadd.f32 0.0, %v4386
      %v4388 = vpop.f32.mrf.mxu0
      %v4389 = vpop.f32.mrf.mxu0
      %v4390 = vadd.f32 0.0, %v4389
      %v4391 = vpop.f32.mrf.mxu0
      %4392 = vmatprep.mubr.bf16.mxu0 0
      %4393 = vmatmul.mubr.bf16.gmra.mxu0 %v4305
      %v4394 = vpop.f32.mrf.mxu0
      %v4395 = vadd.f32 0.0, %v4394
      %v4396 = vpop.f32.mrf.mxu0
      %v4397 = vpop.f32.mrf.mxu0
      %v4398 = vadd.f32 0.0, %v4397
      %v4399 = vpop.f32.mrf.mxu0
      %4400 = vmatprep.mubr.bf16.mxu0 0
      %4401 = vmatmul.mubr.bf16.gmra.mxu0 %v4308
      %v4402 = vpop.f32.mrf.mxu0
      %v4403 = vadd.f32 0.0, %v4402
      %v4404 = vpop.f32.mrf.mxu0
      %v4405 = vpop.f32.mrf.mxu0
      %v4406 = vadd.f32 0.0, %v4405
      %v4407 = vpop.f32.mrf.mxu0
      %4408 = vmatprep.mubr.bf16.mxu0 0
      %4409 = vmatmul.mubr.bf16.gmra.mxu0 %v4311
      %v4410 = vpop.f32.mrf.mxu0
      %v4411 = vadd.f32 0.0, %v4410
      %v4412 = vpop.f32.mrf.mxu0
      %v4413 = vpop.f32.mrf.mxu0
      %v4414 = vadd.f32 0.0, %v4413
      %v4415 = vpop.f32.mrf.mxu0
      %4416 = vmatprep.mubr.bf16.mxu0 0
      %4417 = vmatmul.mubr.bf16.gmra.mxu0 %v4314
      %v4418 = vpop.f32.mrf.mxu0
      %v4419 = vadd.f32 0.0, %v4418
      %v4420 = vpop.f32.mrf.mxu0
      %v4421 = vpop.f32.mrf.mxu0
      %v4422 = vadd.f32 0.0, %v4421
      %v4423 = vpop.f32.mrf.mxu0
      %4424 = vmatprep.mubr.bf16.mxu0 0
      %4425 = vmatmul.mubr.bf16.gmra.mxu0 %v4317
      %v4426 = vpop.f32.mrf.mxu0
      %v4427 = vadd.f32 0.0, %v4426
      %v4428 = vpop.f32.mrf.mxu0
      %v4429 = vpop.f32.mrf.mxu0
      %v4430 = vadd.f32 0.0, %v4429
      %v4431 = vpop.f32.mrf.mxu0
      %4432 = vmatprep.mubr.bf16.mxu0 0
      %4433 = vmatmul.mubr.bf16.gmra.mxu0 %v4320
      %v4434 = vpop.f32.mrf.mxu0
      %v4435 = vadd.f32 0.0, %v4434
      %v4436 = vpop.f32.mrf.mxu0
      %v4437 = vpop.f32.mrf.mxu0
      %v4438 = vadd.f32 0.0, %v4437
      %v4439 = vpop.f32.mrf.mxu0
      %4440 = vmatprep.mubr.bf16.mxu0 0
      %4441 = vmatmul.mubr.bf16.gmra.mxu0 %v4323
      %v4442 = vpop.f32.mrf.mxu0
      %v4443 = vadd.f32 0.0, %v4442
      %v4444 = vpop.f32.mrf.mxu0
      %v4445 = vpop.f32.mrf.mxu0
      %v4446 = vadd.f32 0.0, %v4445
      %v4447 = vpop.f32.mrf.mxu0
      %4448 = vmatprep.mubr.bf16.mxu0 0
      %4449 = vmatmul.mubr.bf16.gmra.mxu0 %v4326
      %v4450 = vpop.f32.mrf.mxu0
      %v4451 = vadd.f32 0.0, %v4450
      %v4452 = vpop.f32.mrf.mxu0
      %v4453 = vpop.f32.mrf.mxu0
      %v4454 = vadd.f32 0.0, %v4453
      %v4455 = vpop.f32.mrf.mxu0
      %4456 = vmatprep.mubr.bf16.mxu0 0
      %4457 = vmatmul.mubr.bf16.gmra.mxu0 %v4329
      %v4458 = vpop.f32.mrf.mxu0
      %v4459 = vadd.f32 0.0, %v4458
      %v4460 = vpop.f32.mrf.mxu0
      %v4461 = vpop.f32.mrf.mxu0
      %v4462 = vadd.f32 0.0, %v4461
      %v4463 = vpop.f32.mrf.mxu0
      %4464 = vmatprep.mubr.bf16.mxu0 0
      %4465 = vmatmul.mubr.bf16.gmra.mxu0 %v4332
      %v4466 = vpop.f32.mrf.mxu0
      %v4467 = vadd.f32 0.0, %v4466
      %v4468 = vpop.f32.mrf.mxu0
      %v4469 = vpop.f32.mrf.mxu0
      %v4470 = vadd.f32 0.0, %v4469
      %v4471 = vpop.f32.mrf.mxu0
      %4472 = vmatprep.mubr.bf16.mxu0 0
      %4473 = vmatmul.mubr.bf16.gmra.mxu0 %v4335
      %v4474 = vpop.f32.mrf.mxu0
      %v4475 = vadd.f32 0.0, %v4474
      %v4476 = vpop.f32.mrf.mxu0
      %v4477 = vpop.f32.mrf.mxu0
      %v4478 = vadd.f32 0.0, %v4477
      %v4479 = vpop.f32.mrf.mxu0
      %4480 = vmatprep.mubr.bf16.mxu0 0
      %4481 = vmatmul.mubr.bf16.gmra.mxu0 %v4338
      %v4482 = vpop.f32.mrf.mxu0
      %v4483 = vadd.f32 0.0, %v4482
      %v4484 = vpop.f32.mrf.mxu0
      %v4485 = vpop.f32.mrf.mxu0
      %v4486 = vadd.f32 0.0, %v4485
      %v4487 = vpop.f32.mrf.mxu0
      %4488 = vmatprep.mubr.bf16.mxu0 0
      %4489 = vmatmul.mubr.bf16.gmra.mxu0 %v4341
      %v4490 = vpop.f32.mrf.mxu0
      %v4491 = vadd.f32 0.0, %v4490
      %v4492 = vpop.f32.mrf.mxu0
      %v4493 = vpop.f32.mrf.mxu0
      %v4494 = vadd.f32 0.0, %v4493
      %v4495 = vpop.f32.mrf.mxu0
      %4496 = vmatprep.mubr.bf16.mxu0 0
      %4497 = vmatmul.mubr.bf16.gmra.mxu0 %v4344
      %v4498 = vpop.f32.mrf.mxu0
      %v4499 = vadd.f32 0.0, %v4498
      %v4500 = vpop.f32.mrf.mxu0
      %v4501 = vpop.f32.mrf.mxu0
      %v4502 = vadd.f32 0.0, %v4501
      %v4503 = vpop.f32.mrf.mxu0
      %4504 = vmatprep.mubr.bf16.mxu0 0
      %4505 = vmatmul.mubr.bf16.gmra.mxu0 %v4347
      %v4506 = vpop.f32.mrf.mxu0
      %v4507 = vadd.f32 0.0, %v4506
      %v4508 = vpop.f32.mrf.mxu0
      %v4509 = vpop.f32.mrf.mxu0
      %v4510 = vadd.f32 0.0, %v4509
      %v4511 = vpop.f32.mrf.mxu0
      %4512 = vdwg.mxu0
      %v4513 = vadd.f32 %v4125, %v4387
      %v4514 = vadd.f32 %v4128, %v4390
      %v4515 = vadd.f32 %v4133, %v4395
      %v4516 = vadd.f32 %v4136, %v4398
      %v4517 = vadd.f32 %v4141, %v4403
      %v4518 = vadd.f32 %v4144, %v4406
      %v4519 = vadd.f32 %v4149, %v4411
      %v4520 = vadd.f32 %v4152, %v4414
      %v4521 = vadd.f32 %v4157, %v4419
      %v4522 = vadd.f32 %v4160, %v4422
      %v4523 = vadd.f32 %v4165, %v4427
      %v4524 = vadd.f32 %v4168, %v4430
      %v4525 = vadd.f32 %v4173, %v4435
      %v4526 = vadd.f32 %v4176, %v4438
      %v4527 = vadd.f32 %v4181, %v4443
      %v4528 = vadd.f32 %v4184, %v4446
      %v4529 = vadd.f32 %v4189, %v4451
      %v4530 = vadd.f32 %v4192, %v4454
      %v4531 = vadd.f32 %v4197, %v4459
      %v4532 = vadd.f32 %v4200, %v4462
      %v4533 = vadd.f32 %v4205, %v4467
      %v4534 = vadd.f32 %v4208, %v4470
      %v4535 = vadd.f32 %v4213, %v4475
      %v4536 = vadd.f32 %v4216, %v4478
      %v4537 = vadd.f32 %v4221, %v4483
      %v4538 = vadd.f32 %v4224, %v4486
      %v4539 = vadd.f32 %v4229, %v4491
      %v4540 = vadd.f32 %v4232, %v4494
      %v4541 = vadd.f32 %v4237, %v4499
      %v4542 = vadd.f32 %v4240, %v4502
      %v4543 = vadd.f32 %v4245, %v4507
      %v4544 = vadd.f32 %v4248, %v4510
      %v4545 = vld [vmem:[%s3066 + $0x2] sm:$0xff]
      %v4546 = vld [vmem:[%s3066 + $0xa] sm:$0xff]
      %v4547 = vld [vmem:[%s3066 + $0x1a] sm:$0xff]
      %v4548 = vld [vmem:[%s3066 + $0x22] sm:$0xff]
      %v4549 = vld [vmem:[%s3066 + $0x32] sm:$0xff]
      %v4550 = vld [vmem:[%s3066 + $0x3a] sm:$0xff]
      %v4551 = vld [vmem:[%s3066 + $0x4a] sm:$0xff]
      %v4552 = vld [vmem:[%s3066 + $0x52] sm:$0xff]
      %v4553 = vld [vmem:[%s3066 + $0x62] sm:$0xff]
      %v4554 = vld [vmem:[%s3066 + $0x6a] sm:$0xff]
      %v4555 = vld [vmem:[%s3066 + $0x7a] sm:$0xff]
      %v4556 = vld [vmem:[%s3066 + $0x82] sm:$0xff]
      %v4557 = vld [vmem:[%s3066 + $0x92] sm:$0xff]
      %v4558 = vld [vmem:[%s3066 + $0x9a] sm:$0xff]
      %v4559 = vld [vmem:[%s3066 + $0xaa] sm:$0xff]
      %v4560 = vld [vmem:[%s3066 + $0xb2] sm:$0xff]
      %v4561 = vld [vmem:[%s3066 + $0xc2] sm:$0xff]
      %v4562 = vld [vmem:[%s3066 + $0xca] sm:$0xff]
      %v4563 = vld [vmem:[%s3066 + $0xda] sm:$0xff]
      %v4564 = vld [vmem:[%s3066 + $0xe2] sm:$0xff]
      %v4565 = vld [vmem:[%s3066 + $0xf2] sm:$0xff]
      %v4566 = vld [vmem:[%s3066 + $0xfa] sm:$0xff]
      %v4567 = vld [vmem:[%s3066 + $0x10a] sm:$0xff]
      %v4568 = vld [vmem:[%s3066 + $0x112] sm:$0xff]
      %v4569 = vld [vmem:[%s3066 + $0x122] sm:$0xff]
      %v4570 = vld [vmem:[%s3066 + $0x12a] sm:$0xff]
      %v4571 = vld [vmem:[%s3066 + $0x13a] sm:$0xff]
      %v4572 = vld [vmem:[%s3066 + $0x142] sm:$0xff]
      %v4573 = vld [vmem:[%s3066 + $0x152] sm:$0xff]
      %v4574 = vld [vmem:[%s3066 + $0x15a] sm:$0xff]
      %v4575 = vld [vmem:[%s3066 + $0x16a] sm:$0xff]
      %v4576 = vld [vmem:[%s3066 + $0x172] sm:$0xff]
      %v4577 = vpack.c.bf16 %v4546, %v4545
      %v4578 = vpack.c.bf16 %v4548, %v4547
      %v4579 = vpack.c.bf16 %v4550, %v4549
      %v4580 = vpack.c.bf16 %v4552, %v4551
      %v4581 = vpack.c.bf16 %v4554, %v4553
      %v4582 = vpack.c.bf16 %v4556, %v4555
      %v4583 = vpack.c.bf16 %v4558, %v4557
      %v4584 = vpack.c.bf16 %v4560, %v4559
      %v4585 = vpack.c.bf16 %v4562, %v4561
      %v4586 = vpack.c.bf16 %v4564, %v4563
      %v4587 = vpack.c.bf16 %v4566, %v4565
      %v4588 = vpack.c.bf16 %v4568, %v4567
      %v4589 = vpack.c.bf16 %v4570, %v4569
      %v4590 = vpack.c.bf16 %v4572, %v4571
      %v4591 = vpack.c.bf16 %v4574, %v4573
      %v4592 = vpack.c.bf16 %v4576, %v4575
      %s4593 = scalar_lea.vmem %s1, 30
      %v4594 = vld [vmem:[%s4593] sm:$0x3]
      %v4596 = vsel %vm271, %v4577, 0
      %v4599 = vsel %vm271, %v4578, 0
      %v4602 = vsel %vm271, %v4579, 0
      %v4605 = vsel %vm271, %v4580, 0
      %v4608 = vsel %vm271, %v4581, 0
      %v4611 = vsel %vm271, %v4582, 0
      %v4614 = vsel %vm271, %v4583, 0
      %v4617 = vsel %vm271, %v4584, 0
      %v4620 = vsel %vm271, %v4585, 0
      %v4623 = vsel %vm271, %v4586, 0
      %v4626 = vsel %vm271, %v4587, 0
      %v4629 = vsel %vm271, %v4588, 0
      %v4632 = vsel %vm271, %v4589, 0
      %v4635 = vsel %vm271, %v4590, 0
      %v4638 = vsel %vm271, %v4591, 0
      %v4641 = vsel %vm271, %v4592, 0
      %v4644 = vsel %vm320, %v4594, 0
      %4646 = vmatprep.subr.bf16.mxu0 0
      %4647 = vmatpush1.bf16.msra.mxu0 0
      %4648 = vmatprep.subr.bf16.mxu0 0
      %4649 = vmatpush1.bf16.msra.mxu0 0
      %4650 = vmatprep.subr.bf16.mxu0 0
      %4651 = vmatpush1.bf16.msra.mxu0 0
      %4652 = vmatprep.subr.bf16.mxu0 0
      %4653 = vmatpush1.bf16.msra.mxu0 0
      %4654 = vmatprep.subr.bf16.mxu0 0
      %4655 = vmatpush1.bf16.msra.mxu0 0
      %4656 = vmatprep.subr.bf16.mxu0 0
      %4657 = vmatpush1.bf16.msra.mxu0 0
      %4658 = vmatprep.subr.bf16.mxu0 0
      %4659 = vmatpush1.bf16.msra.mxu0 0
      %4660 = vmatprep.subr.bf16.mxu0 0
      %4661 = vmatpush1.bf16.msra.mxu0 %v4644
      %4662 = vmatprep.subr.bf16.mxu0 0
      %4663 = vmatpush2.bf16.msra.mxu0 0
      %4664 = vmatprep.subr.bf16.mxu0 0
      %4665 = vmatpush2.bf16.msra.mxu0 0
      %4666 = vmatprep.subr.bf16.mxu0 0
      %4667 = vmatpush2.bf16.msra.mxu0 0
      %4668 = vmatprep.subr.bf16.mxu0 0
      %4669 = vmatpush2.bf16.msra.mxu0 0
      %4670 = vmatprep.subr.bf16.mxu0 0
      %4671 = vmatpush2.bf16.msra.mxu0 0
      %4672 = vmatprep.subr.bf16.mxu0 0
      %4673 = vmatpush2.bf16.msra.mxu0 0
      %4674 = vmatprep.subr.bf16.mxu0 0
      %4675 = vmatpush2.bf16.msra.mxu0 0
      %4676 = vmatprep.subr.bf16.mxu0 0
      %4677 = vmatpush2.bf16.msra.mxu0 0
      %4678 = vmatprep.mubr.bf16.mxu0 0
      %4679 = vmatmul.mubr.bf16.gmra.mxu0 %v4596
      %v4680 = vpop.f32.mrf.mxu0
      %v4681 = vadd.f32 0.0, %v4680
      %v4682 = vpop.f32.mrf.mxu0
      %v4683 = vpop.f32.mrf.mxu0
      %v4684 = vadd.f32 0.0, %v4683
      %v4685 = vpop.f32.mrf.mxu0
      %4686 = vmatprep.mubr.bf16.mxu0 0
      %4687 = vmatmul.mubr.bf16.gmra.mxu0 %v4599
      %v4688 = vpop.f32.mrf.mxu0
      %v4689 = vadd.f32 0.0, %v4688
      %v4690 = vpop.f32.mrf.mxu0
      %v4691 = vpop.f32.mrf.mxu0
      %v4692 = vadd.f32 0.0, %v4691
      %v4693 = vpop.f32.mrf.mxu0
      %4694 = vmatprep.mubr.bf16.mxu0 0
      %4695 = vmatmul.mubr.bf16.gmra.mxu0 %v4602
      %v4696 = vpop.f32.mrf.mxu0
      %v4697 = vadd.f32 0.0, %v4696
      %v4698 = vpop.f32.mrf.mxu0
      %v4699 = vpop.f32.mrf.mxu0
      %v4700 = vadd.f32 0.0, %v4699
      %v4701 = vpop.f32.mrf.mxu0
      %4702 = vmatprep.mubr.bf16.mxu0 0
      %4703 = vmatmul.mubr.bf16.gmra.mxu0 %v4605
      %v4704 = vpop.f32.mrf.mxu0
      %v4705 = vadd.f32 0.0, %v4704
      %v4706 = vpop.f32.mrf.mxu0
      %v4707 = vpop.f32.mrf.mxu0
      %v4708 = vadd.f32 0.0, %v4707
      %v4709 = vpop.f32.mrf.mxu0
      %4710 = vmatprep.mubr.bf16.mxu0 0
      %4711 = vmatmul.mubr.bf16.gmra.mxu0 %v4608
      %v4712 = vpop.f32.mrf.mxu0
      %v4713 = vadd.f32 0.0, %v4712
      %v4714 = vpop.f32.mrf.mxu0
      %v4715 = vpop.f32.mrf.mxu0
      %v4716 = vadd.f32 0.0, %v4715
      %v4717 = vpop.f32.mrf.mxu0
      %4718 = vmatprep.mubr.bf16.mxu0 0
      %4719 = vmatmul.mubr.bf16.gmra.mxu0 %v4611
      %v4720 = vpop.f32.mrf.mxu0
      %v4721 = vadd.f32 0.0, %v4720
      %v4722 = vpop.f32.mrf.mxu0
      %v4723 = vpop.f32.mrf.mxu0
      %v4724 = vadd.f32 0.0, %v4723
      %v4725 = vpop.f32.mrf.mxu0
      %4726 = vmatprep.mubr.bf16.mxu0 0
      %4727 = vmatmul.mubr.bf16.gmra.mxu0 %v4614
      %v4728 = vpop.f32.mrf.mxu0
      %v4729 = vadd.f32 0.0, %v4728
      %v4730 = vpop.f32.mrf.mxu0
      %v4731 = vpop.f32.mrf.mxu0
      %v4732 = vadd.f32 0.0, %v4731
      %v4733 = vpop.f32.mrf.mxu0
      %4734 = vmatprep.mubr.bf16.mxu0 0
      %4735 = vmatmul.mubr.bf16.gmra.mxu0 %v4617
      %v4736 = vpop.f32.mrf.mxu0
      %v4737 = vadd.f32 0.0, %v4736
      %v4738 = vpop.f32.mrf.mxu0
      %v4739 = vpop.f32.mrf.mxu0
      %v4740 = vadd.f32 0.0, %v4739
      %v4741 = vpop.f32.mrf.mxu0
      %4742 = vmatprep.mubr.bf16.mxu0 0
      %4743 = vmatmul.mubr.bf16.gmra.mxu0 %v4620
      %v4744 = vpop.f32.mrf.mxu0
      %v4745 = vadd.f32 0.0, %v4744
      %v4746 = vpop.f32.mrf.mxu0
      %v4747 = vpop.f32.mrf.mxu0
      %v4748 = vadd.f32 0.0, %v4747
      %v4749 = vpop.f32.mrf.mxu0
      %4750 = vmatprep.mubr.bf16.mxu0 0
      %4751 = vmatmul.mubr.bf16.gmra.mxu0 %v4623
      %v4752 = vpop.f32.mrf.mxu0
      %v4753 = vadd.f32 0.0, %v4752
      %v4754 = vpop.f32.mrf.mxu0
      %v4755 = vpop.f32.mrf.mxu0
      %v4756 = vadd.f32 0.0, %v4755
      %v4757 = vpop.f32.mrf.mxu0
      %4758 = vmatprep.mubr.bf16.mxu0 0
      %4759 = vmatmul.mubr.bf16.gmra.mxu0 %v4626
      %v4760 = vpop.f32.mrf.mxu0
      %v4761 = vadd.f32 0.0, %v4760
      %v4762 = vpop.f32.mrf.mxu0
      %v4763 = vpop.f32.mrf.mxu0
      %v4764 = vadd.f32 0.0, %v4763
      %v4765 = vpop.f32.mrf.mxu0
      %4766 = vmatprep.mubr.bf16.mxu0 0
      %4767 = vmatmul.mubr.bf16.gmra.mxu0 %v4629
      %v4768 = vpop.f32.mrf.mxu0
      %v4769 = vadd.f32 0.0, %v4768
      %v4770 = vpop.f32.mrf.mxu0
      %v4771 = vpop.f32.mrf.mxu0
      %v4772 = vadd.f32 0.0, %v4771
      %v4773 = vpop.f32.mrf.mxu0
      %4774 = vmatprep.mubr.bf16.mxu0 0
      %4775 = vmatmul.mubr.bf16.gmra.mxu0 %v4632
      %v4776 = vpop.f32.mrf.mxu0
      %v4777 = vadd.f32 0.0, %v4776
      %v4778 = vpop.f32.mrf.mxu0
      %v4779 = vpop.f32.mrf.mxu0
      %v4780 = vadd.f32 0.0, %v4779
      %v4781 = vpop.f32.mrf.mxu0
      %4782 = vmatprep.mubr.bf16.mxu0 0
      %4783 = vmatmul.mubr.bf16.gmra.mxu0 %v4635
      %v4784 = vpop.f32.mrf.mxu0
      %v4785 = vadd.f32 0.0, %v4784
      %v4786 = vpop.f32.mrf.mxu0
      %v4787 = vpop.f32.mrf.mxu0
      %v4788 = vadd.f32 0.0, %v4787
      %v4789 = vpop.f32.mrf.mxu0
      %4790 = vmatprep.mubr.bf16.mxu0 0
      %4791 = vmatmul.mubr.bf16.gmra.mxu0 %v4638
      %v4792 = vpop.f32.mrf.mxu0
      %v4793 = vadd.f32 0.0, %v4792
      %v4794 = vpop.f32.mrf.mxu0
      %v4795 = vpop.f32.mrf.mxu0
      %v4796 = vadd.f32 0.0, %v4795
      %v4797 = vpop.f32.mrf.mxu0
      %4798 = vmatprep.mubr.bf16.mxu0 0
      %4799 = vmatmul.mubr.bf16.gmra.mxu0 %v4641
      %v4800 = vpop.f32.mrf.mxu0
      %v4801 = vadd.f32 0.0, %v4800
      %v4802 = vpop.f32.mrf.mxu0
      %v4803 = vpop.f32.mrf.mxu0
      %v4804 = vadd.f32 0.0, %v4803
      %v4805 = vpop.f32.mrf.mxu0
      %4806 = vdwg.mxu0
      %v4807 = vadd.f32 %v4513, %v4681
      %v4808 = vadd.f32 %v4514, %v4684
      %v4809 = vadd.f32 %v4515, %v4689
      %v4810 = vadd.f32 %v4516, %v4692
      %v4811 = vadd.f32 %v4517, %v4697
      %v4812 = vadd.f32 %v4518, %v4700
      %v4813 = vadd.f32 %v4519, %v4705
      %v4814 = vadd.f32 %v4520, %v4708
      %v4815 = vadd.f32 %v4521, %v4713
      %v4816 = vadd.f32 %v4522, %v4716
      %v4817 = vadd.f32 %v4523, %v4721
      %v4818 = vadd.f32 %v4524, %v4724
      %v4819 = vadd.f32 %v4525, %v4729
      %v4820 = vadd.f32 %v4526, %v4732
      %v4821 = vadd.f32 %v4527, %v4737
      %v4822 = vadd.f32 %v4528, %v4740
      %v4823 = vadd.f32 %v4529, %v4745
      %v4824 = vadd.f32 %v4530, %v4748
      %v4825 = vadd.f32 %v4531, %v4753
      %v4826 = vadd.f32 %v4532, %v4756
      %v4827 = vadd.f32 %v4533, %v4761
      %v4828 = vadd.f32 %v4534, %v4764
      %v4829 = vadd.f32 %v4535, %v4769
      %v4830 = vadd.f32 %v4536, %v4772
      %v4831 = vadd.f32 %v4537, %v4777
      %v4832 = vadd.f32 %v4538, %v4780
      %v4833 = vadd.f32 %v4539, %v4785
      %v4834 = vadd.f32 %v4540, %v4788
      %v4835 = vadd.f32 %v4541, %v4793
      %v4836 = vadd.f32 %v4542, %v4796
      %v4837 = vadd.f32 %v4543, %v4801
      %v4838 = vadd.f32 %v4544, %v4804
      %v4839 = vld [vmem:[%s2] sm:$0x1]
      %v4841 = vlaneseq
      %v4842 = vshrl.u32 %v4841, 7
      %v4843 = vsub.s32 0, %v4842
      %v4844 = vrot.slane %v4839, %v4843
      %v4846 = vadd.f32 %v4807, %v4844
      %v4847 = vadd.f32 %v4808, %v4844
      %v4848 = vadd.f32 %v4809, %v4844
      %v4849 = vadd.f32 %v4810, %v4844
      %v4850 = vadd.f32 %v4811, %v4844
      %v4851 = vadd.f32 %v4812, %v4844
      %v4852 = vadd.f32 %v4813, %v4844
      %v4853 = vadd.f32 %v4814, %v4844
      %v4854 = vadd.f32 %v4815, %v4844
      %v4855 = vadd.f32 %v4816, %v4844
      %v4856 = vadd.f32 %v4817, %v4844
      %v4857 = vadd.f32 %v4818, %v4844
      %v4858 = vadd.f32 %v4819, %v4844
      %v4859 = vadd.f32 %v4820, %v4844
      %v4860 = vadd.f32 %v4821, %v4844
      %v4861 = vadd.f32 %v4822, %v4844
      %v4862 = vadd.f32 %v4823, %v4844
      %v4863 = vadd.f32 %v4824, %v4844
      %v4864 = vadd.f32 %v4825, %v4844
      %v4865 = vadd.f32 %v4826, %v4844
      %v4866 = vadd.f32 %v4827, %v4844
      %v4867 = vadd.f32 %v4828, %v4844
      %v4868 = vadd.f32 %v4829, %v4844
      %v4869 = vadd.f32 %v4830, %v4844
      %v4870 = vadd.f32 %v4831, %v4844
      %v4871 = vadd.f32 %v4832, %v4844
      %v4872 = vadd.f32 %v4833, %v4844
      %v4873 = vadd.f32 %v4834, %v4844
      %v4874 = vadd.f32 %v4835, %v4844
      %v4875 = vadd.f32 %v4836, %v4844
      %v4876 = vadd.f32 %v4837, %v4844
      %v4877 = vadd.f32 %v4838, %v4844
      %s4878 = scalar_lea.vmem %s170, 768
      %4879 = vst.msk [vmem:[%s4878] sm:$0xff] %vm1325, %v4846
      %4880 = vst.msk [vmem:[%s4878 + $0x8] sm:$0xff] %vm1325, %v4847
      %4881 = vst.msk [vmem:[%s4878 + $0x10] sm:$0xff] %vm1325, %v4848
      %4882 = vst.msk [vmem:[%s4878 + $0x18] sm:$0xff] %vm1325, %v4849
      %4883 = vst.msk [vmem:[%s4878 + $0x20] sm:$0xff] %vm1325, %v4850
      %4884 = vst.msk [vmem:[%s4878 + $0x28] sm:$0xff] %vm1325, %v4851
      %4885 = vst.msk [vmem:[%s4878 + $0x30] sm:$0xff] %vm1325, %v4852
      %4886 = vst.msk [vmem:[%s4878 + $0x38] sm:$0xff] %vm1325, %v4853
      %4887 = vst.msk [vmem:[%s4878 + $0x40] sm:$0xff] %vm1325, %v4854
      %4888 = vst.msk [vmem:[%s4878 + $0x48] sm:$0xff] %vm1325, %v4855
      %4889 = vst.msk [vmem:[%s4878 + $0x50] sm:$0xff] %vm1325, %v4856
      %4890 = vst.msk [vmem:[%s4878 + $0x58] sm:$0xff] %vm1325, %v4857
      %4891 = vst.msk [vmem:[%s4878 + $0x60] sm:$0xff] %vm1325, %v4858
      %4892 = vst.msk [vmem:[%s4878 + $0x68] sm:$0xff] %vm1325, %v4859
      %4893 = vst.msk [vmem:[%s4878 + $0x70] sm:$0xff] %vm1325, %v4860
      %4894 = vst.msk [vmem:[%s4878 + $0x78] sm:$0xff] %vm1325, %v4861
      %4895 = vst.msk [vmem:[%s4878 + $0x80] sm:$0xff] %vm1325, %v4862
      %4896 = vst.msk [vmem:[%s4878 + $0x88] sm:$0xff] %vm1325, %v4863
      %4897 = vst.msk [vmem:[%s4878 + $0x90] sm:$0xff] %vm1325, %v4864
      %4898 = vst.msk [vmem:[%s4878 + $0x98] sm:$0xff] %vm1325, %v4865
      %4899 = vst.msk [vmem:[%s4878 + $0xa0] sm:$0xff] %vm1325, %v4866
      %4900 = vst.msk [vmem:[%s4878 + $0xa8] sm:$0xff] %vm1325, %v4867
      %4901 = vst.msk [vmem:[%s4878 + $0xb0] sm:$0xff] %vm1325, %v4868
      %4902 = vst.msk [vmem:[%s4878 + $0xb8] sm:$0xff] %vm1325, %v4869
      %4903 = vst.msk [vmem:[%s4878 + $0xc0] sm:$0xff] %vm1325, %v4870
      %4904 = vst.msk [vmem:[%s4878 + $0xc8] sm:$0xff] %vm1325, %v4871
      %4905 = vst.msk [vmem:[%s4878 + $0xd0] sm:$0xff] %vm1325, %v4872
      %4906 = vst.msk [vmem:[%s4878 + $0xd8] sm:$0xff] %vm1325, %v4873
      %4907 = vst.msk [vmem:[%s4878 + $0xe0] sm:$0xff] %vm1325, %v4874
      %4908 = vst.msk [vmem:[%s4878 + $0xe8] sm:$0xff] %vm1325, %v4875
      %4909 = vst.msk [vmem:[%s4878 + $0xf0] sm:$0xff] %vm1325, %v4876
      %4910 = vst.msk [vmem:[%s4878 + $0xf8] sm:$0xff] %vm1325, %v4877
      %p4911 = scmp.lt.s32.totalorder %s14, 1
      %s4912 = scalar_select %p4911, %s14, 1
      %s4913 = smul.addr %s4912, 128
      %s4914 = smul.addr %s4913, 8
      %s4915 = scalar_lea.vmem %s3, %s4914
      // Predicated region
      $region33: #{decoder_forward.9} parent=31 // pred_check
        %p4916 = pneg %p100
      $region34: #{decoder_forward.9} parent=31 // pred_check_branch
        %4918 = sbr.rel (%p4916) target = $region36
      $region35: #{decoder_forward.9} parent=31 // pred_region
        _
      $region36: #{decoder_forward.9} parent=31 // pred_fallthru
        _
    $region32: #{decoder_forward.9} parent=5 // pred_fallthru
      _
    %p4919 = scmp.le.s32.totalorder 2, %s9
    // Predicated region
    $region37: #{decoder_forward.9} parent=5 // pred_check
      %p4920 = pneg %p4919
    $region38: #{decoder_forward.9} parent=5 // pred_check_branch
      %4922 = sbr.rel (%p4920) target = $region40
    $region39: #{decoder_forward.9} parent=5 // pred_region
      %s4923 = ssub.s32 %s9, 2
      // Predicated region
      $region41: #{decoder_forward.9} parent=39 // pred_check
        %p4924 = pneg %p106
      $region42: #{decoder_forward.9} parent=39 // pred_check_branch
        %4926 = sbr.rel (%p4924) target = $region44
      $region43: #{decoder_forward.9} parent=39 // pred_region
        %p4927 = scmp.lt.s32.totalorder %s15, 1
        %s4928 = scalar_select %p4927, %s15, 1
        %s4929 = smul.addr %s4928, 128
        %s4930 = smul.addr %s4929, 8
        %s4931 = scalar_lea.vmem %s3, %s4930
      $region44: #{decoder_forward.9} parent=39 // pred_fallthru
        _
    $region40: #{decoder_forward.9} parent=5 // pred_fallthru
      _
  $region6: #{decoder_forward.9} parent=0 // loop_footer
    %s13 = sadd.s32 1, %s9
  $region7: #{decoder_forward.9} parent=0 // loop_footer_branch
    %8 = sbr.rel target = $region3
  $region8: #{decoder_forward.9} parent=0 // loop_exit
    _

</llo_original>
